<compile_context>
chip_gen: v5e
topology: v5e:2x2
jax: 0.10.0
libtpu: 0.0.40
codegen_flags: <defaults>
</compile_context>

<pallas_src>
import jax
import jax.numpy as jnp
from jax.experimental import pallas as pl
from jax.experimental.pallas import tpu as pltpu

N_CLASS = 40        # the hard-coded .repeat(1, 1, 40) in UniModel.forward => 40 classes
C_PAD = 128         # class head padded to a full 128-lane vreg (sliced back outside)
N_VIEW = 20
FT_DIM = 256        # per-modality fusion feature dim
GFT_DIM = 128       # per-modality global feature dim
VOX_TOK = 4         # token axis of the voxel feature (max-pooled in the forward)
FT_OUT = 3 * GFT_DIM + 2 * FT_DIM   # 896 = concat(gft_img, gft_pt, gft_mesh, gft_vox, fts)


# ----------------------------------------------------------------------------
# Packed-slab layouts (shared by init_params and the wrapper so offsets match)
# ----------------------------------------------------------------------------
def _w256_sizes(img_dim, pt_dim, m1_dim, m2_dim):
    # all weights with 256 output columns, stacked along rows (bf16 slab)
    return [("img_enc", img_dim), ("pt_enc", pt_dim), ("m1_enc", m1_dim),
            ("m2_enc", m2_dim), ("img_gc", FT_DIM), ("pt_gc", FT_DIM),
            ("mesh_gc", FT_DIM), ("fuse_w1", 2 * FT_DIM)]


def _bias_sizes():
    # all biases concatenated along lanes into one f32 [1, 3072] slab
    return [("img_enc", FT_DIM), ("pt_enc", FT_DIM), ("mesh_enc", FT_DIM),
            ("img_gc", GFT_DIM + C_PAD), ("pt_gc", GFT_DIM + C_PAD),
            ("mesh_gc", GFT_DIM + C_PAD), ("vox_enc", VOX_TOK * FT_DIM),
            ("vox_cls", C_PAD), ("fuse_b1", FT_DIM), ("fuse_b2", C_PAD)]


def _layout(sizes):
    off, cur = {}, 0
    for name, n in sizes:
        off[name] = (cur, n)
        cur += n
    return off, cur


# ----------------------------------------------------------------------------
# Wrapper: one pallas_call for the whole forward
# ----------------------------------------------------------------------------
def uni_forward(params, img, pt, mesh1, mesh2, vox, label_rand=None):
    # TODO(synk): label_rand mixing inside FusionNet has no reference impl; ignored.
    # TODO(synk): global_ft=True branch not implemented (same kernel, different epilogue).
    del label_rand
    B = img.shape[0]
    inputs = [img.reshape(B, -1), pt.reshape(B, -1),
              mesh1.reshape(B, -1), mesh2.reshape(B, -1), vox.reshape(B, -1)]
    img_dim, pt_dim, m1_dim, m2_dim, vox_dim = (a.shape[1] for a in inputs)

    w_off, w_rows = _layout(_w256_sizes(img_dim, pt_dim, m1_dim, m2_dim))
    b_off, b_lanes = _layout(_bias_sizes())
    assert params["w256"].shape == (w_rows, FT_DIM)
    assert params["bias"].shape == (1, b_lanes)
    assert params["wvox"].shape == (vox_dim, VOX_TOK * FT_DIM)
    assert params["w128"].shape == (2 * FT_DIM, C_PAD)

    def kernel(img_ref, pt_ref, m1_ref, m2_ref, vox_ref,
               w256_ref, wvox_ref, w128_ref, bias_ref,
               out_ref, ft_ref):
        bf16, f32 = jnp.bfloat16, jnp.float32

        def w(name):                       # static sublane-aligned slab slice (bf16)
            r0, k = w_off[name]
            return w256_ref[r0:r0 + k, :]

        def bias(name):                    # static lane-aligned bias slice (f32)
            c0, n = b_off[name]
            return bias_ref[:, c0:c0 + n]

        def mm(a_bf16, wmat):              # bf16 x bf16 MXU matmul, f32 accumulate
            return jnp.dot(a_bf16, wmat, preferred_element_type=f32)

        # inputs cast to bf16 exactly once
        x_img = img_ref[...].astype(bf16)
        x_pt = pt_ref[...].astype(bf16)
        x_m1 = m1_ref[...].astype(bf16)
        x_m2 = m2_ref[...].astype(bf16)
        x_vox = vox_ref[...].astype(bf16)

        # ---- per-modality encoders: enc dot + fused (gft | cls) head dot -----
        ft_img = jnp.maximum(mm(x_img, w("img_enc")) + bias("img_enc"), 0.0).astype(bf16)
        gc_img = mm(ft_img, w("img_gc")) + bias("img_gc")        # [B, 256]
        gft_img, logit_img = gc_img[:, :GFT_DIM], gc_img[:, GFT_DIM:]

        ft_pt = jnp.maximum(mm(x_pt, w("pt_enc")) + bias("pt_enc"), 0.0).astype(bf16)
        gc_pt = mm(ft_pt, w("pt_gc")) + bias("pt_gc")
        gft_pt, logit_pt = gc_pt[:, :GFT_DIM], gc_pt[:, GFT_DIM:]

        ft_mesh = jnp.maximum(mm(x_m1, w("m1_enc")) + mm(x_m2, w("m2_enc"))
                              + bias("mesh_enc"), 0.0).astype(bf16)
        gc_mesh = mm(ft_mesh, w("mesh_gc")) + bias("mesh_gc")
        gft_mesh, logit_mesh = gc_mesh[:, :GFT_DIM], gc_mesh[:, GFT_DIM:]

        # vox: encoder -> max over VOX_TOK contiguous 256-lane slices -> cls head
        hv = jnp.maximum(mm(x_vox, wvox_ref[...]) + bias("vox_enc"), 0.0)   # [B, 1024]
        gft_vox_f = jnp.maximum(
            jnp.maximum(hv[:, 0 * FT_DIM:1 * FT_DIM], hv[:, 1 * FT_DIM:2 * FT_DIM]),
            jnp.maximum(hv[:, 2 * FT_DIM:3 * FT_DIM], hv[:, 3 * FT_DIM:4 * FT_DIM]))
        gft_vox = gft_vox_f.astype(bf16)
        w_vox_cls = w128_ref[0:FT_DIM, :]
        w_f2 = w128_ref[FT_DIM:2 * FT_DIM, :]
        logit_vox = mm(gft_vox, w_vox_cls) + bias("vox_cls")

        # ---- shared FusionNet: two independent calls batched into one dot ----
        w_f1 = w("fuse_w1")                 # [512, 256] = vstack(w1a, w1b)
        b_f1 = bias("fuse_b1")
        b_f2 = bias("fuse_b2")

        fa = jnp.concatenate([ft_img, ft_mesh], axis=0)        # [2B, 256]
        fb = jnp.concatenate([ft_pt, gft_vox], axis=0)         # [2B, 256]
        fab = jnp.concatenate([fa, fb], axis=1)                 # [2B, 512]
        h12 = jnp.maximum(mm(fab, w_f1) + b_f1, 0.0)            # [2B, 256] f32
        h12_b = h12.astype(bf16)
        logit12 = mm(h12_b, w_f2) + b_f2                        # [2B, 128]
        ft_ip, ft_mv = h12_b[:B], h12_b[B:]
        logit_ip, logit_mv = logit12[:B], logit12[B:]

        # third fusion on the two fused features
        fab3 = jnp.concatenate([ft_ip, ft_mv], axis=1)          # [B, 512]
        fts_f = jnp.maximum(mm(fab3, w_f1) + b_f1, 0.0)          # [B, 256] f32
        logit_f = mm(fts_f.astype(bf16), w_f2) + b_f2

        # ---- global feature concat (lane-aligned static writes) --------------
        ft_ref[:, 0 * GFT_DIM:1 * GFT_DIM] = gft_img
        ft_ref[:, 1 * GFT_DIM:2 * GFT_DIM] = gft_pt
        ft_ref[:, 2 * GFT_DIM:3 * GFT_DIM] = gft_mesh
        ft_ref[:, 3 * GFT_DIM:3 * GFT_DIM + FT_DIM] = gft_vox_f
        ft_ref[:, 3 * GFT_DIM + FT_DIM:3 * GFT_DIM + 2 * FT_DIM] = fts_f

        # ---- stacked min/max normalization of all 7 heads in one pass --------
        logits_all = jnp.concatenate(
            [logit_img, logit_pt, logit_mesh, logit_vox,
             logit_ip, logit_mv, logit_f], axis=0)               # [7B, 128]
        lane = jax.lax.broadcasted_iota(jnp.int32, logits_all.shape, 1)
        valid = lane < N_CLASS
        mn = jnp.min(jnp.where(valid, logits_all, jnp.inf), axis=-1, keepdims=True)
        shifted = logits_all - mn + 0.01
        mx = jnp.max(jnp.where(valid, shifted, -jnp.inf), axis=-1, keepdims=True)
        out_ref[...] = shifted / mx        # exact divide -> row max == 1.0

    args = inputs + [params["w256"], params["wvox"], params["w128"], params["bias"]]

    def full_spec(a):
        nd = a.ndim
        return pl.BlockSpec(a.shape, lambda i, _nd=nd: (0,) * _nd)

    out_pad, ft = pl.pallas_call(
        kernel,
        out_shape=(jax.ShapeDtypeStruct((7 * B, C_PAD), jnp.float32),
                   jax.ShapeDtypeStruct((B, FT_OUT), jnp.float32)),
        grid=(1,),
        in_specs=[full_spec(a) for a in args],
        out_specs=(pl.BlockSpec((7 * B, C_PAD), lambda i: (0, 0)),
                   pl.BlockSpec((B, FT_OUT), lambda i: (0, 0))),
        compiler_params=pltpu.CompilerParams(
            dimension_semantics=("arbitrary",),
            vmem_limit_bytes=24 * 1024 * 1024),
    )(*args)

    out_n = out_pad.reshape(7, B, C_PAD)[:, :, :N_CLASS]   # drop lane padding
    return out_n[:, :, None, :], ft                         # unsqueeze(2)


# ----------------------------------------------------------------------------
# Deterministic parameter init (bf16 weights packed into slabs, f32 bias slab)
# ----------------------------------------------------------------------------
def init_params(key, img_dim, pt_dim, mesh1_dim, mesh2_dim, vox_dim):
    # TODO(synk): original TA34/MeshNet/PointNet++/VoxNet/FusionNet weights are
    # unavailable; deterministic linear stand-ins are used.
    keys = jax.random.split(key, 15)

    def linear(k, kin, kout, scale=0.02):
        kw, kb = jax.random.split(k)
        w = (scale * jax.random.normal(kw, (kin, kout), jnp.float32)).astype(jnp.bfloat16)
        b = scale * jax.random.normal(kb, (1, kout), jnp.float32)
        return w, b

    def cls_head(k, kin):
        w, b = linear(k, kin, N_CLASS)
        w_pad = jnp.zeros((kin, C_PAD), jnp.bfloat16).at[:, :N_CLASS].set(w)
        b_pad = jnp.zeros((1, C_PAD), jnp.float32).at[:, :N_CLASS].set(b)
        return w_pad, b_pad

    # TA34 / PointNet++ stand-ins
    w_img_e, b_img_e = linear(keys[0], img_dim, FT_DIM)
    w_img_g, b_img_g = linear(keys[1], FT_DIM, GFT_DIM)
    w_img_c, b_img_c = cls_head(keys[2], FT_DIM)
    w_pt_e, b_pt_e = linear(keys[3], pt_dim, FT_DIM)
    w_pt_g, b_pt_g = linear(keys[4], FT_DIM, GFT_DIM)
    w_pt_c, b_pt_c = cls_head(keys[5], FT_DIM)
    # MeshNet stand-in: concat(mesh1, mesh2) folded into two split enc weights
    w_m1_e, b_m_e = linear(keys[6], mesh1_dim, FT_DIM)
    w_m2_e, _ = linear(keys[7], mesh2_dim, FT_DIM)
    w_m_g, b_m_g = linear(keys[8], FT_DIM, GFT_DIM)
    w_m_c, b_m_c = cls_head(keys[9], FT_DIM)
    # VoxNet stand-in: [B, VOX_TOK, FT_DIM] token feature
    w_v_e, b_v_e = linear(keys[10], vox_dim, VOX_TOK * FT_DIM)
    w_v_c, b_v_c = cls_head(keys[11], FT_DIM)
    # shared FusionNet stand-in (w1a | w1b folded into one [2*FT, FT] weight)
    w_f1a, b_f1 = linear(keys[12], FT_DIM, FT_DIM)
    w_f1b, _ = linear(keys[13], FT_DIM, FT_DIM)
    w_f2, b_f2 = cls_head(keys[14], FT_DIM)

    w_pieces = {
        "img_enc": w_img_e, "pt_enc": w_pt_e, "m1_enc": w_m1_e, "m2_enc": w_m2_e,
        "img_gc": jnp.concatenate([w_img_g, w_img_c], axis=1),
        "pt_gc": jnp.concatenate([w_pt_g, w_pt_c], axis=1),
        "mesh_gc": jnp.concatenate([w_m_g, w_m_c], axis=1),
        "fuse_w1": jnp.concatenate([w_f1a, w_f1b], axis=0),
    }
    b_pieces = {
        "img_enc": b_img_e, "pt_enc": b_pt_e, "mesh_enc": b_m_e,
        "img_gc": jnp.concatenate([b_img_g, b_img_c], axis=1),
        "pt_gc": jnp.concatenate([b_pt_g, b_pt_c], axis=1),
        "mesh_gc": jnp.concatenate([b_m_g, b_m_c], axis=1),
        "vox_enc": b_v_e, "vox_cls": b_v_c, "fuse_b1": b_f1, "fuse_b2": b_f2,
    }
    w256 = jnp.concatenate(
        [w_pieces[n] for n, _ in _w256_sizes(img_dim, pt_dim, mesh1_dim, mesh2_dim)],
        axis=0)                                                    # [*, 256] bf16
    bias = jnp.concatenate([b_pieces[n] for n, _ in _bias_sizes()], axis=1)  # [1, 3072] f32
    w128 = jnp.concatenate([w_v_c, w_f2], axis=0)                  # [512, 128] bf16
    return dict(w256=w256, wvox=w_v_e, w128=w128, bias=bias)


# ----------------------------------------------------------------------------
if __name__ == "__main__":
    B = 2
    key = jax.random.PRNGKey(0)
    k_img, k_pt, k_m1, k_m2, k_vox, k_params = jax.random.split(key, 6)

    img = jax.random.normal(k_img, (B, N_VIEW, 3, 8, 8), jnp.float32)   # [B, V, C, H, W]
    pt = jax.random.normal(k_pt, (B, 3, 256), jnp.float32)              # [B, 3, N]
    mesh1 = jax.random.normal(k_m1, (B, 3, 128), jnp.float32)           # [B, 3, F]
    mesh2 = jax.random.normal(k_m2, (B, 9, 128), jnp.float32)           # [B, 9, F]
    vox = jax.random.normal(k_vox, (B, 1, 8, 8, 8), jnp.float32)        # [B, 1, D, H, W]

    params = init_params(
        k_params,
        img_dim=N_VIEW * 3 * 8 * 8,
        pt_dim=3 * 256,
        mesh1_dim=3 * 128,
        mesh2_dim=9 * 128,
        vox_dim=1 * 8 * 8 * 8,
    )

    fwd = jax.jit(uni_forward)
    out_n, ft = fwd(params, img, pt, mesh1, mesh2, vox)
    jax.block_until_ready((out_n, ft))

    assert out_n.shape == (7, B, 1, N_CLASS), out_n.shape
    assert ft.shape == (B, FT_OUT), ft.shape
    assert bool(jnp.all(jnp.isfinite(out_n))) and bool(jnp.all(jnp.isfinite(ft)))
    # per the normalization: every row of out_n has max == 1.0 (exact divide)
    assert bool(jnp.allclose(jnp.max(out_n, axis=-1), 1.0, atol=1e-5))

    print("KERNEL_OK")
</pallas_src>

<mosaic_0001>
module attributes {stable_mosaic.version = 11 : i64} {
  func.func @kernel(%arg0: i32, %arg1: memref<2x3840xf32, #tpu.memory_space<vmem>>, %arg2: memref<2x768xf32, #tpu.memory_space<vmem>>, %arg3: memref<2x384xf32, #tpu.memory_space<vmem>>, %arg4: memref<2x1152xf32, #tpu.memory_space<vmem>>, %arg5: memref<2x512xf32, #tpu.memory_space<vmem>>, %arg6: memref<7424x256xbf16, #tpu.memory_space<vmem>>, %arg7: memref<512x1024xbf16, #tpu.memory_space<vmem>>, %arg8: memref<512x128xbf16, #tpu.memory_space<vmem>>, %arg9: memref<1x3072xf32, #tpu.memory_space<vmem>>, %arg10: memref<14x128xf32, #tpu.memory_space<vmem>>, %arg11: memref<2x896xf32, #tpu.memory_space<vmem>>) attributes {dimension_semantics = [#tpu.dimension_semantics<arbitrary>], iteration_bounds = array<i64: 1>, scalar_prefetch = 0 : i64, scratch_operands = 0 : i64, tpu.core_type = #tpu.core_type<tc>, window_params = [{pipeline_mode = #tpu.pipeline_mode<synchronous>, transform_indices = @transform_0, window_bounds = array<i64: 2, 3840>}, {pipeline_mode = #tpu.pipeline_mode<synchronous>, transform_indices = @transform_1, window_bounds = array<i64: 2, 768>}, {pipeline_mode = #tpu.pipeline_mode<synchronous>, transform_indices = @transform_2, window_bounds = array<i64: 2, 384>}, {pipeline_mode = #tpu.pipeline_mode<synchronous>, transform_indices = @transform_3, window_bounds = array<i64: 2, 1152>}, {pipeline_mode = #tpu.pipeline_mode<synchronous>, transform_indices = @transform_4, window_bounds = array<i64: 2, 512>}, {pipeline_mode = #tpu.pipeline_mode<synchronous>, transform_indices = @transform_5, window_bounds = array<i64: 7424, 256>}, {pipeline_mode = #tpu.pipeline_mode<synchronous>, transform_indices = @transform_6, window_bounds = array<i64: 512, 1024>}, {pipeline_mode = #tpu.pipeline_mode<synchronous>, transform_indices = @transform_7, window_bounds = array<i64: 512, 128>}, {pipeline_mode = #tpu.pipeline_mode<synchronous>, transform_indices = @transform_8, window_bounds = array<i64: 1, 3072>}, {pipeline_mode = #tpu.pipeline_mode<synchronous>, transform_indices = @transform_9, window_bounds = array<i64: 14, 128>}, {pipeline_mode = #tpu.pipeline_mode<synchronous>, transform_indices = @transform_10, window_bounds = array<i64: 2, 896>}]} {
    %c0 = arith.constant 0 : index
    %c0_0 = arith.constant 0 : index
    %0 = vector.load %arg1[%c0, %c0_0] : memref<2x3840xf32, #tpu.memory_space<vmem>>, vector<2x3840xf32>
    %1 = arith.truncf %0 : vector<2x3840xf32> to vector<2x3840xbf16>
    %c0_1 = arith.constant 0 : index
    %c0_2 = arith.constant 0 : index
    %2 = vector.load %arg2[%c0_1, %c0_2] : memref<2x768xf32, #tpu.memory_space<vmem>>, vector<2x768xf32>
    %3 = arith.truncf %2 : vector<2x768xf32> to vector<2x768xbf16>
    %c0_3 = arith.constant 0 : index
    %c0_4 = arith.constant 0 : index
    %4 = vector.load %arg3[%c0_3, %c0_4] : memref<2x384xf32, #tpu.memory_space<vmem>>, vector<2x384xf32>
    %5 = arith.truncf %4 : vector<2x384xf32> to vector<2x384xbf16>
    %c0_5 = arith.constant 0 : index
    %c0_6 = arith.constant 0 : index
    %6 = vector.load %arg4[%c0_5, %c0_6] : memref<2x1152xf32, #tpu.memory_space<vmem>>, vector<2x1152xf32>
    %7 = arith.truncf %6 : vector<2x1152xf32> to vector<2x1152xbf16>
    %c0_7 = arith.constant 0 : index
    %c0_8 = arith.constant 0 : index
    %8 = vector.load %arg5[%c0_7, %c0_8] : memref<2x512xf32, #tpu.memory_space<vmem>>, vector<2x512xf32>
    %9 = arith.truncf %8 : vector<2x512xf32> to vector<2x512xbf16>
    %c0_9 = arith.constant 0 : index
    %c0_10 = arith.constant 0 : index
    %10 = vector.load %arg6[%c0_9, %c0_10] : memref<7424x256xbf16, #tpu.memory_space<vmem>>, vector<3840x256xbf16>
    %cst = arith.constant dense<0.000000e+00> : vector<2x256xf32>
    %11 = tpu.matmul %1, %10, %cst {dimension_numbers = #tpu.dot_dimension_numbers<[1], [0], [0], [1], [0, 0, 1, 1], [], []>} : vector<2x3840xbf16>, vector<3840x256xbf16>, vector<2x256xf32> -> vector<2x256xf32>
    %c0_11 = arith.constant 0 : index
    %c0_12 = arith.constant 0 : index
    %12 = vector.load %arg9[%c0_11, %c0_12] : memref<1x3072xf32, #tpu.memory_space<vmem>>, vector<1x256xf32>
    %13 = vector.broadcast %12 : vector<1x256xf32> to vector<2x256xf32>
    %14 = arith.addf %11, %13 : vector<2x256xf32>
    %cst_13 = arith.constant 0.000000e+00 : f32
    %15 = vector.broadcast %cst_13 : f32 to vector<2x256xf32>
    %16 = arith.maximumf %14, %15 : vector<2x256xf32>
    %17 = arith.truncf %16 : vector<2x256xf32> to vector<2x256xbf16>
    %c6144 = arith.constant 6144 : index
    %c0_14 = arith.constant 0 : index
    %18 = vector.load %arg6[%c6144, %c0_14] : memref<7424x256xbf16, #tpu.memory_space<vmem>>, vector<256x256xbf16>
    %cst_15 = arith.constant dense<0.000000e+00> : vector<2x256xf32>
    %19 = tpu.matmul %17, %18, %cst_15 {dimension_numbers = #tpu.dot_dimension_numbers<[1], [0], [0], [1], [0, 0, 1, 1], [], []>} : vector<2x256xbf16>, vector<256x256xbf16>, vector<2x256xf32> -> vector<2x256xf32>
    %c0_16 = arith.constant 0 : index
    %c768 = arith.constant 768 : index
    %20 = vector.load %arg9[%c0_16, %c768] : memref<1x3072xf32, #tpu.memory_space<vmem>>, vector<1x256xf32>
    %21 = vector.broadcast %20 : vector<1x256xf32> to vector<2x256xf32>
    %22 = arith.addf %19, %21 : vector<2x256xf32>
    %23 = vector.extract_strided_slice %22 {offsets = [0, 0], sizes = [2, 128], strides = [1, 1]} : vector<2x256xf32> to vector<2x128xf32>
    %24 = vector.extract_strided_slice %22 {offsets = [0, 128], sizes = [2, 128], strides = [1, 1]} : vector<2x256xf32> to vector<2x128xf32>
    %c3840 = arith.constant 3840 : index
    %c0_17 = arith.constant 0 : index
    %25 = vector.load %arg6[%c3840, %c0_17] : memref<7424x256xbf16, #tpu.memory_space<vmem>>, vector<768x256xbf16>
    %cst_18 = arith.constant dense<0.000000e+00> : vector<2x256xf32>
    %26 = tpu.matmul %3, %25, %cst_18 {dimension_numbers = #tpu.dot_dimension_numbers<[1], [0], [0], [1], [0, 0, 1, 1], [], []>} : vector<2x768xbf16>, vector<768x256xbf16>, vector<2x256xf32> -> vector<2x256xf32>
    %c0_19 = arith.constant 0 : index
    %c256 = arith.constant 256 : index
    %27 = vector.load %arg9[%c0_19, %c256] : memref<1x3072xf32, #tpu.memory_space<vmem>>, vector<1x256xf32>
    %28 = vector.broadcast %27 : vector<1x256xf32> to vector<2x256xf32>
    %29 = arith.addf %26, %28 : vector<2x256xf32>
    %cst_20 = arith.constant 0.000000e+00 : f32
    %30 = vector.broadcast %cst_20 : f32 to vector<2x256xf32>
    %31 = arith.maximumf %29, %30 : vector<2x256xf32>
    %32 = arith.truncf %31 : vector<2x256xf32> to vector<2x256xbf16>
    %c6400 = arith.constant 6400 : index
    %c0_21 = arith.constant 0 : index
    %33 = vector.load %arg6[%c6400, %c0_21] : memref<7424x256xbf16, #tpu.memory_space<vmem>>, vector<256x256xbf16>
    %cst_22 = arith.constant dense<0.000000e+00> : vector<2x256xf32>
    %34 = tpu.matmul %32, %33, %cst_22 {dimension_numbers = #tpu.dot_dimension_numbers<[1], [0], [0], [1], [0, 0, 1, 1], [], []>} : vector<2x256xbf16>, vector<256x256xbf16>, vector<2x256xf32> -> vector<2x256xf32>
    %c0_23 = arith.constant 0 : index
    %c1024 = arith.constant 1024 : index
    %35 = vector.load %arg9[%c0_23, %c1024] : memref<1x3072xf32, #tpu.memory_space<vmem>>, vector<1x256xf32>
    %36 = vector.broadcast %35 : vector<1x256xf32> to vector<2x256xf32>
    %37 = arith.addf %34, %36 : vector<2x256xf32>
    %38 = vector.extract_strided_slice %37 {offsets = [0, 0], sizes = [2, 128], strides = [1, 1]} : vector<2x256xf32> to vector<2x128xf32>
    %39 = vector.extract_strided_slice %37 {offsets = [0, 128], sizes = [2, 128], strides = [1, 1]} : vector<2x256xf32> to vector<2x128xf32>
    %c4608 = arith.constant 4608 : index
    %c0_24 = arith.constant 0 : index
    %40 = vector.load %arg6[%c4608, %c0_24] : memref<7424x256xbf16, #tpu.memory_space<vmem>>, vector<384x256xbf16>
    %cst_25 = arith.constant dense<0.000000e+00> : vector<2x256xf32>
    %41 = tpu.matmul %5, %40, %cst_25 {dimension_numbers = #tpu.dot_dimension_numbers<[1], [0], [0], [1], [0, 0, 1, 1], [], []>} : vector<2x384xbf16>, vector<384x256xbf16>, vector<2x256xf32> -> vector<2x256xf32>
    %c4992 = arith.constant 4992 : index
    %c0_26 = arith.constant 0 : index
    %42 = vector.load %arg6[%c4992, %c0_26] : memref<7424x256xbf16, #tpu.memory_space<vmem>>, vector<1152x256xbf16>
    %cst_27 = arith.constant dense<0.000000e+00> : vector<2x256xf32>
    %43 = tpu.matmul %7, %42, %cst_27 {dimension_numbers = #tpu.dot_dimension_numbers<[1], [0], [0], [1], [0, 0, 1, 1], [], []>} : vector<2x1152xbf16>, vector<1152x256xbf16>, vector<2x256xf32> -> vector<2x256xf32>
    %44 = arith.addf %41, %43 : vector<2x256xf32>
    %c0_28 = arith.constant 0 : index
    %c512 = arith.constant 512 : index
    %45 = vector.load %arg9[%c0_28, %c512] : memref<1x3072xf32, #tpu.memory_space<vmem>>, vector<1x256xf32>
    %46 = vector.broadcast %45 : vector<1x256xf32> to vector<2x256xf32>
    %47 = arith.addf %44, %46 : vector<2x256xf32>
    %cst_29 = arith.constant 0.000000e+00 : f32
    %48 = vector.broadcast %cst_29 : f32 to vector<2x256xf32>
    %49 = arith.maximumf %47, %48 : vector<2x256xf32>
    %50 = arith.truncf %49 : vector<2x256xf32> to vector<2x256xbf16>
    %c6656 = arith.constant 6656 : index
    %c0_30 = arith.constant 0 : index
    %51 = vector.load %arg6[%c6656, %c0_30] : memref<7424x256xbf16, #tpu.memory_space<vmem>>, vector<256x256xbf16>
    %cst_31 = arith.constant dense<0.000000e+00> : vector<2x256xf32>
    %52 = tpu.matmul %50, %51, %cst_31 {dimension_numbers = #tpu.dot_dimension_numbers<[1], [0], [0], [1], [0, 0, 1, 1], [], []>} : vector<2x256xbf16>, vector<256x256xbf16>, vector<2x256xf32> -> vector<2x256xf32>
    %c0_32 = arith.constant 0 : index
    %c1280 = arith.constant 1280 : index
    %53 = vector.load %arg9[%c0_32, %c1280] : memref<1x3072xf32, #tpu.memory_space<vmem>>, vector<1x256xf32>
    %54 = vector.broadcast %53 : vector<1x256xf32> to vector<2x256xf32>
    %55 = arith.addf %52, %54 : vector<2x256xf32>
    %56 = vector.extract_strided_slice %55 {offsets = [0, 0], sizes = [2, 128], strides = [1, 1]} : vector<2x256xf32> to vector<2x128xf32>
    %57 = vector.extract_strided_slice %55 {offsets = [0, 128], sizes = [2, 128], strides = [1, 1]} : vector<2x256xf32> to vector<2x128xf32>
    %c0_33 = arith.constant 0 : index
    %c0_34 = arith.constant 0 : index
    %58 = vector.load %arg7[%c0_33, %c0_34] : memref<512x1024xbf16, #tpu.memory_space<vmem>>, vector<512x1024xbf16>
    %cst_35 = arith.constant dense<0.000000e+00> : vector<2x1024xf32>
    %59 = tpu.matmul %9, %58, %cst_35 {dimension_numbers = #tpu.dot_dimension_numbers<[1], [0], [0], [1], [0, 0, 1, 1], [], []>} : vector<2x512xbf16>, vector<512x1024xbf16>, vector<2x1024xf32> -> vector<2x1024xf32>
    %c0_36 = arith.constant 0 : index
    %c1536 = arith.constant 1536 : index
    %60 = vector.load %arg9[%c0_36, %c1536] : memref<1x3072xf32, #tpu.memory_space<vmem>>, vector<1x1024xf32>
    %61 = vector.broadcast %60 : vector<1x1024xf32> to vector<2x1024xf32>
    %62 = arith.addf %59, %61 : vector<2x1024xf32>
    %cst_37 = arith.constant 0.000000e+00 : f32
    %63 = vector.broadcast %cst_37 : f32 to vector<2x1024xf32>
    %64 = arith.maximumf %62, %63 : vector<2x1024xf32>
    %65 = vector.extract_strided_slice %64 {offsets = [0, 0], sizes = [2, 256], strides = [1, 1]} : vector<2x1024xf32> to vector<2x256xf32>
    %66 = vector.extract_strided_slice %64 {offsets = [0, 256], sizes = [2, 256], strides = [1, 1]} : vector<2x1024xf32> to vector<2x256xf32>
    %67 = arith.maximumf %65, %66 : vector<2x256xf32>
    %68 = vector.extract_strided_slice %64 {offsets = [0, 512], sizes = [2, 256], strides = [1, 1]} : vector<2x1024xf32> to vector<2x256xf32>
    %69 = vector.extract_strided_slice %64 {offsets = [0, 768], sizes = [2, 256], strides = [1, 1]} : vector<2x1024xf32> to vector<2x256xf32>
    %70 = arith.maximumf %68, %69 : vector<2x256xf32>
    %71 = arith.maximumf %67, %70 : vector<2x256xf32>
    %72 = arith.truncf %71 : vector<2x256xf32> to vector<2x256xbf16>
    %c0_38 = arith.constant 0 : index
    %c0_39 = arith.constant 0 : index
    %73 = vector.load %arg8[%c0_38, %c0_39] : memref<512x128xbf16, #tpu.memory_space<vmem>>, vector<256x128xbf16>
    %c256_40 = arith.constant 256 : index
    %c0_41 = arith.constant 0 : index
    %74 = vector.load %arg8[%c256_40, %c0_41] : memref<512x128xbf16, #tpu.memory_space<vmem>>, vector<256x128xbf16>
    %cst_42 = arith.constant dense<0.000000e+00> : vector<2x128xf32>
    %75 = tpu.matmul %72, %73, %cst_42 {dimension_numbers = #tpu.dot_dimension_numbers<[1], [0], [0], [1], [0, 0, 1, 1], [], []>} : vector<2x256xbf16>, vector<256x128xbf16>, vector<2x128xf32> -> vector<2x128xf32>
    %c0_43 = arith.constant 0 : index
    %c2560 = arith.constant 2560 : index
    %76 = vector.load %arg9[%c0_43, %c2560] : memref<1x3072xf32, #tpu.memory_space<vmem>>, vector<1x128xf32>
    %77 = vector.broadcast %76 : vector<1x128xf32> to vector<2x128xf32>
    %78 = arith.addf %75, %77 : vector<2x128xf32>
    %c6912 = arith.constant 6912 : index
    %c0_44 = arith.constant 0 : index
    %79 = vector.load %arg6[%c6912, %c0_44] : memref<7424x256xbf16, #tpu.memory_space<vmem>>, vector<512x256xbf16>
    %c0_45 = arith.constant 0 : index
    %c2688 = arith.constant 2688 : index
    %80 = vector.load %arg9[%c0_45, %c2688] : memref<1x3072xf32, #tpu.memory_space<vmem>>, vector<1x256xf32>
    %c0_46 = arith.constant 0 : index
    %c2944 = arith.constant 2944 : index
    %81 = vector.load %arg9[%c0_46, %c2944] : memref<1x3072xf32, #tpu.memory_space<vmem>>, vector<1x128xf32>
    %82 = tpu.concatenate %17, %50 in 0 : vector<2x256xbf16>, vector<2x256xbf16> -> vector<4x256xbf16>
    %83 = tpu.concatenate %32, %72 in 0 : vector<2x256xbf16>, vector<2x256xbf16> -> vector<4x256xbf16>
    %84 = tpu.concatenate %82, %83 in 1 : vector<4x256xbf16>, vector<4x256xbf16> -> vector<4x512xbf16>
    %cst_47 = arith.constant dense<0.000000e+00> : vector<4x256xf32>
    %85 = tpu.matmul %84, %79, %cst_47 {dimension_numbers = #tpu.dot_dimension_numbers<[1], [0], [0], [1], [0, 0, 1, 1], [], []>} : vector<4x512xbf16>, vector<512x256xbf16>, vector<4x256xf32> -> vector<4x256xf32>
    %86 = vector.broadcast %80 : vector<1x256xf32> to vector<4x256xf32>
    %87 = arith.addf %85, %86 : vector<4x256xf32>
    %cst_48 = arith.constant 0.000000e+00 : f32
    %88 = vector.broadcast %cst_48 : f32 to vector<4x256xf32>
    %89 = arith.maximumf %87, %88 : vector<4x256xf32>
    %90 = arith.truncf %89 : vector<4x256xf32> to vector<4x256xbf16>
    %cst_49 = arith.constant dense<0.000000e+00> : vector<4x128xf32>
    %91 = tpu.matmul %90, %74, %cst_49 {dimension_numbers = #tpu.dot_dimension_numbers<[1], [0], [0], [1], [0, 0, 1, 1], [], []>} : vector<4x256xbf16>, vector<256x128xbf16>, vector<4x128xf32> -> vector<4x128xf32>
    %92 = vector.broadcast %81 : vector<1x128xf32> to vector<4x128xf32>
    %93 = arith.addf %91, %92 : vector<4x128xf32>
    %94 = vector.extract_strided_slice %90 {offsets = [0, 0], sizes = [2, 256], strides = [1, 1]} : vector<4x256xbf16> to vector<2x256xbf16>
    %95 = vector.extract_strided_slice %90 {offsets = [2, 0], sizes = [2, 256], strides = [1, 1]} : vector<4x256xbf16> to vector<2x256xbf16>
    %96 = vector.extract_strided_slice %93 {offsets = [0, 0], sizes = [2, 128], strides = [1, 1]} : vector<4x128xf32> to vector<2x128xf32>
    %97 = vector.extract_strided_slice %93 {offsets = [2, 0], sizes = [2, 128], strides = [1, 1]} : vector<4x128xf32> to vector<2x128xf32>
    %98 = tpu.concatenate %94, %95 in 1 : vector<2x256xbf16>, vector<2x256xbf16> -> vector<2x512xbf16>
    %cst_50 = arith.constant dense<0.000000e+00> : vector<2x256xf32>
    %99 = tpu.matmul %98, %79, %cst_50 {dimension_numbers = #tpu.dot_dimension_numbers<[1], [0], [0], [1], [0, 0, 1, 1], [], []>} : vector<2x512xbf16>, vector<512x256xbf16>, vector<2x256xf32> -> vector<2x256xf32>
    %100 = vector.broadcast %80 : vector<1x256xf32> to vector<2x256xf32>
    %101 = arith.addf %99, %100 : vector<2x256xf32>
    %cst_51 = arith.constant 0.000000e+00 : f32
    %102 = vector.broadcast %cst_51 : f32 to vector<2x256xf32>
    %103 = arith.maximumf %101, %102 : vector<2x256xf32>
    %104 = arith.truncf %103 : vector<2x256xf32> to vector<2x256xbf16>
    %cst_52 = arith.constant dense<0.000000e+00> : vector<2x128xf32>
    %105 = tpu.matmul %104, %74, %cst_52 {dimension_numbers = #tpu.dot_dimension_numbers<[1], [0], [0], [1], [0, 0, 1, 1], [], []>} : vector<2x256xbf16>, vector<256x128xbf16>, vector<2x128xf32> -> vector<2x128xf32>
    %106 = vector.broadcast %81 : vector<1x128xf32> to vector<2x128xf32>
    %107 = arith.addf %105, %106 : vector<2x128xf32>
    %c0_53 = arith.constant 0 : index
    %c0_54 = arith.constant 0 : index
    %108 = vector.load %arg11[%c0_53, %c0_54] : memref<2x896xf32, #tpu.memory_space<vmem>>, vector<2x128xf32>
    tpu.vector_store %arg11[%c0_53, %c0_54], %23 {strides = array<i32>} : memref<2x896xf32, #tpu.memory_space<vmem>>, vector<2x128xf32>,
    %c0_55 = arith.constant 0 : index
    %c128 = arith.constant 128 : index
    %109 = vector.load %arg11[%c0_55, %c128] : memref<2x896xf32, #tpu.memory_space<vmem>>, vector<2x128xf32>
    tpu.vector_store %arg11[%c0_55, %c128], %38 {strides = array<i32>} : memref<2x896xf32, #tpu.memory_space<vmem>>, vector<2x128xf32>,
    %c0_56 = arith.constant 0 : index
    %c256_57 = arith.constant 256 : index
    %110 = vector.load %arg11[%c0_56, %c256_57] : memref<2x896xf32, #tpu.memory_space<vmem>>, vector<2x128xf32>
    tpu.vector_store %arg11[%c0_56, %c256_57], %56 {strides = array<i32>} : memref<2x896xf32, #tpu.memory_space<vmem>>, vector<2x128xf32>,
    %c0_58 = arith.constant 0 : index
    %c384 = arith.constant 384 : index
    %111 = vector.load %arg11[%c0_58, %c384] : memref<2x896xf32, #tpu.memory_space<vmem>>, vector<2x256xf32>
    tpu.vector_store %arg11[%c0_58, %c384], %71 {strides = array<i32>} : memref<2x896xf32, #tpu.memory_space<vmem>>, vector<2x256xf32>,
    %c0_59 = arith.constant 0 : index
    %c640 = arith.constant 640 : index
    %112 = vector.load %arg11[%c0_59, %c640] : memref<2x896xf32, #tpu.memory_space<vmem>>, vector<2x256xf32>
    tpu.vector_store %arg11[%c0_59, %c640], %103 {strides = array<i32>} : memref<2x896xf32, #tpu.memory_space<vmem>>, vector<2x256xf32>,
    %113 = tpu.concatenate %24, %39, %57, %78, %96, %97, %107 in 0 : vector<2x128xf32>, vector<2x128xf32>, vector<2x128xf32>, vector<2x128xf32>, vector<2x128xf32>, vector<2x128xf32>, vector<2x128xf32> -> vector<14x128xf32>
    %114 = tpu.iota {dimensions = array<i32: 1>} : vector<14x128xi32>
    %c40_i32 = arith.constant 40 : i32
    %115 = vector.broadcast %c40_i32 : i32 to vector<14x128xi32>
    %116 = arith.cmpi slt, %114, %115 : vector<14x128xi32>
    %cst_60 = arith.constant 0x7F800000 : f32
    %117 = vector.broadcast %cst_60 : f32 to vector<14x128xf32>
    %118 = arith.select %116, %113, %117 : vector<14x128xi1>, vector<14x128xf32>
    %cst_61 = arith.constant dense<0x7F800000> : vector<14xf32>
    %119 = vector.multi_reduction <minimumf>, %118, %cst_61 [1] : vector<14x128xf32> to vector<14xf32>
    %120 = vector.shape_cast %119 : vector<14xf32> to vector<14x1xf32>
    %121 = vector.broadcast %120 : vector<14x1xf32> to vector<14x128xf32>
    %122 = arith.subf %113, %121 : vector<14x128xf32>
    %cst_62 = arith.constant 0.00999999977 : f32
    %123 = vector.broadcast %cst_62 : f32 to vector<14x128xf32>
    %124 = arith.addf %122, %123 : vector<14x128xf32>
    %cst_63 = arith.constant 0xFF800000 : f32
    %125 = vector.broadcast %cst_63 : f32 to vector<14x128xf32>
    %126 = arith.select %116, %124, %125 : vector<14x128xi1>, vector<14x128xf32>
    %cst_64 = arith.constant dense<0xFF800000> : vector<14xf32>
    %127 = vector.multi_reduction <maximumf>, %126, %cst_64 [1] : vector<14x128xf32> to vector<14xf32>
    %128 = vector.shape_cast %127 : vector<14xf32> to vector<14x1xf32>
    %129 = vector.broadcast %128 : vector<14x1xf32> to vector<14x128xf32>
    %130 = arith.divf %124, %129 : vector<14x128xf32>
    %c0_65 = arith.constant 0 : index
    %c0_66 = arith.constant 0 : index
    %131 = vector.load %arg10[%c0_65, %c0_66] : memref<14x128xf32, #tpu.memory_space<vmem>>, vector<14x128xf32>
    tpu.vector_store %arg10[%c0_65, %c0_66], %130 {strides = array<i32>} : memref<14x128xf32, #tpu.memory_space<vmem>>, vector<14x128xf32>,
    return
  }
  func.func @transform_0(%arg0: i32) -> (i32, i32) {
    %c0_i32 = arith.constant 0 : i32
    %c0_i32_0 = arith.constant 0 : i32
    %c0_i32_1 = arith.constant 0 : i32
    return %c0_i32, %c0_i32_0 : i32, i32
  }
  func.func @transform_1(%arg0: i32) -> (i32, i32) {
    %c0_i32 = arith.constant 0 : i32
    %c0_i32_0 = arith.constant 0 : i32
    %c0_i32_1 = arith.constant 0 : i32
    return %c0_i32, %c0_i32_0 : i32, i32
  }
  func.func @transform_2(%arg0: i32) -> (i32, i32) {
    %c0_i32 = arith.constant 0 : i32
    %c0_i32_0 = arith.constant 0 : i32
    %c0_i32_1 = arith.constant 0 : i32
    return %c0_i32, %c0_i32_0 : i32, i32
  }
  func.func @transform_3(%arg0: i32) -> (i32, i32) {
    %c0_i32 = arith.constant 0 : i32
    %c0_i32_0 = arith.constant 0 : i32
    %c0_i32_1 = arith.constant 0 : i32
    return %c0_i32, %c0_i32_0 : i32, i32
  }
  func.func @transform_4(%arg0: i32) -> (i32, i32) {
    %c0_i32 = arith.constant 0 : i32
    %c0_i32_0 = arith.constant 0 : i32
    %c0_i32_1 = arith.constant 0 : i32
    return %c0_i32, %c0_i32_0 : i32, i32
  }
  func.func @transform_5(%arg0: i32) -> (i32, i32) {
    %c0_i32 = arith.constant 0 : i32
    %c0_i32_0 = arith.constant 0 : i32
    %c0_i32_1 = arith.constant 0 : i32
    return %c0_i32, %c0_i32_0 : i32, i32
  }
  func.func @transform_6(%arg0: i32) -> (i32, i32) {
    %c0_i32 = arith.constant 0 : i32
    %c0_i32_0 = arith.constant 0 : i32
    %c0_i32_1 = arith.constant 0 : i32
    return %c0_i32, %c0_i32_0 : i32, i32
  }
  func.func @transform_7(%arg0: i32) -> (i32, i32) {
    %c0_i32 = arith.constant 0 : i32
    %c0_i32_0 = arith.constant 0 : i32
    %c0_i32_1 = arith.constant 0 : i32
    return %c0_i32, %c0_i32_0 : i32, i32
  }
  func.func @transform_8(%arg0: i32) -> (i32, i32) {
    %c0_i32 = arith.constant 0 : i32
    %c0_i32_0 = arith.constant 0 : i32
    %c0_i32_1 = arith.constant 0 : i32
    return %c0_i32, %c0_i32_0 : i32, i32
  }
  func.func @transform_9(%arg0: i32) -> (i32, i32) {
    %c0_i32 = arith.constant 0 : i32
    %c0_i32_0 = arith.constant 0 : i32
    %c0_i32_1 = arith.constant 0 : i32
    return %c0_i32, %c0_i32_0 : i32, i32
  }
  func.func @transform_10(%arg0: i32) -> (i32, i32) {
    %c0_i32 = arith.constant 0 : i32
    %c0_i32_0 = arith.constant 0 : i32
    %c0_i32_1 = arith.constant 0 : i32
    return %c0_i32, %c0_i32_0 : i32, i32
  }
}

</mosaic_0001>

<llo_original>
// kernel: uni_forward.1
$region0: #{uni_forward.1}
  #allocation0 [shape = 'u32[]', space=smem, size = 0x4, offset = 0x4, fixed_abs, tag = 'smem constant byte address 0x4 - core index']
  #allocation1 [shape = 'u32[72,128]{1,0:T(1,128)}', space=vmem, size = 0x9000, scoped, tag = 'internal scratch']
  %s0 = inlined_call_operand.vmem [shape: f32[2,3840], index: 0, kind: input, shape index: {}]
  %s1 = inlined_call_operand.hbm [shape: f32[2,768], index: 1, kind: input, shape index: {}]
  %s2 = inlined_call_operand.hbm [shape: f32[2,384], index: 2, kind: input, shape index: {}]
  %s3 = inlined_call_operand.hbm [shape: f32[2,1152], index: 3, kind: input, shape index: {}]
  %s4 = inlined_call_operand.vmem [shape: f32[2,512], index: 4, kind: input, shape index: {}]
  %s5 = inlined_call_operand.hbm [shape: bf16[7424,256], index: 5, kind: input, shape index: {}]
  %s6 = inlined_call_operand.hbm [shape: bf16[512,1024], index: 6, kind: input, shape index: {}]
  %s7 = inlined_call_operand.hbm [shape: bf16[512,128], index: 7, kind: input, shape index: {}]
  %s8 = inlined_call_operand.hbm [shape: f32[1,3072], index: 8, kind: input, shape index: {}]
  %s9 = inlined_call_operand.vmem [shape: f32[14,128], index: 9, kind: output, shape index: {0}]
  %s10 = inlined_call_operand.hbm [shape: f32[2,896], index: 10, kind: output, shape index: {1}]
  %11 = xla_tuple %s9, %s10
  %s12 = sld [smem:[#allocation0]]
  $region82: #{uni_forward.1} parent=0
    _
  %s14 = ssub.s32 1, %s12
  %s15 = scalar_select 0, %s14, %s12
  $region1: #{uni_forward.1} parent=0
    #allocation2 [shape = 'u8[6144]{0}', space=vmem, size = 0x1800, scoped, tag = 'input window, operand 1, single buffered']
    #allocation3 [shape = 's32[1]{0}', space=sflag, size = 0x4, scoped, tag = 'scoped memory for uni_forward.1']
    #allocation4 [shape = 's32[1]{0}', space=sflag, size = 0x4, scoped, tag = 'scoped memory for uni_forward.1']
    #allocation5 [shape = 'u8[3072]{0}', space=vmem, size = 0xc00, scoped, tag = 'input window, operand 2, single buffered']
    #allocation6 [shape = 's32[1]{0}', space=sflag, size = 0x4, scoped, tag = 'scoped memory for uni_forward.1']
    #allocation7 [shape = 'u8[9216]{0}', space=vmem, size = 0x2400, scoped, tag = 'input window, operand 3, single buffered']
    #allocation8 [shape = 'u8[3801088]{0}', space=vmem, size = 0x3a0000, scoped, tag = 'input window, operand 5, single buffered']
    #allocation9 [shape = 's32[1]{0}', space=sflag, size = 0x4, scoped, tag = 'scoped memory for uni_forward.1']
    #allocation10 [shape = 'u8[1048576]{0}', space=vmem, size = 0x100000, scoped, tag = 'input window, operand 6, single buffered']
    #allocation11 [shape = 'u8[131072]{0}', space=vmem, size = 0x20000, scoped, tag = 'input window, operand 7, single buffered']
    #allocation12 [shape = 's32[1]{0}', space=sflag, size = 0x4, scoped, tag = 'scoped memory for uni_forward.1']
    #allocation13 [shape = 'u8[12288]{0}', space=vmem, size = 0x3000, scoped, tag = 'input window, operand 8, single buffered']
    #allocation14 [shape = 'u8[7168]{0}', space=vmem, size = 0x1c00, scoped, tag = 'output window, operand 1, single buffered']
    %16 = vsyncpa [#allocation3], 0
    %17 = vsyncpa [#allocation6], 0
    %18 = vsyncpa [#allocation9], 0
    %19 = vsyncpa [#allocation12], 0
    %20 = vsyncpa [#allocation4], 0
    // Predicated region
    $region2: #{uni_forward.1} parent=1 // pred_check
      _
    $region3: #{uni_forward.1} parent=1 // pred_check_branch
      %22 = sbr.rel (0) target = $region5
    $region4: #{uni_forward.1} parent=1 // pred_region
      _
    $region5: #{uni_forward.1} parent=1 // pred_fallthru
      _
    // Predicated region
    $region6: #{uni_forward.1} parent=1 // pred_check
      _
    $region7: #{uni_forward.1} parent=1 // pred_check_branch
      %24 = sbr.rel (0) target = $region9
    $region8: #{uni_forward.1} parent=1 // pred_region
      %26 = vsyncadd [#allocation3], 0
      %s28 = sshll.u32 %s1, 4
      %s29 = int_to_ptr.hbm [resolvable:$true] %s28
      %s30 = sshll.u32 [#allocation2], 4
      %s31 = int_to_ptr.vmem [resolvable:$true] %s30
      %33 = dma.hbm_to_vmem [thread:$0]  %s29, 192, %s31, [#allocation3]
    $region9: #{uni_forward.1} parent=1 // pred_fallthru
      _
    // Predicated region
    $region10: #{uni_forward.1} parent=1 // pred_check
      _
    $region11: #{uni_forward.1} parent=1 // pred_check_branch
      %35 = sbr.rel (0) target = $region13
    $region12: #{uni_forward.1} parent=1 // pred_region
      %37 = vsyncadd [#allocation6], 0
      %s39 = sshll.u32 %s2, 4
      %s40 = int_to_ptr.hbm [resolvable:$true] %s39
      %s41 = sshll.u32 [#allocation5], 4
      %s42 = int_to_ptr.vmem [resolvable:$true] %s41
      %44 = dma.hbm_to_vmem [thread:$0]  %s40, 96, %s42, [#allocation6]
    $region13: #{uni_forward.1} parent=1 // pred_fallthru
      _
    // Predicated region
    $region14: #{uni_forward.1} parent=1 // pred_check
      _
    $region15: #{uni_forward.1} parent=1 // pred_check_branch
      %46 = sbr.rel (0) target = $region17
    $region16: #{uni_forward.1} parent=1 // pred_region
      %48 = vsyncadd [#allocation6], 0
      %s50 = sshll.u32 %s3, 4
      %s51 = int_to_ptr.hbm [resolvable:$true] %s50
      %s52 = sshll.u32 [#allocation7], 4
      %s53 = int_to_ptr.vmem [resolvable:$true] %s52
      %55 = dma.hbm_to_vmem [thread:$0]  %s51, 288, %s53, [#allocation6]
    $region17: #{uni_forward.1} parent=1 // pred_fallthru
      _
    // Predicated region
    $region18: #{uni_forward.1} parent=1 // pred_check
      _
    $region19: #{uni_forward.1} parent=1 // pred_check_branch
      %57 = sbr.rel (0) target = $region21
    $region20: #{uni_forward.1} parent=1 // pred_region
      _
    $region21: #{uni_forward.1} parent=1 // pred_fallthru
      _
    // Predicated region
    $region22: #{uni_forward.1} parent=1 // pred_check
      _
    $region23: #{uni_forward.1} parent=1 // pred_check_branch
      %59 = sbr.rel (0) target = $region25
    $region24: #{uni_forward.1} parent=1 // pred_region
      %61 = vsyncadd [#allocation9], 0
      %s62 = sshll.u32 %s5, 4
      %s63 = int_to_ptr.hbm [resolvable:$true] %s62
      %s64 = sshll.u32 [#allocation8], 4
      %s65 = int_to_ptr.vmem [resolvable:$true] %s64
      %70 = dma.hbm_to_vmem [thread:$0]  %s63, 118784, %s65, [#allocation9], 128, 128, 8
    $region25: #{uni_forward.1} parent=1 // pred_fallthru
      _
    // Predicated region
    $region26: #{uni_forward.1} parent=1 // pred_check
      _
    $region27: #{uni_forward.1} parent=1 // pred_check_branch
      %72 = sbr.rel (0) target = $region29
    $region28: #{uni_forward.1} parent=1 // pred_region
      %74 = vsyncadd [#allocation9], 0
      %s75 = sshll.u32 %s6, 4
      %s76 = int_to_ptr.hbm [resolvable:$true] %s75
      %s77 = sshll.u32 [#allocation10], 4
      %s78 = int_to_ptr.vmem [resolvable:$true] %s77
      %83 = dma.hbm_to_vmem [thread:$0]  %s76, 32768, %s78, [#allocation9], 512, 512, 32
    $region29: #{uni_forward.1} parent=1 // pred_fallthru
      _
    // Predicated region
    $region30: #{uni_forward.1} parent=1 // pred_check
      _
    $region31: #{uni_forward.1} parent=1 // pred_check_branch
      %85 = sbr.rel (0) target = $region33
    $region32: #{uni_forward.1} parent=1 // pred_region
      %87 = vsyncadd [#allocation12], 0
      %s88 = sshll.u32 %s7, 4
      %s89 = int_to_ptr.hbm [resolvable:$true] %s88
      %s90 = sshll.u32 [#allocation11], 4
      %s91 = int_to_ptr.vmem [resolvable:$true] %s90
      %96 = dma.hbm_to_vmem [thread:$0]  %s89, 4096, %s91, [#allocation12], 64, 64, 4
    $region33: #{uni_forward.1} parent=1 // pred_fallthru
      _
    // Predicated region
    $region34: #{uni_forward.1} parent=1 // pred_check
      _
    $region35: #{uni_forward.1} parent=1 // pred_check_branch
      %98 = sbr.rel (0) target = $region37
    $region36: #{uni_forward.1} parent=1 // pred_region
      %100 = vsyncadd [#allocation12], 0
      %s102 = sshll.u32 %s8, 4
      %s103 = int_to_ptr.hbm [resolvable:$true] %s102
      %s104 = sshll.u32 [#allocation13], 4
      %s105 = int_to_ptr.vmem [resolvable:$true] %s104
      %107 = dma.hbm_to_vmem [thread:$0]  %s103, 384, %s105, [#allocation12]
    $region37: #{uni_forward.1} parent=1 // pred_fallthru
      _
    // Predicated region
    $region38: #{uni_forward.1} parent=1 // pred_check
      _
    $region39: #{uni_forward.1} parent=1 // pred_check_branch
      %109 = sbr.rel (0) target = $region41
    $region40: #{uni_forward.1} parent=1 // pred_region
      %111 = dma.done [#allocation3], 192
    $region41: #{uni_forward.1} parent=1 // pred_fallthru
      _
    // Predicated region
    $region42: #{uni_forward.1} parent=1 // pred_check
      _
    $region43: #{uni_forward.1} parent=1 // pred_check_branch
      %113 = sbr.rel (0) target = $region45
    $region44: #{uni_forward.1} parent=1 // pred_region
      %115 = dma.done [#allocation6], 96
    $region45: #{uni_forward.1} parent=1 // pred_fallthru
      _
    // Predicated region
    $region46: #{uni_forward.1} parent=1 // pred_check
      _
    $region47: #{uni_forward.1} parent=1 // pred_check_branch
      %117 = sbr.rel (0) target = $region49
    $region48: #{uni_forward.1} parent=1 // pred_region
      %119 = dma.done [#allocation6], 288
    $region49: #{uni_forward.1} parent=1 // pred_fallthru
      _
    // Predicated region
    $region50: #{uni_forward.1} parent=1 // pred_check
      _
    $region51: #{uni_forward.1} parent=1 // pred_check_branch
      %121 = sbr.rel (0) target = $region53
    $region52: #{uni_forward.1} parent=1 // pred_region
      %123 = dma.done [#allocation9], 118784
    $region53: #{uni_forward.1} parent=1 // pred_fallthru
      _
    // Predicated region
    $region54: #{uni_forward.1} parent=1 // pred_check
      _
    $region55: #{uni_forward.1} parent=1 // pred_check_branch
      %125 = sbr.rel (0) target = $region57
    $region56: #{uni_forward.1} parent=1 // pred_region
      %127 = dma.done [#allocation9], 32768
    $region57: #{uni_forward.1} parent=1 // pred_fallthru
      _
    // Predicated region
    $region58: #{uni_forward.1} parent=1 // pred_check
      _
    $region59: #{uni_forward.1} parent=1 // pred_check_branch
      %129 = sbr.rel (0) target = $region61
    $region60: #{uni_forward.1} parent=1 // pred_region
      %131 = dma.done [#allocation12], 4096
    $region61: #{uni_forward.1} parent=1 // pred_fallthru
      _
    // Predicated region
    $region62: #{uni_forward.1} parent=1 // pred_check
      _
    $region63: #{uni_forward.1} parent=1 // pred_check_branch
      %133 = sbr.rel (0) target = $region65
    $region64: #{uni_forward.1} parent=1 // pred_region
      %135 = dma.done [#allocation12], 384
    $region65: #{uni_forward.1} parent=1 // pred_fallthru
      _
    %v136 = vld [vmem:[%s0] sm:$0xff]
    %v137 = vld [vmem:[%s0 + $0x8] sm:$0xff]
    %v138 = vld [vmem:[%s0 + $0x10] sm:$0xff]
    %v139 = vld [vmem:[%s0 + $0x18] sm:$0xff]
    %v140 = vld [vmem:[%s0 + $0x20] sm:$0xff]
    %v141 = vld [vmem:[%s0 + $0x28] sm:$0xff]
    %v142 = vld [vmem:[%s0 + $0x30] sm:$0xff]
    %v143 = vld [vmem:[%s0 + $0x38] sm:$0xf]
    %152 = vst [vmem:[#allocation1] ss:$4 sm:$0xff] %v136
    %s153 = scalar_lea.vmem [#allocation1], 32
    %154 = vst [vmem:[%s153] ss:$4 sm:$0xff] %v137
    %v155 = vld.sshfl [vmem:[#allocation1] sm:$0xff pattern:$0x73625140]
    %v156 = vld.sshfl [vmem:[#allocation1 + $0x8] sm:$0xff pattern:$0x73625140]
    %v157 = vld.sshfl [vmem:[#allocation1 + $0x10] sm:$0xff pattern:$0x73625140]
    %v158 = vld.sshfl [vmem:[#allocation1 + $0x18] sm:$0xff pattern:$0x73625140]
    %v159 = vld.sshfl [vmem:[#allocation1 + $0x20] sm:$0xff pattern:$0x73625140]
    %v160 = vld.sshfl [vmem:[#allocation1 + $0x28] sm:$0xff pattern:$0x73625140]
    %v161 = vld.sshfl [vmem:[#allocation1 + $0x30] sm:$0xff pattern:$0x73625140]
    %v162 = vld.sshfl [vmem:[#allocation1 + $0x38] sm:$0xff pattern:$0x73625140]
    %163 = vst [vmem:[#allocation1] ss:$4 sm:$0xff] %v138
    %164 = vst [vmem:[%s153] ss:$4 sm:$0xff] %v139
    %v165 = vld.sshfl [vmem:[#allocation1] sm:$0xff pattern:$0x73625140]
    %v166 = vld.sshfl [vmem:[#allocation1 + $0x8] sm:$0xff pattern:$0x73625140]
    %v167 = vld.sshfl [vmem:[#allocation1 + $0x10] sm:$0xff pattern:$0x73625140]
    %v168 = vld.sshfl [vmem:[#allocation1 + $0x18] sm:$0xff pattern:$0x73625140]
    %v169 = vld.sshfl [vmem:[#allocation1 + $0x20] sm:$0xff pattern:$0x73625140]
    %v170 = vld.sshfl [vmem:[#allocation1 + $0x28] sm:$0xff pattern:$0x73625140]
    %v171 = vld.sshfl [vmem:[#allocation1 + $0x30] sm:$0xff pattern:$0x73625140]
    %v172 = vld.sshfl [vmem:[#allocation1 + $0x38] sm:$0xff pattern:$0x73625140]
    %173 = vst [vmem:[#allocation1] ss:$4 sm:$0xff] %v140
    %174 = vst [vmem:[%s153] ss:$4 sm:$0xff] %v141
    %v175 = vld.sshfl [vmem:[#allocation1] sm:$0xff pattern:$0x73625140]
    %v176 = vld.sshfl [vmem:[#allocation1 + $0x8] sm:$0xff pattern:$0x73625140]
    %v177 = vld.sshfl [vmem:[#allocation1 + $0x10] sm:$0xff pattern:$0x73625140]
    %v178 = vld.sshfl [vmem:[#allocation1 + $0x18] sm:$0xff pattern:$0x73625140]
    %v179 = vld.sshfl [vmem:[#allocation1 + $0x20] sm:$0xff pattern:$0x73625140]
    %v180 = vld.sshfl [vmem:[#allocation1 + $0x28] sm:$0xff pattern:$0x73625140]
    %v181 = vld.sshfl [vmem:[#allocation1 + $0x30] sm:$0xff pattern:$0x73625140]
    %v182 = vld.sshfl [vmem:[#allocation1 + $0x38] sm:$0xff pattern:$0x73625140]
    %183 = vst [vmem:[#allocation1] ss:$4 sm:$0xff] %v142
    %184 = vst [vmem:[%s153] ss:$4 sm:$0xff] %v143
    %v185 = vld.sshfl [vmem:[#allocation1] sm:$0xff pattern:$0x73625140]
    %v186 = vld.sshfl [vmem:[#allocation1 + $0x8] sm:$0xff pattern:$0x73625140]
    %v187 = vld.sshfl [vmem:[#allocation1 + $0x10] sm:$0xff pattern:$0x73625140]
    %v188 = vld.sshfl [vmem:[#allocation1 + $0x18] sm:$0xff pattern:$0x73625140]
    %v189 = vld.sshfl [vmem:[#allocation1 + $0x20] sm:$0xff pattern:$0x73625140]
    %v190 = vld.sshfl [vmem:[#allocation1 + $0x28] sm:$0xff pattern:$0x73625140]
    %v221 = vpack.c.bf16 %v155, %v155
    %v222 = vpack.c.bf16 %v156, %v156
    %v223 = vpack.c.bf16 %v157, %v157
    %v224 = vpack.c.bf16 %v158, %v158
    %v225 = vpack.c.bf16 %v159, %v159
    %v226 = vpack.c.bf16 %v160, %v160
    %v227 = vpack.c.bf16 %v161, %v161
    %v228 = vpack.c.bf16 %v162, %v162
    %v229 = vpack.c.bf16 %v165, %v165
    %v230 = vpack.c.bf16 %v166, %v166
    %v231 = vpack.c.bf16 %v167, %v167
    %v232 = vpack.c.bf16 %v168, %v168
    %v233 = vpack.c.bf16 %v169, %v169
    %v234 = vpack.c.bf16 %v170, %v170
    %v235 = vpack.c.bf16 %v171, %v171
    %v236 = vpack.c.bf16 %v172, %v172
    %v237 = vpack.c.bf16 %v175, %v175
    %v238 = vpack.c.bf16 %v176, %v176
    %v239 = vpack.c.bf16 %v177, %v177
    %v240 = vpack.c.bf16 %v178, %v178
    %v241 = vpack.c.bf16 %v179, %v179
    %v242 = vpack.c.bf16 %v180, %v180
    %v243 = vpack.c.bf16 %v181, %v181
    %v244 = vpack.c.bf16 %v182, %v182
    %v245 = vpack.c.bf16 %v185, %v185
    %v246 = vpack.c.bf16 %v186, %v186
    %v247 = vpack.c.bf16 %v187, %v187
    %v248 = vpack.c.bf16 %v188, %v188
    %v249 = vpack.c.bf16 %v189, %v189
    %v250 = vpack.c.bf16 %v190, %v190
    %v251 = vld [vmem:[#allocation2] sm:$0xff]
    %v252 = vld [vmem:[#allocation2 + $0x8] sm:$0xf]
    %255 = vst [vmem:[#allocation1] ss:$4 sm:$0xff] %v251
    %s256 = scalar_lea.vmem [#allocation1], 32
    %257 = vst [vmem:[%s256] ss:$4 sm:$0xff] %v252
    %v258 = vld.sshfl [vmem:[#allocation1] sm:$0xff pattern:$0x73625140]
    %v259 = vld.sshfl [vmem:[#allocation1 + $0x8] sm:$0xff pattern:$0x73625140]
    %v260 = vld.sshfl [vmem:[#allocation1 + $0x10] sm:$0xff pattern:$0x73625140]
    %v261 = vld.sshfl [vmem:[#allocation1 + $0x18] sm:$0xff pattern:$0x73625140]
    %v262 = vld.sshfl [vmem:[#allocation1 + $0x20] sm:$0xff pattern:$0x73625140]
    %v263 = vld.sshfl [vmem:[#allocation1 + $0x28] sm:$0xff pattern:$0x73625140]
    %v270 = vpack.c.bf16 %v258, %v258
    %v271 = vpack.c.bf16 %v259, %v259
    %v272 = vpack.c.bf16 %v260, %v260
    %v273 = vpack.c.bf16 %v261, %v261
    %v274 = vpack.c.bf16 %v262, %v262
    %v275 = vpack.c.bf16 %v263, %v263
    %v276 = vld [vmem:[#allocation5] sm:$0x3f]
    %278 = vst [vmem:[#allocation1] ss:$4 sm:$0xff] %v276
    %v279 = vld.sshfl [vmem:[#allocation1] sm:$0xff pattern:$0x73625140]
    %v280 = vld.sshfl [vmem:[#allocation1 + $0x8] sm:$0xff pattern:$0x73625140]
    %v281 = vld.sshfl [vmem:[#allocation1 + $0x10] sm:$0xff pattern:$0x73625140]
    %v285 = vpack.c.bf16 %v279, %v279
    %v286 = vpack.c.bf16 %v280, %v280
    %v287 = vpack.c.bf16 %v281, %v281
    %v288 = vld [vmem:[#allocation7] sm:$0xff]
    %v289 = vld [vmem:[#allocation7 + $0x8] sm:$0xff]
    %v290 = vld [vmem:[#allocation7 + $0x10] sm:$0x3]
    %294 = vst [vmem:[#allocation1] ss:$4 sm:$0xff] %v288
    %s295 = scalar_lea.vmem [#allocation1], 32
    %296 = vst [vmem:[%s295] ss:$4 sm:$0xff] %v289
    %v297 = vld.sshfl [vmem:[#allocation1] sm:$0xff pattern:$0x73625140]
    %v298 = vld.sshfl [vmem:[#allocation1 + $0x8] sm:$0xff pattern:$0x73625140]
    %v299 = vld.sshfl [vmem:[#allocation1 + $0x10] sm:$0xff pattern:$0x73625140]
    %v300 = vld.sshfl [vmem:[#allocation1 + $0x18] sm:$0xff pattern:$0x73625140]
    %v301 = vld.sshfl [vmem:[#allocation1 + $0x20] sm:$0xff pattern:$0x73625140]
    %v302 = vld.sshfl [vmem:[#allocation1 + $0x28] sm:$0xff pattern:$0x73625140]
    %v303 = vld.sshfl [vmem:[#allocation1 + $0x30] sm:$0xff pattern:$0x73625140]
    %v304 = vld.sshfl [vmem:[#allocation1 + $0x38] sm:$0xff pattern:$0x73625140]
    %305 = vst [vmem:[#allocation1] ss:$4 sm:$0xff] %v290
    %v306 = vld.sshfl [vmem:[#allocation1] sm:$0xff pattern:$0x73625140]
    %v316 = vpack.c.bf16 %v297, %v297
    %v317 = vpack.c.bf16 %v298, %v298
    %v318 = vpack.c.bf16 %v299, %v299
    %v319 = vpack.c.bf16 %v300, %v300
    %v320 = vpack.c.bf16 %v301, %v301
    %v321 = vpack.c.bf16 %v302, %v302
    %v322 = vpack.c.bf16 %v303, %v303
    %v323 = vpack.c.bf16 %v304, %v304
    %v324 = vpack.c.bf16 %v306, %v306
    %v325 = vld [vmem:[%s4] sm:$0xff]
    %327 = vst [vmem:[#allocation1] ss:$4 sm:$0xff] %v325
    %v328 = vld.sshfl [vmem:[#allocation1] sm:$0xff pattern:$0x73625140]
    %v329 = vld.sshfl [vmem:[#allocation1 + $0x8] sm:$0xff pattern:$0x73625140]
    %v330 = vld.sshfl [vmem:[#allocation1 + $0x10] sm:$0xff pattern:$0x73625140]
    %v331 = vld.sshfl [vmem:[#allocation1 + $0x18] sm:$0xff pattern:$0x73625140]
    %v336 = vpack.c.bf16 %v328, %v328
    %v337 = vpack.c.bf16 %v329, %v329
    %v338 = vpack.c.bf16 %v330, %v330
    %v339 = vpack.c.bf16 %v331, %v331
    %v340 = vld [vmem:[#allocation8] sm:$0xff]
    %v341 = vld [vmem:[#allocation8 + $0x8] sm:$0xff]
    %v342 = vld [vmem:[#allocation8 + $0x10] sm:$0xff]
    %v343 = vld [vmem:[#allocation8 + $0x18] sm:$0xff]
    %v344 = vld [vmem:[#allocation8 + $0x20] sm:$0xff]
    %v345 = vld [vmem:[#allocation8 + $0x28] sm:$0xff]
    %v346 = vld [vmem:[#allocation8 + $0x30] sm:$0xff]
    %v347 = vld [vmem:[#allocation8 + $0x38] sm:$0xff]
    %v348 = vld [vmem:[#allocation8 + $0x40] sm:$0xff]
    %v349 = vld [vmem:[#allocation8 + $0x48] sm:$0xff]
    %v350 = vld [vmem:[#allocation8 + $0x50] sm:$0xff]
    %v351 = vld [vmem:[#allocation8 + $0x58] sm:$0xff]
    %v352 = vld [vmem:[#allocation8 + $0x60] sm:$0xff]
    %v353 = vld [vmem:[#allocation8 + $0x68] sm:$0xff]
    %v354 = vld [vmem:[#allocation8 + $0x70] sm:$0xff]
    %v355 = vld [vmem:[#allocation8 + $0x78] sm:$0xff]
    %v356 = vld [vmem:[#allocation8 + $0x80] sm:$0xff]
    %v357 = vld [vmem:[#allocation8 + $0x88] sm:$0xff]
    %v358 = vld [vmem:[#allocation8 + $0x90] sm:$0xff]
    %v359 = vld [vmem:[#allocation8 + $0x98] sm:$0xff]
    %v360 = vld [vmem:[#allocation8 + $0xa0] sm:$0xff]
    %v361 = vld [vmem:[#allocation8 + $0xa8] sm:$0xff]
    %v362 = vld [vmem:[#allocation8 + $0xb0] sm:$0xff]
    %v363 = vld [vmem:[#allocation8 + $0xb8] sm:$0xff]
    %v364 = vld [vmem:[#allocation8 + $0xc0] sm:$0xff]
    %v365 = vld [vmem:[#allocation8 + $0xc8] sm:$0xff]
    %v366 = vld [vmem:[#allocation8 + $0xd0] sm:$0xff]
    %v367 = vld [vmem:[#allocation8 + $0xd8] sm:$0xff]
    %v368 = vld [vmem:[#allocation8 + $0xe0] sm:$0xff]
    %v369 = vld [vmem:[#allocation8 + $0xe8] sm:$0xff]
    %v370 = vld [vmem:[#allocation8 + $0xf0] sm:$0xff]
    %v371 = vld [vmem:[#allocation8 + $0xf8] sm:$0xff]
    %v372 = vld [vmem:[#allocation8 + $0x100] sm:$0xff]
    %v373 = vld [vmem:[#allocation8 + $0x108] sm:$0xff]
    %v374 = vld [vmem:[#allocation8 + $0x110] sm:$0xff]
    %v375 = vld [vmem:[#allocation8 + $0x118] sm:$0xff]
    %v376 = vld [vmem:[#allocation8 + $0x120] sm:$0xff]
    %v377 = vld [vmem:[#allocation8 + $0x128] sm:$0xff]
    %v378 = vld [vmem:[#allocation8 + $0x130] sm:$0xff]
    %v379 = vld [vmem:[#allocation8 + $0x138] sm:$0xff]
    %v380 = vld [vmem:[#allocation8 + $0x140] sm:$0xff]
    %v381 = vld [vmem:[#allocation8 + $0x148] sm:$0xff]
    %v382 = vld [vmem:[#allocation8 + $0x150] sm:$0xff]
    %v383 = vld [vmem:[#allocation8 + $0x158] sm:$0xff]
    %v384 = vld [vmem:[#allocation8 + $0x160] sm:$0xff]
    %v385 = vld [vmem:[#allocation8 + $0x168] sm:$0xff]
    %v386 = vld [vmem:[#allocation8 + $0x170] sm:$0xff]
    %v387 = vld [vmem:[#allocation8 + $0x178] sm:$0xff]
    %v388 = vld [vmem:[#allocation8 + $0x180] sm:$0xff]
    %v389 = vld [vmem:[#allocation8 + $0x188] sm:$0xff]
    %v390 = vld [vmem:[#allocation8 + $0x190] sm:$0xff]
    %v391 = vld [vmem:[#allocation8 + $0x198] sm:$0xff]
    %v392 = vld [vmem:[#allocation8 + $0x1a0] sm:$0xff]
    %v393 = vld [vmem:[#allocation8 + $0x1a8] sm:$0xff]
    %v394 = vld [vmem:[#allocation8 + $0x1b0] sm:$0xff]
    %v395 = vld [vmem:[#allocation8 + $0x1b8] sm:$0xff]
    %v396 = vld [vmem:[#allocation8 + $0x1c0] sm:$0xff]
    %v397 = vld [vmem:[#allocation8 + $0x1c8] sm:$0xff]
    %v398 = vld [vmem:[#allocation8 + $0x1d0] sm:$0xff]
    %v399 = vld [vmem:[#allocation8 + $0x1d8] sm:$0xff]
    %v400 = vld [vmem:[#allocation8 + $0x1e0] sm:$0xff]
    %v401 = vld [vmem:[#allocation8 + $0x1e8] sm:$0xff]
    %v402 = vld [vmem:[#allocation8 + $0x1f0] sm:$0xff]
    %v403 = vld [vmem:[#allocation8 + $0x1f8] sm:$0xff]
    %v404 = vld [vmem:[#allocation8 + $0x200] sm:$0xff]
    %v405 = vld [vmem:[#allocation8 + $0x208] sm:$0xff]
    %v406 = vld [vmem:[#allocation8 + $0x210] sm:$0xff]
    %v407 = vld [vmem:[#allocation8 + $0x218] sm:$0xff]
    %v408 = vld [vmem:[#allocation8 + $0x220] sm:$0xff]
    %v409 = vld [vmem:[#allocation8 + $0x228] sm:$0xff]
    %v410 = vld [vmem:[#allocation8 + $0x230] sm:$0xff]
    %v411 = vld [vmem:[#allocation8 + $0x238] sm:$0xff]
    %v412 = vld [vmem:[#allocation8 + $0x240] sm:$0xff]
    %v413 = vld [vmem:[#allocation8 + $0x248] sm:$0xff]
    %v414 = vld [vmem:[#allocation8 + $0x250] sm:$0xff]
    %v415 = vld [vmem:[#allocation8 + $0x258] sm:$0xff]
    %v416 = vld [vmem:[#allocation8 + $0x260] sm:$0xff]
    %v417 = vld [vmem:[#allocation8 + $0x268] sm:$0xff]
    %v418 = vld [vmem:[#allocation8 + $0x270] sm:$0xff]
    %v419 = vld [vmem:[#allocation8 + $0x278] sm:$0xff]
    %v420 = vld [vmem:[#allocation8 + $0x280] sm:$0xff]
    %v421 = vld [vmem:[#allocation8 + $0x288] sm:$0xff]
    %v422 = vld [vmem:[#allocation8 + $0x290] sm:$0xff]
    %v423 = vld [vmem:[#allocation8 + $0x298] sm:$0xff]
    %v424 = vld [vmem:[#allocation8 + $0x2a0] sm:$0xff]
    %v425 = vld [vmem:[#allocation8 + $0x2a8] sm:$0xff]
    %v426 = vld [vmem:[#allocation8 + $0x2b0] sm:$0xff]
    %v427 = vld [vmem:[#allocation8 + $0x2b8] sm:$0xff]
    %v428 = vld [vmem:[#allocation8 + $0x2c0] sm:$0xff]
    %v429 = vld [vmem:[#allocation8 + $0x2c8] sm:$0xff]
    %v430 = vld [vmem:[#allocation8 + $0x2d0] sm:$0xff]
    %v431 = vld [vmem:[#allocation8 + $0x2d8] sm:$0xff]
    %v432 = vld [vmem:[#allocation8 + $0x2e0] sm:$0xff]
    %v433 = vld [vmem:[#allocation8 + $0x2e8] sm:$0xff]
    %v434 = vld [vmem:[#allocation8 + $0x2f0] sm:$0xff]
    %v435 = vld [vmem:[#allocation8 + $0x2f8] sm:$0xff]
    %v436 = vld [vmem:[#allocation8 + $0x300] sm:$0xff]
    %v437 = vld [vmem:[#allocation8 + $0x308] sm:$0xff]
    %v438 = vld [vmem:[#allocation8 + $0x310] sm:$0xff]
    %v439 = vld [vmem:[#allocation8 + $0x318] sm:$0xff]
    %v440 = vld [vmem:[#allocation8 + $0x320] sm:$0xff]
    %v441 = vld [vmem:[#allocation8 + $0x328] sm:$0xff]
    %v442 = vld [vmem:[#allocation8 + $0x330] sm:$0xff]
    %v443 = vld [vmem:[#allocation8 + $0x338] sm:$0xff]
    %v444 = vld [vmem:[#allocation8 + $0x340] sm:$0xff]
    %v445 = vld [vmem:[#allocation8 + $0x348] sm:$0xff]
    %v446 = vld [vmem:[#allocation8 + $0x350] sm:$0xff]
    %v447 = vld [vmem:[#allocation8 + $0x358] sm:$0xff]
    %v448 = vld [vmem:[#allocation8 + $0x360] sm:$0xff]
    %v449 = vld [vmem:[#allocation8 + $0x368] sm:$0xff]
    %v450 = vld [vmem:[#allocation8 + $0x370] sm:$0xff]
    %v451 = vld [vmem:[#allocation8 + $0x378] sm:$0xff]
    %v452 = vld [vmem:[#allocation8 + $0x380] sm:$0xff]
    %v453 = vld [vmem:[#allocation8 + $0x388] sm:$0xff]
    %v454 = vld [vmem:[#allocation8 + $0x390] sm:$0xff]
    %v455 = vld [vmem:[#allocation8 + $0x398] sm:$0xff]
    %v456 = vld [vmem:[#allocation8 + $0x3a0] sm:$0xff]
    %v457 = vld [vmem:[#allocation8 + $0x3a8] sm:$0xff]
    %v458 = vld [vmem:[#allocation8 + $0x3b0] sm:$0xff]
    %v459 = vld [vmem:[#allocation8 + $0x3b8] sm:$0xff]
    %v460 = vld [vmem:[#allocation8 + $0x3c0] sm:$0xff]
    %v461 = vld [vmem:[#allocation8 + $0x3c8] sm:$0xff]
    %v462 = vld [vmem:[#allocation8 + $0x3d0] sm:$0xff]
    %v463 = vld [vmem:[#allocation8 + $0x3d8] sm:$0xff]
    %v464 = vld [vmem:[#allocation8 + $0x3e0] sm:$0xff]
    %v465 = vld [vmem:[#allocation8 + $0x3e8] sm:$0xff]
    %v466 = vld [vmem:[#allocation8 + $0x3f0] sm:$0xff]
    %v467 = vld [vmem:[#allocation8 + $0x3f8] sm:$0xff]
    %v468 = vld [vmem:[#allocation8 + $0x400] sm:$0xff]
    %v469 = vld [vmem:[#allocation8 + $0x408] sm:$0xff]
    %v470 = vld [vmem:[#allocation8 + $0x410] sm:$0xff]
    %v471 = vld [vmem:[#allocation8 + $0x418] sm:$0xff]
    %v472 = vld [vmem:[#allocation8 + $0x420] sm:$0xff]
    %v473 = vld [vmem:[#allocation8 + $0x428] sm:$0xff]
    %v474 = vld [vmem:[#allocation8 + $0x430] sm:$0xff]
    %v475 = vld [vmem:[#allocation8 + $0x438] sm:$0xff]
    %v476 = vld [vmem:[#allocation8 + $0x440] sm:$0xff]
    %v477 = vld [vmem:[#allocation8 + $0x448] sm:$0xff]
    %v478 = vld [vmem:[#allocation8 + $0x450] sm:$0xff]
    %v479 = vld [vmem:[#allocation8 + $0x458] sm:$0xff]
    %v480 = vld [vmem:[#allocation8 + $0x460] sm:$0xff]
    %v481 = vld [vmem:[#allocation8 + $0x468] sm:$0xff]
    %v482 = vld [vmem:[#allocation8 + $0x470] sm:$0xff]
    %v483 = vld [vmem:[#allocation8 + $0x478] sm:$0xff]
    %v484 = vld [vmem:[#allocation8 + $0x480] sm:$0xff]
    %v485 = vld [vmem:[#allocation8 + $0x488] sm:$0xff]
    %v486 = vld [vmem:[#allocation8 + $0x490] sm:$0xff]
    %v487 = vld [vmem:[#allocation8 + $0x498] sm:$0xff]
    %v488 = vld [vmem:[#allocation8 + $0x4a0] sm:$0xff]
    %v489 = vld [vmem:[#allocation8 + $0x4a8] sm:$0xff]
    %v490 = vld [vmem:[#allocation8 + $0x4b0] sm:$0xff]
    %v491 = vld [vmem:[#allocation8 + $0x4b8] sm:$0xff]
    %v492 = vld [vmem:[#allocation8 + $0x4c0] sm:$0xff]
    %v493 = vld [vmem:[#allocation8 + $0x4c8] sm:$0xff]
    %v494 = vld [vmem:[#allocation8 + $0x4d0] sm:$0xff]
    %v495 = vld [vmem:[#allocation8 + $0x4d8] sm:$0xff]
    %v496 = vld [vmem:[#allocation8 + $0x4e0] sm:$0xff]
    %v497 = vld [vmem:[#allocation8 + $0x4e8] sm:$0xff]
    %v498 = vld [vmem:[#allocation8 + $0x4f0] sm:$0xff]
    %v499 = vld [vmem:[#allocation8 + $0x4f8] sm:$0xff]
    %v500 = vld [vmem:[#allocation8 + $0x500] sm:$0xff]
    %v501 = vld [vmem:[#allocation8 + $0x508] sm:$0xff]
    %v502 = vld [vmem:[#allocation8 + $0x510] sm:$0xff]
    %v503 = vld [vmem:[#allocation8 + $0x518] sm:$0xff]
    %v504 = vld [vmem:[#allocation8 + $0x520] sm:$0xff]
    %v505 = vld [vmem:[#allocation8 + $0x528] sm:$0xff]
    %v506 = vld [vmem:[#allocation8 + $0x530] sm:$0xff]
    %v507 = vld [vmem:[#allocation8 + $0x538] sm:$0xff]
    %v508 = vld [vmem:[#allocation8 + $0x540] sm:$0xff]
    %v509 = vld [vmem:[#allocation8 + $0x548] sm:$0xff]
    %v510 = vld [vmem:[#allocation8 + $0x550] sm:$0xff]
    %v511 = vld [vmem:[#allocation8 + $0x558] sm:$0xff]
    %v512 = vld [vmem:[#allocation8 + $0x560] sm:$0xff]
    %v513 = vld [vmem:[#allocation8 + $0x568] sm:$0xff]
    %v514 = vld [vmem:[#allocation8 + $0x570] sm:$0xff]
    %v515 = vld [vmem:[#allocation8 + $0x578] sm:$0xff]
    %v516 = vld [vmem:[#allocation8 + $0x580] sm:$0xff]
    %v517 = vld [vmem:[#allocation8 + $0x588] sm:$0xff]
    %v518 = vld [vmem:[#allocation8 + $0x590] sm:$0xff]
    %v519 = vld [vmem:[#allocation8 + $0x598] sm:$0xff]
    %v520 = vld [vmem:[#allocation8 + $0x5a0] sm:$0xff]
    %v521 = vld [vmem:[#allocation8 + $0x5a8] sm:$0xff]
    %v522 = vld [vmem:[#allocation8 + $0x5b0] sm:$0xff]
    %v523 = vld [vmem:[#allocation8 + $0x5b8] sm:$0xff]
    %v524 = vld [vmem:[#allocation8 + $0x5c0] sm:$0xff]
    %v525 = vld [vmem:[#allocation8 + $0x5c8] sm:$0xff]
    %v526 = vld [vmem:[#allocation8 + $0x5d0] sm:$0xff]
    %v527 = vld [vmem:[#allocation8 + $0x5d8] sm:$0xff]
    %v528 = vld [vmem:[#allocation8 + $0x5e0] sm:$0xff]
    %v529 = vld [vmem:[#allocation8 + $0x5e8] sm:$0xff]
    %v530 = vld [vmem:[#allocation8 + $0x5f0] sm:$0xff]
    %v531 = vld [vmem:[#allocation8 + $0x5f8] sm:$0xff]
    %v532 = vld [vmem:[#allocation8 + $0x600] sm:$0xff]
    %v533 = vld [vmem:[#allocation8 + $0x608] sm:$0xff]
    %v534 = vld [vmem:[#allocation8 + $0x610] sm:$0xff]
    %v535 = vld [vmem:[#allocation8 + $0x618] sm:$0xff]
    %v536 = vld [vmem:[#allocation8 + $0x620] sm:$0xff]
    %v537 = vld [vmem:[#allocation8 + $0x628] sm:$0xff]
    %v538 = vld [vmem:[#allocation8 + $0x630] sm:$0xff]
    %v539 = vld [vmem:[#allocation8 + $0x638] sm:$0xff]
    %v540 = vld [vmem:[#allocation8 + $0x640] sm:$0xff]
    %v541 = vld [vmem:[#allocation8 + $0x648] sm:$0xff]
    %v542 = vld [vmem:[#allocation8 + $0x650] sm:$0xff]
    %v543 = vld [vmem:[#allocation8 + $0x658] sm:$0xff]
    %v544 = vld [vmem:[#allocation8 + $0x660] sm:$0xff]
    %v545 = vld [vmem:[#allocation8 + $0x668] sm:$0xff]
    %v546 = vld [vmem:[#allocation8 + $0x670] sm:$0xff]
    %v547 = vld [vmem:[#allocation8 + $0x678] sm:$0xff]
    %v548 = vld [vmem:[#allocation8 + $0x680] sm:$0xff]
    %v549 = vld [vmem:[#allocation8 + $0x688] sm:$0xff]
    %v550 = vld [vmem:[#allocation8 + $0x690] sm:$0xff]
    %v551 = vld [vmem:[#allocation8 + $0x698] sm:$0xff]
    %v552 = vld [vmem:[#allocation8 + $0x6a0] sm:$0xff]
    %v553 = vld [vmem:[#allocation8 + $0x6a8] sm:$0xff]
    %v554 = vld [vmem:[#allocation8 + $0x6b0] sm:$0xff]
    %v555 = vld [vmem:[#allocation8 + $0x6b8] sm:$0xff]
    %v556 = vld [vmem:[#allocation8 + $0x6c0] sm:$0xff]
    %v557 = vld [vmem:[#allocation8 + $0x6c8] sm:$0xff]
    %v558 = vld [vmem:[#allocation8 + $0x6d0] sm:$0xff]
    %v559 = vld [vmem:[#allocation8 + $0x6d8] sm:$0xff]
    %v560 = vld [vmem:[#allocation8 + $0x6e0] sm:$0xff]
    %v561 = vld [vmem:[#allocation8 + $0x6e8] sm:$0xff]
    %v562 = vld [vmem:[#allocation8 + $0x6f0] sm:$0xff]
    %v563 = vld [vmem:[#allocation8 + $0x6f8] sm:$0xff]
    %v564 = vld [vmem:[#allocation8 + $0x700] sm:$0xff]
    %v565 = vld [vmem:[#allocation8 + $0x708] sm:$0xff]
    %v566 = vld [vmem:[#allocation8 + $0x710] sm:$0xff]
    %v567 = vld [vmem:[#allocation8 + $0x718] sm:$0xff]
    %v568 = vld [vmem:[#allocation8 + $0x720] sm:$0xff]
    %v569 = vld [vmem:[#allocation8 + $0x728] sm:$0xff]
    %v570 = vld [vmem:[#allocation8 + $0x730] sm:$0xff]
    %v571 = vld [vmem:[#allocation8 + $0x738] sm:$0xff]
    %v572 = vld [vmem:[#allocation8 + $0x740] sm:$0xff]
    %v573 = vld [vmem:[#allocation8 + $0x748] sm:$0xff]
    %v574 = vld [vmem:[#allocation8 + $0x750] sm:$0xff]
    %v575 = vld [vmem:[#allocation8 + $0x758] sm:$0xff]
    %v576 = vld [vmem:[#allocation8 + $0x760] sm:$0xff]
    %v577 = vld [vmem:[#allocation8 + $0x768] sm:$0xff]
    %v578 = vld [vmem:[#allocation8 + $0x770] sm:$0xff]
    %v579 = vld [vmem:[#allocation8 + $0x778] sm:$0xff]
    %v580 = vld [vmem:[#allocation8 + $0x780] sm:$0xff]
    %v581 = vld [vmem:[#allocation8 + $0x788] sm:$0xff]
    %v582 = vld [vmem:[#allocation8 + $0x790] sm:$0xff]
    %v583 = vld [vmem:[#allocation8 + $0x798] sm:$0xff]
    %v584 = vld [vmem:[#allocation8 + $0x7a0] sm:$0xff]
    %v585 = vld [vmem:[#allocation8 + $0x7a8] sm:$0xff]
    %v586 = vld [vmem:[#allocation8 + $0x7b0] sm:$0xff]
    %v587 = vld [vmem:[#allocation8 + $0x7b8] sm:$0xff]
    %v588 = vld [vmem:[#allocation8 + $0x7c0] sm:$0xff]
    %v589 = vld [vmem:[#allocation8 + $0x7c8] sm:$0xff]
    %v590 = vld [vmem:[#allocation8 + $0x7d0] sm:$0xff]
    %v591 = vld [vmem:[#allocation8 + $0x7d8] sm:$0xff]
    %v592 = vld [vmem:[#allocation8 + $0x7e0] sm:$0xff]
    %v593 = vld [vmem:[#allocation8 + $0x7e8] sm:$0xff]
    %v594 = vld [vmem:[#allocation8 + $0x7f0] sm:$0xff]
    %v595 = vld [vmem:[#allocation8 + $0x7f8] sm:$0xff]
    %v596 = vld [vmem:[#allocation8 + $0x800] sm:$0xff]
    %v597 = vld [vmem:[#allocation8 + $0x808] sm:$0xff]
    %v598 = vld [vmem:[#allocation8 + $0x810] sm:$0xff]
    %v599 = vld [vmem:[#allocation8 + $0x818] sm:$0xff]
    %v600 = vld [vmem:[#allocation8 + $0x820] sm:$0xff]
    %v601 = vld [vmem:[#allocation8 + $0x828] sm:$0xff]
    %v602 = vld [vmem:[#allocation8 + $0x830] sm:$0xff]
    %v603 = vld [vmem:[#allocation8 + $0x838] sm:$0xff]
    %v604 = vld [vmem:[#allocation8 + $0x840] sm:$0xff]
    %v605 = vld [vmem:[#allocation8 + $0x848] sm:$0xff]
    %v606 = vld [vmem:[#allocation8 + $0x850] sm:$0xff]
    %v607 = vld [vmem:[#allocation8 + $0x858] sm:$0xff]
    %v608 = vld [vmem:[#allocation8 + $0x860] sm:$0xff]
    %v609 = vld [vmem:[#allocation8 + $0x868] sm:$0xff]
    %v610 = vld [vmem:[#allocation8 + $0x870] sm:$0xff]
    %v611 = vld [vmem:[#allocation8 + $0x878] sm:$0xff]
    %v612 = vld [vmem:[#allocation8 + $0x880] sm:$0xff]
    %v613 = vld [vmem:[#allocation8 + $0x888] sm:$0xff]
    %v614 = vld [vmem:[#allocation8 + $0x890] sm:$0xff]
    %v615 = vld [vmem:[#allocation8 + $0x898] sm:$0xff]
    %v616 = vld [vmem:[#allocation8 + $0x8a0] sm:$0xff]
    %v617 = vld [vmem:[#allocation8 + $0x8a8] sm:$0xff]
    %v618 = vld [vmem:[#allocation8 + $0x8b0] sm:$0xff]
    %v619 = vld [vmem:[#allocation8 + $0x8b8] sm:$0xff]
    %v620 = vld [vmem:[#allocation8 + $0x8c0] sm:$0xff]
    %v621 = vld [vmem:[#allocation8 + $0x8c8] sm:$0xff]
    %v622 = vld [vmem:[#allocation8 + $0x8d0] sm:$0xff]
    %v623 = vld [vmem:[#allocation8 + $0x8d8] sm:$0xff]
    %v624 = vld [vmem:[#allocation8 + $0x8e0] sm:$0xff]
    %v625 = vld [vmem:[#allocation8 + $0x8e8] sm:$0xff]
    %v626 = vld [vmem:[#allocation8 + $0x8f0] sm:$0xff]
    %v627 = vld [vmem:[#allocation8 + $0x8f8] sm:$0xff]
    %v628 = vld [vmem:[#allocation8 + $0x900] sm:$0xff]
    %v629 = vld [vmem:[#allocation8 + $0x908] sm:$0xff]
    %v630 = vld [vmem:[#allocation8 + $0x910] sm:$0xff]
    %v631 = vld [vmem:[#allocation8 + $0x918] sm:$0xff]
    %v632 = vld [vmem:[#allocation8 + $0x920] sm:$0xff]
    %v633 = vld [vmem:[#allocation8 + $0x928] sm:$0xff]
    %v634 = vld [vmem:[#allocation8 + $0x930] sm:$0xff]
    %v635 = vld [vmem:[#allocation8 + $0x938] sm:$0xff]
    %v636 = vld [vmem:[#allocation8 + $0x940] sm:$0xff]
    %v637 = vld [vmem:[#allocation8 + $0x948] sm:$0xff]
    %v638 = vld [vmem:[#allocation8 + $0x950] sm:$0xff]
    %v639 = vld [vmem:[#allocation8 + $0x958] sm:$0xff]
    %v640 = vld [vmem:[#allocation8 + $0x960] sm:$0xff]
    %v641 = vld [vmem:[#allocation8 + $0x968] sm:$0xff]
    %v642 = vld [vmem:[#allocation8 + $0x970] sm:$0xff]
    %v643 = vld [vmem:[#allocation8 + $0x978] sm:$0xff]
    %v644 = vld [vmem:[#allocation8 + $0x980] sm:$0xff]
    %v645 = vld [vmem:[#allocation8 + $0x988] sm:$0xff]
    %v646 = vld [vmem:[#allocation8 + $0x990] sm:$0xff]
    %v647 = vld [vmem:[#allocation8 + $0x998] sm:$0xff]
    %v648 = vld [vmem:[#allocation8 + $0x9a0] sm:$0xff]
    %v649 = vld [vmem:[#allocation8 + $0x9a8] sm:$0xff]
    %v650 = vld [vmem:[#allocation8 + $0x9b0] sm:$0xff]
    %v651 = vld [vmem:[#allocation8 + $0x9b8] sm:$0xff]
    %v652 = vld [vmem:[#allocation8 + $0x9c0] sm:$0xff]
    %v653 = vld [vmem:[#allocation8 + $0x9c8] sm:$0xff]
    %v654 = vld [vmem:[#allocation8 + $0x9d0] sm:$0xff]
    %v655 = vld [vmem:[#allocation8 + $0x9d8] sm:$0xff]
    %v656 = vld [vmem:[#allocation8 + $0x9e0] sm:$0xff]
    %v657 = vld [vmem:[#allocation8 + $0x9e8] sm:$0xff]
    %v658 = vld [vmem:[#allocation8 + $0x9f0] sm:$0xff]
    %v659 = vld [vmem:[#allocation8 + $0x9f8] sm:$0xff]
    %v660 = vld [vmem:[#allocation8 + $0xa00] sm:$0xff]
    %v661 = vld [vmem:[#allocation8 + $0xa08] sm:$0xff]
    %v662 = vld [vmem:[#allocation8 + $0xa10] sm:$0xff]
    %v663 = vld [vmem:[#allocation8 + $0xa18] sm:$0xff]
    %v664 = vld [vmem:[#allocation8 + $0xa20] sm:$0xff]
    %v665 = vld [vmem:[#allocation8 + $0xa28] sm:$0xff]
    %v666 = vld [vmem:[#allocation8 + $0xa30] sm:$0xff]
    %v667 = vld [vmem:[#allocation8 + $0xa38] sm:$0xff]
    %v668 = vld [vmem:[#allocation8 + $0xa40] sm:$0xff]
    %v669 = vld [vmem:[#allocation8 + $0xa48] sm:$0xff]
    %v670 = vld [vmem:[#allocation8 + $0xa50] sm:$0xff]
    %v671 = vld [vmem:[#allocation8 + $0xa58] sm:$0xff]
    %v672 = vld [vmem:[#allocation8 + $0xa60] sm:$0xff]
    %v673 = vld [vmem:[#allocation8 + $0xa68] sm:$0xff]
    %v674 = vld [vmem:[#allocation8 + $0xa70] sm:$0xff]
    %v675 = vld [vmem:[#allocation8 + $0xa78] sm:$0xff]
    %v676 = vld [vmem:[#allocation8 + $0xa80] sm:$0xff]
    %v677 = vld [vmem:[#allocation8 + $0xa88] sm:$0xff]
    %v678 = vld [vmem:[#allocation8 + $0xa90] sm:$0xff]
    %v679 = vld [vmem:[#allocation8 + $0xa98] sm:$0xff]
    %v680 = vld [vmem:[#allocation8 + $0xaa0] sm:$0xff]
    %v681 = vld [vmem:[#allocation8 + $0xaa8] sm:$0xff]
    %v682 = vld [vmem:[#allocation8 + $0xab0] sm:$0xff]
    %v683 = vld [vmem:[#allocation8 + $0xab8] sm:$0xff]
    %v684 = vld [vmem:[#allocation8 + $0xac0] sm:$0xff]
    %v685 = vld [vmem:[#allocation8 + $0xac8] sm:$0xff]
    %v686 = vld [vmem:[#allocation8 + $0xad0] sm:$0xff]
    %v687 = vld [vmem:[#allocation8 + $0xad8] sm:$0xff]
    %v688 = vld [vmem:[#allocation8 + $0xae0] sm:$0xff]
    %v689 = vld [vmem:[#allocation8 + $0xae8] sm:$0xff]
    %v690 = vld [vmem:[#allocation8 + $0xaf0] sm:$0xff]
    %v691 = vld [vmem:[#allocation8 + $0xaf8] sm:$0xff]
    %v692 = vld [vmem:[#allocation8 + $0xb00] sm:$0xff]
    %v693 = vld [vmem:[#allocation8 + $0xb08] sm:$0xff]
    %v694 = vld [vmem:[#allocation8 + $0xb10] sm:$0xff]
    %v695 = vld [vmem:[#allocation8 + $0xb18] sm:$0xff]
    %v696 = vld [vmem:[#allocation8 + $0xb20] sm:$0xff]
    %v697 = vld [vmem:[#allocation8 + $0xb28] sm:$0xff]
    %v698 = vld [vmem:[#allocation8 + $0xb30] sm:$0xff]
    %v699 = vld [vmem:[#allocation8 + $0xb38] sm:$0xff]
    %v700 = vld [vmem:[#allocation8 + $0xb40] sm:$0xff]
    %v701 = vld [vmem:[#allocation8 + $0xb48] sm:$0xff]
    %v702 = vld [vmem:[#allocation8 + $0xb50] sm:$0xff]
    %v703 = vld [vmem:[#allocation8 + $0xb58] sm:$0xff]
    %v704 = vld [vmem:[#allocation8 + $0xb60] sm:$0xff]
    %v705 = vld [vmem:[#allocation8 + $0xb68] sm:$0xff]
    %v706 = vld [vmem:[#allocation8 + $0xb70] sm:$0xff]
    %v707 = vld [vmem:[#allocation8 + $0xb78] sm:$0xff]
    %v708 = vld [vmem:[#allocation8 + $0xb80] sm:$0xff]
    %v709 = vld [vmem:[#allocation8 + $0xb88] sm:$0xff]
    %v710 = vld [vmem:[#allocation8 + $0xb90] sm:$0xff]
    %v711 = vld [vmem:[#allocation8 + $0xb98] sm:$0xff]
    %v712 = vld [vmem:[#allocation8 + $0xba0] sm:$0xff]
    %v713 = vld [vmem:[#allocation8 + $0xba8] sm:$0xff]
    %v714 = vld [vmem:[#allocation8 + $0xbb0] sm:$0xff]
    %v715 = vld [vmem:[#allocation8 + $0xbb8] sm:$0xff]
    %v716 = vld [vmem:[#allocation8 + $0xbc0] sm:$0xff]
    %v717 = vld [vmem:[#allocation8 + $0xbc8] sm:$0xff]
    %v718 = vld [vmem:[#allocation8 + $0xbd0] sm:$0xff]
    %v719 = vld [vmem:[#allocation8 + $0xbd8] sm:$0xff]
    %v720 = vld [vmem:[#allocation8 + $0xbe0] sm:$0xff]
    %v721 = vld [vmem:[#allocation8 + $0xbe8] sm:$0xff]
    %v722 = vld [vmem:[#allocation8 + $0xbf0] sm:$0xff]
    %v723 = vld [vmem:[#allocation8 + $0xbf8] sm:$0xff]
    %v724 = vld [vmem:[#allocation8 + $0xc00] sm:$0xff]
    %v725 = vld [vmem:[#allocation8 + $0xc08] sm:$0xff]
    %v726 = vld [vmem:[#allocation8 + $0xc10] sm:$0xff]
    %v727 = vld [vmem:[#allocation8 + $0xc18] sm:$0xff]
    %v728 = vld [vmem:[#allocation8 + $0xc20] sm:$0xff]
    %v729 = vld [vmem:[#allocation8 + $0xc28] sm:$0xff]
    %v730 = vld [vmem:[#allocation8 + $0xc30] sm:$0xff]
    %v731 = vld [vmem:[#allocation8 + $0xc38] sm:$0xff]
    %v732 = vld [vmem:[#allocation8 + $0xc40] sm:$0xff]
    %v733 = vld [vmem:[#allocation8 + $0xc48] sm:$0xff]
    %v734 = vld [vmem:[#allocation8 + $0xc50] sm:$0xff]
    %v735 = vld [vmem:[#allocation8 + $0xc58] sm:$0xff]
    %v736 = vld [vmem:[#allocation8 + $0xc60] sm:$0xff]
    %v737 = vld [vmem:[#allocation8 + $0xc68] sm:$0xff]
    %v738 = vld [vmem:[#allocation8 + $0xc70] sm:$0xff]
    %v739 = vld [vmem:[#allocation8 + $0xc78] sm:$0xff]
    %v740 = vld [vmem:[#allocation8 + $0xc80] sm:$0xff]
    %v741 = vld [vmem:[#allocation8 + $0xc88] sm:$0xff]
    %v742 = vld [vmem:[#allocation8 + $0xc90] sm:$0xff]
    %v743 = vld [vmem:[#allocation8 + $0xc98] sm:$0xff]
    %v744 = vld [vmem:[#allocation8 + $0xca0] sm:$0xff]
    %v745 = vld [vmem:[#allocation8 + $0xca8] sm:$0xff]
    %v746 = vld [vmem:[#allocation8 + $0xcb0] sm:$0xff]
    %v747 = vld [vmem:[#allocation8 + $0xcb8] sm:$0xff]
    %v748 = vld [vmem:[#allocation8 + $0xcc0] sm:$0xff]
    %v749 = vld [vmem:[#allocation8 + $0xcc8] sm:$0xff]
    %v750 = vld [vmem:[#allocation8 + $0xcd0] sm:$0xff]
    %v751 = vld [vmem:[#allocation8 + $0xcd8] sm:$0xff]
    %v752 = vld [vmem:[#allocation8 + $0xce0] sm:$0xff]
    %v753 = vld [vmem:[#allocation8 + $0xce8] sm:$0xff]
    %v754 = vld [vmem:[#allocation8 + $0xcf0] sm:$0xff]
    %v755 = vld [vmem:[#allocation8 + $0xcf8] sm:$0xff]
    %v756 = vld [vmem:[#allocation8 + $0xd00] sm:$0xff]
    %v757 = vld [vmem:[#allocation8 + $0xd08] sm:$0xff]
    %v758 = vld [vmem:[#allocation8 + $0xd10] sm:$0xff]
    %v759 = vld [vmem:[#allocation8 + $0xd18] sm:$0xff]
    %v760 = vld [vmem:[#allocation8 + $0xd20] sm:$0xff]
    %v761 = vld [vmem:[#allocation8 + $0xd28] sm:$0xff]
    %v762 = vld [vmem:[#allocation8 + $0xd30] sm:$0xff]
    %v763 = vld [vmem:[#allocation8 + $0xd38] sm:$0xff]
    %v764 = vld [vmem:[#allocation8 + $0xd40] sm:$0xff]
    %v765 = vld [vmem:[#allocation8 + $0xd48] sm:$0xff]
    %v766 = vld [vmem:[#allocation8 + $0xd50] sm:$0xff]
    %v767 = vld [vmem:[#allocation8 + $0xd58] sm:$0xff]
    %v768 = vld [vmem:[#allocation8 + $0xd60] sm:$0xff]
    %v769 = vld [vmem:[#allocation8 + $0xd68] sm:$0xff]
    %v770 = vld [vmem:[#allocation8 + $0xd70] sm:$0xff]
    %v771 = vld [vmem:[#allocation8 + $0xd78] sm:$0xff]
    %v772 = vld [vmem:[#allocation8 + $0xd80] sm:$0xff]
    %v773 = vld [vmem:[#allocation8 + $0xd88] sm:$0xff]
    %v774 = vld [vmem:[#allocation8 + $0xd90] sm:$0xff]
    %v775 = vld [vmem:[#allocation8 + $0xd98] sm:$0xff]
    %v776 = vld [vmem:[#allocation8 + $0xda0] sm:$0xff]
    %v777 = vld [vmem:[#allocation8 + $0xda8] sm:$0xff]
    %v778 = vld [vmem:[#allocation8 + $0xdb0] sm:$0xff]
    %v779 = vld [vmem:[#allocation8 + $0xdb8] sm:$0xff]
    %v780 = vld [vmem:[#allocation8 + $0xdc0] sm:$0xff]
    %v781 = vld [vmem:[#allocation8 + $0xdc8] sm:$0xff]
    %v782 = vld [vmem:[#allocation8 + $0xdd0] sm:$0xff]
    %v783 = vld [vmem:[#allocation8 + $0xdd8] sm:$0xff]
    %v784 = vld [vmem:[#allocation8 + $0xde0] sm:$0xff]
    %v785 = vld [vmem:[#allocation8 + $0xde8] sm:$0xff]
    %v786 = vld [vmem:[#allocation8 + $0xdf0] sm:$0xff]
    %v787 = vld [vmem:[#allocation8 + $0xdf8] sm:$0xff]
    %v788 = vld [vmem:[#allocation8 + $0xe00] sm:$0xff]
    %v789 = vld [vmem:[#allocation8 + $0xe08] sm:$0xff]
    %v790 = vld [vmem:[#allocation8 + $0xe10] sm:$0xff]
    %v791 = vld [vmem:[#allocation8 + $0xe18] sm:$0xff]
    %v792 = vld [vmem:[#allocation8 + $0xe20] sm:$0xff]
    %v793 = vld [vmem:[#allocation8 + $0xe28] sm:$0xff]
    %v794 = vld [vmem:[#allocation8 + $0xe30] sm:$0xff]
    %v795 = vld [vmem:[#allocation8 + $0xe38] sm:$0xff]
    %v796 = vld [vmem:[#allocation8 + $0xe40] sm:$0xff]
    %v797 = vld [vmem:[#allocation8 + $0xe48] sm:$0xff]
    %v798 = vld [vmem:[#allocation8 + $0xe50] sm:$0xff]
    %v799 = vld [vmem:[#allocation8 + $0xe58] sm:$0xff]
    %v800 = vld [vmem:[#allocation8 + $0xe60] sm:$0xff]
    %v801 = vld [vmem:[#allocation8 + $0xe68] sm:$0xff]
    %v802 = vld [vmem:[#allocation8 + $0xe70] sm:$0xff]
    %v803 = vld [vmem:[#allocation8 + $0xe78] sm:$0xff]
    %v804 = vld [vmem:[#allocation8 + $0xe80] sm:$0xff]
    %v805 = vld [vmem:[#allocation8 + $0xe88] sm:$0xff]
    %v806 = vld [vmem:[#allocation8 + $0xe90] sm:$0xff]
    %v807 = vld [vmem:[#allocation8 + $0xe98] sm:$0xff]
    %v808 = vld [vmem:[#allocation8 + $0xea0] sm:$0xff]
    %v809 = vld [vmem:[#allocation8 + $0xea8] sm:$0xff]
    %v810 = vld [vmem:[#allocation8 + $0xeb0] sm:$0xff]
    %v811 = vld [vmem:[#allocation8 + $0xeb8] sm:$0xff]
    %v812 = vld [vmem:[#allocation8 + $0xec0] sm:$0xff]
    %v813 = vld [vmem:[#allocation8 + $0xec8] sm:$0xff]
    %v814 = vld [vmem:[#allocation8 + $0xed0] sm:$0xff]
    %v815 = vld [vmem:[#allocation8 + $0xed8] sm:$0xff]
    %v816 = vld [vmem:[#allocation8 + $0xee0] sm:$0xff]
    %v817 = vld [vmem:[#allocation8 + $0xee8] sm:$0xff]
    %v818 = vld [vmem:[#allocation8 + $0xef0] sm:$0xff]
    %v819 = vld [vmem:[#allocation8 + $0xef8] sm:$0xff]
    %v820 = vld [vmem:[#allocation13] sm:$0x3]
    %v822 = vperm.slane %v820, 0
    %v823 = vperm.slane %v820, 1
    %v1306 = vunpack.c.l.b16 %v340
    %v1307 = vunpack.c.h.b16 %v340
    %v1308 = vunpack.c.l.b16 %v341
    %v1309 = vunpack.c.h.b16 %v341
    %v1310 = vunpack.c.l.b16 %v342
    %v1311 = vunpack.c.h.b16 %v342
    %v1312 = vunpack.c.l.b16 %v343
    %v1313 = vunpack.c.h.b16 %v343
    %v1314 = vunpack.c.l.b16 %v344
    %v1315 = vunpack.c.h.b16 %v344
    %v1316 = vunpack.c.l.b16 %v345
    %v1317 = vunpack.c.h.b16 %v345
    %v1318 = vunpack.c.l.b16 %v346
    %v1319 = vunpack.c.h.b16 %v346
    %v1320 = vunpack.c.l.b16 %v347
    %v1321 = vunpack.c.h.b16 %v347
    %v1322 = vunpack.c.l.b16 %v348
    %v1323 = vunpack.c.h.b16 %v348
    %v1324 = vunpack.c.l.b16 %v349
    %v1325 = vunpack.c.h.b16 %v349
    %v1326 = vunpack.c.l.b16 %v350
    %v1327 = vunpack.c.h.b16 %v350
    %v1328 = vunpack.c.l.b16 %v351
    %v1329 = vunpack.c.h.b16 %v351
    %v1330 = vunpack.c.l.b16 %v352
    %v1331 = vunpack.c.h.b16 %v352
    %v1332 = vunpack.c.l.b16 %v353
    %v1333 = vunpack.c.h.b16 %v353
    %v1334 = vunpack.c.l.b16 %v354
    %v1335 = vunpack.c.h.b16 %v354
    %v1336 = vunpack.c.l.b16 %v355
    %v1337 = vunpack.c.h.b16 %v355
    %v1338 = vunpack.c.l.b16 %v356
    %v1339 = vunpack.c.h.b16 %v356
    %v1340 = vunpack.c.l.b16 %v357
    %v1341 = vunpack.c.h.b16 %v357
    %v1342 = vunpack.c.l.b16 %v358
    %v1343 = vunpack.c.h.b16 %v358
    %v1344 = vunpack.c.l.b16 %v359
    %v1345 = vunpack.c.h.b16 %v359
    %v1346 = vunpack.c.l.b16 %v360
    %v1347 = vunpack.c.h.b16 %v360
    %v1348 = vunpack.c.l.b16 %v361
    %v1349 = vunpack.c.h.b16 %v361
    %v1350 = vunpack.c.l.b16 %v362
    %v1351 = vunpack.c.h.b16 %v362
    %v1352 = vunpack.c.l.b16 %v363
    %v1353 = vunpack.c.h.b16 %v363
    %v1354 = vunpack.c.l.b16 %v364
    %v1355 = vunpack.c.h.b16 %v364
    %v1356 = vunpack.c.l.b16 %v365
    %v1357 = vunpack.c.h.b16 %v365
    %v1358 = vunpack.c.l.b16 %v366
    %v1359 = vunpack.c.h.b16 %v366
    %v1360 = vunpack.c.l.b16 %v367
    %v1361 = vunpack.c.h.b16 %v367
    %v1362 = vunpack.c.l.b16 %v368
    %v1363 = vunpack.c.h.b16 %v368
    %v1364 = vunpack.c.l.b16 %v369
    %v1365 = vunpack.c.h.b16 %v369
    %v1366 = vunpack.c.l.b16 %v370
    %v1367 = vunpack.c.h.b16 %v370
    %v1368 = vunpack.c.l.b16 %v371
    %v1369 = vunpack.c.h.b16 %v371
    %v1370 = vunpack.c.l.b16 %v372
    %v1371 = vunpack.c.h.b16 %v372
    %v1372 = vunpack.c.l.b16 %v373
    %v1373 = vunpack.c.h.b16 %v373
    %v1374 = vunpack.c.l.b16 %v374
    %v1375 = vunpack.c.h.b16 %v374
    %v1376 = vunpack.c.l.b16 %v375
    %v1377 = vunpack.c.h.b16 %v375
    %v1378 = vunpack.c.l.b16 %v376
    %v1379 = vunpack.c.h.b16 %v376
    %v1380 = vunpack.c.l.b16 %v377
    %v1381 = vunpack.c.h.b16 %v377
    %v1382 = vunpack.c.l.b16 %v378
    %v1383 = vunpack.c.h.b16 %v378
    %v1384 = vunpack.c.l.b16 %v379
    %v1385 = vunpack.c.h.b16 %v379
    %v1386 = vunpack.c.l.b16 %v380
    %v1387 = vunpack.c.h.b16 %v380
    %v1388 = vunpack.c.l.b16 %v381
    %v1389 = vunpack.c.h.b16 %v381
    %v1390 = vunpack.c.l.b16 %v382
    %v1391 = vunpack.c.h.b16 %v382
    %v1392 = vunpack.c.l.b16 %v383
    %v1393 = vunpack.c.h.b16 %v383
    %v1394 = vunpack.c.l.b16 %v384
    %v1395 = vunpack.c.h.b16 %v384
    %v1396 = vunpack.c.l.b16 %v385
    %v1397 = vunpack.c.h.b16 %v385
    %v1398 = vunpack.c.l.b16 %v386
    %v1399 = vunpack.c.h.b16 %v386
    %v1400 = vunpack.c.l.b16 %v387
    %v1401 = vunpack.c.h.b16 %v387
    %v1402 = vunpack.c.l.b16 %v388
    %v1403 = vunpack.c.h.b16 %v388
    %v1404 = vunpack.c.l.b16 %v389
    %v1405 = vunpack.c.h.b16 %v389
    %v1406 = vunpack.c.l.b16 %v390
    %v1407 = vunpack.c.h.b16 %v390
    %v1408 = vunpack.c.l.b16 %v391
    %v1409 = vunpack.c.h.b16 %v391
    %v1410 = vunpack.c.l.b16 %v392
    %v1411 = vunpack.c.h.b16 %v392
    %v1412 = vunpack.c.l.b16 %v393
    %v1413 = vunpack.c.h.b16 %v393
    %v1414 = vunpack.c.l.b16 %v394
    %v1415 = vunpack.c.h.b16 %v394
    %v1416 = vunpack.c.l.b16 %v395
    %v1417 = vunpack.c.h.b16 %v395
    %v1418 = vunpack.c.l.b16 %v396
    %v1419 = vunpack.c.h.b16 %v396
    %v1420 = vunpack.c.l.b16 %v397
    %v1421 = vunpack.c.h.b16 %v397
    %v1422 = vunpack.c.l.b16 %v398
    %v1423 = vunpack.c.h.b16 %v398
    %v1424 = vunpack.c.l.b16 %v399
    %v1425 = vunpack.c.h.b16 %v399
    %v1426 = vunpack.c.l.b16 %v400
    %v1427 = vunpack.c.h.b16 %v400
    %v1428 = vunpack.c.l.b16 %v401
    %v1429 = vunpack.c.h.b16 %v401
    %v1430 = vunpack.c.l.b16 %v402
    %v1431 = vunpack.c.h.b16 %v402
    %v1432 = vunpack.c.l.b16 %v403
    %v1433 = vunpack.c.h.b16 %v403
    %v1434 = vunpack.c.l.b16 %v404
    %v1435 = vunpack.c.h.b16 %v404
    %v1436 = vunpack.c.l.b16 %v405
    %v1437 = vunpack.c.h.b16 %v405
    %v1438 = vunpack.c.l.b16 %v406
    %v1439 = vunpack.c.h.b16 %v406
    %v1440 = vunpack.c.l.b16 %v407
    %v1441 = vunpack.c.h.b16 %v407
    %v1442 = vunpack.c.l.b16 %v408
    %v1443 = vunpack.c.h.b16 %v408
    %v1444 = vunpack.c.l.b16 %v409
    %v1445 = vunpack.c.h.b16 %v409
    %v1446 = vunpack.c.l.b16 %v410
    %v1447 = vunpack.c.h.b16 %v410
    %v1448 = vunpack.c.l.b16 %v411
    %v1449 = vunpack.c.h.b16 %v411
    %v1450 = vunpack.c.l.b16 %v412
    %v1451 = vunpack.c.h.b16 %v412
    %v1452 = vunpack.c.l.b16 %v413
    %v1453 = vunpack.c.h.b16 %v413
    %v1454 = vunpack.c.l.b16 %v414
    %v1455 = vunpack.c.h.b16 %v414
    %v1456 = vunpack.c.l.b16 %v415
    %v1457 = vunpack.c.h.b16 %v415
    %v1458 = vunpack.c.l.b16 %v416
    %v1459 = vunpack.c.h.b16 %v416
    %v1460 = vunpack.c.l.b16 %v417
    %v1461 = vunpack.c.h.b16 %v417
    %v1462 = vunpack.c.l.b16 %v418
    %v1463 = vunpack.c.h.b16 %v418
    %v1464 = vunpack.c.l.b16 %v419
    %v1465 = vunpack.c.h.b16 %v419
    %v1466 = vunpack.c.l.b16 %v420
    %v1467 = vunpack.c.h.b16 %v420
    %v1468 = vunpack.c.l.b16 %v421
    %v1469 = vunpack.c.h.b16 %v421
    %v1470 = vunpack.c.l.b16 %v422
    %v1471 = vunpack.c.h.b16 %v422
    %v1472 = vunpack.c.l.b16 %v423
    %v1473 = vunpack.c.h.b16 %v423
    %v1474 = vunpack.c.l.b16 %v424
    %v1475 = vunpack.c.h.b16 %v424
    %v1476 = vunpack.c.l.b16 %v425
    %v1477 = vunpack.c.h.b16 %v425
    %v1478 = vunpack.c.l.b16 %v426
    %v1479 = vunpack.c.h.b16 %v426
    %v1480 = vunpack.c.l.b16 %v427
    %v1481 = vunpack.c.h.b16 %v427
    %v1482 = vunpack.c.l.b16 %v428
    %v1483 = vunpack.c.h.b16 %v428
    %v1484 = vunpack.c.l.b16 %v429
    %v1485 = vunpack.c.h.b16 %v429
    %v1486 = vunpack.c.l.b16 %v430
    %v1487 = vunpack.c.h.b16 %v430
    %v1488 = vunpack.c.l.b16 %v431
    %v1489 = vunpack.c.h.b16 %v431
    %v1490 = vunpack.c.l.b16 %v432
    %v1491 = vunpack.c.h.b16 %v432
    %v1492 = vunpack.c.l.b16 %v433
    %v1493 = vunpack.c.h.b16 %v433
    %v1494 = vunpack.c.l.b16 %v434
    %v1495 = vunpack.c.h.b16 %v434
    %v1496 = vunpack.c.l.b16 %v435
    %v1497 = vunpack.c.h.b16 %v435
    %v1498 = vunpack.c.l.b16 %v436
    %v1499 = vunpack.c.h.b16 %v436
    %v1500 = vunpack.c.l.b16 %v437
    %v1501 = vunpack.c.h.b16 %v437
    %v1502 = vunpack.c.l.b16 %v438
    %v1503 = vunpack.c.h.b16 %v438
    %v1504 = vunpack.c.l.b16 %v439
    %v1505 = vunpack.c.h.b16 %v439
    %v1506 = vunpack.c.l.b16 %v440
    %v1507 = vunpack.c.h.b16 %v440
    %v1508 = vunpack.c.l.b16 %v441
    %v1509 = vunpack.c.h.b16 %v441
    %v1510 = vunpack.c.l.b16 %v442
    %v1511 = vunpack.c.h.b16 %v442
    %v1512 = vunpack.c.l.b16 %v443
    %v1513 = vunpack.c.h.b16 %v443
    %v1514 = vunpack.c.l.b16 %v444
    %v1515 = vunpack.c.h.b16 %v444
    %v1516 = vunpack.c.l.b16 %v445
    %v1517 = vunpack.c.h.b16 %v445
    %v1518 = vunpack.c.l.b16 %v446
    %v1519 = vunpack.c.h.b16 %v446
    %v1520 = vunpack.c.l.b16 %v447
    %v1521 = vunpack.c.h.b16 %v447
    %v1522 = vunpack.c.l.b16 %v448
    %v1523 = vunpack.c.h.b16 %v448
    %v1524 = vunpack.c.l.b16 %v449
    %v1525 = vunpack.c.h.b16 %v449
    %v1526 = vunpack.c.l.b16 %v450
    %v1527 = vunpack.c.h.b16 %v450
    %v1528 = vunpack.c.l.b16 %v451
    %v1529 = vunpack.c.h.b16 %v451
    %v1530 = vunpack.c.l.b16 %v452
    %v1531 = vunpack.c.h.b16 %v452
    %v1532 = vunpack.c.l.b16 %v453
    %v1533 = vunpack.c.h.b16 %v453
    %v1534 = vunpack.c.l.b16 %v454
    %v1535 = vunpack.c.h.b16 %v454
    %v1536 = vunpack.c.l.b16 %v455
    %v1537 = vunpack.c.h.b16 %v455
    %v1538 = vunpack.c.l.b16 %v456
    %v1539 = vunpack.c.h.b16 %v456
    %v1540 = vunpack.c.l.b16 %v457
    %v1541 = vunpack.c.h.b16 %v457
    %v1542 = vunpack.c.l.b16 %v458
    %v1543 = vunpack.c.h.b16 %v458
    %v1544 = vunpack.c.l.b16 %v459
    %v1545 = vunpack.c.h.b16 %v459
    %v1546 = vunpack.c.l.b16 %v460
    %v1547 = vunpack.c.h.b16 %v460
    %v1548 = vunpack.c.l.b16 %v461
    %v1549 = vunpack.c.h.b16 %v461
    %v1550 = vunpack.c.l.b16 %v462
    %v1551 = vunpack.c.h.b16 %v462
    %v1552 = vunpack.c.l.b16 %v463
    %v1553 = vunpack.c.h.b16 %v463
    %v1554 = vunpack.c.l.b16 %v464
    %v1555 = vunpack.c.h.b16 %v464
    %v1556 = vunpack.c.l.b16 %v465
    %v1557 = vunpack.c.h.b16 %v465
    %v1558 = vunpack.c.l.b16 %v466
    %v1559 = vunpack.c.h.b16 %v466
    %v1560 = vunpack.c.l.b16 %v467
    %v1561 = vunpack.c.h.b16 %v467
    %v1562 = vunpack.c.l.b16 %v468
    %v1563 = vunpack.c.h.b16 %v468
    %v1564 = vunpack.c.l.b16 %v469
    %v1565 = vunpack.c.h.b16 %v469
    %v1566 = vunpack.c.l.b16 %v470
    %v1567 = vunpack.c.h.b16 %v470
    %v1568 = vunpack.c.l.b16 %v471
    %v1569 = vunpack.c.h.b16 %v471
    %v1570 = vunpack.c.l.b16 %v472
    %v1571 = vunpack.c.h.b16 %v472
    %v1572 = vunpack.c.l.b16 %v473
    %v1573 = vunpack.c.h.b16 %v473
    %v1574 = vunpack.c.l.b16 %v474
    %v1575 = vunpack.c.h.b16 %v474
    %v1576 = vunpack.c.l.b16 %v475
    %v1577 = vunpack.c.h.b16 %v475
    %v1578 = vunpack.c.l.b16 %v476
    %v1579 = vunpack.c.h.b16 %v476
    %v1580 = vunpack.c.l.b16 %v477
    %v1581 = vunpack.c.h.b16 %v477
    %v1582 = vunpack.c.l.b16 %v478
    %v1583 = vunpack.c.h.b16 %v478
    %v1584 = vunpack.c.l.b16 %v479
    %v1585 = vunpack.c.h.b16 %v479
    %v1586 = vunpack.c.l.b16 %v480
    %v1587 = vunpack.c.h.b16 %v480
    %v1588 = vunpack.c.l.b16 %v481
    %v1589 = vunpack.c.h.b16 %v481
    %v1590 = vunpack.c.l.b16 %v482
    %v1591 = vunpack.c.h.b16 %v482
    %v1592 = vunpack.c.l.b16 %v483
    %v1593 = vunpack.c.h.b16 %v483
    %v1594 = vunpack.c.l.b16 %v484
    %v1595 = vunpack.c.h.b16 %v484
    %v1596 = vunpack.c.l.b16 %v485
    %v1597 = vunpack.c.h.b16 %v485
    %v1598 = vunpack.c.l.b16 %v486
    %v1599 = vunpack.c.h.b16 %v486
    %v1600 = vunpack.c.l.b16 %v487
    %v1601 = vunpack.c.h.b16 %v487
    %v1602 = vunpack.c.l.b16 %v488
    %v1603 = vunpack.c.h.b16 %v488
    %v1604 = vunpack.c.l.b16 %v489
    %v1605 = vunpack.c.h.b16 %v489
    %v1606 = vunpack.c.l.b16 %v490
    %v1607 = vunpack.c.h.b16 %v490
    %v1608 = vunpack.c.l.b16 %v491
    %v1609 = vunpack.c.h.b16 %v491
    %v1610 = vunpack.c.l.b16 %v492
    %v1611 = vunpack.c.h.b16 %v492
    %v1612 = vunpack.c.l.b16 %v493
    %v1613 = vunpack.c.h.b16 %v493
    %v1614 = vunpack.c.l.b16 %v494
    %v1615 = vunpack.c.h.b16 %v494
    %v1616 = vunpack.c.l.b16 %v495
    %v1617 = vunpack.c.h.b16 %v495
    %v1618 = vunpack.c.l.b16 %v496
    %v1619 = vunpack.c.h.b16 %v496
    %v1620 = vunpack.c.l.b16 %v497
    %v1621 = vunpack.c.h.b16 %v497
    %v1622 = vunpack.c.l.b16 %v498
    %v1623 = vunpack.c.h.b16 %v498
    %v1624 = vunpack.c.l.b16 %v499
    %v1625 = vunpack.c.h.b16 %v499
    %v1626 = vunpack.c.l.b16 %v500
    %v1627 = vunpack.c.h.b16 %v500
    %v1628 = vunpack.c.l.b16 %v501
    %v1629 = vunpack.c.h.b16 %v501
    %v1630 = vunpack.c.l.b16 %v502
    %v1631 = vunpack.c.h.b16 %v502
    %v1632 = vunpack.c.l.b16 %v503
    %v1633 = vunpack.c.h.b16 %v503
    %v1634 = vunpack.c.l.b16 %v504
    %v1635 = vunpack.c.h.b16 %v504
    %v1636 = vunpack.c.l.b16 %v505
    %v1637 = vunpack.c.h.b16 %v505
    %v1638 = vunpack.c.l.b16 %v506
    %v1639 = vunpack.c.h.b16 %v506
    %v1640 = vunpack.c.l.b16 %v507
    %v1641 = vunpack.c.h.b16 %v507
    %v1642 = vunpack.c.l.b16 %v508
    %v1643 = vunpack.c.h.b16 %v508
    %v1644 = vunpack.c.l.b16 %v509
    %v1645 = vunpack.c.h.b16 %v509
    %v1646 = vunpack.c.l.b16 %v510
    %v1647 = vunpack.c.h.b16 %v510
    %v1648 = vunpack.c.l.b16 %v511
    %v1649 = vunpack.c.h.b16 %v511
    %v1650 = vunpack.c.l.b16 %v512
    %v1651 = vunpack.c.h.b16 %v512
    %v1652 = vunpack.c.l.b16 %v513
    %v1653 = vunpack.c.h.b16 %v513
    %v1654 = vunpack.c.l.b16 %v514
    %v1655 = vunpack.c.h.b16 %v514
    %v1656 = vunpack.c.l.b16 %v515
    %v1657 = vunpack.c.h.b16 %v515
    %v1658 = vunpack.c.l.b16 %v516
    %v1659 = vunpack.c.h.b16 %v516
    %v1660 = vunpack.c.l.b16 %v517
    %v1661 = vunpack.c.h.b16 %v517
    %v1662 = vunpack.c.l.b16 %v518
    %v1663 = vunpack.c.h.b16 %v518
    %v1664 = vunpack.c.l.b16 %v519
    %v1665 = vunpack.c.h.b16 %v519
    %v1666 = vunpack.c.l.b16 %v520
    %v1667 = vunpack.c.h.b16 %v520
    %v1668 = vunpack.c.l.b16 %v521
    %v1669 = vunpack.c.h.b16 %v521
    %v1670 = vunpack.c.l.b16 %v522
    %v1671 = vunpack.c.h.b16 %v522
    %v1672 = vunpack.c.l.b16 %v523
    %v1673 = vunpack.c.h.b16 %v523
    %v1674 = vunpack.c.l.b16 %v524
    %v1675 = vunpack.c.h.b16 %v524
    %v1676 = vunpack.c.l.b16 %v525
    %v1677 = vunpack.c.h.b16 %v525
    %v1678 = vunpack.c.l.b16 %v526
    %v1679 = vunpack.c.h.b16 %v526
    %v1680 = vunpack.c.l.b16 %v527
    %v1681 = vunpack.c.h.b16 %v527
    %v1682 = vunpack.c.l.b16 %v528
    %v1683 = vunpack.c.h.b16 %v528
    %v1684 = vunpack.c.l.b16 %v529
    %v1685 = vunpack.c.h.b16 %v529
    %v1686 = vunpack.c.l.b16 %v530
    %v1687 = vunpack.c.h.b16 %v530
    %v1688 = vunpack.c.l.b16 %v531
    %v1689 = vunpack.c.h.b16 %v531
    %v1690 = vunpack.c.l.b16 %v532
    %v1691 = vunpack.c.h.b16 %v532
    %v1692 = vunpack.c.l.b16 %v533
    %v1693 = vunpack.c.h.b16 %v533
    %v1694 = vunpack.c.l.b16 %v534
    %v1695 = vunpack.c.h.b16 %v534
    %v1696 = vunpack.c.l.b16 %v535
    %v1697 = vunpack.c.h.b16 %v535
    %v1698 = vunpack.c.l.b16 %v536
    %v1699 = vunpack.c.h.b16 %v536
    %v1700 = vunpack.c.l.b16 %v537
    %v1701 = vunpack.c.h.b16 %v537
    %v1702 = vunpack.c.l.b16 %v538
    %v1703 = vunpack.c.h.b16 %v538
    %v1704 = vunpack.c.l.b16 %v539
    %v1705 = vunpack.c.h.b16 %v539
    %v1706 = vunpack.c.l.b16 %v540
    %v1707 = vunpack.c.h.b16 %v540
    %v1708 = vunpack.c.l.b16 %v541
    %v1709 = vunpack.c.h.b16 %v541
    %v1710 = vunpack.c.l.b16 %v542
    %v1711 = vunpack.c.h.b16 %v542
    %v1712 = vunpack.c.l.b16 %v543
    %v1713 = vunpack.c.h.b16 %v543
    %v1714 = vunpack.c.l.b16 %v544
    %v1715 = vunpack.c.h.b16 %v544
    %v1716 = vunpack.c.l.b16 %v545
    %v1717 = vunpack.c.h.b16 %v545
    %v1718 = vunpack.c.l.b16 %v546
    %v1719 = vunpack.c.h.b16 %v546
    %v1720 = vunpack.c.l.b16 %v547
    %v1721 = vunpack.c.h.b16 %v547
    %v1722 = vunpack.c.l.b16 %v548
    %v1723 = vunpack.c.h.b16 %v548
    %v1724 = vunpack.c.l.b16 %v549
    %v1725 = vunpack.c.h.b16 %v549
    %v1726 = vunpack.c.l.b16 %v550
    %v1727 = vunpack.c.h.b16 %v550
    %v1728 = vunpack.c.l.b16 %v551
    %v1729 = vunpack.c.h.b16 %v551
    %v1730 = vunpack.c.l.b16 %v552
    %v1731 = vunpack.c.h.b16 %v552
    %v1732 = vunpack.c.l.b16 %v553
    %v1733 = vunpack.c.h.b16 %v553
    %v1734 = vunpack.c.l.b16 %v554
    %v1735 = vunpack.c.h.b16 %v554
    %v1736 = vunpack.c.l.b16 %v555
    %v1737 = vunpack.c.h.b16 %v555
    %v1738 = vunpack.c.l.b16 %v556
    %v1739 = vunpack.c.h.b16 %v556
    %v1740 = vunpack.c.l.b16 %v557
    %v1741 = vunpack.c.h.b16 %v557
    %v1742 = vunpack.c.l.b16 %v558
    %v1743 = vunpack.c.h.b16 %v558
    %v1744 = vunpack.c.l.b16 %v559
    %v1745 = vunpack.c.h.b16 %v559
    %v1746 = vunpack.c.l.b16 %v560
    %v1747 = vunpack.c.h.b16 %v560
    %v1748 = vunpack.c.l.b16 %v561
    %v1749 = vunpack.c.h.b16 %v561
    %v1750 = vunpack.c.l.b16 %v562
    %v1751 = vunpack.c.h.b16 %v562
    %v1752 = vunpack.c.l.b16 %v563
    %v1753 = vunpack.c.h.b16 %v563
    %v1754 = vunpack.c.l.b16 %v564
    %v1755 = vunpack.c.h.b16 %v564
    %v1756 = vunpack.c.l.b16 %v565
    %v1757 = vunpack.c.h.b16 %v565
    %v1758 = vunpack.c.l.b16 %v566
    %v1759 = vunpack.c.h.b16 %v566
    %v1760 = vunpack.c.l.b16 %v567
    %v1761 = vunpack.c.h.b16 %v567
    %v1762 = vunpack.c.l.b16 %v568
    %v1763 = vunpack.c.h.b16 %v568
    %v1764 = vunpack.c.l.b16 %v569
    %v1765 = vunpack.c.h.b16 %v569
    %v1766 = vunpack.c.l.b16 %v570
    %v1767 = vunpack.c.h.b16 %v570
    %v1768 = vunpack.c.l.b16 %v571
    %v1769 = vunpack.c.h.b16 %v571
    %v1770 = vunpack.c.l.b16 %v572
    %v1771 = vunpack.c.h.b16 %v572
    %v1772 = vunpack.c.l.b16 %v573
    %v1773 = vunpack.c.h.b16 %v573
    %v1774 = vunpack.c.l.b16 %v574
    %v1775 = vunpack.c.h.b16 %v574
    %v1776 = vunpack.c.l.b16 %v575
    %v1777 = vunpack.c.h.b16 %v575
    %v1778 = vunpack.c.l.b16 %v576
    %v1779 = vunpack.c.h.b16 %v576
    %v1780 = vunpack.c.l.b16 %v577
    %v1781 = vunpack.c.h.b16 %v577
    %v1782 = vunpack.c.l.b16 %v578
    %v1783 = vunpack.c.h.b16 %v578
    %v1784 = vunpack.c.l.b16 %v579
    %v1785 = vunpack.c.h.b16 %v579
    %v1786 = vunpack.c.l.b16 %v580
    %v1787 = vunpack.c.h.b16 %v580
    %v1788 = vunpack.c.l.b16 %v581
    %v1789 = vunpack.c.h.b16 %v581
    %v1790 = vunpack.c.l.b16 %v582
    %v1791 = vunpack.c.h.b16 %v582
    %v1792 = vunpack.c.l.b16 %v583
    %v1793 = vunpack.c.h.b16 %v583
    %v1794 = vunpack.c.l.b16 %v584
    %v1795 = vunpack.c.h.b16 %v584
    %v1796 = vunpack.c.l.b16 %v585
    %v1797 = vunpack.c.h.b16 %v585
    %v1798 = vunpack.c.l.b16 %v586
    %v1799 = vunpack.c.h.b16 %v586
    %v1800 = vunpack.c.l.b16 %v587
    %v1801 = vunpack.c.h.b16 %v587
    %v1802 = vunpack.c.l.b16 %v588
    %v1803 = vunpack.c.h.b16 %v588
    %v1804 = vunpack.c.l.b16 %v589
    %v1805 = vunpack.c.h.b16 %v589
    %v1806 = vunpack.c.l.b16 %v590
    %v1807 = vunpack.c.h.b16 %v590
    %v1808 = vunpack.c.l.b16 %v591
    %v1809 = vunpack.c.h.b16 %v591
    %v1810 = vunpack.c.l.b16 %v592
    %v1811 = vunpack.c.h.b16 %v592
    %v1812 = vunpack.c.l.b16 %v593
    %v1813 = vunpack.c.h.b16 %v593
    %v1814 = vunpack.c.l.b16 %v594
    %v1815 = vunpack.c.h.b16 %v594
    %v1816 = vunpack.c.l.b16 %v595
    %v1817 = vunpack.c.h.b16 %v595
    %v1818 = vunpack.c.l.b16 %v596
    %v1819 = vunpack.c.h.b16 %v596
    %v1820 = vunpack.c.l.b16 %v597
    %v1821 = vunpack.c.h.b16 %v597
    %v1822 = vunpack.c.l.b16 %v598
    %v1823 = vunpack.c.h.b16 %v598
    %v1824 = vunpack.c.l.b16 %v599
    %v1825 = vunpack.c.h.b16 %v599
    %v1826 = vunpack.c.l.b16 %v600
    %v1827 = vunpack.c.h.b16 %v600
    %v1828 = vunpack.c.l.b16 %v601
    %v1829 = vunpack.c.h.b16 %v601
    %v1830 = vunpack.c.l.b16 %v602
    %v1831 = vunpack.c.h.b16 %v602
    %v1832 = vunpack.c.l.b16 %v603
    %v1833 = vunpack.c.h.b16 %v603
    %v1834 = vunpack.c.l.b16 %v604
    %v1835 = vunpack.c.h.b16 %v604
    %v1836 = vunpack.c.l.b16 %v605
    %v1837 = vunpack.c.h.b16 %v605
    %v1838 = vunpack.c.l.b16 %v606
    %v1839 = vunpack.c.h.b16 %v606
    %v1840 = vunpack.c.l.b16 %v607
    %v1841 = vunpack.c.h.b16 %v607
    %v1842 = vunpack.c.l.b16 %v608
    %v1843 = vunpack.c.h.b16 %v608
    %v1844 = vunpack.c.l.b16 %v609
    %v1845 = vunpack.c.h.b16 %v609
    %v1846 = vunpack.c.l.b16 %v610
    %v1847 = vunpack.c.h.b16 %v610
    %v1848 = vunpack.c.l.b16 %v611
    %v1849 = vunpack.c.h.b16 %v611
    %v1850 = vunpack.c.l.b16 %v612
    %v1851 = vunpack.c.h.b16 %v612
    %v1852 = vunpack.c.l.b16 %v613
    %v1853 = vunpack.c.h.b16 %v613
    %v1854 = vunpack.c.l.b16 %v614
    %v1855 = vunpack.c.h.b16 %v614
    %v1856 = vunpack.c.l.b16 %v615
    %v1857 = vunpack.c.h.b16 %v615
    %v1858 = vunpack.c.l.b16 %v616
    %v1859 = vunpack.c.h.b16 %v616
    %v1860 = vunpack.c.l.b16 %v617
    %v1861 = vunpack.c.h.b16 %v617
    %v1862 = vunpack.c.l.b16 %v618
    %v1863 = vunpack.c.h.b16 %v618
    %v1864 = vunpack.c.l.b16 %v619
    %v1865 = vunpack.c.h.b16 %v619
    %v1866 = vunpack.c.l.b16 %v620
    %v1867 = vunpack.c.h.b16 %v620
    %v1868 = vunpack.c.l.b16 %v621
    %v1869 = vunpack.c.h.b16 %v621
    %v1870 = vunpack.c.l.b16 %v622
    %v1871 = vunpack.c.h.b16 %v622
    %v1872 = vunpack.c.l.b16 %v623
    %v1873 = vunpack.c.h.b16 %v623
    %v1874 = vunpack.c.l.b16 %v624
    %v1875 = vunpack.c.h.b16 %v624
    %v1876 = vunpack.c.l.b16 %v625
    %v1877 = vunpack.c.h.b16 %v625
    %v1878 = vunpack.c.l.b16 %v626
    %v1879 = vunpack.c.h.b16 %v626
    %v1880 = vunpack.c.l.b16 %v627
    %v1881 = vunpack.c.h.b16 %v627
    %v1882 = vunpack.c.l.b16 %v628
    %v1883 = vunpack.c.h.b16 %v628
    %v1884 = vunpack.c.l.b16 %v629
    %v1885 = vunpack.c.h.b16 %v629
    %v1886 = vunpack.c.l.b16 %v630
    %v1887 = vunpack.c.h.b16 %v630
    %v1888 = vunpack.c.l.b16 %v631
    %v1889 = vunpack.c.h.b16 %v631
    %v1890 = vunpack.c.l.b16 %v632
    %v1891 = vunpack.c.h.b16 %v632
    %v1892 = vunpack.c.l.b16 %v633
    %v1893 = vunpack.c.h.b16 %v633
    %v1894 = vunpack.c.l.b16 %v634
    %v1895 = vunpack.c.h.b16 %v634
    %v1896 = vunpack.c.l.b16 %v635
    %v1897 = vunpack.c.h.b16 %v635
    %v1898 = vunpack.c.l.b16 %v636
    %v1899 = vunpack.c.h.b16 %v636
    %v1900 = vunpack.c.l.b16 %v637
    %v1901 = vunpack.c.h.b16 %v637
    %v1902 = vunpack.c.l.b16 %v638
    %v1903 = vunpack.c.h.b16 %v638
    %v1904 = vunpack.c.l.b16 %v639
    %v1905 = vunpack.c.h.b16 %v639
    %v1906 = vunpack.c.l.b16 %v640
    %v1907 = vunpack.c.h.b16 %v640
    %v1908 = vunpack.c.l.b16 %v641
    %v1909 = vunpack.c.h.b16 %v641
    %v1910 = vunpack.c.l.b16 %v642
    %v1911 = vunpack.c.h.b16 %v642
    %v1912 = vunpack.c.l.b16 %v643
    %v1913 = vunpack.c.h.b16 %v643
    %v1914 = vunpack.c.l.b16 %v644
    %v1915 = vunpack.c.h.b16 %v644
    %v1916 = vunpack.c.l.b16 %v645
    %v1917 = vunpack.c.h.b16 %v645
    %v1918 = vunpack.c.l.b16 %v646
    %v1919 = vunpack.c.h.b16 %v646
    %v1920 = vunpack.c.l.b16 %v647
    %v1921 = vunpack.c.h.b16 %v647
    %v1922 = vunpack.c.l.b16 %v648
    %v1923 = vunpack.c.h.b16 %v648
    %v1924 = vunpack.c.l.b16 %v649
    %v1925 = vunpack.c.h.b16 %v649
    %v1926 = vunpack.c.l.b16 %v650
    %v1927 = vunpack.c.h.b16 %v650
    %v1928 = vunpack.c.l.b16 %v651
    %v1929 = vunpack.c.h.b16 %v651
    %v1930 = vunpack.c.l.b16 %v652
    %v1931 = vunpack.c.h.b16 %v652
    %v1932 = vunpack.c.l.b16 %v653
    %v1933 = vunpack.c.h.b16 %v653
    %v1934 = vunpack.c.l.b16 %v654
    %v1935 = vunpack.c.h.b16 %v654
    %v1936 = vunpack.c.l.b16 %v655
    %v1937 = vunpack.c.h.b16 %v655
    %v1938 = vunpack.c.l.b16 %v656
    %v1939 = vunpack.c.h.b16 %v656
    %v1940 = vunpack.c.l.b16 %v657
    %v1941 = vunpack.c.h.b16 %v657
    %v1942 = vunpack.c.l.b16 %v658
    %v1943 = vunpack.c.h.b16 %v658
    %v1944 = vunpack.c.l.b16 %v659
    %v1945 = vunpack.c.h.b16 %v659
    %v1946 = vunpack.c.l.b16 %v660
    %v1947 = vunpack.c.h.b16 %v660
    %v1948 = vunpack.c.l.b16 %v661
    %v1949 = vunpack.c.h.b16 %v661
    %v1950 = vunpack.c.l.b16 %v662
    %v1951 = vunpack.c.h.b16 %v662
    %v1952 = vunpack.c.l.b16 %v663
    %v1953 = vunpack.c.h.b16 %v663
    %v1954 = vunpack.c.l.b16 %v664
    %v1955 = vunpack.c.h.b16 %v664
    %v1956 = vunpack.c.l.b16 %v665
    %v1957 = vunpack.c.h.b16 %v665
    %v1958 = vunpack.c.l.b16 %v666
    %v1959 = vunpack.c.h.b16 %v666
    %v1960 = vunpack.c.l.b16 %v667
    %v1961 = vunpack.c.h.b16 %v667
    %v1962 = vunpack.c.l.b16 %v668
    %v1963 = vunpack.c.h.b16 %v668
    %v1964 = vunpack.c.l.b16 %v669
    %v1965 = vunpack.c.h.b16 %v669
    %v1966 = vunpack.c.l.b16 %v670
    %v1967 = vunpack.c.h.b16 %v670
    %v1968 = vunpack.c.l.b16 %v671
    %v1969 = vunpack.c.h.b16 %v671
    %v1970 = vunpack.c.l.b16 %v672
    %v1971 = vunpack.c.h.b16 %v672
    %v1972 = vunpack.c.l.b16 %v673
    %v1973 = vunpack.c.h.b16 %v673
    %v1974 = vunpack.c.l.b16 %v674
    %v1975 = vunpack.c.h.b16 %v674
    %v1976 = vunpack.c.l.b16 %v675
    %v1977 = vunpack.c.h.b16 %v675
    %v1978 = vunpack.c.l.b16 %v676
    %v1979 = vunpack.c.h.b16 %v676
    %v1980 = vunpack.c.l.b16 %v677
    %v1981 = vunpack.c.h.b16 %v677
    %v1982 = vunpack.c.l.b16 %v678
    %v1983 = vunpack.c.h.b16 %v678
    %v1984 = vunpack.c.l.b16 %v679
    %v1985 = vunpack.c.h.b16 %v679
    %v1986 = vunpack.c.l.b16 %v680
    %v1987 = vunpack.c.h.b16 %v680
    %v1988 = vunpack.c.l.b16 %v681
    %v1989 = vunpack.c.h.b16 %v681
    %v1990 = vunpack.c.l.b16 %v682
    %v1991 = vunpack.c.h.b16 %v682
    %v1992 = vunpack.c.l.b16 %v683
    %v1993 = vunpack.c.h.b16 %v683
    %v1994 = vunpack.c.l.b16 %v684
    %v1995 = vunpack.c.h.b16 %v684
    %v1996 = vunpack.c.l.b16 %v685
    %v1997 = vunpack.c.h.b16 %v685
    %v1998 = vunpack.c.l.b16 %v686
    %v1999 = vunpack.c.h.b16 %v686
    %v2000 = vunpack.c.l.b16 %v687
    %v2001 = vunpack.c.h.b16 %v687
    %v2002 = vunpack.c.l.b16 %v688
    %v2003 = vunpack.c.h.b16 %v688
    %v2004 = vunpack.c.l.b16 %v689
    %v2005 = vunpack.c.h.b16 %v689
    %v2006 = vunpack.c.l.b16 %v690
    %v2007 = vunpack.c.h.b16 %v690
    %v2008 = vunpack.c.l.b16 %v691
    %v2009 = vunpack.c.h.b16 %v691
    %v2010 = vunpack.c.l.b16 %v692
    %v2011 = vunpack.c.h.b16 %v692
    %v2012 = vunpack.c.l.b16 %v693
    %v2013 = vunpack.c.h.b16 %v693
    %v2014 = vunpack.c.l.b16 %v694
    %v2015 = vunpack.c.h.b16 %v694
    %v2016 = vunpack.c.l.b16 %v695
    %v2017 = vunpack.c.h.b16 %v695
    %v2018 = vunpack.c.l.b16 %v696
    %v2019 = vunpack.c.h.b16 %v696
    %v2020 = vunpack.c.l.b16 %v697
    %v2021 = vunpack.c.h.b16 %v697
    %v2022 = vunpack.c.l.b16 %v698
    %v2023 = vunpack.c.h.b16 %v698
    %v2024 = vunpack.c.l.b16 %v699
    %v2025 = vunpack.c.h.b16 %v699
    %v2026 = vunpack.c.l.b16 %v700
    %v2027 = vunpack.c.h.b16 %v700
    %v2028 = vunpack.c.l.b16 %v701
    %v2029 = vunpack.c.h.b16 %v701
    %v2030 = vunpack.c.l.b16 %v702
    %v2031 = vunpack.c.h.b16 %v702
    %v2032 = vunpack.c.l.b16 %v703
    %v2033 = vunpack.c.h.b16 %v703
    %v2034 = vunpack.c.l.b16 %v704
    %v2035 = vunpack.c.h.b16 %v704
    %v2036 = vunpack.c.l.b16 %v705
    %v2037 = vunpack.c.h.b16 %v705
    %v2038 = vunpack.c.l.b16 %v706
    %v2039 = vunpack.c.h.b16 %v706
    %v2040 = vunpack.c.l.b16 %v707
    %v2041 = vunpack.c.h.b16 %v707
    %v2042 = vunpack.c.l.b16 %v708
    %v2043 = vunpack.c.h.b16 %v708
    %v2044 = vunpack.c.l.b16 %v709
    %v2045 = vunpack.c.h.b16 %v709
    %v2046 = vunpack.c.l.b16 %v710
    %v2047 = vunpack.c.h.b16 %v710
    %v2048 = vunpack.c.l.b16 %v711
    %v2049 = vunpack.c.h.b16 %v711
    %v2050 = vunpack.c.l.b16 %v712
    %v2051 = vunpack.c.h.b16 %v712
    %v2052 = vunpack.c.l.b16 %v713
    %v2053 = vunpack.c.h.b16 %v713
    %v2054 = vunpack.c.l.b16 %v714
    %v2055 = vunpack.c.h.b16 %v714
    %v2056 = vunpack.c.l.b16 %v715
    %v2057 = vunpack.c.h.b16 %v715
    %v2058 = vunpack.c.l.b16 %v716
    %v2059 = vunpack.c.h.b16 %v716
    %v2060 = vunpack.c.l.b16 %v717
    %v2061 = vunpack.c.h.b16 %v717
    %v2062 = vunpack.c.l.b16 %v718
    %v2063 = vunpack.c.h.b16 %v718
    %v2064 = vunpack.c.l.b16 %v719
    %v2065 = vunpack.c.h.b16 %v719
    %v2066 = vunpack.c.l.b16 %v720
    %v2067 = vunpack.c.h.b16 %v720
    %v2068 = vunpack.c.l.b16 %v721
    %v2069 = vunpack.c.h.b16 %v721
    %v2070 = vunpack.c.l.b16 %v722
    %v2071 = vunpack.c.h.b16 %v722
    %v2072 = vunpack.c.l.b16 %v723
    %v2073 = vunpack.c.h.b16 %v723
    %v2074 = vunpack.c.l.b16 %v724
    %v2075 = vunpack.c.h.b16 %v724
    %v2076 = vunpack.c.l.b16 %v725
    %v2077 = vunpack.c.h.b16 %v725
    %v2078 = vunpack.c.l.b16 %v726
    %v2079 = vunpack.c.h.b16 %v726
    %v2080 = vunpack.c.l.b16 %v727
    %v2081 = vunpack.c.h.b16 %v727
    %v2082 = vunpack.c.l.b16 %v728
    %v2083 = vunpack.c.h.b16 %v728
    %v2084 = vunpack.c.l.b16 %v729
    %v2085 = vunpack.c.h.b16 %v729
    %v2086 = vunpack.c.l.b16 %v730
    %v2087 = vunpack.c.h.b16 %v730
    %v2088 = vunpack.c.l.b16 %v731
    %v2089 = vunpack.c.h.b16 %v731
    %v2090 = vunpack.c.l.b16 %v732
    %v2091 = vunpack.c.h.b16 %v732
    %v2092 = vunpack.c.l.b16 %v733
    %v2093 = vunpack.c.h.b16 %v733
    %v2094 = vunpack.c.l.b16 %v734
    %v2095 = vunpack.c.h.b16 %v734
    %v2096 = vunpack.c.l.b16 %v735
    %v2097 = vunpack.c.h.b16 %v735
    %v2098 = vunpack.c.l.b16 %v736
    %v2099 = vunpack.c.h.b16 %v736
    %v2100 = vunpack.c.l.b16 %v737
    %v2101 = vunpack.c.h.b16 %v737
    %v2102 = vunpack.c.l.b16 %v738
    %v2103 = vunpack.c.h.b16 %v738
    %v2104 = vunpack.c.l.b16 %v739
    %v2105 = vunpack.c.h.b16 %v739
    %v2106 = vunpack.c.l.b16 %v740
    %v2107 = vunpack.c.h.b16 %v740
    %v2108 = vunpack.c.l.b16 %v741
    %v2109 = vunpack.c.h.b16 %v741
    %v2110 = vunpack.c.l.b16 %v742
    %v2111 = vunpack.c.h.b16 %v742
    %v2112 = vunpack.c.l.b16 %v743
    %v2113 = vunpack.c.h.b16 %v743
    %v2114 = vunpack.c.l.b16 %v744
    %v2115 = vunpack.c.h.b16 %v744
    %v2116 = vunpack.c.l.b16 %v745
    %v2117 = vunpack.c.h.b16 %v745
    %v2118 = vunpack.c.l.b16 %v746
    %v2119 = vunpack.c.h.b16 %v746
    %v2120 = vunpack.c.l.b16 %v747
    %v2121 = vunpack.c.h.b16 %v747
    %v2122 = vunpack.c.l.b16 %v748
    %v2123 = vunpack.c.h.b16 %v748
    %v2124 = vunpack.c.l.b16 %v749
    %v2125 = vunpack.c.h.b16 %v749
    %v2126 = vunpack.c.l.b16 %v750
    %v2127 = vunpack.c.h.b16 %v750
    %v2128 = vunpack.c.l.b16 %v751
    %v2129 = vunpack.c.h.b16 %v751
    %v2130 = vunpack.c.l.b16 %v752
    %v2131 = vunpack.c.h.b16 %v752
    %v2132 = vunpack.c.l.b16 %v753
    %v2133 = vunpack.c.h.b16 %v753
    %v2134 = vunpack.c.l.b16 %v754
    %v2135 = vunpack.c.h.b16 %v754
    %v2136 = vunpack.c.l.b16 %v755
    %v2137 = vunpack.c.h.b16 %v755
    %v2138 = vunpack.c.l.b16 %v756
    %v2139 = vunpack.c.h.b16 %v756
    %v2140 = vunpack.c.l.b16 %v757
    %v2141 = vunpack.c.h.b16 %v757
    %v2142 = vunpack.c.l.b16 %v758
    %v2143 = vunpack.c.h.b16 %v758
    %v2144 = vunpack.c.l.b16 %v759
    %v2145 = vunpack.c.h.b16 %v759
    %v2146 = vunpack.c.l.b16 %v760
    %v2147 = vunpack.c.h.b16 %v760
    %v2148 = vunpack.c.l.b16 %v761
    %v2149 = vunpack.c.h.b16 %v761
    %v2150 = vunpack.c.l.b16 %v762
    %v2151 = vunpack.c.h.b16 %v762
    %v2152 = vunpack.c.l.b16 %v763
    %v2153 = vunpack.c.h.b16 %v763
    %v2154 = vunpack.c.l.b16 %v764
    %v2155 = vunpack.c.h.b16 %v764
    %v2156 = vunpack.c.l.b16 %v765
    %v2157 = vunpack.c.h.b16 %v765
    %v2158 = vunpack.c.l.b16 %v766
    %v2159 = vunpack.c.h.b16 %v766
    %v2160 = vunpack.c.l.b16 %v767
    %v2161 = vunpack.c.h.b16 %v767
    %v2162 = vunpack.c.l.b16 %v768
    %v2163 = vunpack.c.h.b16 %v768
    %v2164 = vunpack.c.l.b16 %v769
    %v2165 = vunpack.c.h.b16 %v769
    %v2166 = vunpack.c.l.b16 %v770
    %v2167 = vunpack.c.h.b16 %v770
    %v2168 = vunpack.c.l.b16 %v771
    %v2169 = vunpack.c.h.b16 %v771
    %v2170 = vunpack.c.l.b16 %v772
    %v2171 = vunpack.c.h.b16 %v772
    %v2172 = vunpack.c.l.b16 %v773
    %v2173 = vunpack.c.h.b16 %v773
    %v2174 = vunpack.c.l.b16 %v774
    %v2175 = vunpack.c.h.b16 %v774
    %v2176 = vunpack.c.l.b16 %v775
    %v2177 = vunpack.c.h.b16 %v775
    %v2178 = vunpack.c.l.b16 %v776
    %v2179 = vunpack.c.h.b16 %v776
    %v2180 = vunpack.c.l.b16 %v777
    %v2181 = vunpack.c.h.b16 %v777
    %v2182 = vunpack.c.l.b16 %v778
    %v2183 = vunpack.c.h.b16 %v778
    %v2184 = vunpack.c.l.b16 %v779
    %v2185 = vunpack.c.h.b16 %v779
    %v2186 = vunpack.c.l.b16 %v780
    %v2187 = vunpack.c.h.b16 %v780
    %v2188 = vunpack.c.l.b16 %v781
    %v2189 = vunpack.c.h.b16 %v781
    %v2190 = vunpack.c.l.b16 %v782
    %v2191 = vunpack.c.h.b16 %v782
    %v2192 = vunpack.c.l.b16 %v783
    %v2193 = vunpack.c.h.b16 %v783
    %v2194 = vunpack.c.l.b16 %v784
    %v2195 = vunpack.c.h.b16 %v784
    %v2196 = vunpack.c.l.b16 %v785
    %v2197 = vunpack.c.h.b16 %v785
    %v2198 = vunpack.c.l.b16 %v786
    %v2199 = vunpack.c.h.b16 %v786
    %v2200 = vunpack.c.l.b16 %v787
    %v2201 = vunpack.c.h.b16 %v787
    %v2202 = vunpack.c.l.b16 %v788
    %v2203 = vunpack.c.h.b16 %v788
    %v2204 = vunpack.c.l.b16 %v789
    %v2205 = vunpack.c.h.b16 %v789
    %v2206 = vunpack.c.l.b16 %v790
    %v2207 = vunpack.c.h.b16 %v790
    %v2208 = vunpack.c.l.b16 %v791
    %v2209 = vunpack.c.h.b16 %v791
    %v2210 = vunpack.c.l.b16 %v792
    %v2211 = vunpack.c.h.b16 %v792
    %v2212 = vunpack.c.l.b16 %v793
    %v2213 = vunpack.c.h.b16 %v793
    %v2214 = vunpack.c.l.b16 %v794
    %v2215 = vunpack.c.h.b16 %v794
    %v2216 = vunpack.c.l.b16 %v795
    %v2217 = vunpack.c.h.b16 %v795
    %v2218 = vunpack.c.l.b16 %v796
    %v2219 = vunpack.c.h.b16 %v796
    %v2220 = vunpack.c.l.b16 %v797
    %v2221 = vunpack.c.h.b16 %v797
    %v2222 = vunpack.c.l.b16 %v798
    %v2223 = vunpack.c.h.b16 %v798
    %v2224 = vunpack.c.l.b16 %v799
    %v2225 = vunpack.c.h.b16 %v799
    %v2226 = vunpack.c.l.b16 %v800
    %v2227 = vunpack.c.h.b16 %v800
    %v2228 = vunpack.c.l.b16 %v801
    %v2229 = vunpack.c.h.b16 %v801
    %v2230 = vunpack.c.l.b16 %v802
    %v2231 = vunpack.c.h.b16 %v802
    %v2232 = vunpack.c.l.b16 %v803
    %v2233 = vunpack.c.h.b16 %v803
    %v2234 = vunpack.c.l.b16 %v804
    %v2235 = vunpack.c.h.b16 %v804
    %v2236 = vunpack.c.l.b16 %v805
    %v2237 = vunpack.c.h.b16 %v805
    %v2238 = vunpack.c.l.b16 %v806
    %v2239 = vunpack.c.h.b16 %v806
    %v2240 = vunpack.c.l.b16 %v807
    %v2241 = vunpack.c.h.b16 %v807
    %v2242 = vunpack.c.l.b16 %v808
    %v2243 = vunpack.c.h.b16 %v808
    %v2244 = vunpack.c.l.b16 %v809
    %v2245 = vunpack.c.h.b16 %v809
    %v2246 = vunpack.c.l.b16 %v810
    %v2247 = vunpack.c.h.b16 %v810
    %v2248 = vunpack.c.l.b16 %v811
    %v2249 = vunpack.c.h.b16 %v811
    %v2250 = vunpack.c.l.b16 %v812
    %v2251 = vunpack.c.h.b16 %v812
    %v2252 = vunpack.c.l.b16 %v813
    %v2253 = vunpack.c.h.b16 %v813
    %v2254 = vunpack.c.l.b16 %v814
    %v2255 = vunpack.c.h.b16 %v814
    %v2256 = vunpack.c.l.b16 %v815
    %v2257 = vunpack.c.h.b16 %v815
    %v2258 = vunpack.c.l.b16 %v816
    %v2259 = vunpack.c.h.b16 %v816
    %v2260 = vunpack.c.l.b16 %v817
    %v2261 = vunpack.c.h.b16 %v817
    %v2262 = vunpack.c.l.b16 %v818
    %v2263 = vunpack.c.h.b16 %v818
    %v2264 = vunpack.c.l.b16 %v819
    %v2265 = vunpack.c.h.b16 %v819
    %v2266 = vpack.c.b16 %v1308, %v1306
    %v2267 = vpack.c.b16 %v1309, %v1307
    %v2268 = vpack.c.b16 %v1312, %v1310
    %v2269 = vpack.c.b16 %v1313, %v1311
    %v2270 = vpack.c.b16 %v1316, %v1314
    %v2271 = vpack.c.b16 %v1317, %v1315
    %v2272 = vpack.c.b16 %v1320, %v1318
    %v2273 = vpack.c.b16 %v1321, %v1319
    %v2274 = vpack.c.b16 %v1324, %v1322
    %v2275 = vpack.c.b16 %v1325, %v1323
    %v2276 = vpack.c.b16 %v1328, %v1326
    %v2277 = vpack.c.b16 %v1329, %v1327
    %v2278 = vpack.c.b16 %v1332, %v1330
    %v2279 = vpack.c.b16 %v1333, %v1331
    %v2280 = vpack.c.b16 %v1336, %v1334
    %v2281 = vpack.c.b16 %v1337, %v1335
    %v2282 = vpack.c.b16 %v1340, %v1338
    %v2283 = vpack.c.b16 %v1341, %v1339
    %v2284 = vpack.c.b16 %v1344, %v1342
    %v2285 = vpack.c.b16 %v1345, %v1343
    %v2286 = vpack.c.b16 %v1348, %v1346
    %v2287 = vpack.c.b16 %v1349, %v1347
    %v2288 = vpack.c.b16 %v1352, %v1350
    %v2289 = vpack.c.b16 %v1353, %v1351
    %v2290 = vpack.c.b16 %v1356, %v1354
    %v2291 = vpack.c.b16 %v1357, %v1355
    %v2292 = vpack.c.b16 %v1360, %v1358
    %v2293 = vpack.c.b16 %v1361, %v1359
    %v2294 = vpack.c.b16 %v1364, %v1362
    %v2295 = vpack.c.b16 %v1365, %v1363
    %v2296 = vpack.c.b16 %v1368, %v1366
    %v2297 = vpack.c.b16 %v1369, %v1367
    %v2298 = vpack.c.b16 %v1372, %v1370
    %v2299 = vpack.c.b16 %v1373, %v1371
    %v2300 = vpack.c.b16 %v1376, %v1374
    %v2301 = vpack.c.b16 %v1377, %v1375
    %v2302 = vpack.c.b16 %v1380, %v1378
    %v2303 = vpack.c.b16 %v1381, %v1379
    %v2304 = vpack.c.b16 %v1384, %v1382
    %v2305 = vpack.c.b16 %v1385, %v1383
    %v2306 = vpack.c.b16 %v1388, %v1386
    %v2307 = vpack.c.b16 %v1389, %v1387
    %v2308 = vpack.c.b16 %v1392, %v1390
    %v2309 = vpack.c.b16 %v1393, %v1391
    %v2310 = vpack.c.b16 %v1396, %v1394
    %v2311 = vpack.c.b16 %v1397, %v1395
    %v2312 = vpack.c.b16 %v1400, %v1398
    %v2313 = vpack.c.b16 %v1401, %v1399
    %v2314 = vpack.c.b16 %v1404, %v1402
    %v2315 = vpack.c.b16 %v1405, %v1403
    %v2316 = vpack.c.b16 %v1408, %v1406
    %v2317 = vpack.c.b16 %v1409, %v1407
    %v2318 = vpack.c.b16 %v1412, %v1410
    %v2319 = vpack.c.b16 %v1413, %v1411
    %v2320 = vpack.c.b16 %v1416, %v1414
    %v2321 = vpack.c.b16 %v1417, %v1415
    %v2322 = vpack.c.b16 %v1420, %v1418
    %v2323 = vpack.c.b16 %v1421, %v1419
    %v2324 = vpack.c.b16 %v1424, %v1422
    %v2325 = vpack.c.b16 %v1425, %v1423
    %v2326 = vpack.c.b16 %v1428, %v1426
    %v2327 = vpack.c.b16 %v1429, %v1427
    %v2328 = vpack.c.b16 %v1432, %v1430
    %v2329 = vpack.c.b16 %v1433, %v1431
    %v2330 = vpack.c.b16 %v1436, %v1434
    %v2331 = vpack.c.b16 %v1437, %v1435
    %v2332 = vpack.c.b16 %v1440, %v1438
    %v2333 = vpack.c.b16 %v1441, %v1439
    %v2334 = vpack.c.b16 %v1444, %v1442
    %v2335 = vpack.c.b16 %v1445, %v1443
    %v2336 = vpack.c.b16 %v1448, %v1446
    %v2337 = vpack.c.b16 %v1449, %v1447
    %v2338 = vpack.c.b16 %v1452, %v1450
    %v2339 = vpack.c.b16 %v1453, %v1451
    %v2340 = vpack.c.b16 %v1456, %v1454
    %v2341 = vpack.c.b16 %v1457, %v1455
    %v2342 = vpack.c.b16 %v1460, %v1458
    %v2343 = vpack.c.b16 %v1461, %v1459
    %v2344 = vpack.c.b16 %v1464, %v1462
    %v2345 = vpack.c.b16 %v1465, %v1463
    %v2346 = vpack.c.b16 %v1468, %v1466
    %v2347 = vpack.c.b16 %v1469, %v1467
    %v2348 = vpack.c.b16 %v1472, %v1470
    %v2349 = vpack.c.b16 %v1473, %v1471
    %v2350 = vpack.c.b16 %v1476, %v1474
    %v2351 = vpack.c.b16 %v1477, %v1475
    %v2352 = vpack.c.b16 %v1480, %v1478
    %v2353 = vpack.c.b16 %v1481, %v1479
    %v2354 = vpack.c.b16 %v1484, %v1482
    %v2355 = vpack.c.b16 %v1485, %v1483
    %v2356 = vpack.c.b16 %v1488, %v1486
    %v2357 = vpack.c.b16 %v1489, %v1487
    %v2358 = vpack.c.b16 %v1492, %v1490
    %v2359 = vpack.c.b16 %v1493, %v1491
    %v2360 = vpack.c.b16 %v1496, %v1494
    %v2361 = vpack.c.b16 %v1497, %v1495
    %v2362 = vpack.c.b16 %v1500, %v1498
    %v2363 = vpack.c.b16 %v1501, %v1499
    %v2364 = vpack.c.b16 %v1504, %v1502
    %v2365 = vpack.c.b16 %v1505, %v1503
    %v2366 = vpack.c.b16 %v1508, %v1506
    %v2367 = vpack.c.b16 %v1509, %v1507
    %v2368 = vpack.c.b16 %v1512, %v1510
    %v2369 = vpack.c.b16 %v1513, %v1511
    %v2370 = vpack.c.b16 %v1516, %v1514
    %v2371 = vpack.c.b16 %v1517, %v1515
    %v2372 = vpack.c.b16 %v1520, %v1518
    %v2373 = vpack.c.b16 %v1521, %v1519
    %v2374 = vpack.c.b16 %v1524, %v1522
    %v2375 = vpack.c.b16 %v1525, %v1523
    %v2376 = vpack.c.b16 %v1528, %v1526
    %v2377 = vpack.c.b16 %v1529, %v1527
    %v2378 = vpack.c.b16 %v1532, %v1530
    %v2379 = vpack.c.b16 %v1533, %v1531
    %v2380 = vpack.c.b16 %v1536, %v1534
    %v2381 = vpack.c.b16 %v1537, %v1535
    %v2382 = vpack.c.b16 %v1540, %v1538
    %v2383 = vpack.c.b16 %v1541, %v1539
    %v2384 = vpack.c.b16 %v1544, %v1542
    %v2385 = vpack.c.b16 %v1545, %v1543
    %v2386 = vpack.c.b16 %v1548, %v1546
    %v2387 = vpack.c.b16 %v1549, %v1547
    %v2388 = vpack.c.b16 %v1552, %v1550
    %v2389 = vpack.c.b16 %v1553, %v1551
    %v2390 = vpack.c.b16 %v1556, %v1554
    %v2391 = vpack.c.b16 %v1557, %v1555
    %v2392 = vpack.c.b16 %v1560, %v1558
    %v2393 = vpack.c.b16 %v1561, %v1559
    %v2394 = vpack.c.b16 %v1564, %v1562
    %v2395 = vpack.c.b16 %v1565, %v1563
    %v2396 = vpack.c.b16 %v1568, %v1566
    %v2397 = vpack.c.b16 %v1569, %v1567
    %v2398 = vpack.c.b16 %v1572, %v1570
    %v2399 = vpack.c.b16 %v1573, %v1571
    %v2400 = vpack.c.b16 %v1576, %v1574
    %v2401 = vpack.c.b16 %v1577, %v1575
    %v2402 = vpack.c.b16 %v1580, %v1578
    %v2403 = vpack.c.b16 %v1581, %v1579
    %v2404 = vpack.c.b16 %v1584, %v1582
    %v2405 = vpack.c.b16 %v1585, %v1583
    %v2406 = vpack.c.b16 %v1588, %v1586
    %v2407 = vpack.c.b16 %v1589, %v1587
    %v2408 = vpack.c.b16 %v1592, %v1590
    %v2409 = vpack.c.b16 %v1593, %v1591
    %v2410 = vpack.c.b16 %v1596, %v1594
    %v2411 = vpack.c.b16 %v1597, %v1595
    %v2412 = vpack.c.b16 %v1600, %v1598
    %v2413 = vpack.c.b16 %v1601, %v1599
    %v2414 = vpack.c.b16 %v1604, %v1602
    %v2415 = vpack.c.b16 %v1605, %v1603
    %v2416 = vpack.c.b16 %v1608, %v1606
    %v2417 = vpack.c.b16 %v1609, %v1607
    %v2418 = vpack.c.b16 %v1612, %v1610
    %v2419 = vpack.c.b16 %v1613, %v1611
    %v2420 = vpack.c.b16 %v1616, %v1614
    %v2421 = vpack.c.b16 %v1617, %v1615
    %v2422 = vpack.c.b16 %v1620, %v1618
    %v2423 = vpack.c.b16 %v1621, %v1619
    %v2424 = vpack.c.b16 %v1624, %v1622
    %v2425 = vpack.c.b16 %v1625, %v1623
    %v2426 = vpack.c.b16 %v1628, %v1626
    %v2427 = vpack.c.b16 %v1629, %v1627
    %v2428 = vpack.c.b16 %v1632, %v1630
    %v2429 = vpack.c.b16 %v1633, %v1631
    %v2430 = vpack.c.b16 %v1636, %v1634
    %v2431 = vpack.c.b16 %v1637, %v1635
    %v2432 = vpack.c.b16 %v1640, %v1638
    %v2433 = vpack.c.b16 %v1641, %v1639
    %v2434 = vpack.c.b16 %v1644, %v1642
    %v2435 = vpack.c.b16 %v1645, %v1643
    %v2436 = vpack.c.b16 %v1648, %v1646
    %v2437 = vpack.c.b16 %v1649, %v1647
    %v2438 = vpack.c.b16 %v1652, %v1650
    %v2439 = vpack.c.b16 %v1653, %v1651
    %v2440 = vpack.c.b16 %v1656, %v1654
    %v2441 = vpack.c.b16 %v1657, %v1655
    %v2442 = vpack.c.b16 %v1660, %v1658
    %v2443 = vpack.c.b16 %v1661, %v1659
    %v2444 = vpack.c.b16 %v1664, %v1662
    %v2445 = vpack.c.b16 %v1665, %v1663
    %v2446 = vpack.c.b16 %v1668, %v1666
    %v2447 = vpack.c.b16 %v1669, %v1667
    %v2448 = vpack.c.b16 %v1672, %v1670
    %v2449 = vpack.c.b16 %v1673, %v1671
    %v2450 = vpack.c.b16 %v1676, %v1674
    %v2451 = vpack.c.b16 %v1677, %v1675
    %v2452 = vpack.c.b16 %v1680, %v1678
    %v2453 = vpack.c.b16 %v1681, %v1679
    %v2454 = vpack.c.b16 %v1684, %v1682
    %v2455 = vpack.c.b16 %v1685, %v1683
    %v2456 = vpack.c.b16 %v1688, %v1686
    %v2457 = vpack.c.b16 %v1689, %v1687
    %v2458 = vpack.c.b16 %v1692, %v1690
    %v2459 = vpack.c.b16 %v1693, %v1691
    %v2460 = vpack.c.b16 %v1696, %v1694
    %v2461 = vpack.c.b16 %v1697, %v1695
    %v2462 = vpack.c.b16 %v1700, %v1698
    %v2463 = vpack.c.b16 %v1701, %v1699
    %v2464 = vpack.c.b16 %v1704, %v1702
    %v2465 = vpack.c.b16 %v1705, %v1703
    %v2466 = vpack.c.b16 %v1708, %v1706
    %v2467 = vpack.c.b16 %v1709, %v1707
    %v2468 = vpack.c.b16 %v1712, %v1710
    %v2469 = vpack.c.b16 %v1713, %v1711
    %v2470 = vpack.c.b16 %v1716, %v1714
    %v2471 = vpack.c.b16 %v1717, %v1715
    %v2472 = vpack.c.b16 %v1720, %v1718
    %v2473 = vpack.c.b16 %v1721, %v1719
    %v2474 = vpack.c.b16 %v1724, %v1722
    %v2475 = vpack.c.b16 %v1725, %v1723
    %v2476 = vpack.c.b16 %v1728, %v1726
    %v2477 = vpack.c.b16 %v1729, %v1727
    %v2478 = vpack.c.b16 %v1732, %v1730
    %v2479 = vpack.c.b16 %v1733, %v1731
    %v2480 = vpack.c.b16 %v1736, %v1734
    %v2481 = vpack.c.b16 %v1737, %v1735
    %v2482 = vpack.c.b16 %v1740, %v1738
    %v2483 = vpack.c.b16 %v1741, %v1739
    %v2484 = vpack.c.b16 %v1744, %v1742
    %v2485 = vpack.c.b16 %v1745, %v1743
    %v2486 = vpack.c.b16 %v1748, %v1746
    %v2487 = vpack.c.b16 %v1749, %v1747
    %v2488 = vpack.c.b16 %v1752, %v1750
    %v2489 = vpack.c.b16 %v1753, %v1751
    %v2490 = vpack.c.b16 %v1756, %v1754
    %v2491 = vpack.c.b16 %v1757, %v1755
    %v2492 = vpack.c.b16 %v1760, %v1758
    %v2493 = vpack.c.b16 %v1761, %v1759
    %v2494 = vpack.c.b16 %v1764, %v1762
    %v2495 = vpack.c.b16 %v1765, %v1763
    %v2496 = vpack.c.b16 %v1768, %v1766
    %v2497 = vpack.c.b16 %v1769, %v1767
    %v2498 = vpack.c.b16 %v1772, %v1770
    %v2499 = vpack.c.b16 %v1773, %v1771
    %v2500 = vpack.c.b16 %v1776, %v1774
    %v2501 = vpack.c.b16 %v1777, %v1775
    %v2502 = vpack.c.b16 %v1780, %v1778
    %v2503 = vpack.c.b16 %v1781, %v1779
    %v2504 = vpack.c.b16 %v1784, %v1782
    %v2505 = vpack.c.b16 %v1785, %v1783
    %v2506 = vpack.c.b16 %v1788, %v1786
    %v2507 = vpack.c.b16 %v1789, %v1787
    %v2508 = vpack.c.b16 %v1792, %v1790
    %v2509 = vpack.c.b16 %v1793, %v1791
    %v2510 = vpack.c.b16 %v1796, %v1794
    %v2511 = vpack.c.b16 %v1797, %v1795
    %v2512 = vpack.c.b16 %v1800, %v1798
    %v2513 = vpack.c.b16 %v1801, %v1799
    %v2514 = vpack.c.b16 %v1804, %v1802
    %v2515 = vpack.c.b16 %v1805, %v1803
    %v2516 = vpack.c.b16 %v1808, %v1806
    %v2517 = vpack.c.b16 %v1809, %v1807
    %v2518 = vpack.c.b16 %v1812, %v1810
    %v2519 = vpack.c.b16 %v1813, %v1811
    %v2520 = vpack.c.b16 %v1816, %v1814
    %v2521 = vpack.c.b16 %v1817, %v1815
    %v2522 = vpack.c.b16 %v1820, %v1818
    %v2523 = vpack.c.b16 %v1821, %v1819
    %v2524 = vpack.c.b16 %v1824, %v1822
    %v2525 = vpack.c.b16 %v1825, %v1823
    %v2526 = vpack.c.b16 %v1828, %v1826
    %v2527 = vpack.c.b16 %v1829, %v1827
    %v2528 = vpack.c.b16 %v1832, %v1830
    %v2529 = vpack.c.b16 %v1833, %v1831
    %v2530 = vpack.c.b16 %v1836, %v1834
    %v2531 = vpack.c.b16 %v1837, %v1835
    %v2532 = vpack.c.b16 %v1840, %v1838
    %v2533 = vpack.c.b16 %v1841, %v1839
    %v2534 = vpack.c.b16 %v1844, %v1842
    %v2535 = vpack.c.b16 %v1845, %v1843
    %v2536 = vpack.c.b16 %v1848, %v1846
    %v2537 = vpack.c.b16 %v1849, %v1847
    %v2538 = vpack.c.b16 %v1852, %v1850
    %v2539 = vpack.c.b16 %v1853, %v1851
    %v2540 = vpack.c.b16 %v1856, %v1854
    %v2541 = vpack.c.b16 %v1857, %v1855
    %v2542 = vpack.c.b16 %v1860, %v1858
    %v2543 = vpack.c.b16 %v1861, %v1859
    %v2544 = vpack.c.b16 %v1864, %v1862
    %v2545 = vpack.c.b16 %v1865, %v1863
    %v2546 = vpack.c.b16 %v1868, %v1866
    %v2547 = vpack.c.b16 %v1869, %v1867
    %v2548 = vpack.c.b16 %v1872, %v1870
    %v2549 = vpack.c.b16 %v1873, %v1871
    %v2550 = vpack.c.b16 %v1876, %v1874
    %v2551 = vpack.c.b16 %v1877, %v1875
    %v2552 = vpack.c.b16 %v1880, %v1878
    %v2553 = vpack.c.b16 %v1881, %v1879
    %v2554 = vpack.c.b16 %v1884, %v1882
    %v2555 = vpack.c.b16 %v1885, %v1883
    %v2556 = vpack.c.b16 %v1888, %v1886
    %v2557 = vpack.c.b16 %v1889, %v1887
    %v2558 = vpack.c.b16 %v1892, %v1890
    %v2559 = vpack.c.b16 %v1893, %v1891
    %v2560 = vpack.c.b16 %v1896, %v1894
    %v2561 = vpack.c.b16 %v1897, %v1895
    %v2562 = vpack.c.b16 %v1900, %v1898
    %v2563 = vpack.c.b16 %v1901, %v1899
    %v2564 = vpack.c.b16 %v1904, %v1902
    %v2565 = vpack.c.b16 %v1905, %v1903
    %v2566 = vpack.c.b16 %v1908, %v1906
    %v2567 = vpack.c.b16 %v1909, %v1907
    %v2568 = vpack.c.b16 %v1912, %v1910
    %v2569 = vpack.c.b16 %v1913, %v1911
    %v2570 = vpack.c.b16 %v1916, %v1914
    %v2571 = vpack.c.b16 %v1917, %v1915
    %v2572 = vpack.c.b16 %v1920, %v1918
    %v2573 = vpack.c.b16 %v1921, %v1919
    %v2574 = vpack.c.b16 %v1924, %v1922
    %v2575 = vpack.c.b16 %v1925, %v1923
    %v2576 = vpack.c.b16 %v1928, %v1926
    %v2577 = vpack.c.b16 %v1929, %v1927
    %v2578 = vpack.c.b16 %v1932, %v1930
    %v2579 = vpack.c.b16 %v1933, %v1931
    %v2580 = vpack.c.b16 %v1936, %v1934
    %v2581 = vpack.c.b16 %v1937, %v1935
    %v2582 = vpack.c.b16 %v1940, %v1938
    %v2583 = vpack.c.b16 %v1941, %v1939
    %v2584 = vpack.c.b16 %v1944, %v1942
    %v2585 = vpack.c.b16 %v1945, %v1943
    %v2586 = vpack.c.b16 %v1948, %v1946
    %v2587 = vpack.c.b16 %v1949, %v1947
    %v2588 = vpack.c.b16 %v1952, %v1950
    %v2589 = vpack.c.b16 %v1953, %v1951
    %v2590 = vpack.c.b16 %v1956, %v1954
    %v2591 = vpack.c.b16 %v1957, %v1955
    %v2592 = vpack.c.b16 %v1960, %v1958
    %v2593 = vpack.c.b16 %v1961, %v1959
    %v2594 = vpack.c.b16 %v1964, %v1962
    %v2595 = vpack.c.b16 %v1965, %v1963
    %v2596 = vpack.c.b16 %v1968, %v1966
    %v2597 = vpack.c.b16 %v1969, %v1967
    %v2598 = vpack.c.b16 %v1972, %v1970
    %v2599 = vpack.c.b16 %v1973, %v1971
    %v2600 = vpack.c.b16 %v1976, %v1974
    %v2601 = vpack.c.b16 %v1977, %v1975
    %v2602 = vpack.c.b16 %v1980, %v1978
    %v2603 = vpack.c.b16 %v1981, %v1979
    %v2604 = vpack.c.b16 %v1984, %v1982
    %v2605 = vpack.c.b16 %v1985, %v1983
    %v2606 = vpack.c.b16 %v1988, %v1986
    %v2607 = vpack.c.b16 %v1989, %v1987
    %v2608 = vpack.c.b16 %v1992, %v1990
    %v2609 = vpack.c.b16 %v1993, %v1991
    %v2610 = vpack.c.b16 %v1996, %v1994
    %v2611 = vpack.c.b16 %v1997, %v1995
    %v2612 = vpack.c.b16 %v2000, %v1998
    %v2613 = vpack.c.b16 %v2001, %v1999
    %v2614 = vpack.c.b16 %v2004, %v2002
    %v2615 = vpack.c.b16 %v2005, %v2003
    %v2616 = vpack.c.b16 %v2008, %v2006
    %v2617 = vpack.c.b16 %v2009, %v2007
    %v2618 = vpack.c.b16 %v2012, %v2010
    %v2619 = vpack.c.b16 %v2013, %v2011
    %v2620 = vpack.c.b16 %v2016, %v2014
    %v2621 = vpack.c.b16 %v2017, %v2015
    %v2622 = vpack.c.b16 %v2020, %v2018
    %v2623 = vpack.c.b16 %v2021, %v2019
    %v2624 = vpack.c.b16 %v2024, %v2022
    %v2625 = vpack.c.b16 %v2025, %v2023
    %v2626 = vpack.c.b16 %v2028, %v2026
    %v2627 = vpack.c.b16 %v2029, %v2027
    %v2628 = vpack.c.b16 %v2032, %v2030
    %v2629 = vpack.c.b16 %v2033, %v2031
    %v2630 = vpack.c.b16 %v2036, %v2034
    %v2631 = vpack.c.b16 %v2037, %v2035
    %v2632 = vpack.c.b16 %v2040, %v2038
    %v2633 = vpack.c.b16 %v2041, %v2039
    %v2634 = vpack.c.b16 %v2044, %v2042
    %v2635 = vpack.c.b16 %v2045, %v2043
    %v2636 = vpack.c.b16 %v2048, %v2046
    %v2637 = vpack.c.b16 %v2049, %v2047
    %v2638 = vpack.c.b16 %v2052, %v2050
    %v2639 = vpack.c.b16 %v2053, %v2051
    %v2640 = vpack.c.b16 %v2056, %v2054
    %v2641 = vpack.c.b16 %v2057, %v2055
    %v2642 = vpack.c.b16 %v2060, %v2058
    %v2643 = vpack.c.b16 %v2061, %v2059
    %v2644 = vpack.c.b16 %v2064, %v2062
    %v2645 = vpack.c.b16 %v2065, %v2063
    %v2646 = vpack.c.b16 %v2068, %v2066
    %v2647 = vpack.c.b16 %v2069, %v2067
    %v2648 = vpack.c.b16 %v2072, %v2070
    %v2649 = vpack.c.b16 %v2073, %v2071
    %v2650 = vpack.c.b16 %v2076, %v2074
    %v2651 = vpack.c.b16 %v2077, %v2075
    %v2652 = vpack.c.b16 %v2080, %v2078
    %v2653 = vpack.c.b16 %v2081, %v2079
    %v2654 = vpack.c.b16 %v2084, %v2082
    %v2655 = vpack.c.b16 %v2085, %v2083
    %v2656 = vpack.c.b16 %v2088, %v2086
    %v2657 = vpack.c.b16 %v2089, %v2087
    %v2658 = vpack.c.b16 %v2092, %v2090
    %v2659 = vpack.c.b16 %v2093, %v2091
    %v2660 = vpack.c.b16 %v2096, %v2094
    %v2661 = vpack.c.b16 %v2097, %v2095
    %v2662 = vpack.c.b16 %v2100, %v2098
    %v2663 = vpack.c.b16 %v2101, %v2099
    %v2664 = vpack.c.b16 %v2104, %v2102
    %v2665 = vpack.c.b16 %v2105, %v2103
    %v2666 = vpack.c.b16 %v2108, %v2106
    %v2667 = vpack.c.b16 %v2109, %v2107
    %v2668 = vpack.c.b16 %v2112, %v2110
    %v2669 = vpack.c.b16 %v2113, %v2111
    %v2670 = vpack.c.b16 %v2116, %v2114
    %v2671 = vpack.c.b16 %v2117, %v2115
    %v2672 = vpack.c.b16 %v2120, %v2118
    %v2673 = vpack.c.b16 %v2121, %v2119
    %v2674 = vpack.c.b16 %v2124, %v2122
    %v2675 = vpack.c.b16 %v2125, %v2123
    %v2676 = vpack.c.b16 %v2128, %v2126
    %v2677 = vpack.c.b16 %v2129, %v2127
    %v2678 = vpack.c.b16 %v2132, %v2130
    %v2679 = vpack.c.b16 %v2133, %v2131
    %v2680 = vpack.c.b16 %v2136, %v2134
    %v2681 = vpack.c.b16 %v2137, %v2135
    %v2682 = vpack.c.b16 %v2140, %v2138
    %v2683 = vpack.c.b16 %v2141, %v2139
    %v2684 = vpack.c.b16 %v2144, %v2142
    %v2685 = vpack.c.b16 %v2145, %v2143
    %v2686 = vpack.c.b16 %v2148, %v2146
    %v2687 = vpack.c.b16 %v2149, %v2147
    %v2688 = vpack.c.b16 %v2152, %v2150
    %v2689 = vpack.c.b16 %v2153, %v2151
    %v2690 = vpack.c.b16 %v2156, %v2154
    %v2691 = vpack.c.b16 %v2157, %v2155
    %v2692 = vpack.c.b16 %v2160, %v2158
    %v2693 = vpack.c.b16 %v2161, %v2159
    %v2694 = vpack.c.b16 %v2164, %v2162
    %v2695 = vpack.c.b16 %v2165, %v2163
    %v2696 = vpack.c.b16 %v2168, %v2166
    %v2697 = vpack.c.b16 %v2169, %v2167
    %v2698 = vpack.c.b16 %v2172, %v2170
    %v2699 = vpack.c.b16 %v2173, %v2171
    %v2700 = vpack.c.b16 %v2176, %v2174
    %v2701 = vpack.c.b16 %v2177, %v2175
    %v2702 = vpack.c.b16 %v2180, %v2178
    %v2703 = vpack.c.b16 %v2181, %v2179
    %v2704 = vpack.c.b16 %v2184, %v2182
    %v2705 = vpack.c.b16 %v2185, %v2183
    %v2706 = vpack.c.b16 %v2188, %v2186
    %v2707 = vpack.c.b16 %v2189, %v2187
    %v2708 = vpack.c.b16 %v2192, %v2190
    %v2709 = vpack.c.b16 %v2193, %v2191
    %v2710 = vpack.c.b16 %v2196, %v2194
    %v2711 = vpack.c.b16 %v2197, %v2195
    %v2712 = vpack.c.b16 %v2200, %v2198
    %v2713 = vpack.c.b16 %v2201, %v2199
    %v2714 = vpack.c.b16 %v2204, %v2202
    %v2715 = vpack.c.b16 %v2205, %v2203
    %v2716 = vpack.c.b16 %v2208, %v2206
    %v2717 = vpack.c.b16 %v2209, %v2207
    %v2718 = vpack.c.b16 %v2212, %v2210
    %v2719 = vpack.c.b16 %v2213, %v2211
    %v2720 = vpack.c.b16 %v2216, %v2214
    %v2721 = vpack.c.b16 %v2217, %v2215
    %v2722 = vpack.c.b16 %v2220, %v2218
    %v2723 = vpack.c.b16 %v2221, %v2219
    %v2724 = vpack.c.b16 %v2224, %v2222
    %v2725 = vpack.c.b16 %v2225, %v2223
    %v2726 = vpack.c.b16 %v2228, %v2226
    %v2727 = vpack.c.b16 %v2229, %v2227
    %v2728 = vpack.c.b16 %v2232, %v2230
    %v2729 = vpack.c.b16 %v2233, %v2231
    %v2730 = vpack.c.b16 %v2236, %v2234
    %v2731 = vpack.c.b16 %v2237, %v2235
    %v2732 = vpack.c.b16 %v2240, %v2238
    %v2733 = vpack.c.b16 %v2241, %v2239
    %v2734 = vpack.c.b16 %v2244, %v2242
    %v2735 = vpack.c.b16 %v2245, %v2243
    %v2736 = vpack.c.b16 %v2248, %v2246
    %v2737 = vpack.c.b16 %v2249, %v2247
    %v2738 = vpack.c.b16 %v2252, %v2250
    %v2739 = vpack.c.b16 %v2253, %v2251
    %v2740 = vpack.c.b16 %v2256, %v2254
    %v2741 = vpack.c.b16 %v2257, %v2255
    %v2742 = vpack.c.b16 %v2260, %v2258
    %v2743 = vpack.c.b16 %v2261, %v2259
    %v2744 = vpack.c.b16 %v2264, %v2262
    %v2745 = vpack.c.b16 %v2265, %v2263
    %3226 = vmatpush.bf16.msra.mxu0 %v2280
    %3227 = vmatpush.bf16.msra.mxu0 %v2278
    %3228 = vmatpush.bf16.msra.mxu0 %v2276
    %3229 = vmatpush.bf16.msra.mxu0 %v2274
    %3230 = vmatpush.bf16.msra.mxu0 %v2272
    %3231 = vmatpush.bf16.msra.mxu0 %v2270
    %3232 = vmatpush.bf16.msra.mxu0 %v2268
    %3233 = vmatpush.bf16.msra.mxu0 %v2266
    %3234 = vmatmul.bf16.gmra.mxu0 %v221
    %v3235 = vpop.f32.mrf.mxu0
    %v3236 = vadd.f32 %v822, %v3235
    %v3237 = vpop.f32.mrf.mxu0
    %3238 = vdwg.mxu0
    %3239 = vmatpush.bf16.msra.mxu0 %v2296
    %3240 = vmatpush.bf16.msra.mxu0 %v2294
    %3241 = vmatpush.bf16.msra.mxu0 %v2292
    %3242 = vmatpush.bf16.msra.mxu0 %v2290
    %3243 = vmatpush.bf16.msra.mxu0 %v2288
    %3244 = vmatpush.bf16.msra.mxu0 %v2286
    %3245 = vmatpush.bf16.msra.mxu0 %v2284
    %3246 = vmatpush.bf16.msra.mxu0 %v2282
    %3247 = vmatmul.bf16.gmra.mxu0 %v222
    %v3248 = vpop.f32.mrf.mxu0
    %v3249 = vadd.f32 %v3236, %v3248
    %v3250 = vpop.f32.mrf.mxu0
    %3251 = vdwg.mxu0
    %3252 = vmatpush.bf16.msra.mxu0 %v2312
    %3253 = vmatpush.bf16.msra.mxu0 %v2310
    %3254 = vmatpush.bf16.msra.mxu0 %v2308
    %3255 = vmatpush.bf16.msra.mxu0 %v2306
    %3256 = vmatpush.bf16.msra.mxu0 %v2304
    %3257 = vmatpush.bf16.msra.mxu0 %v2302
    %3258 = vmatpush.bf16.msra.mxu0 %v2300
    %3259 = vmatpush.bf16.msra.mxu0 %v2298
    %3260 = vmatmul.bf16.gmra.mxu0 %v223
    %v3261 = vpop.f32.mrf.mxu0
    %v3262 = vadd.f32 %v3249, %v3261
    %v3263 = vpop.f32.mrf.mxu0
    %3264 = vdwg.mxu0
    %3265 = vmatpush.bf16.msra.mxu0 %v2328
    %3266 = vmatpush.bf16.msra.mxu0 %v2326
    %3267 = vmatpush.bf16.msra.mxu0 %v2324
    %3268 = vmatpush.bf16.msra.mxu0 %v2322
    %3269 = vmatpush.bf16.msra.mxu0 %v2320
    %3270 = vmatpush.bf16.msra.mxu0 %v2318
    %3271 = vmatpush.bf16.msra.mxu0 %v2316
    %3272 = vmatpush.bf16.msra.mxu0 %v2314
    %3273 = vmatmul.bf16.gmra.mxu0 %v224
    %v3274 = vpop.f32.mrf.mxu0
    %v3275 = vadd.f32 %v3262, %v3274
    %v3276 = vpop.f32.mrf.mxu0
    %3277 = vdwg.mxu0
    %3278 = vmatpush.bf16.msra.mxu0 %v2344
    %3279 = vmatpush.bf16.msra.mxu0 %v2342
    %3280 = vmatpush.bf16.msra.mxu0 %v2340
    %3281 = vmatpush.bf16.msra.mxu0 %v2338
    %3282 = vmatpush.bf16.msra.mxu0 %v2336
    %3283 = vmatpush.bf16.msra.mxu0 %v2334
    %3284 = vmatpush.bf16.msra.mxu0 %v2332
    %3285 = vmatpush.bf16.msra.mxu0 %v2330
    %3286 = vmatmul.bf16.gmra.mxu0 %v225
    %v3287 = vpop.f32.mrf.mxu0
    %v3288 = vadd.f32 %v3275, %v3287
    %v3289 = vpop.f32.mrf.mxu0
    %3290 = vdwg.mxu0
    %3291 = vmatpush.bf16.msra.mxu0 %v2360
    %3292 = vmatpush.bf16.msra.mxu0 %v2358
    %3293 = vmatpush.bf16.msra.mxu0 %v2356
    %3294 = vmatpush.bf16.msra.mxu0 %v2354
    %3295 = vmatpush.bf16.msra.mxu0 %v2352
    %3296 = vmatpush.bf16.msra.mxu0 %v2350
    %3297 = vmatpush.bf16.msra.mxu0 %v2348
    %3298 = vmatpush.bf16.msra.mxu0 %v2346
    %3299 = vmatmul.bf16.gmra.mxu0 %v226
    %v3300 = vpop.f32.mrf.mxu0
    %v3301 = vadd.f32 %v3288, %v3300
    %v3302 = vpop.f32.mrf.mxu0
    %3303 = vdwg.mxu0
    %3304 = vmatpush.bf16.msra.mxu0 %v2376
    %3305 = vmatpush.bf16.msra.mxu0 %v2374
    %3306 = vmatpush.bf16.msra.mxu0 %v2372
    %3307 = vmatpush.bf16.msra.mxu0 %v2370
    %3308 = vmatpush.bf16.msra.mxu0 %v2368
    %3309 = vmatpush.bf16.msra.mxu0 %v2366
    %3310 = vmatpush.bf16.msra.mxu0 %v2364
    %3311 = vmatpush.bf16.msra.mxu0 %v2362
    %3312 = vmatmul.bf16.gmra.mxu0 %v227
    %v3313 = vpop.f32.mrf.mxu0
    %v3314 = vadd.f32 %v3301, %v3313
    %v3315 = vpop.f32.mrf.mxu0
    %3316 = vdwg.mxu0
    %3317 = vmatpush.bf16.msra.mxu0 %v2392
    %3318 = vmatpush.bf16.msra.mxu0 %v2390
    %3319 = vmatpush.bf16.msra.mxu0 %v2388
    %3320 = vmatpush.bf16.msra.mxu0 %v2386
    %3321 = vmatpush.bf16.msra.mxu0 %v2384
    %3322 = vmatpush.bf16.msra.mxu0 %v2382
    %3323 = vmatpush.bf16.msra.mxu0 %v2380
    %3324 = vmatpush.bf16.msra.mxu0 %v2378
    %3325 = vmatmul.bf16.gmra.mxu0 %v228
    %v3326 = vpop.f32.mrf.mxu0
    %v3327 = vadd.f32 %v3314, %v3326
    %v3328 = vpop.f32.mrf.mxu0
    %3329 = vdwg.mxu0
    %3330 = vmatpush.bf16.msra.mxu0 %v2408
    %3331 = vmatpush.bf16.msra.mxu0 %v2406
    %3332 = vmatpush.bf16.msra.mxu0 %v2404
    %3333 = vmatpush.bf16.msra.mxu0 %v2402
    %3334 = vmatpush.bf16.msra.mxu0 %v2400
    %3335 = vmatpush.bf16.msra.mxu0 %v2398
    %3336 = vmatpush.bf16.msra.mxu0 %v2396
    %3337 = vmatpush.bf16.msra.mxu0 %v2394
    %3338 = vmatmul.bf16.gmra.mxu0 %v229
    %v3339 = vpop.f32.mrf.mxu0
    %v3340 = vadd.f32 %v3327, %v3339
    %v3341 = vpop.f32.mrf.mxu0
    %3342 = vdwg.mxu0
    %3343 = vmatpush.bf16.msra.mxu0 %v2424
    %3344 = vmatpush.bf16.msra.mxu0 %v2422
    %3345 = vmatpush.bf16.msra.mxu0 %v2420
    %3346 = vmatpush.bf16.msra.mxu0 %v2418
    %3347 = vmatpush.bf16.msra.mxu0 %v2416
    %3348 = vmatpush.bf16.msra.mxu0 %v2414
    %3349 = vmatpush.bf16.msra.mxu0 %v2412
    %3350 = vmatpush.bf16.msra.mxu0 %v2410
    %3351 = vmatmul.bf16.gmra.mxu0 %v230
    %v3352 = vpop.f32.mrf.mxu0
    %v3353 = vadd.f32 %v3340, %v3352
    %v3354 = vpop.f32.mrf.mxu0
    %3355 = vdwg.mxu0
    %3356 = vmatpush.bf16.msra.mxu0 %v2440
    %3357 = vmatpush.bf16.msra.mxu0 %v2438
    %3358 = vmatpush.bf16.msra.mxu0 %v2436
    %3359 = vmatpush.bf16.msra.mxu0 %v2434
    %3360 = vmatpush.bf16.msra.mxu0 %v2432
    %3361 = vmatpush.bf16.msra.mxu0 %v2430
    %3362 = vmatpush.bf16.msra.mxu0 %v2428
    %3363 = vmatpush.bf16.msra.mxu0 %v2426
    %3364 = vmatmul.bf16.gmra.mxu0 %v231
    %v3365 = vpop.f32.mrf.mxu0
    %v3366 = vadd.f32 %v3353, %v3365
    %v3367 = vpop.f32.mrf.mxu0
    %3368 = vdwg.mxu0
    %3369 = vmatpush.bf16.msra.mxu0 %v2456
    %3370 = vmatpush.bf16.msra.mxu0 %v2454
    %3371 = vmatpush.bf16.msra.mxu0 %v2452
    %3372 = vmatpush.bf16.msra.mxu0 %v2450
    %3373 = vmatpush.bf16.msra.mxu0 %v2448
    %3374 = vmatpush.bf16.msra.mxu0 %v2446
    %3375 = vmatpush.bf16.msra.mxu0 %v2444
    %3376 = vmatpush.bf16.msra.mxu0 %v2442
    %3377 = vmatmul.bf16.gmra.mxu0 %v232
    %v3378 = vpop.f32.mrf.mxu0
    %v3379 = vadd.f32 %v3366, %v3378
    %v3380 = vpop.f32.mrf.mxu0
    %3381 = vdwg.mxu0
    %3382 = vmatpush.bf16.msra.mxu0 %v2472
    %3383 = vmatpush.bf16.msra.mxu0 %v2470
    %3384 = vmatpush.bf16.msra.mxu0 %v2468
    %3385 = vmatpush.bf16.msra.mxu0 %v2466
    %3386 = vmatpush.bf16.msra.mxu0 %v2464
    %3387 = vmatpush.bf16.msra.mxu0 %v2462
    %3388 = vmatpush.bf16.msra.mxu0 %v2460
    %3389 = vmatpush.bf16.msra.mxu0 %v2458
    %3390 = vmatmul.bf16.gmra.mxu0 %v233
    %v3391 = vpop.f32.mrf.mxu0
    %v3392 = vadd.f32 %v3379, %v3391
    %v3393 = vpop.f32.mrf.mxu0
    %3394 = vdwg.mxu0
    %3395 = vmatpush.bf16.msra.mxu0 %v2488
    %3396 = vmatpush.bf16.msra.mxu0 %v2486
    %3397 = vmatpush.bf16.msra.mxu0 %v2484
    %3398 = vmatpush.bf16.msra.mxu0 %v2482
    %3399 = vmatpush.bf16.msra.mxu0 %v2480
    %3400 = vmatpush.bf16.msra.mxu0 %v2478
    %3401 = vmatpush.bf16.msra.mxu0 %v2476
    %3402 = vmatpush.bf16.msra.mxu0 %v2474
    %3403 = vmatmul.bf16.gmra.mxu0 %v234
    %v3404 = vpop.f32.mrf.mxu0
    %v3405 = vadd.f32 %v3392, %v3404
    %v3406 = vpop.f32.mrf.mxu0
    %3407 = vdwg.mxu0
    %3408 = vmatpush.bf16.msra.mxu0 %v2504
    %3409 = vmatpush.bf16.msra.mxu0 %v2502
    %3410 = vmatpush.bf16.msra.mxu0 %v2500
    %3411 = vmatpush.bf16.msra.mxu0 %v2498
    %3412 = vmatpush.bf16.msra.mxu0 %v2496
    %3413 = vmatpush.bf16.msra.mxu0 %v2494
    %3414 = vmatpush.bf16.msra.mxu0 %v2492
    %3415 = vmatpush.bf16.msra.mxu0 %v2490
    %3416 = vmatmul.bf16.gmra.mxu0 %v235
    %v3417 = vpop.f32.mrf.mxu0
    %v3418 = vadd.f32 %v3405, %v3417
    %v3419 = vpop.f32.mrf.mxu0
    %3420 = vdwg.mxu0
    %3421 = vmatpush.bf16.msra.mxu0 %v2520
    %3422 = vmatpush.bf16.msra.mxu0 %v2518
    %3423 = vmatpush.bf16.msra.mxu0 %v2516
    %3424 = vmatpush.bf16.msra.mxu0 %v2514
    %3425 = vmatpush.bf16.msra.mxu0 %v2512
    %3426 = vmatpush.bf16.msra.mxu0 %v2510
    %3427 = vmatpush.bf16.msra.mxu0 %v2508
    %3428 = vmatpush.bf16.msra.mxu0 %v2506
    %3429 = vmatmul.bf16.gmra.mxu0 %v236
    %v3430 = vpop.f32.mrf.mxu0
    %v3431 = vadd.f32 %v3418, %v3430
    %v3432 = vpop.f32.mrf.mxu0
    %3433 = vdwg.mxu0
    %3434 = vmatpush.bf16.msra.mxu0 %v2536
    %3435 = vmatpush.bf16.msra.mxu0 %v2534
    %3436 = vmatpush.bf16.msra.mxu0 %v2532
    %3437 = vmatpush.bf16.msra.mxu0 %v2530
    %3438 = vmatpush.bf16.msra.mxu0 %v2528
    %3439 = vmatpush.bf16.msra.mxu0 %v2526
    %3440 = vmatpush.bf16.msra.mxu0 %v2524
    %3441 = vmatpush.bf16.msra.mxu0 %v2522
    %3442 = vmatmul.bf16.gmra.mxu0 %v237
    %v3443 = vpop.f32.mrf.mxu0
    %v3444 = vadd.f32 %v3431, %v3443
    %v3445 = vpop.f32.mrf.mxu0
    %3446 = vdwg.mxu0
    %3447 = vmatpush.bf16.msra.mxu0 %v2552
    %3448 = vmatpush.bf16.msra.mxu0 %v2550
    %3449 = vmatpush.bf16.msra.mxu0 %v2548
    %3450 = vmatpush.bf16.msra.mxu0 %v2546
    %3451 = vmatpush.bf16.msra.mxu0 %v2544
    %3452 = vmatpush.bf16.msra.mxu0 %v2542
    %3453 = vmatpush.bf16.msra.mxu0 %v2540
    %3454 = vmatpush.bf16.msra.mxu0 %v2538
    %3455 = vmatmul.bf16.gmra.mxu0 %v238
    %v3456 = vpop.f32.mrf.mxu0
    %v3457 = vadd.f32 %v3444, %v3456
    %v3458 = vpop.f32.mrf.mxu0
    %3459 = vdwg.mxu0
    %3460 = vmatpush.bf16.msra.mxu0 %v2568
    %3461 = vmatpush.bf16.msra.mxu0 %v2566
    %3462 = vmatpush.bf16.msra.mxu0 %v2564
    %3463 = vmatpush.bf16.msra.mxu0 %v2562
    %3464 = vmatpush.bf16.msra.mxu0 %v2560
    %3465 = vmatpush.bf16.msra.mxu0 %v2558
    %3466 = vmatpush.bf16.msra.mxu0 %v2556
    %3467 = vmatpush.bf16.msra.mxu0 %v2554
    %3468 = vmatmul.bf16.gmra.mxu0 %v239
    %v3469 = vpop.f32.mrf.mxu0
    %v3470 = vadd.f32 %v3457, %v3469
    %v3471 = vpop.f32.mrf.mxu0
    %3472 = vdwg.mxu0
    %3473 = vmatpush.bf16.msra.mxu0 %v2584
    %3474 = vmatpush.bf16.msra.mxu0 %v2582
    %3475 = vmatpush.bf16.msra.mxu0 %v2580
    %3476 = vmatpush.bf16.msra.mxu0 %v2578
    %3477 = vmatpush.bf16.msra.mxu0 %v2576
    %3478 = vmatpush.bf16.msra.mxu0 %v2574
    %3479 = vmatpush.bf16.msra.mxu0 %v2572
    %3480 = vmatpush.bf16.msra.mxu0 %v2570
    %3481 = vmatmul.bf16.gmra.mxu0 %v240
    %v3482 = vpop.f32.mrf.mxu0
    %v3483 = vadd.f32 %v3470, %v3482
    %v3484 = vpop.f32.mrf.mxu0
    %3485 = vdwg.mxu0
    %3486 = vmatpush.bf16.msra.mxu0 %v2600
    %3487 = vmatpush.bf16.msra.mxu0 %v2598
    %3488 = vmatpush.bf16.msra.mxu0 %v2596
    %3489 = vmatpush.bf16.msra.mxu0 %v2594
    %3490 = vmatpush.bf16.msra.mxu0 %v2592
    %3491 = vmatpush.bf16.msra.mxu0 %v2590
    %3492 = vmatpush.bf16.msra.mxu0 %v2588
    %3493 = vmatpush.bf16.msra.mxu0 %v2586
    %3494 = vmatmul.bf16.gmra.mxu0 %v241
    %v3495 = vpop.f32.mrf.mxu0
    %v3496 = vadd.f32 %v3483, %v3495
    %v3497 = vpop.f32.mrf.mxu0
    %3498 = vdwg.mxu0
    %3499 = vmatpush.bf16.msra.mxu0 %v2616
    %3500 = vmatpush.bf16.msra.mxu0 %v2614
    %3501 = vmatpush.bf16.msra.mxu0 %v2612
    %3502 = vmatpush.bf16.msra.mxu0 %v2610
    %3503 = vmatpush.bf16.msra.mxu0 %v2608
    %3504 = vmatpush.bf16.msra.mxu0 %v2606
    %3505 = vmatpush.bf16.msra.mxu0 %v2604
    %3506 = vmatpush.bf16.msra.mxu0 %v2602
    %3507 = vmatmul.bf16.gmra.mxu0 %v242
    %v3508 = vpop.f32.mrf.mxu0
    %v3509 = vadd.f32 %v3496, %v3508
    %v3510 = vpop.f32.mrf.mxu0
    %3511 = vdwg.mxu0
    %3512 = vmatpush.bf16.msra.mxu0 %v2632
    %3513 = vmatpush.bf16.msra.mxu0 %v2630
    %3514 = vmatpush.bf16.msra.mxu0 %v2628
    %3515 = vmatpush.bf16.msra.mxu0 %v2626
    %3516 = vmatpush.bf16.msra.mxu0 %v2624
    %3517 = vmatpush.bf16.msra.mxu0 %v2622
    %3518 = vmatpush.bf16.msra.mxu0 %v2620
    %3519 = vmatpush.bf16.msra.mxu0 %v2618
    %3520 = vmatmul.bf16.gmra.mxu0 %v243
    %v3521 = vpop.f32.mrf.mxu0
    %v3522 = vadd.f32 %v3509, %v3521
    %v3523 = vpop.f32.mrf.mxu0
    %3524 = vdwg.mxu0
    %3525 = vmatpush.bf16.msra.mxu0 %v2648
    %3526 = vmatpush.bf16.msra.mxu0 %v2646
    %3527 = vmatpush.bf16.msra.mxu0 %v2644
    %3528 = vmatpush.bf16.msra.mxu0 %v2642
    %3529 = vmatpush.bf16.msra.mxu0 %v2640
    %3530 = vmatpush.bf16.msra.mxu0 %v2638
    %3531 = vmatpush.bf16.msra.mxu0 %v2636
    %3532 = vmatpush.bf16.msra.mxu0 %v2634
    %3533 = vmatmul.bf16.gmra.mxu0 %v244
    %v3534 = vpop.f32.mrf.mxu0
    %v3535 = vadd.f32 %v3522, %v3534
    %v3536 = vpop.f32.mrf.mxu0
    %3537 = vdwg.mxu0
    %3538 = vmatpush.bf16.msra.mxu0 %v2664
    %3539 = vmatpush.bf16.msra.mxu0 %v2662
    %3540 = vmatpush.bf16.msra.mxu0 %v2660
    %3541 = vmatpush.bf16.msra.mxu0 %v2658
    %3542 = vmatpush.bf16.msra.mxu0 %v2656
    %3543 = vmatpush.bf16.msra.mxu0 %v2654
    %3544 = vmatpush.bf16.msra.mxu0 %v2652
    %3545 = vmatpush.bf16.msra.mxu0 %v2650
    %3546 = vmatmul.bf16.gmra.mxu0 %v245
    %v3547 = vpop.f32.mrf.mxu0
    %v3548 = vadd.f32 %v3535, %v3547
    %v3549 = vpop.f32.mrf.mxu0
    %3550 = vdwg.mxu0
    %3551 = vmatpush.bf16.msra.mxu0 %v2680
    %3552 = vmatpush.bf16.msra.mxu0 %v2678
    %3553 = vmatpush.bf16.msra.mxu0 %v2676
    %3554 = vmatpush.bf16.msra.mxu0 %v2674
    %3555 = vmatpush.bf16.msra.mxu0 %v2672
    %3556 = vmatpush.bf16.msra.mxu0 %v2670
    %3557 = vmatpush.bf16.msra.mxu0 %v2668
    %3558 = vmatpush.bf16.msra.mxu0 %v2666
    %3559 = vmatmul.bf16.gmra.mxu0 %v246
    %v3560 = vpop.f32.mrf.mxu0
    %v3561 = vadd.f32 %v3548, %v3560
    %v3562 = vpop.f32.mrf.mxu0
    %3563 = vdwg.mxu0
    %3564 = vmatpush.bf16.msra.mxu0 %v2696
    %3565 = vmatpush.bf16.msra.mxu0 %v2694
    %3566 = vmatpush.bf16.msra.mxu0 %v2692
    %3567 = vmatpush.bf16.msra.mxu0 %v2690
    %3568 = vmatpush.bf16.msra.mxu0 %v2688
    %3569 = vmatpush.bf16.msra.mxu0 %v2686
    %3570 = vmatpush.bf16.msra.mxu0 %v2684
    %3571 = vmatpush.bf16.msra.mxu0 %v2682
    %3572 = vmatmul.bf16.gmra.mxu0 %v247
    %v3573 = vpop.f32.mrf.mxu0
    %v3574 = vadd.f32 %v3561, %v3573
    %v3575 = vpop.f32.mrf.mxu0
    %3576 = vdwg.mxu0
    %3577 = vmatpush.bf16.msra.mxu0 %v2712
    %3578 = vmatpush.bf16.msra.mxu0 %v2710
    %3579 = vmatpush.bf16.msra.mxu0 %v2708
    %3580 = vmatpush.bf16.msra.mxu0 %v2706
    %3581 = vmatpush.bf16.msra.mxu0 %v2704
    %3582 = vmatpush.bf16.msra.mxu0 %v2702
    %3583 = vmatpush.bf16.msra.mxu0 %v2700
    %3584 = vmatpush.bf16.msra.mxu0 %v2698
    %3585 = vmatmul.bf16.gmra.mxu0 %v248
    %v3586 = vpop.f32.mrf.mxu0
    %v3587 = vadd.f32 %v3574, %v3586
    %v3588 = vpop.f32.mrf.mxu0
    %3589 = vdwg.mxu0
    %3590 = vmatpush.bf16.msra.mxu0 %v2728
    %3591 = vmatpush.bf16.msra.mxu0 %v2726
    %3592 = vmatpush.bf16.msra.mxu0 %v2724
    %3593 = vmatpush.bf16.msra.mxu0 %v2722
    %3594 = vmatpush.bf16.msra.mxu0 %v2720
    %3595 = vmatpush.bf16.msra.mxu0 %v2718
    %3596 = vmatpush.bf16.msra.mxu0 %v2716
    %3597 = vmatpush.bf16.msra.mxu0 %v2714
    %3598 = vmatmul.bf16.gmra.mxu0 %v249
    %v3599 = vpop.f32.mrf.mxu0
    %v3600 = vadd.f32 %v3587, %v3599
    %v3601 = vpop.f32.mrf.mxu0
    %3602 = vdwg.mxu0
    %3603 = vmatpush.bf16.msra.mxu0 %v2744
    %3604 = vmatpush.bf16.msra.mxu0 %v2742
    %3605 = vmatpush.bf16.msra.mxu0 %v2740
    %3606 = vmatpush.bf16.msra.mxu0 %v2738
    %3607 = vmatpush.bf16.msra.mxu0 %v2736
    %3608 = vmatpush.bf16.msra.mxu0 %v2734
    %3609 = vmatpush.bf16.msra.mxu0 %v2732
    %3610 = vmatpush.bf16.msra.mxu0 %v2730
    %3611 = vmatmul.bf16.gmra.mxu0 %v250
    %v3612 = vpop.f32.mrf.mxu0
    %v3613 = vadd.f32 %v3600, %v3612
    %v3614 = vpop.f32.mrf.mxu0
    %3615 = vdwg.mxu0
    %3616 = vmatpush.bf16.msra.mxu0 %v2281
    %3617 = vmatpush.bf16.msra.mxu0 %v2279
    %3618 = vmatpush.bf16.msra.mxu0 %v2277
    %3619 = vmatpush.bf16.msra.mxu0 %v2275
    %3620 = vmatpush.bf16.msra.mxu0 %v2273
    %3621 = vmatpush.bf16.msra.mxu0 %v2271
    %3622 = vmatpush.bf16.msra.mxu0 %v2269
    %3623 = vmatpush.bf16.msra.mxu0 %v2267
    %3624 = vmatmul.bf16.gmra.mxu0 %v221
    %v3625 = vpop.f32.mrf.mxu0
    %v3626 = vadd.f32 %v823, %v3625
    %v3627 = vpop.f32.mrf.mxu0
    %3628 = vdwg.mxu0
    %3629 = vmatpush.bf16.msra.mxu0 %v2297
    %3630 = vmatpush.bf16.msra.mxu0 %v2295
    %3631 = vmatpush.bf16.msra.mxu0 %v2293
    %3632 = vmatpush.bf16.msra.mxu0 %v2291
    %3633 = vmatpush.bf16.msra.mxu0 %v2289
    %3634 = vmatpush.bf16.msra.mxu0 %v2287
    %3635 = vmatpush.bf16.msra.mxu0 %v2285
    %3636 = vmatpush.bf16.msra.mxu0 %v2283
    %3637 = vmatmul.bf16.gmra.mxu0 %v222
    %v3638 = vpop.f32.mrf.mxu0
    %v3639 = vadd.f32 %v3626, %v3638
    %v3640 = vpop.f32.mrf.mxu0
    %3641 = vdwg.mxu0
    %3642 = vmatpush.bf16.msra.mxu0 %v2313
    %3643 = vmatpush.bf16.msra.mxu0 %v2311
    %3644 = vmatpush.bf16.msra.mxu0 %v2309
    %3645 = vmatpush.bf16.msra.mxu0 %v2307
    %3646 = vmatpush.bf16.msra.mxu0 %v2305
    %3647 = vmatpush.bf16.msra.mxu0 %v2303
    %3648 = vmatpush.bf16.msra.mxu0 %v2301
    %3649 = vmatpush.bf16.msra.mxu0 %v2299
    %3650 = vmatmul.bf16.gmra.mxu0 %v223
    %v3651 = vpop.f32.mrf.mxu0
    %v3652 = vadd.f32 %v3639, %v3651
    %v3653 = vpop.f32.mrf.mxu0
    %3654 = vdwg.mxu0
    %3655 = vmatpush.bf16.msra.mxu0 %v2329
    %3656 = vmatpush.bf16.msra.mxu0 %v2327
    %3657 = vmatpush.bf16.msra.mxu0 %v2325
    %3658 = vmatpush.bf16.msra.mxu0 %v2323
    %3659 = vmatpush.bf16.msra.mxu0 %v2321
    %3660 = vmatpush.bf16.msra.mxu0 %v2319
    %3661 = vmatpush.bf16.msra.mxu0 %v2317
    %3662 = vmatpush.bf16.msra.mxu0 %v2315
    %3663 = vmatmul.bf16.gmra.mxu0 %v224
    %v3664 = vpop.f32.mrf.mxu0
    %v3665 = vadd.f32 %v3652, %v3664
    %v3666 = vpop.f32.mrf.mxu0
    %3667 = vdwg.mxu0
    %3668 = vmatpush.bf16.msra.mxu0 %v2345
    %3669 = vmatpush.bf16.msra.mxu0 %v2343
    %3670 = vmatpush.bf16.msra.mxu0 %v2341
    %3671 = vmatpush.bf16.msra.mxu0 %v2339
    %3672 = vmatpush.bf16.msra.mxu0 %v2337
    %3673 = vmatpush.bf16.msra.mxu0 %v2335
    %3674 = vmatpush.bf16.msra.mxu0 %v2333
    %3675 = vmatpush.bf16.msra.mxu0 %v2331
    %3676 = vmatmul.bf16.gmra.mxu0 %v225
    %v3677 = vpop.f32.mrf.mxu0
    %v3678 = vadd.f32 %v3665, %v3677
    %v3679 = vpop.f32.mrf.mxu0
    %3680 = vdwg.mxu0
    %3681 = vmatpush.bf16.msra.mxu0 %v2361
    %3682 = vmatpush.bf16.msra.mxu0 %v2359
    %3683 = vmatpush.bf16.msra.mxu0 %v2357
    %3684 = vmatpush.bf16.msra.mxu0 %v2355
    %3685 = vmatpush.bf16.msra.mxu0 %v2353
    %3686 = vmatpush.bf16.msra.mxu0 %v2351
    %3687 = vmatpush.bf16.msra.mxu0 %v2349
    %3688 = vmatpush.bf16.msra.mxu0 %v2347
    %3689 = vmatmul.bf16.gmra.mxu0 %v226
    %v3690 = vpop.f32.mrf.mxu0
    %v3691 = vadd.f32 %v3678, %v3690
    %v3692 = vpop.f32.mrf.mxu0
    %3693 = vdwg.mxu0
    %3694 = vmatpush.bf16.msra.mxu0 %v2377
    %3695 = vmatpush.bf16.msra.mxu0 %v2375
    %3696 = vmatpush.bf16.msra.mxu0 %v2373
    %3697 = vmatpush.bf16.msra.mxu0 %v2371
    %3698 = vmatpush.bf16.msra.mxu0 %v2369
    %3699 = vmatpush.bf16.msra.mxu0 %v2367
    %3700 = vmatpush.bf16.msra.mxu0 %v2365
    %3701 = vmatpush.bf16.msra.mxu0 %v2363
    %3702 = vmatmul.bf16.gmra.mxu0 %v227
    %v3703 = vpop.f32.mrf.mxu0
    %v3704 = vadd.f32 %v3691, %v3703
    %v3705 = vpop.f32.mrf.mxu0
    %3706 = vdwg.mxu0
    %3707 = vmatpush.bf16.msra.mxu0 %v2393
    %3708 = vmatpush.bf16.msra.mxu0 %v2391
    %3709 = vmatpush.bf16.msra.mxu0 %v2389
    %3710 = vmatpush.bf16.msra.mxu0 %v2387
    %3711 = vmatpush.bf16.msra.mxu0 %v2385
    %3712 = vmatpush.bf16.msra.mxu0 %v2383
    %3713 = vmatpush.bf16.msra.mxu0 %v2381
    %3714 = vmatpush.bf16.msra.mxu0 %v2379
    %3715 = vmatmul.bf16.gmra.mxu0 %v228
    %v3716 = vpop.f32.mrf.mxu0
    %v3717 = vadd.f32 %v3704, %v3716
    %v3718 = vpop.f32.mrf.mxu0
    %3719 = vdwg.mxu0
    %3720 = vmatpush.bf16.msra.mxu0 %v2409
    %3721 = vmatpush.bf16.msra.mxu0 %v2407
    %3722 = vmatpush.bf16.msra.mxu0 %v2405
    %3723 = vmatpush.bf16.msra.mxu0 %v2403
    %3724 = vmatpush.bf16.msra.mxu0 %v2401
    %3725 = vmatpush.bf16.msra.mxu0 %v2399
    %3726 = vmatpush.bf16.msra.mxu0 %v2397
    %3727 = vmatpush.bf16.msra.mxu0 %v2395
    %3728 = vmatmul.bf16.gmra.mxu0 %v229
    %v3729 = vpop.f32.mrf.mxu0
    %v3730 = vadd.f32 %v3717, %v3729
    %v3731 = vpop.f32.mrf.mxu0
    %3732 = vdwg.mxu0
    %3733 = vmatpush.bf16.msra.mxu0 %v2425
    %3734 = vmatpush.bf16.msra.mxu0 %v2423
    %3735 = vmatpush.bf16.msra.mxu0 %v2421
    %3736 = vmatpush.bf16.msra.mxu0 %v2419
    %3737 = vmatpush.bf16.msra.mxu0 %v2417
    %3738 = vmatpush.bf16.msra.mxu0 %v2415
    %3739 = vmatpush.bf16.msra.mxu0 %v2413
    %3740 = vmatpush.bf16.msra.mxu0 %v2411
    %3741 = vmatmul.bf16.gmra.mxu0 %v230
    %v3742 = vpop.f32.mrf.mxu0
    %v3743 = vadd.f32 %v3730, %v3742
    %v3744 = vpop.f32.mrf.mxu0
    %3745 = vdwg.mxu0
    %3746 = vmatpush.bf16.msra.mxu0 %v2441
    %3747 = vmatpush.bf16.msra.mxu0 %v2439
    %3748 = vmatpush.bf16.msra.mxu0 %v2437
    %3749 = vmatpush.bf16.msra.mxu0 %v2435
    %3750 = vmatpush.bf16.msra.mxu0 %v2433
    %3751 = vmatpush.bf16.msra.mxu0 %v2431
    %3752 = vmatpush.bf16.msra.mxu0 %v2429
    %3753 = vmatpush.bf16.msra.mxu0 %v2427
    %3754 = vmatmul.bf16.gmra.mxu0 %v231
    %v3755 = vpop.f32.mrf.mxu0
    %v3756 = vadd.f32 %v3743, %v3755
    %v3757 = vpop.f32.mrf.mxu0
    %3758 = vdwg.mxu0
    %3759 = vmatpush.bf16.msra.mxu0 %v2457
    %3760 = vmatpush.bf16.msra.mxu0 %v2455
    %3761 = vmatpush.bf16.msra.mxu0 %v2453
    %3762 = vmatpush.bf16.msra.mxu0 %v2451
    %3763 = vmatpush.bf16.msra.mxu0 %v2449
    %3764 = vmatpush.bf16.msra.mxu0 %v2447
    %3765 = vmatpush.bf16.msra.mxu0 %v2445
    %3766 = vmatpush.bf16.msra.mxu0 %v2443
    %3767 = vmatmul.bf16.gmra.mxu0 %v232
    %v3768 = vpop.f32.mrf.mxu0
    %v3769 = vadd.f32 %v3756, %v3768
    %v3770 = vpop.f32.mrf.mxu0
    %3771 = vdwg.mxu0
    %3772 = vmatpush.bf16.msra.mxu0 %v2473
    %3773 = vmatpush.bf16.msra.mxu0 %v2471
    %3774 = vmatpush.bf16.msra.mxu0 %v2469
    %3775 = vmatpush.bf16.msra.mxu0 %v2467
    %3776 = vmatpush.bf16.msra.mxu0 %v2465
    %3777 = vmatpush.bf16.msra.mxu0 %v2463
    %3778 = vmatpush.bf16.msra.mxu0 %v2461
    %3779 = vmatpush.bf16.msra.mxu0 %v2459
    %3780 = vmatmul.bf16.gmra.mxu0 %v233
    %v3781 = vpop.f32.mrf.mxu0
    %v3782 = vadd.f32 %v3769, %v3781
    %v3783 = vpop.f32.mrf.mxu0
    %3784 = vdwg.mxu0
    %3785 = vmatpush.bf16.msra.mxu0 %v2489
    %3786 = vmatpush.bf16.msra.mxu0 %v2487
    %3787 = vmatpush.bf16.msra.mxu0 %v2485
    %3788 = vmatpush.bf16.msra.mxu0 %v2483
    %3789 = vmatpush.bf16.msra.mxu0 %v2481
    %3790 = vmatpush.bf16.msra.mxu0 %v2479
    %3791 = vmatpush.bf16.msra.mxu0 %v2477
    %3792 = vmatpush.bf16.msra.mxu0 %v2475
    %3793 = vmatmul.bf16.gmra.mxu0 %v234
    %v3794 = vpop.f32.mrf.mxu0
    %v3795 = vadd.f32 %v3782, %v3794
    %v3796 = vpop.f32.mrf.mxu0
    %3797 = vdwg.mxu0
    %3798 = vmatpush.bf16.msra.mxu0 %v2505
    %3799 = vmatpush.bf16.msra.mxu0 %v2503
    %3800 = vmatpush.bf16.msra.mxu0 %v2501
    %3801 = vmatpush.bf16.msra.mxu0 %v2499
    %3802 = vmatpush.bf16.msra.mxu0 %v2497
    %3803 = vmatpush.bf16.msra.mxu0 %v2495
    %3804 = vmatpush.bf16.msra.mxu0 %v2493
    %3805 = vmatpush.bf16.msra.mxu0 %v2491
    %3806 = vmatmul.bf16.gmra.mxu0 %v235
    %v3807 = vpop.f32.mrf.mxu0
    %v3808 = vadd.f32 %v3795, %v3807
    %v3809 = vpop.f32.mrf.mxu0
    %3810 = vdwg.mxu0
    %3811 = vmatpush.bf16.msra.mxu0 %v2521
    %3812 = vmatpush.bf16.msra.mxu0 %v2519
    %3813 = vmatpush.bf16.msra.mxu0 %v2517
    %3814 = vmatpush.bf16.msra.mxu0 %v2515
    %3815 = vmatpush.bf16.msra.mxu0 %v2513
    %3816 = vmatpush.bf16.msra.mxu0 %v2511
    %3817 = vmatpush.bf16.msra.mxu0 %v2509
    %3818 = vmatpush.bf16.msra.mxu0 %v2507
    %3819 = vmatmul.bf16.gmra.mxu0 %v236
    %v3820 = vpop.f32.mrf.mxu0
    %v3821 = vadd.f32 %v3808, %v3820
    %v3822 = vpop.f32.mrf.mxu0
    %3823 = vdwg.mxu0
    %3824 = vmatpush.bf16.msra.mxu0 %v2537
    %3825 = vmatpush.bf16.msra.mxu0 %v2535
    %3826 = vmatpush.bf16.msra.mxu0 %v2533
    %3827 = vmatpush.bf16.msra.mxu0 %v2531
    %3828 = vmatpush.bf16.msra.mxu0 %v2529
    %3829 = vmatpush.bf16.msra.mxu0 %v2527
    %3830 = vmatpush.bf16.msra.mxu0 %v2525
    %3831 = vmatpush.bf16.msra.mxu0 %v2523
    %3832 = vmatmul.bf16.gmra.mxu0 %v237
    %v3833 = vpop.f32.mrf.mxu0
    %v3834 = vadd.f32 %v3821, %v3833
    %v3835 = vpop.f32.mrf.mxu0
    %3836 = vdwg.mxu0
    %3837 = vmatpush.bf16.msra.mxu0 %v2553
    %3838 = vmatpush.bf16.msra.mxu0 %v2551
    %3839 = vmatpush.bf16.msra.mxu0 %v2549
    %3840 = vmatpush.bf16.msra.mxu0 %v2547
    %3841 = vmatpush.bf16.msra.mxu0 %v2545
    %3842 = vmatpush.bf16.msra.mxu0 %v2543
    %3843 = vmatpush.bf16.msra.mxu0 %v2541
    %3844 = vmatpush.bf16.msra.mxu0 %v2539
    %3845 = vmatmul.bf16.gmra.mxu0 %v238
    %v3846 = vpop.f32.mrf.mxu0
    %v3847 = vadd.f32 %v3834, %v3846
    %v3848 = vpop.f32.mrf.mxu0
    %3849 = vdwg.mxu0
    %3850 = vmatpush.bf16.msra.mxu0 %v2569
    %3851 = vmatpush.bf16.msra.mxu0 %v2567
    %3852 = vmatpush.bf16.msra.mxu0 %v2565
    %3853 = vmatpush.bf16.msra.mxu0 %v2563
    %3854 = vmatpush.bf16.msra.mxu0 %v2561
    %3855 = vmatpush.bf16.msra.mxu0 %v2559
    %3856 = vmatpush.bf16.msra.mxu0 %v2557
    %3857 = vmatpush.bf16.msra.mxu0 %v2555
    %3858 = vmatmul.bf16.gmra.mxu0 %v239
    %v3859 = vpop.f32.mrf.mxu0
    %v3860 = vadd.f32 %v3847, %v3859
    %v3861 = vpop.f32.mrf.mxu0
    %3862 = vdwg.mxu0
    %3863 = vmatpush.bf16.msra.mxu0 %v2585
    %3864 = vmatpush.bf16.msra.mxu0 %v2583
    %3865 = vmatpush.bf16.msra.mxu0 %v2581
    %3866 = vmatpush.bf16.msra.mxu0 %v2579
    %3867 = vmatpush.bf16.msra.mxu0 %v2577
    %3868 = vmatpush.bf16.msra.mxu0 %v2575
    %3869 = vmatpush.bf16.msra.mxu0 %v2573
    %3870 = vmatpush.bf16.msra.mxu0 %v2571
    %3871 = vmatmul.bf16.gmra.mxu0 %v240
    %v3872 = vpop.f32.mrf.mxu0
    %v3873 = vadd.f32 %v3860, %v3872
    %v3874 = vpop.f32.mrf.mxu0
    %3875 = vdwg.mxu0
    %3876 = vmatpush.bf16.msra.mxu0 %v2601
    %3877 = vmatpush.bf16.msra.mxu0 %v2599
    %3878 = vmatpush.bf16.msra.mxu0 %v2597
    %3879 = vmatpush.bf16.msra.mxu0 %v2595
    %3880 = vmatpush.bf16.msra.mxu0 %v2593
    %3881 = vmatpush.bf16.msra.mxu0 %v2591
    %3882 = vmatpush.bf16.msra.mxu0 %v2589
    %3883 = vmatpush.bf16.msra.mxu0 %v2587
    %3884 = vmatmul.bf16.gmra.mxu0 %v241
    %v3885 = vpop.f32.mrf.mxu0
    %v3886 = vadd.f32 %v3873, %v3885
    %v3887 = vpop.f32.mrf.mxu0
    %3888 = vdwg.mxu0
    %3889 = vmatpush.bf16.msra.mxu0 %v2617
    %3890 = vmatpush.bf16.msra.mxu0 %v2615
    %3891 = vmatpush.bf16.msra.mxu0 %v2613
    %3892 = vmatpush.bf16.msra.mxu0 %v2611
    %3893 = vmatpush.bf16.msra.mxu0 %v2609
    %3894 = vmatpush.bf16.msra.mxu0 %v2607
    %3895 = vmatpush.bf16.msra.mxu0 %v2605
    %3896 = vmatpush.bf16.msra.mxu0 %v2603
    %3897 = vmatmul.bf16.gmra.mxu0 %v242
    %v3898 = vpop.f32.mrf.mxu0
    %v3899 = vadd.f32 %v3886, %v3898
    %v3900 = vpop.f32.mrf.mxu0
    %3901 = vdwg.mxu0
    %3902 = vmatpush.bf16.msra.mxu0 %v2633
    %3903 = vmatpush.bf16.msra.mxu0 %v2631
    %3904 = vmatpush.bf16.msra.mxu0 %v2629
    %3905 = vmatpush.bf16.msra.mxu0 %v2627
    %3906 = vmatpush.bf16.msra.mxu0 %v2625
    %3907 = vmatpush.bf16.msra.mxu0 %v2623
    %3908 = vmatpush.bf16.msra.mxu0 %v2621
    %3909 = vmatpush.bf16.msra.mxu0 %v2619
    %3910 = vmatmul.bf16.gmra.mxu0 %v243
    %v3911 = vpop.f32.mrf.mxu0
    %v3912 = vadd.f32 %v3899, %v3911
    %v3913 = vpop.f32.mrf.mxu0
    %3914 = vdwg.mxu0
    %3915 = vmatpush.bf16.msra.mxu0 %v2649
    %3916 = vmatpush.bf16.msra.mxu0 %v2647
    %3917 = vmatpush.bf16.msra.mxu0 %v2645
    %3918 = vmatpush.bf16.msra.mxu0 %v2643
    %3919 = vmatpush.bf16.msra.mxu0 %v2641
    %3920 = vmatpush.bf16.msra.mxu0 %v2639
    %3921 = vmatpush.bf16.msra.mxu0 %v2637
    %3922 = vmatpush.bf16.msra.mxu0 %v2635
    %3923 = vmatmul.bf16.gmra.mxu0 %v244
    %v3924 = vpop.f32.mrf.mxu0
    %v3925 = vadd.f32 %v3912, %v3924
    %v3926 = vpop.f32.mrf.mxu0
    %3927 = vdwg.mxu0
    %3928 = vmatpush.bf16.msra.mxu0 %v2665
    %3929 = vmatpush.bf16.msra.mxu0 %v2663
    %3930 = vmatpush.bf16.msra.mxu0 %v2661
    %3931 = vmatpush.bf16.msra.mxu0 %v2659
    %3932 = vmatpush.bf16.msra.mxu0 %v2657
    %3933 = vmatpush.bf16.msra.mxu0 %v2655
    %3934 = vmatpush.bf16.msra.mxu0 %v2653
    %3935 = vmatpush.bf16.msra.mxu0 %v2651
    %3936 = vmatmul.bf16.gmra.mxu0 %v245
    %v3937 = vpop.f32.mrf.mxu0
    %v3938 = vadd.f32 %v3925, %v3937
    %v3939 = vpop.f32.mrf.mxu0
    %3940 = vdwg.mxu0
    %3941 = vmatpush.bf16.msra.mxu0 %v2681
    %3942 = vmatpush.bf16.msra.mxu0 %v2679
    %3943 = vmatpush.bf16.msra.mxu0 %v2677
    %3944 = vmatpush.bf16.msra.mxu0 %v2675
    %3945 = vmatpush.bf16.msra.mxu0 %v2673
    %3946 = vmatpush.bf16.msra.mxu0 %v2671
    %3947 = vmatpush.bf16.msra.mxu0 %v2669
    %3948 = vmatpush.bf16.msra.mxu0 %v2667
    %3949 = vmatmul.bf16.gmra.mxu0 %v246
    %v3950 = vpop.f32.mrf.mxu0
    %v3951 = vadd.f32 %v3938, %v3950
    %v3952 = vpop.f32.mrf.mxu0
    %3953 = vdwg.mxu0
    %3954 = vmatpush.bf16.msra.mxu0 %v2697
    %3955 = vmatpush.bf16.msra.mxu0 %v2695
    %3956 = vmatpush.bf16.msra.mxu0 %v2693
    %3957 = vmatpush.bf16.msra.mxu0 %v2691
    %3958 = vmatpush.bf16.msra.mxu0 %v2689
    %3959 = vmatpush.bf16.msra.mxu0 %v2687
    %3960 = vmatpush.bf16.msra.mxu0 %v2685
    %3961 = vmatpush.bf16.msra.mxu0 %v2683
    %3962 = vmatmul.bf16.gmra.mxu0 %v247
    %v3963 = vpop.f32.mrf.mxu0
    %v3964 = vadd.f32 %v3951, %v3963
    %v3965 = vpop.f32.mrf.mxu0
    %3966 = vdwg.mxu0
    %3967 = vmatpush.bf16.msra.mxu0 %v2713
    %3968 = vmatpush.bf16.msra.mxu0 %v2711
    %3969 = vmatpush.bf16.msra.mxu0 %v2709
    %3970 = vmatpush.bf16.msra.mxu0 %v2707
    %3971 = vmatpush.bf16.msra.mxu0 %v2705
    %3972 = vmatpush.bf16.msra.mxu0 %v2703
    %3973 = vmatpush.bf16.msra.mxu0 %v2701
    %3974 = vmatpush.bf16.msra.mxu0 %v2699
    %3975 = vmatmul.bf16.gmra.mxu0 %v248
    %v3976 = vpop.f32.mrf.mxu0
    %v3977 = vadd.f32 %v3964, %v3976
    %v3978 = vpop.f32.mrf.mxu0
    %3979 = vdwg.mxu0
    %3980 = vmatpush.bf16.msra.mxu0 %v2729
    %3981 = vmatpush.bf16.msra.mxu0 %v2727
    %3982 = vmatpush.bf16.msra.mxu0 %v2725
    %3983 = vmatpush.bf16.msra.mxu0 %v2723
    %3984 = vmatpush.bf16.msra.mxu0 %v2721
    %3985 = vmatpush.bf16.msra.mxu0 %v2719
    %3986 = vmatpush.bf16.msra.mxu0 %v2717
    %3987 = vmatpush.bf16.msra.mxu0 %v2715
    %3988 = vmatmul.bf16.gmra.mxu0 %v249
    %v3989 = vpop.f32.mrf.mxu0
    %v3990 = vadd.f32 %v3977, %v3989
    %v3991 = vpop.f32.mrf.mxu0
    %3992 = vdwg.mxu0
    %3993 = vmatpush.bf16.msra.mxu0 %v2745
    %3994 = vmatpush.bf16.msra.mxu0 %v2743
    %3995 = vmatpush.bf16.msra.mxu0 %v2741
    %3996 = vmatpush.bf16.msra.mxu0 %v2739
    %3997 = vmatpush.bf16.msra.mxu0 %v2737
    %3998 = vmatpush.bf16.msra.mxu0 %v2735
    %3999 = vmatpush.bf16.msra.mxu0 %v2733
    %4000 = vmatpush.bf16.msra.mxu0 %v2731
    %4001 = vmatmul.bf16.gmra.mxu0 %v250
    %v4002 = vpop.f32.mrf.mxu0
    %v4003 = vadd.f32 %v3990, %v4002
    %v4004 = vpop.f32.mrf.mxu0
    %4005 = vdwg.mxu0
    %v4006 = vmax.f32 %v3613, 0.0
    %v4007 = vmax.f32 %v4003, 0.0
    %v4008 = vpack.c.bf16 %v4007, %v4006
    %v4009 = vld [vmem:[#allocation8 + $0x1800] sm:$0xff]
    %v4010 = vld [vmem:[#allocation8 + $0x1808] sm:$0xff]
    %v4011 = vld [vmem:[#allocation8 + $0x1810] sm:$0xff]
    %v4012 = vld [vmem:[#allocation8 + $0x1818] sm:$0xff]
    %v4013 = vld [vmem:[#allocation8 + $0x1820] sm:$0xff]
    %v4014 = vld [vmem:[#allocation8 + $0x1828] sm:$0xff]
    %v4015 = vld [vmem:[#allocation8 + $0x1830] sm:$0xff]
    %v4016 = vld [vmem:[#allocation8 + $0x1838] sm:$0xff]
    %v4017 = vld [vmem:[#allocation8 + $0x1840] sm:$0xff]
    %v4018 = vld [vmem:[#allocation8 + $0x1848] sm:$0xff]
    %v4019 = vld [vmem:[#allocation8 + $0x1850] sm:$0xff]
    %v4020 = vld [vmem:[#allocation8 + $0x1858] sm:$0xff]
    %v4021 = vld [vmem:[#allocation8 + $0x1860] sm:$0xff]
    %v4022 = vld [vmem:[#allocation8 + $0x1868] sm:$0xff]
    %v4023 = vld [vmem:[#allocation8 + $0x1870] sm:$0xff]
    %v4024 = vld [vmem:[#allocation8 + $0x1878] sm:$0xff]
    %v4025 = vld [vmem:[#allocation8 + $0x1880] sm:$0xff]
    %v4026 = vld [vmem:[#allocation8 + $0x1888] sm:$0xff]
    %v4027 = vld [vmem:[#allocation8 + $0x1890] sm:$0xff]
    %v4028 = vld [vmem:[#allocation8 + $0x1898] sm:$0xff]
    %v4029 = vld [vmem:[#allocation8 + $0x18a0] sm:$0xff]
    %v4030 = vld [vmem:[#allocation8 + $0x18a8] sm:$0xff]
    %v4031 = vld [vmem:[#allocation8 + $0x18b0] sm:$0xff]
    %v4032 = vld [vmem:[#allocation8 + $0x18b8] sm:$0xff]
    %v4033 = vld [vmem:[#allocation8 + $0x18c0] sm:$0xff]
    %v4034 = vld [vmem:[#allocation8 + $0x18c8] sm:$0xff]
    %v4035 = vld [vmem:[#allocation8 + $0x18d0] sm:$0xff]
    %v4036 = vld [vmem:[#allocation8 + $0x18d8] sm:$0xff]
    %v4037 = vld [vmem:[#allocation8 + $0x18e0] sm:$0xff]
    %v4038 = vld [vmem:[#allocation8 + $0x18e8] sm:$0xff]
    %v4039 = vld [vmem:[#allocation8 + $0x18f0] sm:$0xff]
    %v4040 = vld [vmem:[#allocation8 + $0x18f8] sm:$0xff]
    %v4041 = vld [vmem:[#allocation13 + $0x6] sm:$0x3]
    %v4043 = vperm.slane %v4041, 0
    %v4044 = vperm.slane %v4041, 1
    %v4048 = vunpack.c.l.b16 %v4008
    %v4049 = vunpack.c.h.b16 %v4008
    %v4050 = vpack.c.b16 %v4048, %v4048
    %v4051 = vpack.c.b16 %v4049, %v4049
    %v4086 = vunpack.c.l.b16 %v4009
    %v4087 = vunpack.c.h.b16 %v4009
    %v4088 = vunpack.c.l.b16 %v4010
    %v4089 = vunpack.c.h.b16 %v4010
    %v4090 = vunpack.c.l.b16 %v4011
    %v4091 = vunpack.c.h.b16 %v4011
    %v4092 = vunpack.c.l.b16 %v4012
    %v4093 = vunpack.c.h.b16 %v4012
    %v4094 = vunpack.c.l.b16 %v4013
    %v4095 = vunpack.c.h.b16 %v4013
    %v4096 = vunpack.c.l.b16 %v4014
    %v4097 = vunpack.c.h.b16 %v4014
    %v4098 = vunpack.c.l.b16 %v4015
    %v4099 = vunpack.c.h.b16 %v4015
    %v4100 = vunpack.c.l.b16 %v4016
    %v4101 = vunpack.c.h.b16 %v4016
    %v4102 = vunpack.c.l.b16 %v4017
    %v4103 = vunpack.c.h.b16 %v4017
    %v4104 = vunpack.c.l.b16 %v4018
    %v4105 = vunpack.c.h.b16 %v4018
    %v4106 = vunpack.c.l.b16 %v4019
    %v4107 = vunpack.c.h.b16 %v4019
    %v4108 = vunpack.c.l.b16 %v4020
    %v4109 = vunpack.c.h.b16 %v4020
    %v4110 = vunpack.c.l.b16 %v4021
    %v4111 = vunpack.c.h.b16 %v4021
    %v4112 = vunpack.c.l.b16 %v4022
    %v4113 = vunpack.c.h.b16 %v4022
    %v4114 = vunpack.c.l.b16 %v4023
    %v4115 = vunpack.c.h.b16 %v4023
    %v4116 = vunpack.c.l.b16 %v4024
    %v4117 = vunpack.c.h.b16 %v4024
    %v4118 = vunpack.c.l.b16 %v4025
    %v4119 = vunpack.c.h.b16 %v4025
    %v4120 = vunpack.c.l.b16 %v4026
    %v4121 = vunpack.c.h.b16 %v4026
    %v4122 = vunpack.c.l.b16 %v4027
    %v4123 = vunpack.c.h.b16 %v4027
    %v4124 = vunpack.c.l.b16 %v4028
    %v4125 = vunpack.c.h.b16 %v4028
    %v4126 = vunpack.c.l.b16 %v4029
    %v4127 = vunpack.c.h.b16 %v4029
    %v4128 = vunpack.c.l.b16 %v4030
    %v4129 = vunpack.c.h.b16 %v4030
    %v4130 = vunpack.c.l.b16 %v4031
    %v4131 = vunpack.c.h.b16 %v4031
    %v4132 = vunpack.c.l.b16 %v4032
    %v4133 = vunpack.c.h.b16 %v4032
    %v4134 = vunpack.c.l.b16 %v4033
    %v4135 = vunpack.c.h.b16 %v4033
    %v4136 = vunpack.c.l.b16 %v4034
    %v4137 = vunpack.c.h.b16 %v4034
    %v4138 = vunpack.c.l.b16 %v4035
    %v4139 = vunpack.c.h.b16 %v4035
    %v4140 = vunpack.c.l.b16 %v4036
    %v4141 = vunpack.c.h.b16 %v4036
    %v4142 = vunpack.c.l.b16 %v4037
    %v4143 = vunpack.c.h.b16 %v4037
    %v4144 = vunpack.c.l.b16 %v4038
    %v4145 = vunpack.c.h.b16 %v4038
    %v4146 = vunpack.c.l.b16 %v4039
    %v4147 = vunpack.c.h.b16 %v4039
    %v4148 = vunpack.c.l.b16 %v4040
    %v4149 = vunpack.c.h.b16 %v4040
    %v4150 = vpack.c.b16 %v4088, %v4086
    %v4151 = vpack.c.b16 %v4089, %v4087
    %v4152 = vpack.c.b16 %v4092, %v4090
    %v4153 = vpack.c.b16 %v4093, %v4091
    %v4154 = vpack.c.b16 %v4096, %v4094
    %v4155 = vpack.c.b16 %v4097, %v4095
    %v4156 = vpack.c.b16 %v4100, %v4098
    %v4157 = vpack.c.b16 %v4101, %v4099
    %v4158 = vpack.c.b16 %v4104, %v4102
    %v4159 = vpack.c.b16 %v4105, %v4103
    %v4160 = vpack.c.b16 %v4108, %v4106
    %v4161 = vpack.c.b16 %v4109, %v4107
    %v4162 = vpack.c.b16 %v4112, %v4110
    %v4163 = vpack.c.b16 %v4113, %v4111
    %v4164 = vpack.c.b16 %v4116, %v4114
    %v4165 = vpack.c.b16 %v4117, %v4115
    %v4166 = vpack.c.b16 %v4120, %v4118
    %v4167 = vpack.c.b16 %v4121, %v4119
    %v4168 = vpack.c.b16 %v4124, %v4122
    %v4169 = vpack.c.b16 %v4125, %v4123
    %v4170 = vpack.c.b16 %v4128, %v4126
    %v4171 = vpack.c.b16 %v4129, %v4127
    %v4172 = vpack.c.b16 %v4132, %v4130
    %v4173 = vpack.c.b16 %v4133, %v4131
    %v4174 = vpack.c.b16 %v4136, %v4134
    %v4175 = vpack.c.b16 %v4137, %v4135
    %v4176 = vpack.c.b16 %v4140, %v4138
    %v4177 = vpack.c.b16 %v4141, %v4139
    %v4178 = vpack.c.b16 %v4144, %v4142
    %v4179 = vpack.c.b16 %v4145, %v4143
    %v4180 = vpack.c.b16 %v4148, %v4146
    %v4181 = vpack.c.b16 %v4149, %v4147
    %4214 = vmatpush.bf16.msra.mxu0 %v4164
    %4215 = vmatpush.bf16.msra.mxu0 %v4162
    %4216 = vmatpush.bf16.msra.mxu0 %v4160
    %4217 = vmatpush.bf16.msra.mxu0 %v4158
    %4218 = vmatpush.bf16.msra.mxu0 %v4156
    %4219 = vmatpush.bf16.msra.mxu0 %v4154
    %4220 = vmatpush.bf16.msra.mxu0 %v4152
    %4221 = vmatpush.bf16.msra.mxu0 %v4150
    %4222 = vmatmul.bf16.gmra.mxu0 %v4050
    %v4223 = vpop.f32.mrf.mxu0
    %v4224 = vadd.f32 %v4043, %v4223
    %v4225 = vpop.f32.mrf.mxu0
    %4226 = vdwg.mxu0
    %4227 = vmatpush.bf16.msra.mxu0 %v4180
    %4228 = vmatpush.bf16.msra.mxu0 %v4178
    %4229 = vmatpush.bf16.msra.mxu0 %v4176
    %4230 = vmatpush.bf16.msra.mxu0 %v4174
    %4231 = vmatpush.bf16.msra.mxu0 %v4172
    %4232 = vmatpush.bf16.msra.mxu0 %v4170
    %4233 = vmatpush.bf16.msra.mxu0 %v4168
    %4234 = vmatpush.bf16.msra.mxu0 %v4166
    %4235 = vmatmul.bf16.gmra.mxu0 %v4051
    %v4236 = vpop.f32.mrf.mxu0
    %v4237 = vadd.f32 %v4224, %v4236
    %v4238 = vpop.f32.mrf.mxu0
    %4239 = vdwg.mxu0
    %4240 = vmatpush.bf16.msra.mxu0 %v4165
    %4241 = vmatpush.bf16.msra.mxu0 %v4163
    %4242 = vmatpush.bf16.msra.mxu0 %v4161
    %4243 = vmatpush.bf16.msra.mxu0 %v4159
    %4244 = vmatpush.bf16.msra.mxu0 %v4157
    %4245 = vmatpush.bf16.msra.mxu0 %v4155
    %4246 = vmatpush.bf16.msra.mxu0 %v4153
    %4247 = vmatpush.bf16.msra.mxu0 %v4151
    %4248 = vmatmul.bf16.gmra.mxu0 %v4050
    %v4249 = vpop.f32.mrf.mxu0
    %v4250 = vadd.f32 %v4044, %v4249
    %v4251 = vpop.f32.mrf.mxu0
    %4252 = vdwg.mxu0
    %4253 = vmatpush.bf16.msra.mxu0 %v4181
    %4254 = vmatpush.bf16.msra.mxu0 %v4179
    %4255 = vmatpush.bf16.msra.mxu0 %v4177
    %4256 = vmatpush.bf16.msra.mxu0 %v4175
    %4257 = vmatpush.bf16.msra.mxu0 %v4173
    %4258 = vmatpush.bf16.msra.mxu0 %v4171
    %4259 = vmatpush.bf16.msra.mxu0 %v4169
    %4260 = vmatpush.bf16.msra.mxu0 %v4167
    %4261 = vmatmul.bf16.gmra.mxu0 %v4051
    %v4262 = vpop.f32.mrf.mxu0
    %v4263 = vadd.f32 %v4250, %v4262
    %v4264 = vpop.f32.mrf.mxu0
    %4265 = vdwg.mxu0
    %v4266 = vld [vmem:[#allocation8 + $0xf00] sm:$0xff]
    %v4267 = vld [vmem:[#allocation8 + $0xf08] sm:$0xff]
    %v4268 = vld [vmem:[#allocation8 + $0xf10] sm:$0xff]
    %v4269 = vld [vmem:[#allocation8 + $0xf18] sm:$0xff]
    %v4270 = vld [vmem:[#allocation8 + $0xf20] sm:$0xff]
    %v4271 = vld [vmem:[#allocation8 + $0xf28] sm:$0xff]
    %v4272 = vld [vmem:[#allocation8 + $0xf30] sm:$0xff]
    %v4273 = vld [vmem:[#allocation8 + $0xf38] sm:$0xff]
    %v4274 = vld [vmem:[#allocation8 + $0xf40] sm:$0xff]
    %v4275 = vld [vmem:[#allocation8 + $0xf48] sm:$0xff]
    %v4276 = vld [vmem:[#allocation8 + $0xf50] sm:$0xff]
    %v4277 = vld [vmem:[#allocation8 + $0xf58] sm:$0xff]
    %v4278 = vld [vmem:[#allocation8 + $0xf60] sm:$0xff]
    %v4279 = vld [vmem:[#allocation8 + $0xf68] sm:$0xff]
    %v4280 = vld [vmem:[#allocation8 + $0xf70] sm:$0xff]
    %v4281 = vld [vmem:[#allocation8 + $0xf78] sm:$0xff]
    %v4282 = vld [vmem:[#allocation8 + $0xf80] sm:$0xff]
    %v4283 = vld [vmem:[#allocation8 + $0xf88] sm:$0xff]
    %v4284 = vld [vmem:[#allocation8 + $0xf90] sm:$0xff]
    %v4285 = vld [vmem:[#allocation8 + $0xf98] sm:$0xff]
    %v4286 = vld [vmem:[#allocation8 + $0xfa0] sm:$0xff]
    %v4287 = vld [vmem:[#allocation8 + $0xfa8] sm:$0xff]
    %v4288 = vld [vmem:[#allocation8 + $0xfb0] sm:$0xff]
    %v4289 = vld [vmem:[#allocation8 + $0xfb8] sm:$0xff]
    %v4290 = vld [vmem:[#allocation8 + $0xfc0] sm:$0xff]
    %v4291 = vld [vmem:[#allocation8 + $0xfc8] sm:$0xff]
    %v4292 = vld [vmem:[#allocation8 + $0xfd0] sm:$0xff]
    %v4293 = vld [vmem:[#allocation8 + $0xfd8] sm:$0xff]
    %v4294 = vld [vmem:[#allocation8 + $0xfe0] sm:$0xff]
    %v4295 = vld [vmem:[#allocation8 + $0xfe8] sm:$0xff]
    %v4296 = vld [vmem:[#allocation8 + $0xff0] sm:$0xff]
    %v4297 = vld [vmem:[#allocation8 + $0xff8] sm:$0xff]
    %v4298 = vld [vmem:[#allocation8 + $0x1000] sm:$0xff]
    %v4299 = vld [vmem:[#allocation8 + $0x1008] sm:$0xff]
    %v4300 = vld [vmem:[#allocation8 + $0x1010] sm:$0xff]
    %v4301 = vld [vmem:[#allocation8 + $0x1018] sm:$0xff]
    %v4302 = vld [vmem:[#allocation8 + $0x1020] sm:$0xff]
    %v4303 = vld [vmem:[#allocation8 + $0x1028] sm:$0xff]
    %v4304 = vld [vmem:[#allocation8 + $0x1030] sm:$0xff]
    %v4305 = vld [vmem:[#allocation8 + $0x1038] sm:$0xff]
    %v4306 = vld [vmem:[#allocation8 + $0x1040] sm:$0xff]
    %v4307 = vld [vmem:[#allocation8 + $0x1048] sm:$0xff]
    %v4308 = vld [vmem:[#allocation8 + $0x1050] sm:$0xff]
    %v4309 = vld [vmem:[#allocation8 + $0x1058] sm:$0xff]
    %v4310 = vld [vmem:[#allocation8 + $0x1060] sm:$0xff]
    %v4311 = vld [vmem:[#allocation8 + $0x1068] sm:$0xff]
    %v4312 = vld [vmem:[#allocation8 + $0x1070] sm:$0xff]
    %v4313 = vld [vmem:[#allocation8 + $0x1078] sm:$0xff]
    %v4314 = vld [vmem:[#allocation8 + $0x1080] sm:$0xff]
    %v4315 = vld [vmem:[#allocation8 + $0x1088] sm:$0xff]
    %v4316 = vld [vmem:[#allocation8 + $0x1090] sm:$0xff]
    %v4317 = vld [vmem:[#allocation8 + $0x1098] sm:$0xff]
    %v4318 = vld [vmem:[#allocation8 + $0x10a0] sm:$0xff]
    %v4319 = vld [vmem:[#allocation8 + $0x10a8] sm:$0xff]
    %v4320 = vld [vmem:[#allocation8 + $0x10b0] sm:$0xff]
    %v4321 = vld [vmem:[#allocation8 + $0x10b8] sm:$0xff]
    %v4322 = vld [vmem:[#allocation8 + $0x10c0] sm:$0xff]
    %v4323 = vld [vmem:[#allocation8 + $0x10c8] sm:$0xff]
    %v4324 = vld [vmem:[#allocation8 + $0x10d0] sm:$0xff]
    %v4325 = vld [vmem:[#allocation8 + $0x10d8] sm:$0xff]
    %v4326 = vld [vmem:[#allocation8 + $0x10e0] sm:$0xff]
    %v4327 = vld [vmem:[#allocation8 + $0x10e8] sm:$0xff]
    %v4328 = vld [vmem:[#allocation8 + $0x10f0] sm:$0xff]
    %v4329 = vld [vmem:[#allocation8 + $0x10f8] sm:$0xff]
    %v4330 = vld [vmem:[#allocation8 + $0x1100] sm:$0xff]
    %v4331 = vld [vmem:[#allocation8 + $0x1108] sm:$0xff]
    %v4332 = vld [vmem:[#allocation8 + $0x1110] sm:$0xff]
    %v4333 = vld [vmem:[#allocation8 + $0x1118] sm:$0xff]
    %v4334 = vld [vmem:[#allocation8 + $0x1120] sm:$0xff]
    %v4335 = vld [vmem:[#allocation8 + $0x1128] sm:$0xff]
    %v4336 = vld [vmem:[#allocation8 + $0x1130] sm:$0xff]
    %v4337 = vld [vmem:[#allocation8 + $0x1138] sm:$0xff]
    %v4338 = vld [vmem:[#allocation8 + $0x1140] sm:$0xff]
    %v4339 = vld [vmem:[#allocation8 + $0x1148] sm:$0xff]
    %v4340 = vld [vmem:[#allocation8 + $0x1150] sm:$0xff]
    %v4341 = vld [vmem:[#allocation8 + $0x1158] sm:$0xff]
    %v4342 = vld [vmem:[#allocation8 + $0x1160] sm:$0xff]
    %v4343 = vld [vmem:[#allocation8 + $0x1168] sm:$0xff]
    %v4344 = vld [vmem:[#allocation8 + $0x1170] sm:$0xff]
    %v4345 = vld [vmem:[#allocation8 + $0x1178] sm:$0xff]
    %v4346 = vld [vmem:[#allocation8 + $0x1180] sm:$0xff]
    %v4347 = vld [vmem:[#allocation8 + $0x1188] sm:$0xff]
    %v4348 = vld [vmem:[#allocation8 + $0x1190] sm:$0xff]
    %v4349 = vld [vmem:[#allocation8 + $0x1198] sm:$0xff]
    %v4350 = vld [vmem:[#allocation8 + $0x11a0] sm:$0xff]
    %v4351 = vld [vmem:[#allocation8 + $0x11a8] sm:$0xff]
    %v4352 = vld [vmem:[#allocation8 + $0x11b0] sm:$0xff]
    %v4353 = vld [vmem:[#allocation8 + $0x11b8] sm:$0xff]
    %v4354 = vld [vmem:[#allocation8 + $0x11c0] sm:$0xff]
    %v4355 = vld [vmem:[#allocation8 + $0x11c8] sm:$0xff]
    %v4356 = vld [vmem:[#allocation8 + $0x11d0] sm:$0xff]
    %v4357 = vld [vmem:[#allocation8 + $0x11d8] sm:$0xff]
    %v4358 = vld [vmem:[#allocation8 + $0x11e0] sm:$0xff]
    %v4359 = vld [vmem:[#allocation8 + $0x11e8] sm:$0xff]
    %v4360 = vld [vmem:[#allocation8 + $0x11f0] sm:$0xff]
    %v4361 = vld [vmem:[#allocation8 + $0x11f8] sm:$0xff]
    %v4362 = vld [vmem:[#allocation13 + $0x2] sm:$0x3]
    %v4364 = vperm.slane %v4362, 0
    %v4365 = vperm.slane %v4362, 1
    %v4464 = vunpack.c.l.b16 %v4266
    %v4465 = vunpack.c.h.b16 %v4266
    %v4466 = vunpack.c.l.b16 %v4267
    %v4467 = vunpack.c.h.b16 %v4267
    %v4468 = vunpack.c.l.b16 %v4268
    %v4469 = vunpack.c.h.b16 %v4268
    %v4470 = vunpack.c.l.b16 %v4269
    %v4471 = vunpack.c.h.b16 %v4269
    %v4472 = vunpack.c.l.b16 %v4270
    %v4473 = vunpack.c.h.b16 %v4270
    %v4474 = vunpack.c.l.b16 %v4271
    %v4475 = vunpack.c.h.b16 %v4271
    %v4476 = vunpack.c.l.b16 %v4272
    %v4477 = vunpack.c.h.b16 %v4272
    %v4478 = vunpack.c.l.b16 %v4273
    %v4479 = vunpack.c.h.b16 %v4273
    %v4480 = vunpack.c.l.b16 %v4274
    %v4481 = vunpack.c.h.b16 %v4274
    %v4482 = vunpack.c.l.b16 %v4275
    %v4483 = vunpack.c.h.b16 %v4275
    %v4484 = vunpack.c.l.b16 %v4276
    %v4485 = vunpack.c.h.b16 %v4276
    %v4486 = vunpack.c.l.b16 %v4277
    %v4487 = vunpack.c.h.b16 %v4277
    %v4488 = vunpack.c.l.b16 %v4278
    %v4489 = vunpack.c.h.b16 %v4278
    %v4490 = vunpack.c.l.b16 %v4279
    %v4491 = vunpack.c.h.b16 %v4279
    %v4492 = vunpack.c.l.b16 %v4280
    %v4493 = vunpack.c.h.b16 %v4280
    %v4494 = vunpack.c.l.b16 %v4281
    %v4495 = vunpack.c.h.b16 %v4281
    %v4496 = vunpack.c.l.b16 %v4282
    %v4497 = vunpack.c.h.b16 %v4282
    %v4498 = vunpack.c.l.b16 %v4283
    %v4499 = vunpack.c.h.b16 %v4283
    %v4500 = vunpack.c.l.b16 %v4284
    %v4501 = vunpack.c.h.b16 %v4284
    %v4502 = vunpack.c.l.b16 %v4285
    %v4503 = vunpack.c.h.b16 %v4285
    %v4504 = vunpack.c.l.b16 %v4286
    %v4505 = vunpack.c.h.b16 %v4286
    %v4506 = vunpack.c.l.b16 %v4287
    %v4507 = vunpack.c.h.b16 %v4287
    %v4508 = vunpack.c.l.b16 %v4288
    %v4509 = vunpack.c.h.b16 %v4288
    %v4510 = vunpack.c.l.b16 %v4289
    %v4511 = vunpack.c.h.b16 %v4289
    %v4512 = vunpack.c.l.b16 %v4290
    %v4513 = vunpack.c.h.b16 %v4290
    %v4514 = vunpack.c.l.b16 %v4291
    %v4515 = vunpack.c.h.b16 %v4291
    %v4516 = vunpack.c.l.b16 %v4292
    %v4517 = vunpack.c.h.b16 %v4292
    %v4518 = vunpack.c.l.b16 %v4293
    %v4519 = vunpack.c.h.b16 %v4293
    %v4520 = vunpack.c.l.b16 %v4294
    %v4521 = vunpack.c.h.b16 %v4294
    %v4522 = vunpack.c.l.b16 %v4295
    %v4523 = vunpack.c.h.b16 %v4295
    %v4524 = vunpack.c.l.b16 %v4296
    %v4525 = vunpack.c.h.b16 %v4296
    %v4526 = vunpack.c.l.b16 %v4297
    %v4527 = vunpack.c.h.b16 %v4297
    %v4528 = vunpack.c.l.b16 %v4298
    %v4529 = vunpack.c.h.b16 %v4298
    %v4530 = vunpack.c.l.b16 %v4299
    %v4531 = vunpack.c.h.b16 %v4299
    %v4532 = vunpack.c.l.b16 %v4300
    %v4533 = vunpack.c.h.b16 %v4300
    %v4534 = vunpack.c.l.b16 %v4301
    %v4535 = vunpack.c.h.b16 %v4301
    %v4536 = vunpack.c.l.b16 %v4302
    %v4537 = vunpack.c.h.b16 %v4302
    %v4538 = vunpack.c.l.b16 %v4303
    %v4539 = vunpack.c.h.b16 %v4303
    %v4540 = vunpack.c.l.b16 %v4304
    %v4541 = vunpack.c.h.b16 %v4304
    %v4542 = vunpack.c.l.b16 %v4305
    %v4543 = vunpack.c.h.b16 %v4305
    %v4544 = vunpack.c.l.b16 %v4306
    %v4545 = vunpack.c.h.b16 %v4306
    %v4546 = vunpack.c.l.b16 %v4307
    %v4547 = vunpack.c.h.b16 %v4307
    %v4548 = vunpack.c.l.b16 %v4308
    %v4549 = vunpack.c.h.b16 %v4308
    %v4550 = vunpack.c.l.b16 %v4309
    %v4551 = vunpack.c.h.b16 %v4309
    %v4552 = vunpack.c.l.b16 %v4310
    %v4553 = vunpack.c.h.b16 %v4310
    %v4554 = vunpack.c.l.b16 %v4311
    %v4555 = vunpack.c.h.b16 %v4311
    %v4556 = vunpack.c.l.b16 %v4312
    %v4557 = vunpack.c.h.b16 %v4312
    %v4558 = vunpack.c.l.b16 %v4313
    %v4559 = vunpack.c.h.b16 %v4313
    %v4560 = vunpack.c.l.b16 %v4314
    %v4561 = vunpack.c.h.b16 %v4314
    %v4562 = vunpack.c.l.b16 %v4315
    %v4563 = vunpack.c.h.b16 %v4315
    %v4564 = vunpack.c.l.b16 %v4316
    %v4565 = vunpack.c.h.b16 %v4316
    %v4566 = vunpack.c.l.b16 %v4317
    %v4567 = vunpack.c.h.b16 %v4317
    %v4568 = vunpack.c.l.b16 %v4318
    %v4569 = vunpack.c.h.b16 %v4318
    %v4570 = vunpack.c.l.b16 %v4319
    %v4571 = vunpack.c.h.b16 %v4319
    %v4572 = vunpack.c.l.b16 %v4320
    %v4573 = vunpack.c.h.b16 %v4320
    %v4574 = vunpack.c.l.b16 %v4321
    %v4575 = vunpack.c.h.b16 %v4321
    %v4576 = vunpack.c.l.b16 %v4322
    %v4577 = vunpack.c.h.b16 %v4322
    %v4578 = vunpack.c.l.b16 %v4323
    %v4579 = vunpack.c.h.b16 %v4323
    %v4580 = vunpack.c.l.b16 %v4324
    %v4581 = vunpack.c.h.b16 %v4324
    %v4582 = vunpack.c.l.b16 %v4325
    %v4583 = vunpack.c.h.b16 %v4325
    %v4584 = vunpack.c.l.b16 %v4326
    %v4585 = vunpack.c.h.b16 %v4326
    %v4586 = vunpack.c.l.b16 %v4327
    %v4587 = vunpack.c.h.b16 %v4327
    %v4588 = vunpack.c.l.b16 %v4328
    %v4589 = vunpack.c.h.b16 %v4328
    %v4590 = vunpack.c.l.b16 %v4329
    %v4591 = vunpack.c.h.b16 %v4329
    %v4592 = vunpack.c.l.b16 %v4330
    %v4593 = vunpack.c.h.b16 %v4330
    %v4594 = vunpack.c.l.b16 %v4331
    %v4595 = vunpack.c.h.b16 %v4331
    %v4596 = vunpack.c.l.b16 %v4332
    %v4597 = vunpack.c.h.b16 %v4332
    %v4598 = vunpack.c.l.b16 %v4333
    %v4599 = vunpack.c.h.b16 %v4333
    %v4600 = vunpack.c.l.b16 %v4334
    %v4601 = vunpack.c.h.b16 %v4334
    %v4602 = vunpack.c.l.b16 %v4335
    %v4603 = vunpack.c.h.b16 %v4335
    %v4604 = vunpack.c.l.b16 %v4336
    %v4605 = vunpack.c.h.b16 %v4336
    %v4606 = vunpack.c.l.b16 %v4337
    %v4607 = vunpack.c.h.b16 %v4337
    %v4608 = vunpack.c.l.b16 %v4338
    %v4609 = vunpack.c.h.b16 %v4338
    %v4610 = vunpack.c.l.b16 %v4339
    %v4611 = vunpack.c.h.b16 %v4339
    %v4612 = vunpack.c.l.b16 %v4340
    %v4613 = vunpack.c.h.b16 %v4340
    %v4614 = vunpack.c.l.b16 %v4341
    %v4615 = vunpack.c.h.b16 %v4341
    %v4616 = vunpack.c.l.b16 %v4342
    %v4617 = vunpack.c.h.b16 %v4342
    %v4618 = vunpack.c.l.b16 %v4343
    %v4619 = vunpack.c.h.b16 %v4343
    %v4620 = vunpack.c.l.b16 %v4344
    %v4621 = vunpack.c.h.b16 %v4344
    %v4622 = vunpack.c.l.b16 %v4345
    %v4623 = vunpack.c.h.b16 %v4345
    %v4624 = vunpack.c.l.b16 %v4346
    %v4625 = vunpack.c.h.b16 %v4346
    %v4626 = vunpack.c.l.b16 %v4347
    %v4627 = vunpack.c.h.b16 %v4347
    %v4628 = vunpack.c.l.b16 %v4348
    %v4629 = vunpack.c.h.b16 %v4348
    %v4630 = vunpack.c.l.b16 %v4349
    %v4631 = vunpack.c.h.b16 %v4349
    %v4632 = vunpack.c.l.b16 %v4350
    %v4633 = vunpack.c.h.b16 %v4350
    %v4634 = vunpack.c.l.b16 %v4351
    %v4635 = vunpack.c.h.b16 %v4351
    %v4636 = vunpack.c.l.b16 %v4352
    %v4637 = vunpack.c.h.b16 %v4352
    %v4638 = vunpack.c.l.b16 %v4353
    %v4639 = vunpack.c.h.b16 %v4353
    %v4640 = vunpack.c.l.b16 %v4354
    %v4641 = vunpack.c.h.b16 %v4354
    %v4642 = vunpack.c.l.b16 %v4355
    %v4643 = vunpack.c.h.b16 %v4355
    %v4644 = vunpack.c.l.b16 %v4356
    %v4645 = vunpack.c.h.b16 %v4356
    %v4646 = vunpack.c.l.b16 %v4357
    %v4647 = vunpack.c.h.b16 %v4357
    %v4648 = vunpack.c.l.b16 %v4358
    %v4649 = vunpack.c.h.b16 %v4358
    %v4650 = vunpack.c.l.b16 %v4359
    %v4651 = vunpack.c.h.b16 %v4359
    %v4652 = vunpack.c.l.b16 %v4360
    %v4653 = vunpack.c.h.b16 %v4360
    %v4654 = vunpack.c.l.b16 %v4361
    %v4655 = vunpack.c.h.b16 %v4361
    %v4656 = vpack.c.b16 %v4466, %v4464
    %v4657 = vpack.c.b16 %v4467, %v4465
    %v4658 = vpack.c.b16 %v4470, %v4468
    %v4659 = vpack.c.b16 %v4471, %v4469
    %v4660 = vpack.c.b16 %v4474, %v4472
    %v4661 = vpack.c.b16 %v4475, %v4473
    %v4662 = vpack.c.b16 %v4478, %v4476
    %v4663 = vpack.c.b16 %v4479, %v4477
    %v4664 = vpack.c.b16 %v4482, %v4480
    %v4665 = vpack.c.b16 %v4483, %v4481
    %v4666 = vpack.c.b16 %v4486, %v4484
    %v4667 = vpack.c.b16 %v4487, %v4485
    %v4668 = vpack.c.b16 %v4490, %v4488
    %v4669 = vpack.c.b16 %v4491, %v4489
    %v4670 = vpack.c.b16 %v4494, %v4492
    %v4671 = vpack.c.b16 %v4495, %v4493
    %v4672 = vpack.c.b16 %v4498, %v4496
    %v4673 = vpack.c.b16 %v4499, %v4497
    %v4674 = vpack.c.b16 %v4502, %v4500
    %v4675 = vpack.c.b16 %v4503, %v4501
    %v4676 = vpack.c.b16 %v4506, %v4504
    %v4677 = vpack.c.b16 %v4507, %v4505
    %v4678 = vpack.c.b16 %v4510, %v4508
    %v4679 = vpack.c.b16 %v4511, %v4509
    %v4680 = vpack.c.b16 %v4514, %v4512
    %v4681 = vpack.c.b16 %v4515, %v4513
    %v4682 = vpack.c.b16 %v4518, %v4516
    %v4683 = vpack.c.b16 %v4519, %v4517
    %v4684 = vpack.c.b16 %v4522, %v4520
    %v4685 = vpack.c.b16 %v4523, %v4521
    %v4686 = vpack.c.b16 %v4526, %v4524
    %v4687 = vpack.c.b16 %v4527, %v4525
    %v4688 = vpack.c.b16 %v4530, %v4528
    %v4689 = vpack.c.b16 %v4531, %v4529
    %v4690 = vpack.c.b16 %v4534, %v4532
    %v4691 = vpack.c.b16 %v4535, %v4533
    %v4692 = vpack.c.b16 %v4538, %v4536
    %v4693 = vpack.c.b16 %v4539, %v4537
    %v4694 = vpack.c.b16 %v4542, %v4540
    %v4695 = vpack.c.b16 %v4543, %v4541
    %v4696 = vpack.c.b16 %v4546, %v4544
    %v4697 = vpack.c.b16 %v4547, %v4545
    %v4698 = vpack.c.b16 %v4550, %v4548
    %v4699 = vpack.c.b16 %v4551, %v4549
    %v4700 = vpack.c.b16 %v4554, %v4552
    %v4701 = vpack.c.b16 %v4555, %v4553
    %v4702 = vpack.c.b16 %v4558, %v4556
    %v4703 = vpack.c.b16 %v4559, %v4557
    %v4704 = vpack.c.b16 %v4562, %v4560
    %v4705 = vpack.c.b16 %v4563, %v4561
    %v4706 = vpack.c.b16 %v4566, %v4564
    %v4707 = vpack.c.b16 %v4567, %v4565
    %v4708 = vpack.c.b16 %v4570, %v4568
    %v4709 = vpack.c.b16 %v4571, %v4569
    %v4710 = vpack.c.b16 %v4574, %v4572
    %v4711 = vpack.c.b16 %v4575, %v4573
    %v4712 = vpack.c.b16 %v4578, %v4576
    %v4713 = vpack.c.b16 %v4579, %v4577
    %v4714 = vpack.c.b16 %v4582, %v4580
    %v4715 = vpack.c.b16 %v4583, %v4581
    %v4716 = vpack.c.b16 %v4586, %v4584
    %v4717 = vpack.c.b16 %v4587, %v4585
    %v4718 = vpack.c.b16 %v4590, %v4588
    %v4719 = vpack.c.b16 %v4591, %v4589
    %v4720 = vpack.c.b16 %v4594, %v4592
    %v4721 = vpack.c.b16 %v4595, %v4593
    %v4722 = vpack.c.b16 %v4598, %v4596
    %v4723 = vpack.c.b16 %v4599, %v4597
    %v4724 = vpack.c.b16 %v4602, %v4600
    %v4725 = vpack.c.b16 %v4603, %v4601
    %v4726 = vpack.c.b16 %v4606, %v4604
    %v4727 = vpack.c.b16 %v4607, %v4605
    %v4728 = vpack.c.b16 %v4610, %v4608
    %v4729 = vpack.c.b16 %v4611, %v4609
    %v4730 = vpack.c.b16 %v4614, %v4612
    %v4731 = vpack.c.b16 %v4615, %v4613
    %v4732 = vpack.c.b16 %v4618, %v4616
    %v4733 = vpack.c.b16 %v4619, %v4617
    %v4734 = vpack.c.b16 %v4622, %v4620
    %v4735 = vpack.c.b16 %v4623, %v4621
    %v4736 = vpack.c.b16 %v4626, %v4624
    %v4737 = vpack.c.b16 %v4627, %v4625
    %v4738 = vpack.c.b16 %v4630, %v4628
    %v4739 = vpack.c.b16 %v4631, %v4629
    %v4740 = vpack.c.b16 %v4634, %v4632
    %v4741 = vpack.c.b16 %v4635, %v4633
    %v4742 = vpack.c.b16 %v4638, %v4636
    %v4743 = vpack.c.b16 %v4639, %v4637
    %v4744 = vpack.c.b16 %v4642, %v4640
    %v4745 = vpack.c.b16 %v4643, %v4641
    %v4746 = vpack.c.b16 %v4646, %v4644
    %v4747 = vpack.c.b16 %v4647, %v4645
    %v4748 = vpack.c.b16 %v4650, %v4648
    %v4749 = vpack.c.b16 %v4651, %v4649
    %v4750 = vpack.c.b16 %v4654, %v4652
    %v4751 = vpack.c.b16 %v4655, %v4653
    %4848 = vmatpush.bf16.msra.mxu0 %v4670
    %4849 = vmatpush.bf16.msra.mxu0 %v4668
    %4850 = vmatpush.bf16.msra.mxu0 %v4666
    %4851 = vmatpush.bf16.msra.mxu0 %v4664
    %4852 = vmatpush.bf16.msra.mxu0 %v4662
    %4853 = vmatpush.bf16.msra.mxu0 %v4660
    %4854 = vmatpush.bf16.msra.mxu0 %v4658
    %4855 = vmatpush.bf16.msra.mxu0 %v4656
    %4856 = vmatmul.bf16.gmra.mxu0 %v270
    %v4857 = vpop.f32.mrf.mxu0
    %v4858 = vadd.f32 %v4364, %v4857
    %v4859 = vpop.f32.mrf.mxu0
    %4860 = vdwg.mxu0
    %4861 = vmatpush.bf16.msra.mxu0 %v4686
    %4862 = vmatpush.bf16.msra.mxu0 %v4684
    %4863 = vmatpush.bf16.msra.mxu0 %v4682
    %4864 = vmatpush.bf16.msra.mxu0 %v4680
    %4865 = vmatpush.bf16.msra.mxu0 %v4678
    %4866 = vmatpush.bf16.msra.mxu0 %v4676
    %4867 = vmatpush.bf16.msra.mxu0 %v4674
    %4868 = vmatpush.bf16.msra.mxu0 %v4672
    %4869 = vmatmul.bf16.gmra.mxu0 %v271
    %v4870 = vpop.f32.mrf.mxu0
    %v4871 = vadd.f32 %v4858, %v4870
    %v4872 = vpop.f32.mrf.mxu0
    %4873 = vdwg.mxu0
    %4874 = vmatpush.bf16.msra.mxu0 %v4702
    %4875 = vmatpush.bf16.msra.mxu0 %v4700
    %4876 = vmatpush.bf16.msra.mxu0 %v4698
    %4877 = vmatpush.bf16.msra.mxu0 %v4696
    %4878 = vmatpush.bf16.msra.mxu0 %v4694
    %4879 = vmatpush.bf16.msra.mxu0 %v4692
    %4880 = vmatpush.bf16.msra.mxu0 %v4690
    %4881 = vmatpush.bf16.msra.mxu0 %v4688
    %4882 = vmatmul.bf16.gmra.mxu0 %v272
    %v4883 = vpop.f32.mrf.mxu0
    %v4884 = vadd.f32 %v4871, %v4883
    %v4885 = vpop.f32.mrf.mxu0
    %4886 = vdwg.mxu0
    %4887 = vmatpush.bf16.msra.mxu0 %v4718
    %4888 = vmatpush.bf16.msra.mxu0 %v4716
    %4889 = vmatpush.bf16.msra.mxu0 %v4714
    %4890 = vmatpush.bf16.msra.mxu0 %v4712
    %4891 = vmatpush.bf16.msra.mxu0 %v4710
    %4892 = vmatpush.bf16.msra.mxu0 %v4708
    %4893 = vmatpush.bf16.msra.mxu0 %v4706
    %4894 = vmatpush.bf16.msra.mxu0 %v4704
    %4895 = vmatmul.bf16.gmra.mxu0 %v273
    %v4896 = vpop.f32.mrf.mxu0
    %v4897 = vadd.f32 %v4884, %v4896
    %v4898 = vpop.f32.mrf.mxu0
    %4899 = vdwg.mxu0
    %4900 = vmatpush.bf16.msra.mxu0 %v4734
    %4901 = vmatpush.bf16.msra.mxu0 %v4732
    %4902 = vmatpush.bf16.msra.mxu0 %v4730
    %4903 = vmatpush.bf16.msra.mxu0 %v4728
    %4904 = vmatpush.bf16.msra.mxu0 %v4726
    %4905 = vmatpush.bf16.msra.mxu0 %v4724
    %4906 = vmatpush.bf16.msra.mxu0 %v4722
    %4907 = vmatpush.bf16.msra.mxu0 %v4720
    %4908 = vmatmul.bf16.gmra.mxu0 %v274
    %v4909 = vpop.f32.mrf.mxu0
    %v4910 = vadd.f32 %v4897, %v4909
    %v4911 = vpop.f32.mrf.mxu0
    %4912 = vdwg.mxu0
    %4913 = vmatpush.bf16.msra.mxu0 %v4750
    %4914 = vmatpush.bf16.msra.mxu0 %v4748
    %4915 = vmatpush.bf16.msra.mxu0 %v4746
    %4916 = vmatpush.bf16.msra.mxu0 %v4744
    %4917 = vmatpush.bf16.msra.mxu0 %v4742
    %4918 = vmatpush.bf16.msra.mxu0 %v4740
    %4919 = vmatpush.bf16.msra.mxu0 %v4738
    %4920 = vmatpush.bf16.msra.mxu0 %v4736
    %4921 = vmatmul.bf16.gmra.mxu0 %v275
    %v4922 = vpop.f32.mrf.mxu0
    %v4923 = vadd.f32 %v4910, %v4922
    %v4924 = vpop.f32.mrf.mxu0
    %4925 = vdwg.mxu0
    %4926 = vmatpush.bf16.msra.mxu0 %v4671
    %4927 = vmatpush.bf16.msra.mxu0 %v4669
    %4928 = vmatpush.bf16.msra.mxu0 %v4667
    %4929 = vmatpush.bf16.msra.mxu0 %v4665
    %4930 = vmatpush.bf16.msra.mxu0 %v4663
    %4931 = vmatpush.bf16.msra.mxu0 %v4661
    %4932 = vmatpush.bf16.msra.mxu0 %v4659
    %4933 = vmatpush.bf16.msra.mxu0 %v4657
    %4934 = vmatmul.bf16.gmra.mxu0 %v270
    %v4935 = vpop.f32.mrf.mxu0
    %v4936 = vadd.f32 %v4365, %v4935
    %v4937 = vpop.f32.mrf.mxu0
    %4938 = vdwg.mxu0
    %4939 = vmatpush.bf16.msra.mxu0 %v4687
    %4940 = vmatpush.bf16.msra.mxu0 %v4685
    %4941 = vmatpush.bf16.msra.mxu0 %v4683
    %4942 = vmatpush.bf16.msra.mxu0 %v4681
    %4943 = vmatpush.bf16.msra.mxu0 %v4679
    %4944 = vmatpush.bf16.msra.mxu0 %v4677
    %4945 = vmatpush.bf16.msra.mxu0 %v4675
    %4946 = vmatpush.bf16.msra.mxu0 %v4673
    %4947 = vmatmul.bf16.gmra.mxu0 %v271
    %v4948 = vpop.f32.mrf.mxu0
    %v4949 = vadd.f32 %v4936, %v4948
    %v4950 = vpop.f32.mrf.mxu0
    %4951 = vdwg.mxu0
    %4952 = vmatpush.bf16.msra.mxu0 %v4703
    %4953 = vmatpush.bf16.msra.mxu0 %v4701
    %4954 = vmatpush.bf16.msra.mxu0 %v4699
    %4955 = vmatpush.bf16.msra.mxu0 %v4697
    %4956 = vmatpush.bf16.msra.mxu0 %v4695
    %4957 = vmatpush.bf16.msra.mxu0 %v4693
    %4958 = vmatpush.bf16.msra.mxu0 %v4691
    %4959 = vmatpush.bf16.msra.mxu0 %v4689
    %4960 = vmatmul.bf16.gmra.mxu0 %v272
    %v4961 = vpop.f32.mrf.mxu0
    %v4962 = vadd.f32 %v4949, %v4961
    %v4963 = vpop.f32.mrf.mxu0
    %4964 = vdwg.mxu0
    %4965 = vmatpush.bf16.msra.mxu0 %v4719
    %4966 = vmatpush.bf16.msra.mxu0 %v4717
    %4967 = vmatpush.bf16.msra.mxu0 %v4715
    %4968 = vmatpush.bf16.msra.mxu0 %v4713
    %4969 = vmatpush.bf16.msra.mxu0 %v4711
    %4970 = vmatpush.bf16.msra.mxu0 %v4709
    %4971 = vmatpush.bf16.msra.mxu0 %v4707
    %4972 = vmatpush.bf16.msra.mxu0 %v4705
    %4973 = vmatmul.bf16.gmra.mxu0 %v273
    %v4974 = vpop.f32.mrf.mxu0
    %v4975 = vadd.f32 %v4962, %v4974
    %v4976 = vpop.f32.mrf.mxu0
    %4977 = vdwg.mxu0
    %4978 = vmatpush.bf16.msra.mxu0 %v4735
    %4979 = vmatpush.bf16.msra.mxu0 %v4733
    %4980 = vmatpush.bf16.msra.mxu0 %v4731
    %4981 = vmatpush.bf16.msra.mxu0 %v4729
    %4982 = vmatpush.bf16.msra.mxu0 %v4727
    %4983 = vmatpush.bf16.msra.mxu0 %v4725
    %4984 = vmatpush.bf16.msra.mxu0 %v4723
    %4985 = vmatpush.bf16.msra.mxu0 %v4721
    %4986 = vmatmul.bf16.gmra.mxu0 %v274
    %v4987 = vpop.f32.mrf.mxu0
    %v4988 = vadd.f32 %v4975, %v4987
    %v4989 = vpop.f32.mrf.mxu0
    %4990 = vdwg.mxu0
    %4991 = vmatpush.bf16.msra.mxu0 %v4751
    %4992 = vmatpush.bf16.msra.mxu0 %v4749
    %4993 = vmatpush.bf16.msra.mxu0 %v4747
    %4994 = vmatpush.bf16.msra.mxu0 %v4745
    %4995 = vmatpush.bf16.msra.mxu0 %v4743
    %4996 = vmatpush.bf16.msra.mxu0 %v4741
    %4997 = vmatpush.bf16.msra.mxu0 %v4739
    %4998 = vmatpush.bf16.msra.mxu0 %v4737
    %4999 = vmatmul.bf16.gmra.mxu0 %v275
    %v5000 = vpop.f32.mrf.mxu0
    %v5001 = vadd.f32 %v4988, %v5000
    %v5002 = vpop.f32.mrf.mxu0
    %5003 = vdwg.mxu0
    %v5004 = vmax.f32 %v4923, 0.0
    %v5005 = vmax.f32 %v5001, 0.0
    %v5006 = vpack.c.bf16 %v5005, %v5004
    %v5007 = vld [vmem:[#allocation8 + $0x1900] sm:$0xff]
    %v5008 = vld [vmem:[#allocation8 + $0x1908] sm:$0xff]
    %v5009 = vld [vmem:[#allocation8 + $0x1910] sm:$0xff]
    %v5010 = vld [vmem:[#allocation8 + $0x1918] sm:$0xff]
    %v5011 = vld [vmem:[#allocation8 + $0x1920] sm:$0xff]
    %v5012 = vld [vmem:[#allocation8 + $0x1928] sm:$0xff]
    %v5013 = vld [vmem:[#allocation8 + $0x1930] sm:$0xff]
    %v5014 = vld [vmem:[#allocation8 + $0x1938] sm:$0xff]
    %v5015 = vld [vmem:[#allocation8 + $0x1940] sm:$0xff]
    %v5016 = vld [vmem:[#allocation8 + $0x1948] sm:$0xff]
    %v5017 = vld [vmem:[#allocation8 + $0x1950] sm:$0xff]
    %v5018 = vld [vmem:[#allocation8 + $0x1958] sm:$0xff]
    %v5019 = vld [vmem:[#allocation8 + $0x1960] sm:$0xff]
    %v5020 = vld [vmem:[#allocation8 + $0x1968] sm:$0xff]
    %v5021 = vld [vmem:[#allocation8 + $0x1970] sm:$0xff]
    %v5022 = vld [vmem:[#allocation8 + $0x1978] sm:$0xff]
    %v5023 = vld [vmem:[#allocation8 + $0x1980] sm:$0xff]
    %v5024 = vld [vmem:[#allocation8 + $0x1988] sm:$0xff]
    %v5025 = vld [vmem:[#allocation8 + $0x1990] sm:$0xff]
    %v5026 = vld [vmem:[#allocation8 + $0x1998] sm:$0xff]
    %v5027 = vld [vmem:[#allocation8 + $0x19a0] sm:$0xff]
    %v5028 = vld [vmem:[#allocation8 + $0x19a8] sm:$0xff]
    %v5029 = vld [vmem:[#allocation8 + $0x19b0] sm:$0xff]
    %v5030 = vld [vmem:[#allocation8 + $0x19b8] sm:$0xff]
    %v5031 = vld [vmem:[#allocation8 + $0x19c0] sm:$0xff]
    %v5032 = vld [vmem:[#allocation8 + $0x19c8] sm:$0xff]
    %v5033 = vld [vmem:[#allocation8 + $0x19d0] sm:$0xff]
    %v5034 = vld [vmem:[#allocation8 + $0x19d8] sm:$0xff]
    %v5035 = vld [vmem:[#allocation8 + $0x19e0] sm:$0xff]
    %v5036 = vld [vmem:[#allocation8 + $0x19e8] sm:$0xff]
    %v5037 = vld [vmem:[#allocation8 + $0x19f0] sm:$0xff]
    %v5038 = vld [vmem:[#allocation8 + $0x19f8] sm:$0xff]
    %v5039 = vld [vmem:[#allocation13 + $0x8] sm:$0x3]
    %v5041 = vperm.slane %v5039, 0
    %v5042 = vperm.slane %v5039, 1
    %v5046 = vunpack.c.l.b16 %v5006
    %v5047 = vunpack.c.h.b16 %v5006
    %v5048 = vpack.c.b16 %v5046, %v5046
    %v5049 = vpack.c.b16 %v5047, %v5047
    %v5084 = vunpack.c.l.b16 %v5007
    %v5085 = vunpack.c.h.b16 %v5007
    %v5086 = vunpack.c.l.b16 %v5008
    %v5087 = vunpack.c.h.b16 %v5008
    %v5088 = vunpack.c.l.b16 %v5009
    %v5089 = vunpack.c.h.b16 %v5009
    %v5090 = vunpack.c.l.b16 %v5010
    %v5091 = vunpack.c.h.b16 %v5010
    %v5092 = vunpack.c.l.b16 %v5011
    %v5093 = vunpack.c.h.b16 %v5011
    %v5094 = vunpack.c.l.b16 %v5012
    %v5095 = vunpack.c.h.b16 %v5012
    %v5096 = vunpack.c.l.b16 %v5013
    %v5097 = vunpack.c.h.b16 %v5013
    %v5098 = vunpack.c.l.b16 %v5014
    %v5099 = vunpack.c.h.b16 %v5014
    %v5100 = vunpack.c.l.b16 %v5015
    %v5101 = vunpack.c.h.b16 %v5015
    %v5102 = vunpack.c.l.b16 %v5016
    %v5103 = vunpack.c.h.b16 %v5016
    %v5104 = vunpack.c.l.b16 %v5017
    %v5105 = vunpack.c.h.b16 %v5017
    %v5106 = vunpack.c.l.b16 %v5018
    %v5107 = vunpack.c.h.b16 %v5018
    %v5108 = vunpack.c.l.b16 %v5019
    %v5109 = vunpack.c.h.b16 %v5019
    %v5110 = vunpack.c.l.b16 %v5020
    %v5111 = vunpack.c.h.b16 %v5020
    %v5112 = vunpack.c.l.b16 %v5021
    %v5113 = vunpack.c.h.b16 %v5021
    %v5114 = vunpack.c.l.b16 %v5022
    %v5115 = vunpack.c.h.b16 %v5022
    %v5116 = vunpack.c.l.b16 %v5023
    %v5117 = vunpack.c.h.b16 %v5023
    %v5118 = vunpack.c.l.b16 %v5024
    %v5119 = vunpack.c.h.b16 %v5024
    %v5120 = vunpack.c.l.b16 %v5025
    %v5121 = vunpack.c.h.b16 %v5025
    %v5122 = vunpack.c.l.b16 %v5026
    %v5123 = vunpack.c.h.b16 %v5026
    %v5124 = vunpack.c.l.b16 %v5027
    %v5125 = vunpack.c.h.b16 %v5027
    %v5126 = vunpack.c.l.b16 %v5028
    %v5127 = vunpack.c.h.b16 %v5028
    %v5128 = vunpack.c.l.b16 %v5029
    %v5129 = vunpack.c.h.b16 %v5029
    %v5130 = vunpack.c.l.b16 %v5030
    %v5131 = vunpack.c.h.b16 %v5030
    %v5132 = vunpack.c.l.b16 %v5031
    %v5133 = vunpack.c.h.b16 %v5031
    %v5134 = vunpack.c.l.b16 %v5032
    %v5135 = vunpack.c.h.b16 %v5032
    %v5136 = vunpack.c.l.b16 %v5033
    %v5137 = vunpack.c.h.b16 %v5033
    %v5138 = vunpack.c.l.b16 %v5034
    %v5139 = vunpack.c.h.b16 %v5034
    %v5140 = vunpack.c.l.b16 %v5035
    %v5141 = vunpack.c.h.b16 %v5035
    %v5142 = vunpack.c.l.b16 %v5036
    %v5143 = vunpack.c.h.b16 %v5036
    %v5144 = vunpack.c.l.b16 %v5037
    %v5145 = vunpack.c.h.b16 %v5037
    %v5146 = vunpack.c.l.b16 %v5038
    %v5147 = vunpack.c.h.b16 %v5038
    %v5148 = vpack.c.b16 %v5086, %v5084
    %v5149 = vpack.c.b16 %v5087, %v5085
    %v5150 = vpack.c.b16 %v5090, %v5088
    %v5151 = vpack.c.b16 %v5091, %v5089
    %v5152 = vpack.c.b16 %v5094, %v5092
    %v5153 = vpack.c.b16 %v5095, %v5093
    %v5154 = vpack.c.b16 %v5098, %v5096
    %v5155 = vpack.c.b16 %v5099, %v5097
    %v5156 = vpack.c.b16 %v5102, %v5100
    %v5157 = vpack.c.b16 %v5103, %v5101
    %v5158 = vpack.c.b16 %v5106, %v5104
    %v5159 = vpack.c.b16 %v5107, %v5105
    %v5160 = vpack.c.b16 %v5110, %v5108
    %v5161 = vpack.c.b16 %v5111, %v5109
    %v5162 = vpack.c.b16 %v5114, %v5112
    %v5163 = vpack.c.b16 %v5115, %v5113
    %v5164 = vpack.c.b16 %v5118, %v5116
    %v5165 = vpack.c.b16 %v5119, %v5117
    %v5166 = vpack.c.b16 %v5122, %v5120
    %v5167 = vpack.c.b16 %v5123, %v5121
    %v5168 = vpack.c.b16 %v5126, %v5124
    %v5169 = vpack.c.b16 %v5127, %v5125
    %v5170 = vpack.c.b16 %v5130, %v5128
    %v5171 = vpack.c.b16 %v5131, %v5129
    %v5172 = vpack.c.b16 %v5134, %v5132
    %v5173 = vpack.c.b16 %v5135, %v5133
    %v5174 = vpack.c.b16 %v5138, %v5136
    %v5175 = vpack.c.b16 %v5139, %v5137
    %v5176 = vpack.c.b16 %v5142, %v5140
    %v5177 = vpack.c.b16 %v5143, %v5141
    %v5178 = vpack.c.b16 %v5146, %v5144
    %v5179 = vpack.c.b16 %v5147, %v5145
    %5212 = vmatpush.bf16.msra.mxu0 %v5162
    %5213 = vmatpush.bf16.msra.mxu0 %v5160
    %5214 = vmatpush.bf16.msra.mxu0 %v5158
    %5215 = vmatpush.bf16.msra.mxu0 %v5156
    %5216 = vmatpush.bf16.msra.mxu0 %v5154
    %5217 = vmatpush.bf16.msra.mxu0 %v5152
    %5218 = vmatpush.bf16.msra.mxu0 %v5150
    %5219 = vmatpush.bf16.msra.mxu0 %v5148
    %5220 = vmatmul.bf16.gmra.mxu0 %v5048
    %v5221 = vpop.f32.mrf.mxu0
    %v5222 = vadd.f32 %v5041, %v5221
    %v5223 = vpop.f32.mrf.mxu0
    %5224 = vdwg.mxu0
    %5225 = vmatpush.bf16.msra.mxu0 %v5178
    %5226 = vmatpush.bf16.msra.mxu0 %v5176
    %5227 = vmatpush.bf16.msra.mxu0 %v5174
    %5228 = vmatpush.bf16.msra.mxu0 %v5172
    %5229 = vmatpush.bf16.msra.mxu0 %v5170
    %5230 = vmatpush.bf16.msra.mxu0 %v5168
    %5231 = vmatpush.bf16.msra.mxu0 %v5166
    %5232 = vmatpush.bf16.msra.mxu0 %v5164
    %5233 = vmatmul.bf16.gmra.mxu0 %v5049
    %v5234 = vpop.f32.mrf.mxu0
    %v5235 = vadd.f32 %v5222, %v5234
    %v5236 = vpop.f32.mrf.mxu0
    %5237 = vdwg.mxu0
    %5238 = vmatpush.bf16.msra.mxu0 %v5163
    %5239 = vmatpush.bf16.msra.mxu0 %v5161
    %5240 = vmatpush.bf16.msra.mxu0 %v5159
    %5241 = vmatpush.bf16.msra.mxu0 %v5157
    %5242 = vmatpush.bf16.msra.mxu0 %v5155
    %5243 = vmatpush.bf16.msra.mxu0 %v5153
    %5244 = vmatpush.bf16.msra.mxu0 %v5151
    %5245 = vmatpush.bf16.msra.mxu0 %v5149
    %5246 = vmatmul.bf16.gmra.mxu0 %v5048
    %v5247 = vpop.f32.mrf.mxu0
    %v5248 = vadd.f32 %v5042, %v5247
    %v5249 = vpop.f32.mrf.mxu0
    %5250 = vdwg.mxu0
    %5251 = vmatpush.bf16.msra.mxu0 %v5179
    %5252 = vmatpush.bf16.msra.mxu0 %v5177
    %5253 = vmatpush.bf16.msra.mxu0 %v5175
    %5254 = vmatpush.bf16.msra.mxu0 %v5173
    %5255 = vmatpush.bf16.msra.mxu0 %v5171
    %5256 = vmatpush.bf16.msra.mxu0 %v5169
    %5257 = vmatpush.bf16.msra.mxu0 %v5167
    %5258 = vmatpush.bf16.msra.mxu0 %v5165
    %5259 = vmatmul.bf16.gmra.mxu0 %v5049
    %v5260 = vpop.f32.mrf.mxu0
    %v5261 = vadd.f32 %v5248, %v5260
    %v5262 = vpop.f32.mrf.mxu0
    %5263 = vdwg.mxu0
    %v5264 = vld [vmem:[#allocation8 + $0x1200] sm:$0xff]
    %v5265 = vld [vmem:[#allocation8 + $0x1208] sm:$0xff]
    %v5266 = vld [vmem:[#allocation8 + $0x1210] sm:$0xff]
    %v5267 = vld [vmem:[#allocation8 + $0x1218] sm:$0xff]
    %v5268 = vld [vmem:[#allocation8 + $0x1220] sm:$0xff]
    %v5269 = vld [vmem:[#allocation8 + $0x1228] sm:$0xff]
    %v5270 = vld [vmem:[#allocation8 + $0x1230] sm:$0xff]
    %v5271 = vld [vmem:[#allocation8 + $0x1238] sm:$0xff]
    %v5272 = vld [vmem:[#allocation8 + $0x1240] sm:$0xff]
    %v5273 = vld [vmem:[#allocation8 + $0x1248] sm:$0xff]
    %v5274 = vld [vmem:[#allocation8 + $0x1250] sm:$0xff]
    %v5275 = vld [vmem:[#allocation8 + $0x1258] sm:$0xff]
    %v5276 = vld [vmem:[#allocation8 + $0x1260] sm:$0xff]
    %v5277 = vld [vmem:[#allocation8 + $0x1268] sm:$0xff]
    %v5278 = vld [vmem:[#allocation8 + $0x1270] sm:$0xff]
    %v5279 = vld [vmem:[#allocation8 + $0x1278] sm:$0xff]
    %v5280 = vld [vmem:[#allocation8 + $0x1280] sm:$0xff]
    %v5281 = vld [vmem:[#allocation8 + $0x1288] sm:$0xff]
    %v5282 = vld [vmem:[#allocation8 + $0x1290] sm:$0xff]
    %v5283 = vld [vmem:[#allocation8 + $0x1298] sm:$0xff]
    %v5284 = vld [vmem:[#allocation8 + $0x12a0] sm:$0xff]
    %v5285 = vld [vmem:[#allocation8 + $0x12a8] sm:$0xff]
    %v5286 = vld [vmem:[#allocation8 + $0x12b0] sm:$0xff]
    %v5287 = vld [vmem:[#allocation8 + $0x12b8] sm:$0xff]
    %v5288 = vld [vmem:[#allocation8 + $0x12c0] sm:$0xff]
    %v5289 = vld [vmem:[#allocation8 + $0x12c8] sm:$0xff]
    %v5290 = vld [vmem:[#allocation8 + $0x12d0] sm:$0xff]
    %v5291 = vld [vmem:[#allocation8 + $0x12d8] sm:$0xff]
    %v5292 = vld [vmem:[#allocation8 + $0x12e0] sm:$0xff]
    %v5293 = vld [vmem:[#allocation8 + $0x12e8] sm:$0xff]
    %v5294 = vld [vmem:[#allocation8 + $0x12f0] sm:$0xff]
    %v5295 = vld [vmem:[#allocation8 + $0x12f8] sm:$0xff]
    %v5296 = vld [vmem:[#allocation8 + $0x1300] sm:$0xff]
    %v5297 = vld [vmem:[#allocation8 + $0x1308] sm:$0xff]
    %v5298 = vld [vmem:[#allocation8 + $0x1310] sm:$0xff]
    %v5299 = vld [vmem:[#allocation8 + $0x1318] sm:$0xff]
    %v5300 = vld [vmem:[#allocation8 + $0x1320] sm:$0xff]
    %v5301 = vld [vmem:[#allocation8 + $0x1328] sm:$0xff]
    %v5302 = vld [vmem:[#allocation8 + $0x1330] sm:$0xff]
    %v5303 = vld [vmem:[#allocation8 + $0x1338] sm:$0xff]
    %v5304 = vld [vmem:[#allocation8 + $0x1340] sm:$0xff]
    %v5305 = vld [vmem:[#allocation8 + $0x1348] sm:$0xff]
    %v5306 = vld [vmem:[#allocation8 + $0x1350] sm:$0xff]
    %v5307 = vld [vmem:[#allocation8 + $0x1358] sm:$0xff]
    %v5308 = vld [vmem:[#allocation8 + $0x1360] sm:$0xff]
    %v5309 = vld [vmem:[#allocation8 + $0x1368] sm:$0xff]
    %v5310 = vld [vmem:[#allocation8 + $0x1370] sm:$0xff]
    %v5311 = vld [vmem:[#allocation8 + $0x1378] sm:$0xff]
    %v5312 = vld [vmem:[#allocation8 + $0x1380] sm:$0xff]
    %v5313 = vld [vmem:[#allocation8 + $0x1388] sm:$0xff]
    %v5314 = vld [vmem:[#allocation8 + $0x1390] sm:$0xff]
    %v5315 = vld [vmem:[#allocation8 + $0x1398] sm:$0xff]
    %v5316 = vld [vmem:[#allocation8 + $0x13a0] sm:$0xff]
    %v5317 = vld [vmem:[#allocation8 + $0x13a8] sm:$0xff]
    %v5318 = vld [vmem:[#allocation8 + $0x13b0] sm:$0xff]
    %v5319 = vld [vmem:[#allocation8 + $0x13b8] sm:$0xff]
    %v5320 = vld [vmem:[#allocation8 + $0x13c0] sm:$0xff]
    %v5321 = vld [vmem:[#allocation8 + $0x13c8] sm:$0xff]
    %v5322 = vld [vmem:[#allocation8 + $0x13d0] sm:$0xff]
    %v5323 = vld [vmem:[#allocation8 + $0x13d8] sm:$0xff]
    %v5324 = vld [vmem:[#allocation8 + $0x13e0] sm:$0xff]
    %v5325 = vld [vmem:[#allocation8 + $0x13e8] sm:$0xff]
    %v5326 = vld [vmem:[#allocation8 + $0x13f0] sm:$0xff]
    %v5327 = vld [vmem:[#allocation8 + $0x13f8] sm:$0xff]
    %v5328 = vld [vmem:[#allocation8 + $0x1400] sm:$0xff]
    %v5329 = vld [vmem:[#allocation8 + $0x1408] sm:$0xff]
    %v5330 = vld [vmem:[#allocation8 + $0x1410] sm:$0xff]
    %v5331 = vld [vmem:[#allocation8 + $0x1418] sm:$0xff]
    %v5332 = vld [vmem:[#allocation8 + $0x1420] sm:$0xff]
    %v5333 = vld [vmem:[#allocation8 + $0x1428] sm:$0xff]
    %v5334 = vld [vmem:[#allocation8 + $0x1430] sm:$0xff]
    %v5335 = vld [vmem:[#allocation8 + $0x1438] sm:$0xff]
    %v5336 = vld [vmem:[#allocation8 + $0x1440] sm:$0xff]
    %v5337 = vld [vmem:[#allocation8 + $0x1448] sm:$0xff]
    %v5338 = vld [vmem:[#allocation8 + $0x1450] sm:$0xff]
    %v5339 = vld [vmem:[#allocation8 + $0x1458] sm:$0xff]
    %v5340 = vld [vmem:[#allocation8 + $0x1460] sm:$0xff]
    %v5341 = vld [vmem:[#allocation8 + $0x1468] sm:$0xff]
    %v5342 = vld [vmem:[#allocation8 + $0x1470] sm:$0xff]
    %v5343 = vld [vmem:[#allocation8 + $0x1478] sm:$0xff]
    %v5344 = vld [vmem:[#allocation8 + $0x1480] sm:$0xff]
    %v5345 = vld [vmem:[#allocation8 + $0x1488] sm:$0xff]
    %v5346 = vld [vmem:[#allocation8 + $0x1490] sm:$0xff]
    %v5347 = vld [vmem:[#allocation8 + $0x1498] sm:$0xff]
    %v5348 = vld [vmem:[#allocation8 + $0x14a0] sm:$0xff]
    %v5349 = vld [vmem:[#allocation8 + $0x14a8] sm:$0xff]
    %v5350 = vld [vmem:[#allocation8 + $0x14b0] sm:$0xff]
    %v5351 = vld [vmem:[#allocation8 + $0x14b8] sm:$0xff]
    %v5352 = vld [vmem:[#allocation8 + $0x14c0] sm:$0xff]
    %v5353 = vld [vmem:[#allocation8 + $0x14c8] sm:$0xff]
    %v5354 = vld [vmem:[#allocation8 + $0x14d0] sm:$0xff]
    %v5355 = vld [vmem:[#allocation8 + $0x14d8] sm:$0xff]
    %v5356 = vld [vmem:[#allocation8 + $0x14e0] sm:$0xff]
    %v5357 = vld [vmem:[#allocation8 + $0x14e8] sm:$0xff]
    %v5358 = vld [vmem:[#allocation8 + $0x14f0] sm:$0xff]
    %v5359 = vld [vmem:[#allocation8 + $0x14f8] sm:$0xff]
    %v5360 = vld [vmem:[#allocation8 + $0x1500] sm:$0xff]
    %v5361 = vld [vmem:[#allocation8 + $0x1508] sm:$0xff]
    %v5362 = vld [vmem:[#allocation8 + $0x1510] sm:$0xff]
    %v5363 = vld [vmem:[#allocation8 + $0x1518] sm:$0xff]
    %v5364 = vld [vmem:[#allocation8 + $0x1520] sm:$0xff]
    %v5365 = vld [vmem:[#allocation8 + $0x1528] sm:$0xff]
    %v5366 = vld [vmem:[#allocation8 + $0x1530] sm:$0xff]
    %v5367 = vld [vmem:[#allocation8 + $0x1538] sm:$0xff]
    %v5368 = vld [vmem:[#allocation8 + $0x1540] sm:$0xff]
    %v5369 = vld [vmem:[#allocation8 + $0x1548] sm:$0xff]
    %v5370 = vld [vmem:[#allocation8 + $0x1550] sm:$0xff]
    %v5371 = vld [vmem:[#allocation8 + $0x1558] sm:$0xff]
    %v5372 = vld [vmem:[#allocation8 + $0x1560] sm:$0xff]
    %v5373 = vld [vmem:[#allocation8 + $0x1568] sm:$0xff]
    %v5374 = vld [vmem:[#allocation8 + $0x1570] sm:$0xff]
    %v5375 = vld [vmem:[#allocation8 + $0x1578] sm:$0xff]
    %v5376 = vld [vmem:[#allocation8 + $0x1580] sm:$0xff]
    %v5377 = vld [vmem:[#allocation8 + $0x1588] sm:$0xff]
    %v5378 = vld [vmem:[#allocation8 + $0x1590] sm:$0xff]
    %v5379 = vld [vmem:[#allocation8 + $0x1598] sm:$0xff]
    %v5380 = vld [vmem:[#allocation8 + $0x15a0] sm:$0xff]
    %v5381 = vld [vmem:[#allocation8 + $0x15a8] sm:$0xff]
    %v5382 = vld [vmem:[#allocation8 + $0x15b0] sm:$0xff]
    %v5383 = vld [vmem:[#allocation8 + $0x15b8] sm:$0xff]
    %v5384 = vld [vmem:[#allocation8 + $0x15c0] sm:$0xff]
    %v5385 = vld [vmem:[#allocation8 + $0x15c8] sm:$0xff]
    %v5386 = vld [vmem:[#allocation8 + $0x15d0] sm:$0xff]
    %v5387 = vld [vmem:[#allocation8 + $0x15d8] sm:$0xff]
    %v5388 = vld [vmem:[#allocation8 + $0x15e0] sm:$0xff]
    %v5389 = vld [vmem:[#allocation8 + $0x15e8] sm:$0xff]
    %v5390 = vld [vmem:[#allocation8 + $0x15f0] sm:$0xff]
    %v5391 = vld [vmem:[#allocation8 + $0x15f8] sm:$0xff]
    %v5392 = vld [vmem:[#allocation8 + $0x1600] sm:$0xff]
    %v5393 = vld [vmem:[#allocation8 + $0x1608] sm:$0xff]
    %v5394 = vld [vmem:[#allocation8 + $0x1610] sm:$0xff]
    %v5395 = vld [vmem:[#allocation8 + $0x1618] sm:$0xff]
    %v5396 = vld [vmem:[#allocation8 + $0x1620] sm:$0xff]
    %v5397 = vld [vmem:[#allocation8 + $0x1628] sm:$0xff]
    %v5398 = vld [vmem:[#allocation8 + $0x1630] sm:$0xff]
    %v5399 = vld [vmem:[#allocation8 + $0x1638] sm:$0xff]
    %v5400 = vld [vmem:[#allocation8 + $0x1640] sm:$0xff]
    %v5401 = vld [vmem:[#allocation8 + $0x1648] sm:$0xff]
    %v5402 = vld [vmem:[#allocation8 + $0x1650] sm:$0xff]
    %v5403 = vld [vmem:[#allocation8 + $0x1658] sm:$0xff]
    %v5404 = vld [vmem:[#allocation8 + $0x1660] sm:$0xff]
    %v5405 = vld [vmem:[#allocation8 + $0x1668] sm:$0xff]
    %v5406 = vld [vmem:[#allocation8 + $0x1670] sm:$0xff]
    %v5407 = vld [vmem:[#allocation8 + $0x1678] sm:$0xff]
    %v5408 = vld [vmem:[#allocation8 + $0x1680] sm:$0xff]
    %v5409 = vld [vmem:[#allocation8 + $0x1688] sm:$0xff]
    %v5410 = vld [vmem:[#allocation8 + $0x1690] sm:$0xff]
    %v5411 = vld [vmem:[#allocation8 + $0x1698] sm:$0xff]
    %v5412 = vld [vmem:[#allocation8 + $0x16a0] sm:$0xff]
    %v5413 = vld [vmem:[#allocation8 + $0x16a8] sm:$0xff]
    %v5414 = vld [vmem:[#allocation8 + $0x16b0] sm:$0xff]
    %v5415 = vld [vmem:[#allocation8 + $0x16b8] sm:$0xff]
    %v5416 = vld [vmem:[#allocation8 + $0x16c0] sm:$0xff]
    %v5417 = vld [vmem:[#allocation8 + $0x16c8] sm:$0xff]
    %v5418 = vld [vmem:[#allocation8 + $0x16d0] sm:$0xff]
    %v5419 = vld [vmem:[#allocation8 + $0x16d8] sm:$0xff]
    %v5420 = vld [vmem:[#allocation8 + $0x16e0] sm:$0xff]
    %v5421 = vld [vmem:[#allocation8 + $0x16e8] sm:$0xff]
    %v5422 = vld [vmem:[#allocation8 + $0x16f0] sm:$0xff]
    %v5423 = vld [vmem:[#allocation8 + $0x16f8] sm:$0xff]
    %v5424 = vld [vmem:[#allocation8 + $0x1700] sm:$0xff]
    %v5425 = vld [vmem:[#allocation8 + $0x1708] sm:$0xff]
    %v5426 = vld [vmem:[#allocation8 + $0x1710] sm:$0xff]
    %v5427 = vld [vmem:[#allocation8 + $0x1718] sm:$0xff]
    %v5428 = vld [vmem:[#allocation8 + $0x1720] sm:$0xff]
    %v5429 = vld [vmem:[#allocation8 + $0x1728] sm:$0xff]
    %v5430 = vld [vmem:[#allocation8 + $0x1730] sm:$0xff]
    %v5431 = vld [vmem:[#allocation8 + $0x1738] sm:$0xff]
    %v5432 = vld [vmem:[#allocation8 + $0x1740] sm:$0xff]
    %v5433 = vld [vmem:[#allocation8 + $0x1748] sm:$0xff]
    %v5434 = vld [vmem:[#allocation8 + $0x1750] sm:$0xff]
    %v5435 = vld [vmem:[#allocation8 + $0x1758] sm:$0xff]
    %v5436 = vld [vmem:[#allocation8 + $0x1760] sm:$0xff]
    %v5437 = vld [vmem:[#allocation8 + $0x1768] sm:$0xff]
    %v5438 = vld [vmem:[#allocation8 + $0x1770] sm:$0xff]
    %v5439 = vld [vmem:[#allocation8 + $0x1778] sm:$0xff]
    %v5440 = vld [vmem:[#allocation8 + $0x1780] sm:$0xff]
    %v5441 = vld [vmem:[#allocation8 + $0x1788] sm:$0xff]
    %v5442 = vld [vmem:[#allocation8 + $0x1790] sm:$0xff]
    %v5443 = vld [vmem:[#allocation8 + $0x1798] sm:$0xff]
    %v5444 = vld [vmem:[#allocation8 + $0x17a0] sm:$0xff]
    %v5445 = vld [vmem:[#allocation8 + $0x17a8] sm:$0xff]
    %v5446 = vld [vmem:[#allocation8 + $0x17b0] sm:$0xff]
    %v5447 = vld [vmem:[#allocation8 + $0x17b8] sm:$0xff]
    %v5448 = vld [vmem:[#allocation8 + $0x17c0] sm:$0xff]
    %v5449 = vld [vmem:[#allocation8 + $0x17c8] sm:$0xff]
    %v5450 = vld [vmem:[#allocation8 + $0x17d0] sm:$0xff]
    %v5451 = vld [vmem:[#allocation8 + $0x17d8] sm:$0xff]
    %v5452 = vld [vmem:[#allocation8 + $0x17e0] sm:$0xff]
    %v5453 = vld [vmem:[#allocation8 + $0x17e8] sm:$0xff]
    %v5454 = vld [vmem:[#allocation8 + $0x17f0] sm:$0xff]
    %v5455 = vld [vmem:[#allocation8 + $0x17f8] sm:$0xff]
    %v5600 = vunpack.c.l.b16 %v5312
    %v5601 = vunpack.c.h.b16 %v5312
    %v5602 = vunpack.c.l.b16 %v5313
    %v5603 = vunpack.c.h.b16 %v5313
    %v5604 = vunpack.c.l.b16 %v5314
    %v5605 = vunpack.c.h.b16 %v5314
    %v5606 = vunpack.c.l.b16 %v5315
    %v5607 = vunpack.c.h.b16 %v5315
    %v5608 = vunpack.c.l.b16 %v5316
    %v5609 = vunpack.c.h.b16 %v5316
    %v5610 = vunpack.c.l.b16 %v5317
    %v5611 = vunpack.c.h.b16 %v5317
    %v5612 = vunpack.c.l.b16 %v5318
    %v5613 = vunpack.c.h.b16 %v5318
    %v5614 = vunpack.c.l.b16 %v5319
    %v5615 = vunpack.c.h.b16 %v5319
    %v5616 = vunpack.c.l.b16 %v5320
    %v5617 = vunpack.c.h.b16 %v5320
    %v5618 = vunpack.c.l.b16 %v5321
    %v5619 = vunpack.c.h.b16 %v5321
    %v5620 = vunpack.c.l.b16 %v5322
    %v5621 = vunpack.c.h.b16 %v5322
    %v5622 = vunpack.c.l.b16 %v5323
    %v5623 = vunpack.c.h.b16 %v5323
    %v5624 = vunpack.c.l.b16 %v5324
    %v5625 = vunpack.c.h.b16 %v5324
    %v5626 = vunpack.c.l.b16 %v5325
    %v5627 = vunpack.c.h.b16 %v5325
    %v5628 = vunpack.c.l.b16 %v5326
    %v5629 = vunpack.c.h.b16 %v5326
    %v5630 = vunpack.c.l.b16 %v5327
    %v5631 = vunpack.c.h.b16 %v5327
    %v5632 = vunpack.c.l.b16 %v5328
    %v5633 = vunpack.c.h.b16 %v5328
    %v5634 = vunpack.c.l.b16 %v5329
    %v5635 = vunpack.c.h.b16 %v5329
    %v5636 = vunpack.c.l.b16 %v5330
    %v5637 = vunpack.c.h.b16 %v5330
    %v5638 = vunpack.c.l.b16 %v5331
    %v5639 = vunpack.c.h.b16 %v5331
    %v5640 = vunpack.c.l.b16 %v5332
    %v5641 = vunpack.c.h.b16 %v5332
    %v5642 = vunpack.c.l.b16 %v5333
    %v5643 = vunpack.c.h.b16 %v5333
    %v5644 = vunpack.c.l.b16 %v5334
    %v5645 = vunpack.c.h.b16 %v5334
    %v5646 = vunpack.c.l.b16 %v5335
    %v5647 = vunpack.c.h.b16 %v5335
    %v5648 = vunpack.c.l.b16 %v5336
    %v5649 = vunpack.c.h.b16 %v5336
    %v5650 = vunpack.c.l.b16 %v5337
    %v5651 = vunpack.c.h.b16 %v5337
    %v5652 = vunpack.c.l.b16 %v5338
    %v5653 = vunpack.c.h.b16 %v5338
    %v5654 = vunpack.c.l.b16 %v5339
    %v5655 = vunpack.c.h.b16 %v5339
    %v5656 = vunpack.c.l.b16 %v5340
    %v5657 = vunpack.c.h.b16 %v5340
    %v5658 = vunpack.c.l.b16 %v5341
    %v5659 = vunpack.c.h.b16 %v5341
    %v5660 = vunpack.c.l.b16 %v5342
    %v5661 = vunpack.c.h.b16 %v5342
    %v5662 = vunpack.c.l.b16 %v5343
    %v5663 = vunpack.c.h.b16 %v5343
    %v5664 = vunpack.c.l.b16 %v5344
    %v5665 = vunpack.c.h.b16 %v5344
    %v5666 = vunpack.c.l.b16 %v5345
    %v5667 = vunpack.c.h.b16 %v5345
    %v5668 = vunpack.c.l.b16 %v5346
    %v5669 = vunpack.c.h.b16 %v5346
    %v5670 = vunpack.c.l.b16 %v5347
    %v5671 = vunpack.c.h.b16 %v5347
    %v5672 = vunpack.c.l.b16 %v5348
    %v5673 = vunpack.c.h.b16 %v5348
    %v5674 = vunpack.c.l.b16 %v5349
    %v5675 = vunpack.c.h.b16 %v5349
    %v5676 = vunpack.c.l.b16 %v5350
    %v5677 = vunpack.c.h.b16 %v5350
    %v5678 = vunpack.c.l.b16 %v5351
    %v5679 = vunpack.c.h.b16 %v5351
    %v5680 = vunpack.c.l.b16 %v5352
    %v5681 = vunpack.c.h.b16 %v5352
    %v5682 = vunpack.c.l.b16 %v5353
    %v5683 = vunpack.c.h.b16 %v5353
    %v5684 = vunpack.c.l.b16 %v5354
    %v5685 = vunpack.c.h.b16 %v5354
    %v5686 = vunpack.c.l.b16 %v5355
    %v5687 = vunpack.c.h.b16 %v5355
    %v5688 = vunpack.c.l.b16 %v5356
    %v5689 = vunpack.c.h.b16 %v5356
    %v5690 = vunpack.c.l.b16 %v5357
    %v5691 = vunpack.c.h.b16 %v5357
    %v5692 = vunpack.c.l.b16 %v5358
    %v5693 = vunpack.c.h.b16 %v5358
    %v5694 = vunpack.c.l.b16 %v5359
    %v5695 = vunpack.c.h.b16 %v5359
    %v5696 = vunpack.c.l.b16 %v5360
    %v5697 = vunpack.c.h.b16 %v5360
    %v5698 = vunpack.c.l.b16 %v5361
    %v5699 = vunpack.c.h.b16 %v5361
    %v5700 = vunpack.c.l.b16 %v5362
    %v5701 = vunpack.c.h.b16 %v5362
    %v5702 = vunpack.c.l.b16 %v5363
    %v5703 = vunpack.c.h.b16 %v5363
    %v5704 = vunpack.c.l.b16 %v5364
    %v5705 = vunpack.c.h.b16 %v5364
    %v5706 = vunpack.c.l.b16 %v5365
    %v5707 = vunpack.c.h.b16 %v5365
    %v5708 = vunpack.c.l.b16 %v5366
    %v5709 = vunpack.c.h.b16 %v5366
    %v5710 = vunpack.c.l.b16 %v5367
    %v5711 = vunpack.c.h.b16 %v5367
    %v5712 = vunpack.c.l.b16 %v5368
    %v5713 = vunpack.c.h.b16 %v5368
    %v5714 = vunpack.c.l.b16 %v5369
    %v5715 = vunpack.c.h.b16 %v5369
    %v5716 = vunpack.c.l.b16 %v5370
    %v5717 = vunpack.c.h.b16 %v5370
    %v5718 = vunpack.c.l.b16 %v5371
    %v5719 = vunpack.c.h.b16 %v5371
    %v5720 = vunpack.c.l.b16 %v5372
    %v5721 = vunpack.c.h.b16 %v5372
    %v5722 = vunpack.c.l.b16 %v5373
    %v5723 = vunpack.c.h.b16 %v5373
    %v5724 = vunpack.c.l.b16 %v5374
    %v5725 = vunpack.c.h.b16 %v5374
    %v5726 = vunpack.c.l.b16 %v5375
    %v5727 = vunpack.c.h.b16 %v5375
    %v5728 = vunpack.c.l.b16 %v5376
    %v5729 = vunpack.c.h.b16 %v5376
    %v5730 = vunpack.c.l.b16 %v5377
    %v5731 = vunpack.c.h.b16 %v5377
    %v5732 = vunpack.c.l.b16 %v5378
    %v5733 = vunpack.c.h.b16 %v5378
    %v5734 = vunpack.c.l.b16 %v5379
    %v5735 = vunpack.c.h.b16 %v5379
    %v5736 = vunpack.c.l.b16 %v5380
    %v5737 = vunpack.c.h.b16 %v5380
    %v5738 = vunpack.c.l.b16 %v5381
    %v5739 = vunpack.c.h.b16 %v5381
    %v5740 = vunpack.c.l.b16 %v5382
    %v5741 = vunpack.c.h.b16 %v5382
    %v5742 = vunpack.c.l.b16 %v5383
    %v5743 = vunpack.c.h.b16 %v5383
    %v5744 = vunpack.c.l.b16 %v5384
    %v5745 = vunpack.c.h.b16 %v5384
    %v5746 = vunpack.c.l.b16 %v5385
    %v5747 = vunpack.c.h.b16 %v5385
    %v5748 = vunpack.c.l.b16 %v5386
    %v5749 = vunpack.c.h.b16 %v5386
    %v5750 = vunpack.c.l.b16 %v5387
    %v5751 = vunpack.c.h.b16 %v5387
    %v5752 = vunpack.c.l.b16 %v5388
    %v5753 = vunpack.c.h.b16 %v5388
    %v5754 = vunpack.c.l.b16 %v5389
    %v5755 = vunpack.c.h.b16 %v5389
    %v5756 = vunpack.c.l.b16 %v5390
    %v5757 = vunpack.c.h.b16 %v5390
    %v5758 = vunpack.c.l.b16 %v5391
    %v5759 = vunpack.c.h.b16 %v5391
    %v5760 = vunpack.c.l.b16 %v5392
    %v5761 = vunpack.c.h.b16 %v5392
    %v5762 = vunpack.c.l.b16 %v5393
    %v5763 = vunpack.c.h.b16 %v5393
    %v5764 = vunpack.c.l.b16 %v5394
    %v5765 = vunpack.c.h.b16 %v5394
    %v5766 = vunpack.c.l.b16 %v5395
    %v5767 = vunpack.c.h.b16 %v5395
    %v5768 = vunpack.c.l.b16 %v5396
    %v5769 = vunpack.c.h.b16 %v5396
    %v5770 = vunpack.c.l.b16 %v5397
    %v5771 = vunpack.c.h.b16 %v5397
    %v5772 = vunpack.c.l.b16 %v5398
    %v5773 = vunpack.c.h.b16 %v5398
    %v5774 = vunpack.c.l.b16 %v5399
    %v5775 = vunpack.c.h.b16 %v5399
    %v5776 = vunpack.c.l.b16 %v5400
    %v5777 = vunpack.c.h.b16 %v5400
    %v5778 = vunpack.c.l.b16 %v5401
    %v5779 = vunpack.c.h.b16 %v5401
    %v5780 = vunpack.c.l.b16 %v5402
    %v5781 = vunpack.c.h.b16 %v5402
    %v5782 = vunpack.c.l.b16 %v5403
    %v5783 = vunpack.c.h.b16 %v5403
    %v5784 = vunpack.c.l.b16 %v5404
    %v5785 = vunpack.c.h.b16 %v5404
    %v5786 = vunpack.c.l.b16 %v5405
    %v5787 = vunpack.c.h.b16 %v5405
    %v5788 = vunpack.c.l.b16 %v5406
    %v5789 = vunpack.c.h.b16 %v5406
    %v5790 = vunpack.c.l.b16 %v5407
    %v5791 = vunpack.c.h.b16 %v5407
    %v5792 = vunpack.c.l.b16 %v5408
    %v5793 = vunpack.c.h.b16 %v5408
    %v5794 = vunpack.c.l.b16 %v5409
    %v5795 = vunpack.c.h.b16 %v5409
    %v5796 = vunpack.c.l.b16 %v5410
    %v5797 = vunpack.c.h.b16 %v5410
    %v5798 = vunpack.c.l.b16 %v5411
    %v5799 = vunpack.c.h.b16 %v5411
    %v5800 = vunpack.c.l.b16 %v5412
    %v5801 = vunpack.c.h.b16 %v5412
    %v5802 = vunpack.c.l.b16 %v5413
    %v5803 = vunpack.c.h.b16 %v5413
    %v5804 = vunpack.c.l.b16 %v5414
    %v5805 = vunpack.c.h.b16 %v5414
    %v5806 = vunpack.c.l.b16 %v5415
    %v5807 = vunpack.c.h.b16 %v5415
    %v5808 = vunpack.c.l.b16 %v5416
    %v5809 = vunpack.c.h.b16 %v5416
    %v5810 = vunpack.c.l.b16 %v5417
    %v5811 = vunpack.c.h.b16 %v5417
    %v5812 = vunpack.c.l.b16 %v5418
    %v5813 = vunpack.c.h.b16 %v5418
    %v5814 = vunpack.c.l.b16 %v5419
    %v5815 = vunpack.c.h.b16 %v5419
    %v5816 = vunpack.c.l.b16 %v5420
    %v5817 = vunpack.c.h.b16 %v5420
    %v5818 = vunpack.c.l.b16 %v5421
    %v5819 = vunpack.c.h.b16 %v5421
    %v5820 = vunpack.c.l.b16 %v5422
    %v5821 = vunpack.c.h.b16 %v5422
    %v5822 = vunpack.c.l.b16 %v5423
    %v5823 = vunpack.c.h.b16 %v5423
    %v5824 = vunpack.c.l.b16 %v5424
    %v5825 = vunpack.c.h.b16 %v5424
    %v5826 = vunpack.c.l.b16 %v5425
    %v5827 = vunpack.c.h.b16 %v5425
    %v5828 = vunpack.c.l.b16 %v5426
    %v5829 = vunpack.c.h.b16 %v5426
    %v5830 = vunpack.c.l.b16 %v5427
    %v5831 = vunpack.c.h.b16 %v5427
    %v5832 = vunpack.c.l.b16 %v5428
    %v5833 = vunpack.c.h.b16 %v5428
    %v5834 = vunpack.c.l.b16 %v5429
    %v5835 = vunpack.c.h.b16 %v5429
    %v5836 = vunpack.c.l.b16 %v5430
    %v5837 = vunpack.c.h.b16 %v5430
    %v5838 = vunpack.c.l.b16 %v5431
    %v5839 = vunpack.c.h.b16 %v5431
    %v5840 = vunpack.c.l.b16 %v5432
    %v5841 = vunpack.c.h.b16 %v5432
    %v5842 = vunpack.c.l.b16 %v5433
    %v5843 = vunpack.c.h.b16 %v5433
    %v5844 = vunpack.c.l.b16 %v5434
    %v5845 = vunpack.c.h.b16 %v5434
    %v5846 = vunpack.c.l.b16 %v5435
    %v5847 = vunpack.c.h.b16 %v5435
    %v5848 = vunpack.c.l.b16 %v5436
    %v5849 = vunpack.c.h.b16 %v5436
    %v5850 = vunpack.c.l.b16 %v5437
    %v5851 = vunpack.c.h.b16 %v5437
    %v5852 = vunpack.c.l.b16 %v5438
    %v5853 = vunpack.c.h.b16 %v5438
    %v5854 = vunpack.c.l.b16 %v5439
    %v5855 = vunpack.c.h.b16 %v5439
    %v5856 = vunpack.c.l.b16 %v5440
    %v5857 = vunpack.c.h.b16 %v5440
    %v5858 = vunpack.c.l.b16 %v5441
    %v5859 = vunpack.c.h.b16 %v5441
    %v5860 = vunpack.c.l.b16 %v5442
    %v5861 = vunpack.c.h.b16 %v5442
    %v5862 = vunpack.c.l.b16 %v5443
    %v5863 = vunpack.c.h.b16 %v5443
    %v5864 = vunpack.c.l.b16 %v5444
    %v5865 = vunpack.c.h.b16 %v5444
    %v5866 = vunpack.c.l.b16 %v5445
    %v5867 = vunpack.c.h.b16 %v5445
    %v5868 = vunpack.c.l.b16 %v5446
    %v5869 = vunpack.c.h.b16 %v5446
    %v5870 = vunpack.c.l.b16 %v5447
    %v5871 = vunpack.c.h.b16 %v5447
    %v5872 = vunpack.c.l.b16 %v5448
    %v5873 = vunpack.c.h.b16 %v5448
    %v5874 = vunpack.c.l.b16 %v5449
    %v5875 = vunpack.c.h.b16 %v5449
    %v5876 = vunpack.c.l.b16 %v5450
    %v5877 = vunpack.c.h.b16 %v5450
    %v5878 = vunpack.c.l.b16 %v5451
    %v5879 = vunpack.c.h.b16 %v5451
    %v5880 = vunpack.c.l.b16 %v5452
    %v5881 = vunpack.c.h.b16 %v5452
    %v5882 = vunpack.c.l.b16 %v5453
    %v5883 = vunpack.c.h.b16 %v5453
    %v5884 = vunpack.c.l.b16 %v5454
    %v5885 = vunpack.c.h.b16 %v5454
    %v5886 = vunpack.c.l.b16 %v5455
    %v5887 = vunpack.c.h.b16 %v5455
    %v5888 = vpack.c.b16 %v5602, %v5600
    %v5889 = vpack.c.b16 %v5603, %v5601
    %v5890 = vpack.c.b16 %v5606, %v5604
    %v5891 = vpack.c.b16 %v5607, %v5605
    %v5892 = vpack.c.b16 %v5610, %v5608
    %v5893 = vpack.c.b16 %v5611, %v5609
    %v5894 = vpack.c.b16 %v5614, %v5612
    %v5895 = vpack.c.b16 %v5615, %v5613
    %v5896 = vpack.c.b16 %v5618, %v5616
    %v5897 = vpack.c.b16 %v5619, %v5617
    %v5898 = vpack.c.b16 %v5622, %v5620
    %v5899 = vpack.c.b16 %v5623, %v5621
    %v5900 = vpack.c.b16 %v5626, %v5624
    %v5901 = vpack.c.b16 %v5627, %v5625
    %v5902 = vpack.c.b16 %v5630, %v5628
    %v5903 = vpack.c.b16 %v5631, %v5629
    %v5904 = vpack.c.b16 %v5634, %v5632
    %v5905 = vpack.c.b16 %v5635, %v5633
    %v5906 = vpack.c.b16 %v5638, %v5636
    %v5907 = vpack.c.b16 %v5639, %v5637
    %v5908 = vpack.c.b16 %v5642, %v5640
    %v5909 = vpack.c.b16 %v5643, %v5641
    %v5910 = vpack.c.b16 %v5646, %v5644
    %v5911 = vpack.c.b16 %v5647, %v5645
    %v5912 = vpack.c.b16 %v5650, %v5648
    %v5913 = vpack.c.b16 %v5651, %v5649
    %v5914 = vpack.c.b16 %v5654, %v5652
    %v5915 = vpack.c.b16 %v5655, %v5653
    %v5916 = vpack.c.b16 %v5658, %v5656
    %v5917 = vpack.c.b16 %v5659, %v5657
    %v5918 = vpack.c.b16 %v5662, %v5660
    %v5919 = vpack.c.b16 %v5663, %v5661
    %v5920 = vpack.c.b16 %v5666, %v5664
    %v5921 = vpack.c.b16 %v5667, %v5665
    %v5922 = vpack.c.b16 %v5670, %v5668
    %v5923 = vpack.c.b16 %v5671, %v5669
    %v5924 = vpack.c.b16 %v5674, %v5672
    %v5925 = vpack.c.b16 %v5675, %v5673
    %v5926 = vpack.c.b16 %v5678, %v5676
    %v5927 = vpack.c.b16 %v5679, %v5677
    %v5928 = vpack.c.b16 %v5682, %v5680
    %v5929 = vpack.c.b16 %v5683, %v5681
    %v5930 = vpack.c.b16 %v5686, %v5684
    %v5931 = vpack.c.b16 %v5687, %v5685
    %v5932 = vpack.c.b16 %v5690, %v5688
    %v5933 = vpack.c.b16 %v5691, %v5689
    %v5934 = vpack.c.b16 %v5694, %v5692
    %v5935 = vpack.c.b16 %v5695, %v5693
    %v5936 = vpack.c.b16 %v5698, %v5696
    %v5937 = vpack.c.b16 %v5699, %v5697
    %v5938 = vpack.c.b16 %v5702, %v5700
    %v5939 = vpack.c.b16 %v5703, %v5701
    %v5940 = vpack.c.b16 %v5706, %v5704
    %v5941 = vpack.c.b16 %v5707, %v5705
    %v5942 = vpack.c.b16 %v5710, %v5708
    %v5943 = vpack.c.b16 %v5711, %v5709
    %v5944 = vpack.c.b16 %v5714, %v5712
    %v5945 = vpack.c.b16 %v5715, %v5713
    %v5946 = vpack.c.b16 %v5718, %v5716
    %v5947 = vpack.c.b16 %v5719, %v5717
    %v5948 = vpack.c.b16 %v5722, %v5720
    %v5949 = vpack.c.b16 %v5723, %v5721
    %v5950 = vpack.c.b16 %v5726, %v5724
    %v5951 = vpack.c.b16 %v5727, %v5725
    %v5952 = vpack.c.b16 %v5730, %v5728
    %v5953 = vpack.c.b16 %v5731, %v5729
    %v5954 = vpack.c.b16 %v5734, %v5732
    %v5955 = vpack.c.b16 %v5735, %v5733
    %v5956 = vpack.c.b16 %v5738, %v5736
    %v5957 = vpack.c.b16 %v5739, %v5737
    %v5958 = vpack.c.b16 %v5742, %v5740
    %v5959 = vpack.c.b16 %v5743, %v5741
    %v5960 = vpack.c.b16 %v5746, %v5744
    %v5961 = vpack.c.b16 %v5747, %v5745
    %v5962 = vpack.c.b16 %v5750, %v5748
    %v5963 = vpack.c.b16 %v5751, %v5749
    %v5964 = vpack.c.b16 %v5754, %v5752
    %v5965 = vpack.c.b16 %v5755, %v5753
    %v5966 = vpack.c.b16 %v5758, %v5756
    %v5967 = vpack.c.b16 %v5759, %v5757
    %v5968 = vpack.c.b16 %v5762, %v5760
    %v5969 = vpack.c.b16 %v5763, %v5761
    %v5970 = vpack.c.b16 %v5766, %v5764
    %v5971 = vpack.c.b16 %v5767, %v5765
    %v5972 = vpack.c.b16 %v5770, %v5768
    %v5973 = vpack.c.b16 %v5771, %v5769
    %v5974 = vpack.c.b16 %v5774, %v5772
    %v5975 = vpack.c.b16 %v5775, %v5773
    %v5976 = vpack.c.b16 %v5778, %v5776
    %v5977 = vpack.c.b16 %v5779, %v5777
    %v5978 = vpack.c.b16 %v5782, %v5780
    %v5979 = vpack.c.b16 %v5783, %v5781
    %v5980 = vpack.c.b16 %v5786, %v5784
    %v5981 = vpack.c.b16 %v5787, %v5785
    %v5982 = vpack.c.b16 %v5790, %v5788
    %v5983 = vpack.c.b16 %v5791, %v5789
    %v5984 = vpack.c.b16 %v5794, %v5792
    %v5985 = vpack.c.b16 %v5795, %v5793
    %v5986 = vpack.c.b16 %v5798, %v5796
    %v5987 = vpack.c.b16 %v5799, %v5797
    %v5988 = vpack.c.b16 %v5802, %v5800
    %v5989 = vpack.c.b16 %v5803, %v5801
    %v5990 = vpack.c.b16 %v5806, %v5804
    %v5991 = vpack.c.b16 %v5807, %v5805
    %v5992 = vpack.c.b16 %v5810, %v5808
    %v5993 = vpack.c.b16 %v5811, %v5809
    %v5994 = vpack.c.b16 %v5814, %v5812
    %v5995 = vpack.c.b16 %v5815, %v5813
    %v5996 = vpack.c.b16 %v5818, %v5816
    %v5997 = vpack.c.b16 %v5819, %v5817
    %v5998 = vpack.c.b16 %v5822, %v5820
    %v5999 = vpack.c.b16 %v5823, %v5821
    %v6000 = vpack.c.b16 %v5826, %v5824
    %v6001 = vpack.c.b16 %v5827, %v5825
    %v6002 = vpack.c.b16 %v5830, %v5828
    %v6003 = vpack.c.b16 %v5831, %v5829
    %v6004 = vpack.c.b16 %v5834, %v5832
    %v6005 = vpack.c.b16 %v5835, %v5833
    %v6006 = vpack.c.b16 %v5838, %v5836
    %v6007 = vpack.c.b16 %v5839, %v5837
    %v6008 = vpack.c.b16 %v5842, %v5840
    %v6009 = vpack.c.b16 %v5843, %v5841
    %v6010 = vpack.c.b16 %v5846, %v5844
    %v6011 = vpack.c.b16 %v5847, %v5845
    %v6012 = vpack.c.b16 %v5850, %v5848
    %v6013 = vpack.c.b16 %v5851, %v5849
    %v6014 = vpack.c.b16 %v5854, %v5852
    %v6015 = vpack.c.b16 %v5855, %v5853
    %v6016 = vpack.c.b16 %v5858, %v5856
    %v6017 = vpack.c.b16 %v5859, %v5857
    %v6018 = vpack.c.b16 %v5862, %v5860
    %v6019 = vpack.c.b16 %v5863, %v5861
    %v6020 = vpack.c.b16 %v5866, %v5864
    %v6021 = vpack.c.b16 %v5867, %v5865
    %v6022 = vpack.c.b16 %v5870, %v5868
    %v6023 = vpack.c.b16 %v5871, %v5869
    %v6024 = vpack.c.b16 %v5874, %v5872
    %v6025 = vpack.c.b16 %v5875, %v5873
    %v6026 = vpack.c.b16 %v5878, %v5876
    %v6027 = vpack.c.b16 %v5879, %v5877
    %v6028 = vpack.c.b16 %v5882, %v5880
    %v6029 = vpack.c.b16 %v5883, %v5881
    %v6030 = vpack.c.b16 %v5886, %v5884
    %v6031 = vpack.c.b16 %v5887, %v5885
    %6176 = vmatpush.bf16.msra.mxu0 %v5902
    %6177 = vmatpush.bf16.msra.mxu0 %v5900
    %6178 = vmatpush.bf16.msra.mxu0 %v5898
    %6179 = vmatpush.bf16.msra.mxu0 %v5896
    %6180 = vmatpush.bf16.msra.mxu0 %v5894
    %6181 = vmatpush.bf16.msra.mxu0 %v5892
    %6182 = vmatpush.bf16.msra.mxu0 %v5890
    %6183 = vmatpush.bf16.msra.mxu0 %v5888
    %6184 = vmatmul.bf16.gmra.mxu0 %v316
    %v6185 = vpop.f32.mrf.mxu0
    %v6186 = vadd.f32 0.0, %v6185
    %v6187 = vpop.f32.mrf.mxu0
    %6188 = vdwg.mxu0
    %6189 = vmatpush.bf16.msra.mxu0 %v5918
    %6190 = vmatpush.bf16.msra.mxu0 %v5916
    %6191 = vmatpush.bf16.msra.mxu0 %v5914
    %6192 = vmatpush.bf16.msra.mxu0 %v5912
    %6193 = vmatpush.bf16.msra.mxu0 %v5910
    %6194 = vmatpush.bf16.msra.mxu0 %v5908
    %6195 = vmatpush.bf16.msra.mxu0 %v5906
    %6196 = vmatpush.bf16.msra.mxu0 %v5904
    %6197 = vmatmul.bf16.gmra.mxu0 %v317
    %v6198 = vpop.f32.mrf.mxu0
    %v6199 = vadd.f32 %v6186, %v6198
    %v6200 = vpop.f32.mrf.mxu0
    %6201 = vdwg.mxu0
    %6202 = vmatpush.bf16.msra.mxu0 %v5934
    %6203 = vmatpush.bf16.msra.mxu0 %v5932
    %6204 = vmatpush.bf16.msra.mxu0 %v5930
    %6205 = vmatpush.bf16.msra.mxu0 %v5928
    %6206 = vmatpush.bf16.msra.mxu0 %v5926
    %6207 = vmatpush.bf16.msra.mxu0 %v5924
    %6208 = vmatpush.bf16.msra.mxu0 %v5922
    %6209 = vmatpush.bf16.msra.mxu0 %v5920
    %6210 = vmatmul.bf16.gmra.mxu0 %v318
    %v6211 = vpop.f32.mrf.mxu0
    %v6212 = vadd.f32 %v6199, %v6211
    %v6213 = vpop.f32.mrf.mxu0
    %6214 = vdwg.mxu0
    %6215 = vmatpush.bf16.msra.mxu0 %v5950
    %6216 = vmatpush.bf16.msra.mxu0 %v5948
    %6217 = vmatpush.bf16.msra.mxu0 %v5946
    %6218 = vmatpush.bf16.msra.mxu0 %v5944
    %6219 = vmatpush.bf16.msra.mxu0 %v5942
    %6220 = vmatpush.bf16.msra.mxu0 %v5940
    %6221 = vmatpush.bf16.msra.mxu0 %v5938
    %6222 = vmatpush.bf16.msra.mxu0 %v5936
    %6223 = vmatmul.bf16.gmra.mxu0 %v319
    %v6224 = vpop.f32.mrf.mxu0
    %v6225 = vadd.f32 %v6212, %v6224
    %v6226 = vpop.f32.mrf.mxu0
    %6227 = vdwg.mxu0
    %6228 = vmatpush.bf16.msra.mxu0 %v5966
    %6229 = vmatpush.bf16.msra.mxu0 %v5964
    %6230 = vmatpush.bf16.msra.mxu0 %v5962
    %6231 = vmatpush.bf16.msra.mxu0 %v5960
    %6232 = vmatpush.bf16.msra.mxu0 %v5958
    %6233 = vmatpush.bf16.msra.mxu0 %v5956
    %6234 = vmatpush.bf16.msra.mxu0 %v5954
    %6235 = vmatpush.bf16.msra.mxu0 %v5952
    %6236 = vmatmul.bf16.gmra.mxu0 %v320
    %v6237 = vpop.f32.mrf.mxu0
    %v6238 = vadd.f32 %v6225, %v6237
    %v6239 = vpop.f32.mrf.mxu0
    %6240 = vdwg.mxu0
    %6241 = vmatpush.bf16.msra.mxu0 %v5982
    %6242 = vmatpush.bf16.msra.mxu0 %v5980
    %6243 = vmatpush.bf16.msra.mxu0 %v5978
    %6244 = vmatpush.bf16.msra.mxu0 %v5976
    %6245 = vmatpush.bf16.msra.mxu0 %v5974
    %6246 = vmatpush.bf16.msra.mxu0 %v5972
    %6247 = vmatpush.bf16.msra.mxu0 %v5970
    %6248 = vmatpush.bf16.msra.mxu0 %v5968
    %6249 = vmatmul.bf16.gmra.mxu0 %v321
    %v6250 = vpop.f32.mrf.mxu0
    %v6251 = vadd.f32 %v6238, %v6250
    %v6252 = vpop.f32.mrf.mxu0
    %6253 = vdwg.mxu0
    %6254 = vmatpush.bf16.msra.mxu0 %v5998
    %6255 = vmatpush.bf16.msra.mxu0 %v5996
    %6256 = vmatpush.bf16.msra.mxu0 %v5994
    %6257 = vmatpush.bf16.msra.mxu0 %v5992
    %6258 = vmatpush.bf16.msra.mxu0 %v5990
    %6259 = vmatpush.bf16.msra.mxu0 %v5988
    %6260 = vmatpush.bf16.msra.mxu0 %v5986
    %6261 = vmatpush.bf16.msra.mxu0 %v5984
    %6262 = vmatmul.bf16.gmra.mxu0 %v322
    %v6263 = vpop.f32.mrf.mxu0
    %v6264 = vadd.f32 %v6251, %v6263
    %v6265 = vpop.f32.mrf.mxu0
    %6266 = vdwg.mxu0
    %6267 = vmatpush.bf16.msra.mxu0 %v6014
    %6268 = vmatpush.bf16.msra.mxu0 %v6012
    %6269 = vmatpush.bf16.msra.mxu0 %v6010
    %6270 = vmatpush.bf16.msra.mxu0 %v6008
    %6271 = vmatpush.bf16.msra.mxu0 %v6006
    %6272 = vmatpush.bf16.msra.mxu0 %v6004
    %6273 = vmatpush.bf16.msra.mxu0 %v6002
    %6274 = vmatpush.bf16.msra.mxu0 %v6000
    %6275 = vmatmul.bf16.gmra.mxu0 %v323
    %v6276 = vpop.f32.mrf.mxu0
    %v6277 = vadd.f32 %v6264, %v6276
    %v6278 = vpop.f32.mrf.mxu0
    %6279 = vdwg.mxu0
    %6280 = vmatpush.bf16.msra.mxu0 %v6030
    %6281 = vmatpush.bf16.msra.mxu0 %v6028
    %6282 = vmatpush.bf16.msra.mxu0 %v6026
    %6283 = vmatpush.bf16.msra.mxu0 %v6024
    %6284 = vmatpush.bf16.msra.mxu0 %v6022
    %6285 = vmatpush.bf16.msra.mxu0 %v6020
    %6286 = vmatpush.bf16.msra.mxu0 %v6018
    %6287 = vmatpush.bf16.msra.mxu0 %v6016
    %6288 = vmatmul.bf16.gmra.mxu0 %v324
    %v6289 = vpop.f32.mrf.mxu0
    %v6290 = vadd.f32 %v6277, %v6289
    %v6291 = vpop.f32.mrf.mxu0
    %6292 = vdwg.mxu0
    %6293 = vmatpush.bf16.msra.mxu0 %v5903
    %6294 = vmatpush.bf16.msra.mxu0 %v5901
    %6295 = vmatpush.bf16.msra.mxu0 %v5899
    %6296 = vmatpush.bf16.msra.mxu0 %v5897
    %6297 = vmatpush.bf16.msra.mxu0 %v5895
    %6298 = vmatpush.bf16.msra.mxu0 %v5893
    %6299 = vmatpush.bf16.msra.mxu0 %v5891
    %6300 = vmatpush.bf16.msra.mxu0 %v5889
    %6301 = vmatmul.bf16.gmra.mxu0 %v316
    %v6302 = vpop.f32.mrf.mxu0
    %v6303 = vadd.f32 0.0, %v6302
    %v6304 = vpop.f32.mrf.mxu0
    %6305 = vdwg.mxu0
    %6306 = vmatpush.bf16.msra.mxu0 %v5919
    %6307 = vmatpush.bf16.msra.mxu0 %v5917
    %6308 = vmatpush.bf16.msra.mxu0 %v5915
    %6309 = vmatpush.bf16.msra.mxu0 %v5913
    %6310 = vmatpush.bf16.msra.mxu0 %v5911
    %6311 = vmatpush.bf16.msra.mxu0 %v5909
    %6312 = vmatpush.bf16.msra.mxu0 %v5907
    %6313 = vmatpush.bf16.msra.mxu0 %v5905
    %6314 = vmatmul.bf16.gmra.mxu0 %v317
    %v6315 = vpop.f32.mrf.mxu0
    %v6316 = vadd.f32 %v6303, %v6315
    %v6317 = vpop.f32.mrf.mxu0
    %6318 = vdwg.mxu0
    %6319 = vmatpush.bf16.msra.mxu0 %v5935
    %6320 = vmatpush.bf16.msra.mxu0 %v5933
    %6321 = vmatpush.bf16.msra.mxu0 %v5931
    %6322 = vmatpush.bf16.msra.mxu0 %v5929
    %6323 = vmatpush.bf16.msra.mxu0 %v5927
    %6324 = vmatpush.bf16.msra.mxu0 %v5925
    %6325 = vmatpush.bf16.msra.mxu0 %v5923
    %6326 = vmatpush.bf16.msra.mxu0 %v5921
    %6327 = vmatmul.bf16.gmra.mxu0 %v318
    %v6328 = vpop.f32.mrf.mxu0
    %v6329 = vadd.f32 %v6316, %v6328
    %v6330 = vpop.f32.mrf.mxu0
    %6331 = vdwg.mxu0
    %6332 = vmatpush.bf16.msra.mxu0 %v5951
    %6333 = vmatpush.bf16.msra.mxu0 %v5949
    %6334 = vmatpush.bf16.msra.mxu0 %v5947
    %6335 = vmatpush.bf16.msra.mxu0 %v5945
    %6336 = vmatpush.bf16.msra.mxu0 %v5943
    %6337 = vmatpush.bf16.msra.mxu0 %v5941
    %6338 = vmatpush.bf16.msra.mxu0 %v5939
    %6339 = vmatpush.bf16.msra.mxu0 %v5937
    %6340 = vmatmul.bf16.gmra.mxu0 %v319
    %v6341 = vpop.f32.mrf.mxu0
    %v6342 = vadd.f32 %v6329, %v6341
    %v6343 = vpop.f32.mrf.mxu0
    %6344 = vdwg.mxu0
    %6345 = vmatpush.bf16.msra.mxu0 %v5967
    %6346 = vmatpush.bf16.msra.mxu0 %v5965
    %6347 = vmatpush.bf16.msra.mxu0 %v5963
    %6348 = vmatpush.bf16.msra.mxu0 %v5961
    %6349 = vmatpush.bf16.msra.mxu0 %v5959
    %6350 = vmatpush.bf16.msra.mxu0 %v5957
    %6351 = vmatpush.bf16.msra.mxu0 %v5955
    %6352 = vmatpush.bf16.msra.mxu0 %v5953
    %6353 = vmatmul.bf16.gmra.mxu0 %v320
    %v6354 = vpop.f32.mrf.mxu0
    %v6355 = vadd.f32 %v6342, %v6354
    %v6356 = vpop.f32.mrf.mxu0
    %6357 = vdwg.mxu0
    %6358 = vmatpush.bf16.msra.mxu0 %v5983
    %6359 = vmatpush.bf16.msra.mxu0 %v5981
    %6360 = vmatpush.bf16.msra.mxu0 %v5979
    %6361 = vmatpush.bf16.msra.mxu0 %v5977
    %6362 = vmatpush.bf16.msra.mxu0 %v5975
    %6363 = vmatpush.bf16.msra.mxu0 %v5973
    %6364 = vmatpush.bf16.msra.mxu0 %v5971
    %6365 = vmatpush.bf16.msra.mxu0 %v5969
    %6366 = vmatmul.bf16.gmra.mxu0 %v321
    %v6367 = vpop.f32.mrf.mxu0
    %v6368 = vadd.f32 %v6355, %v6367
    %v6369 = vpop.f32.mrf.mxu0
    %6370 = vdwg.mxu0
    %6371 = vmatpush.bf16.msra.mxu0 %v5999
    %6372 = vmatpush.bf16.msra.mxu0 %v5997
    %6373 = vmatpush.bf16.msra.mxu0 %v5995
    %6374 = vmatpush.bf16.msra.mxu0 %v5993
    %6375 = vmatpush.bf16.msra.mxu0 %v5991
    %6376 = vmatpush.bf16.msra.mxu0 %v5989
    %6377 = vmatpush.bf16.msra.mxu0 %v5987
    %6378 = vmatpush.bf16.msra.mxu0 %v5985
    %6379 = vmatmul.bf16.gmra.mxu0 %v322
    %v6380 = vpop.f32.mrf.mxu0
    %v6381 = vadd.f32 %v6368, %v6380
    %v6382 = vpop.f32.mrf.mxu0
    %6383 = vdwg.mxu0
    %6384 = vmatpush.bf16.msra.mxu0 %v6015
    %6385 = vmatpush.bf16.msra.mxu0 %v6013
    %6386 = vmatpush.bf16.msra.mxu0 %v6011
    %6387 = vmatpush.bf16.msra.mxu0 %v6009
    %6388 = vmatpush.bf16.msra.mxu0 %v6007
    %6389 = vmatpush.bf16.msra.mxu0 %v6005
    %6390 = vmatpush.bf16.msra.mxu0 %v6003
    %6391 = vmatpush.bf16.msra.mxu0 %v6001
    %6392 = vmatmul.bf16.gmra.mxu0 %v323
    %v6393 = vpop.f32.mrf.mxu0
    %v6394 = vadd.f32 %v6381, %v6393
    %v6395 = vpop.f32.mrf.mxu0
    %6396 = vdwg.mxu0
    %6397 = vmatpush.bf16.msra.mxu0 %v6031
    %6398 = vmatpush.bf16.msra.mxu0 %v6029
    %6399 = vmatpush.bf16.msra.mxu0 %v6027
    %6400 = vmatpush.bf16.msra.mxu0 %v6025
    %6401 = vmatpush.bf16.msra.mxu0 %v6023
    %6402 = vmatpush.bf16.msra.mxu0 %v6021
    %6403 = vmatpush.bf16.msra.mxu0 %v6019
    %6404 = vmatpush.bf16.msra.mxu0 %v6017
    %6405 = vmatmul.bf16.gmra.mxu0 %v324
    %v6406 = vpop.f32.mrf.mxu0
    %v6407 = vadd.f32 %v6394, %v6406
    %v6408 = vpop.f32.mrf.mxu0
    %6409 = vdwg.mxu0
    %v6458 = vunpack.c.l.b16 %v5264
    %v6459 = vunpack.c.h.b16 %v5264
    %v6460 = vunpack.c.l.b16 %v5265
    %v6461 = vunpack.c.h.b16 %v5265
    %v6462 = vunpack.c.l.b16 %v5266
    %v6463 = vunpack.c.h.b16 %v5266
    %v6464 = vunpack.c.l.b16 %v5267
    %v6465 = vunpack.c.h.b16 %v5267
    %v6466 = vunpack.c.l.b16 %v5268
    %v6467 = vunpack.c.h.b16 %v5268
    %v6468 = vunpack.c.l.b16 %v5269
    %v6469 = vunpack.c.h.b16 %v5269
    %v6470 = vunpack.c.l.b16 %v5270
    %v6471 = vunpack.c.h.b16 %v5270
    %v6472 = vunpack.c.l.b16 %v5271
    %v6473 = vunpack.c.h.b16 %v5271
    %v6474 = vunpack.c.l.b16 %v5272
    %v6475 = vunpack.c.h.b16 %v5272
    %v6476 = vunpack.c.l.b16 %v5273
    %v6477 = vunpack.c.h.b16 %v5273
    %v6478 = vunpack.c.l.b16 %v5274
    %v6479 = vunpack.c.h.b16 %v5274
    %v6480 = vunpack.c.l.b16 %v5275
    %v6481 = vunpack.c.h.b16 %v5275
    %v6482 = vunpack.c.l.b16 %v5276
    %v6483 = vunpack.c.h.b16 %v5276
    %v6484 = vunpack.c.l.b16 %v5277
    %v6485 = vunpack.c.h.b16 %v5277
    %v6486 = vunpack.c.l.b16 %v5278
    %v6487 = vunpack.c.h.b16 %v5278
    %v6488 = vunpack.c.l.b16 %v5279
    %v6489 = vunpack.c.h.b16 %v5279
    %v6490 = vunpack.c.l.b16 %v5280
    %v6491 = vunpack.c.h.b16 %v5280
    %v6492 = vunpack.c.l.b16 %v5281
    %v6493 = vunpack.c.h.b16 %v5281
    %v6494 = vunpack.c.l.b16 %v5282
    %v6495 = vunpack.c.h.b16 %v5282
    %v6496 = vunpack.c.l.b16 %v5283
    %v6497 = vunpack.c.h.b16 %v5283
    %v6498 = vunpack.c.l.b16 %v5284
    %v6499 = vunpack.c.h.b16 %v5284
    %v6500 = vunpack.c.l.b16 %v5285
    %v6501 = vunpack.c.h.b16 %v5285
    %v6502 = vunpack.c.l.b16 %v5286
    %v6503 = vunpack.c.h.b16 %v5286
    %v6504 = vunpack.c.l.b16 %v5287
    %v6505 = vunpack.c.h.b16 %v5287
    %v6506 = vunpack.c.l.b16 %v5288
    %v6507 = vunpack.c.h.b16 %v5288
    %v6508 = vunpack.c.l.b16 %v5289
    %v6509 = vunpack.c.h.b16 %v5289
    %v6510 = vunpack.c.l.b16 %v5290
    %v6511 = vunpack.c.h.b16 %v5290
    %v6512 = vunpack.c.l.b16 %v5291
    %v6513 = vunpack.c.h.b16 %v5291
    %v6514 = vunpack.c.l.b16 %v5292
    %v6515 = vunpack.c.h.b16 %v5292
    %v6516 = vunpack.c.l.b16 %v5293
    %v6517 = vunpack.c.h.b16 %v5293
    %v6518 = vunpack.c.l.b16 %v5294
    %v6519 = vunpack.c.h.b16 %v5294
    %v6520 = vunpack.c.l.b16 %v5295
    %v6521 = vunpack.c.h.b16 %v5295
    %v6522 = vunpack.c.l.b16 %v5296
    %v6523 = vunpack.c.h.b16 %v5296
    %v6524 = vunpack.c.l.b16 %v5297
    %v6525 = vunpack.c.h.b16 %v5297
    %v6526 = vunpack.c.l.b16 %v5298
    %v6527 = vunpack.c.h.b16 %v5298
    %v6528 = vunpack.c.l.b16 %v5299
    %v6529 = vunpack.c.h.b16 %v5299
    %v6530 = vunpack.c.l.b16 %v5300
    %v6531 = vunpack.c.h.b16 %v5300
    %v6532 = vunpack.c.l.b16 %v5301
    %v6533 = vunpack.c.h.b16 %v5301
    %v6534 = vunpack.c.l.b16 %v5302
    %v6535 = vunpack.c.h.b16 %v5302
    %v6536 = vunpack.c.l.b16 %v5303
    %v6537 = vunpack.c.h.b16 %v5303
    %v6538 = vunpack.c.l.b16 %v5304
    %v6539 = vunpack.c.h.b16 %v5304
    %v6540 = vunpack.c.l.b16 %v5305
    %v6541 = vunpack.c.h.b16 %v5305
    %v6542 = vunpack.c.l.b16 %v5306
    %v6543 = vunpack.c.h.b16 %v5306
    %v6544 = vunpack.c.l.b16 %v5307
    %v6545 = vunpack.c.h.b16 %v5307
    %v6546 = vunpack.c.l.b16 %v5308
    %v6547 = vunpack.c.h.b16 %v5308
    %v6548 = vunpack.c.l.b16 %v5309
    %v6549 = vunpack.c.h.b16 %v5309
    %v6550 = vunpack.c.l.b16 %v5310
    %v6551 = vunpack.c.h.b16 %v5310
    %v6552 = vunpack.c.l.b16 %v5311
    %v6553 = vunpack.c.h.b16 %v5311
    %v6554 = vpack.c.b16 %v6460, %v6458
    %v6555 = vpack.c.b16 %v6461, %v6459
    %v6556 = vpack.c.b16 %v6464, %v6462
    %v6557 = vpack.c.b16 %v6465, %v6463
    %v6558 = vpack.c.b16 %v6468, %v6466
    %v6559 = vpack.c.b16 %v6469, %v6467
    %v6560 = vpack.c.b16 %v6472, %v6470
    %v6561 = vpack.c.b16 %v6473, %v6471
    %v6562 = vpack.c.b16 %v6476, %v6474
    %v6563 = vpack.c.b16 %v6477, %v6475
    %v6564 = vpack.c.b16 %v6480, %v6478
    %v6565 = vpack.c.b16 %v6481, %v6479
    %v6566 = vpack.c.b16 %v6484, %v6482
    %v6567 = vpack.c.b16 %v6485, %v6483
    %v6568 = vpack.c.b16 %v6488, %v6486
    %v6569 = vpack.c.b16 %v6489, %v6487
    %v6570 = vpack.c.b16 %v6492, %v6490
    %v6571 = vpack.c.b16 %v6493, %v6491
    %v6572 = vpack.c.b16 %v6496, %v6494
    %v6573 = vpack.c.b16 %v6497, %v6495
    %v6574 = vpack.c.b16 %v6500, %v6498
    %v6575 = vpack.c.b16 %v6501, %v6499
    %v6576 = vpack.c.b16 %v6504, %v6502
    %v6577 = vpack.c.b16 %v6505, %v6503
    %v6578 = vpack.c.b16 %v6508, %v6506
    %v6579 = vpack.c.b16 %v6509, %v6507
    %v6580 = vpack.c.b16 %v6512, %v6510
    %v6581 = vpack.c.b16 %v6513, %v6511
    %v6582 = vpack.c.b16 %v6516, %v6514
    %v6583 = vpack.c.b16 %v6517, %v6515
    %v6584 = vpack.c.b16 %v6520, %v6518
    %v6585 = vpack.c.b16 %v6521, %v6519
    %v6586 = vpack.c.b16 %v6524, %v6522
    %v6587 = vpack.c.b16 %v6525, %v6523
    %v6588 = vpack.c.b16 %v6528, %v6526
    %v6589 = vpack.c.b16 %v6529, %v6527
    %v6590 = vpack.c.b16 %v6532, %v6530
    %v6591 = vpack.c.b16 %v6533, %v6531
    %v6592 = vpack.c.b16 %v6536, %v6534
    %v6593 = vpack.c.b16 %v6537, %v6535
    %v6594 = vpack.c.b16 %v6540, %v6538
    %v6595 = vpack.c.b16 %v6541, %v6539
    %v6596 = vpack.c.b16 %v6544, %v6542
    %v6597 = vpack.c.b16 %v6545, %v6543
    %v6598 = vpack.c.b16 %v6548, %v6546
    %v6599 = vpack.c.b16 %v6549, %v6547
    %v6600 = vpack.c.b16 %v6552, %v6550
    %v6601 = vpack.c.b16 %v6553, %v6551
    %6650 = vmatpush.bf16.msra.mxu0 %v6568
    %6651 = vmatpush.bf16.msra.mxu0 %v6566
    %6652 = vmatpush.bf16.msra.mxu0 %v6564
    %6653 = vmatpush.bf16.msra.mxu0 %v6562
    %6654 = vmatpush.bf16.msra.mxu0 %v6560
    %6655 = vmatpush.bf16.msra.mxu0 %v6558
    %6656 = vmatpush.bf16.msra.mxu0 %v6556
    %6657 = vmatpush.bf16.msra.mxu0 %v6554
    %6658 = vmatmul.bf16.gmra.mxu0 %v285
    %v6659 = vpop.f32.mrf.mxu0
    %v6660 = vadd.f32 %v6290, %v6659
    %v6661 = vpop.f32.mrf.mxu0
    %6662 = vdwg.mxu0
    %6663 = vmatpush.bf16.msra.mxu0 %v6584
    %6664 = vmatpush.bf16.msra.mxu0 %v6582
    %6665 = vmatpush.bf16.msra.mxu0 %v6580
    %6666 = vmatpush.bf16.msra.mxu0 %v6578
    %6667 = vmatpush.bf16.msra.mxu0 %v6576
    %6668 = vmatpush.bf16.msra.mxu0 %v6574
    %6669 = vmatpush.bf16.msra.mxu0 %v6572
    %6670 = vmatpush.bf16.msra.mxu0 %v6570
    %6671 = vmatmul.bf16.gmra.mxu0 %v286
    %v6672 = vpop.f32.mrf.mxu0
    %v6673 = vadd.f32 %v6660, %v6672
    %v6674 = vpop.f32.mrf.mxu0
    %6675 = vdwg.mxu0
    %6676 = vmatpush.bf16.msra.mxu0 %v6600
    %6677 = vmatpush.bf16.msra.mxu0 %v6598
    %6678 = vmatpush.bf16.msra.mxu0 %v6596
    %6679 = vmatpush.bf16.msra.mxu0 %v6594
    %6680 = vmatpush.bf16.msra.mxu0 %v6592
    %6681 = vmatpush.bf16.msra.mxu0 %v6590
    %6682 = vmatpush.bf16.msra.mxu0 %v6588
    %6683 = vmatpush.bf16.msra.mxu0 %v6586
    %6684 = vmatmul.bf16.gmra.mxu0 %v287
    %v6685 = vpop.f32.mrf.mxu0
    %v6686 = vadd.f32 %v6673, %v6685
    %v6687 = vpop.f32.mrf.mxu0
    %6688 = vdwg.mxu0
    %6689 = vmatpush.bf16.msra.mxu0 %v6569
    %6690 = vmatpush.bf16.msra.mxu0 %v6567
    %6691 = vmatpush.bf16.msra.mxu0 %v6565
    %6692 = vmatpush.bf16.msra.mxu0 %v6563
    %6693 = vmatpush.bf16.msra.mxu0 %v6561
    %6694 = vmatpush.bf16.msra.mxu0 %v6559
    %6695 = vmatpush.bf16.msra.mxu0 %v6557
    %6696 = vmatpush.bf16.msra.mxu0 %v6555
    %6697 = vmatmul.bf16.gmra.mxu0 %v285
    %v6698 = vpop.f32.mrf.mxu0
    %v6699 = vadd.f32 %v6407, %v6698
    %v6700 = vpop.f32.mrf.mxu0
    %6701 = vdwg.mxu0
    %6702 = vmatpush.bf16.msra.mxu0 %v6585
    %6703 = vmatpush.bf16.msra.mxu0 %v6583
    %6704 = vmatpush.bf16.msra.mxu0 %v6581
    %6705 = vmatpush.bf16.msra.mxu0 %v6579
    %6706 = vmatpush.bf16.msra.mxu0 %v6577
    %6707 = vmatpush.bf16.msra.mxu0 %v6575
    %6708 = vmatpush.bf16.msra.mxu0 %v6573
    %6709 = vmatpush.bf16.msra.mxu0 %v6571
    %6710 = vmatmul.bf16.gmra.mxu0 %v286
    %v6711 = vpop.f32.mrf.mxu0
    %v6712 = vadd.f32 %v6699, %v6711
    %v6713 = vpop.f32.mrf.mxu0
    %6714 = vdwg.mxu0
    %6715 = vmatpush.bf16.msra.mxu0 %v6601
    %6716 = vmatpush.bf16.msra.mxu0 %v6599
    %6717 = vmatpush.bf16.msra.mxu0 %v6597
    %6718 = vmatpush.bf16.msra.mxu0 %v6595
    %6719 = vmatpush.bf16.msra.mxu0 %v6593
    %6720 = vmatpush.bf16.msra.mxu0 %v6591
    %6721 = vmatpush.bf16.msra.mxu0 %v6589
    %6722 = vmatpush.bf16.msra.mxu0 %v6587
    %6723 = vmatmul.bf16.gmra.mxu0 %v287
    %v6724 = vpop.f32.mrf.mxu0
    %v6725 = vadd.f32 %v6712, %v6724
    %v6726 = vpop.f32.mrf.mxu0
    %6727 = vdwg.mxu0
    %v6728 = vld [vmem:[#allocation13 + $0x4] sm:$0x3]
    %v6730 = vperm.slane %v6728, 0
    %v6731 = vperm.slane %v6728, 1
    %v6734 = vadd.f32 %v6686, %v6730
    %v6735 = vadd.f32 %v6725, %v6731
    %v6736 = vmax.f32 %v6734, 0.0
    %v6737 = vmax.f32 %v6735, 0.0
    %v6738 = vpack.c.bf16 %v6737, %v6736
    %v6739 = vld [vmem:[#allocation8 + $0x1a00] sm:$0xff]
    %v6740 = vld [vmem:[#allocation8 + $0x1a08] sm:$0xff]
    %v6741 = vld [vmem:[#allocation8 + $0x1a10] sm:$0xff]
    %v6742 = vld [vmem:[#allocation8 + $0x1a18] sm:$0xff]
    %v6743 = vld [vmem:[#allocation8 + $0x1a20] sm:$0xff]
    %v6744 = vld [vmem:[#allocation8 + $0x1a28] sm:$0xff]
    %v6745 = vld [vmem:[#allocation8 + $0x1a30] sm:$0xff]
    %v6746 = vld [vmem:[#allocation8 + $0x1a38] sm:$0xff]
    %v6747 = vld [vmem:[#allocation8 + $0x1a40] sm:$0xff]
    %v6748 = vld [vmem:[#allocation8 + $0x1a48] sm:$0xff]
    %v6749 = vld [vmem:[#allocation8 + $0x1a50] sm:$0xff]
    %v6750 = vld [vmem:[#allocation8 + $0x1a58] sm:$0xff]
    %v6751 = vld [vmem:[#allocation8 + $0x1a60] sm:$0xff]
    %v6752 = vld [vmem:[#allocation8 + $0x1a68] sm:$0xff]
    %v6753 = vld [vmem:[#allocation8 + $0x1a70] sm:$0xff]
    %v6754 = vld [vmem:[#allocation8 + $0x1a78] sm:$0xff]
    %v6755 = vld [vmem:[#allocation8 + $0x1a80] sm:$0xff]
    %v6756 = vld [vmem:[#allocation8 + $0x1a88] sm:$0xff]
    %v6757 = vld [vmem:[#allocation8 + $0x1a90] sm:$0xff]
    %v6758 = vld [vmem:[#allocation8 + $0x1a98] sm:$0xff]
    %v6759 = vld [vmem:[#allocation8 + $0x1aa0] sm:$0xff]
    %v6760 = vld [vmem:[#allocation8 + $0x1aa8] sm:$0xff]
    %v6761 = vld [vmem:[#allocation8 + $0x1ab0] sm:$0xff]
    %v6762 = vld [vmem:[#allocation8 + $0x1ab8] sm:$0xff]
    %v6763 = vld [vmem:[#allocation8 + $0x1ac0] sm:$0xff]
    %v6764 = vld [vmem:[#allocation8 + $0x1ac8] sm:$0xff]
    %v6765 = vld [vmem:[#allocation8 + $0x1ad0] sm:$0xff]
    %v6766 = vld [vmem:[#allocation8 + $0x1ad8] sm:$0xff]
    %v6767 = vld [vmem:[#allocation8 + $0x1ae0] sm:$0xff]
    %v6768 = vld [vmem:[#allocation8 + $0x1ae8] sm:$0xff]
    %v6769 = vld [vmem:[#allocation8 + $0x1af0] sm:$0xff]
    %v6770 = vld [vmem:[#allocation8 + $0x1af8] sm:$0xff]
    %v6771 = vld [vmem:[#allocation13 + $0xa] sm:$0x3]
    %v6773 = vperm.slane %v6771, 0
    %v6774 = vperm.slane %v6771, 1
    %v6778 = vunpack.c.l.b16 %v6738
    %v6779 = vunpack.c.h.b16 %v6738
    %v6780 = vpack.c.b16 %v6778, %v6778
    %v6781 = vpack.c.b16 %v6779, %v6779
    %v6816 = vunpack.c.l.b16 %v6739
    %v6817 = vunpack.c.h.b16 %v6739
    %v6818 = vunpack.c.l.b16 %v6740
    %v6819 = vunpack.c.h.b16 %v6740
    %v6820 = vunpack.c.l.b16 %v6741
    %v6821 = vunpack.c.h.b16 %v6741
    %v6822 = vunpack.c.l.b16 %v6742
    %v6823 = vunpack.c.h.b16 %v6742
    %v6824 = vunpack.c.l.b16 %v6743
    %v6825 = vunpack.c.h.b16 %v6743
    %v6826 = vunpack.c.l.b16 %v6744
    %v6827 = vunpack.c.h.b16 %v6744
    %v6828 = vunpack.c.l.b16 %v6745
    %v6829 = vunpack.c.h.b16 %v6745
    %v6830 = vunpack.c.l.b16 %v6746
    %v6831 = vunpack.c.h.b16 %v6746
    %v6832 = vunpack.c.l.b16 %v6747
    %v6833 = vunpack.c.h.b16 %v6747
    %v6834 = vunpack.c.l.b16 %v6748
    %v6835 = vunpack.c.h.b16 %v6748
    %v6836 = vunpack.c.l.b16 %v6749
    %v6837 = vunpack.c.h.b16 %v6749
    %v6838 = vunpack.c.l.b16 %v6750
    %v6839 = vunpack.c.h.b16 %v6750
    %v6840 = vunpack.c.l.b16 %v6751
    %v6841 = vunpack.c.h.b16 %v6751
    %v6842 = vunpack.c.l.b16 %v6752
    %v6843 = vunpack.c.h.b16 %v6752
    %v6844 = vunpack.c.l.b16 %v6753
    %v6845 = vunpack.c.h.b16 %v6753
    %v6846 = vunpack.c.l.b16 %v6754
    %v6847 = vunpack.c.h.b16 %v6754
    %v6848 = vunpack.c.l.b16 %v6755
    %v6849 = vunpack.c.h.b16 %v6755
    %v6850 = vunpack.c.l.b16 %v6756
    %v6851 = vunpack.c.h.b16 %v6756
    %v6852 = vunpack.c.l.b16 %v6757
    %v6853 = vunpack.c.h.b16 %v6757
    %v6854 = vunpack.c.l.b16 %v6758
    %v6855 = vunpack.c.h.b16 %v6758
    %v6856 = vunpack.c.l.b16 %v6759
    %v6857 = vunpack.c.h.b16 %v6759
    %v6858 = vunpack.c.l.b16 %v6760
    %v6859 = vunpack.c.h.b16 %v6760
    %v6860 = vunpack.c.l.b16 %v6761
    %v6861 = vunpack.c.h.b16 %v6761
    %v6862 = vunpack.c.l.b16 %v6762
    %v6863 = vunpack.c.h.b16 %v6762
    %v6864 = vunpack.c.l.b16 %v6763
    %v6865 = vunpack.c.h.b16 %v6763
    %v6866 = vunpack.c.l.b16 %v6764
    %v6867 = vunpack.c.h.b16 %v6764
    %v6868 = vunpack.c.l.b16 %v6765
    %v6869 = vunpack.c.h.b16 %v6765
    %v6870 = vunpack.c.l.b16 %v6766
    %v6871 = vunpack.c.h.b16 %v6766
    %v6872 = vunpack.c.l.b16 %v6767
    %v6873 = vunpack.c.h.b16 %v6767
    %v6874 = vunpack.c.l.b16 %v6768
    %v6875 = vunpack.c.h.b16 %v6768
    %v6876 = vunpack.c.l.b16 %v6769
    %v6877 = vunpack.c.h.b16 %v6769
    %v6878 = vunpack.c.l.b16 %v6770
    %v6879 = vunpack.c.h.b16 %v6770
    %v6880 = vpack.c.b16 %v6818, %v6816
    %v6881 = vpack.c.b16 %v6819, %v6817
    %v6882 = vpack.c.b16 %v6822, %v6820
    %v6883 = vpack.c.b16 %v6823, %v6821
    %v6884 = vpack.c.b16 %v6826, %v6824
    %v6885 = vpack.c.b16 %v6827, %v6825
    %v6886 = vpack.c.b16 %v6830, %v6828
    %v6887 = vpack.c.b16 %v6831, %v6829
    %v6888 = vpack.c.b16 %v6834, %v6832
    %v6889 = vpack.c.b16 %v6835, %v6833
    %v6890 = vpack.c.b16 %v6838, %v6836
    %v6891 = vpack.c.b16 %v6839, %v6837
    %v6892 = vpack.c.b16 %v6842, %v6840
    %v6893 = vpack.c.b16 %v6843, %v6841
    %v6894 = vpack.c.b16 %v6846, %v6844
    %v6895 = vpack.c.b16 %v6847, %v6845
    %v6896 = vpack.c.b16 %v6850, %v6848
    %v6897 = vpack.c.b16 %v6851, %v6849
    %v6898 = vpack.c.b16 %v6854, %v6852
    %v6899 = vpack.c.b16 %v6855, %v6853
    %v6900 = vpack.c.b16 %v6858, %v6856
    %v6901 = vpack.c.b16 %v6859, %v6857
    %v6902 = vpack.c.b16 %v6862, %v6860
    %v6903 = vpack.c.b16 %v6863, %v6861
    %v6904 = vpack.c.b16 %v6866, %v6864
    %v6905 = vpack.c.b16 %v6867, %v6865
    %v6906 = vpack.c.b16 %v6870, %v6868
    %v6907 = vpack.c.b16 %v6871, %v6869
    %v6908 = vpack.c.b16 %v6874, %v6872
    %v6909 = vpack.c.b16 %v6875, %v6873
    %v6910 = vpack.c.b16 %v6878, %v6876
    %v6911 = vpack.c.b16 %v6879, %v6877
    %6944 = vmatpush.bf16.msra.mxu0 %v6894
    %6945 = vmatpush.bf16.msra.mxu0 %v6892
    %6946 = vmatpush.bf16.msra.mxu0 %v6890
    %6947 = vmatpush.bf16.msra.mxu0 %v6888
    %6948 = vmatpush.bf16.msra.mxu0 %v6886
    %6949 = vmatpush.bf16.msra.mxu0 %v6884
    %6950 = vmatpush.bf16.msra.mxu0 %v6882
    %6951 = vmatpush.bf16.msra.mxu0 %v6880
    %6952 = vmatmul.bf16.gmra.mxu0 %v6780
    %v6953 = vpop.f32.mrf.mxu0
    %v6954 = vadd.f32 %v6773, %v6953
    %v6955 = vpop.f32.mrf.mxu0
    %6956 = vdwg.mxu0
    %6957 = vmatpush.bf16.msra.mxu0 %v6910
    %6958 = vmatpush.bf16.msra.mxu0 %v6908
    %6959 = vmatpush.bf16.msra.mxu0 %v6906
    %6960 = vmatpush.bf16.msra.mxu0 %v6904
    %6961 = vmatpush.bf16.msra.mxu0 %v6902
    %6962 = vmatpush.bf16.msra.mxu0 %v6900
    %6963 = vmatpush.bf16.msra.mxu0 %v6898
    %6964 = vmatpush.bf16.msra.mxu0 %v6896
    %6965 = vmatmul.bf16.gmra.mxu0 %v6781
    %v6966 = vpop.f32.mrf.mxu0
    %v6967 = vadd.f32 %v6954, %v6966
    %v6968 = vpop.f32.mrf.mxu0
    %6969 = vdwg.mxu0
    %6970 = vmatpush.bf16.msra.mxu0 %v6895
    %6971 = vmatpush.bf16.msra.mxu0 %v6893
    %6972 = vmatpush.bf16.msra.mxu0 %v6891
    %6973 = vmatpush.bf16.msra.mxu0 %v6889
    %6974 = vmatpush.bf16.msra.mxu0 %v6887
    %6975 = vmatpush.bf16.msra.mxu0 %v6885
    %6976 = vmatpush.bf16.msra.mxu0 %v6883
    %6977 = vmatpush.bf16.msra.mxu0 %v6881
    %6978 = vmatmul.bf16.gmra.mxu0 %v6780
    %v6979 = vpop.f32.mrf.mxu0
    %v6980 = vadd.f32 %v6774, %v6979
    %v6981 = vpop.f32.mrf.mxu0
    %6982 = vdwg.mxu0
    %6983 = vmatpush.bf16.msra.mxu0 %v6911
    %6984 = vmatpush.bf16.msra.mxu0 %v6909
    %6985 = vmatpush.bf16.msra.mxu0 %v6907
    %6986 = vmatpush.bf16.msra.mxu0 %v6905
    %6987 = vmatpush.bf16.msra.mxu0 %v6903
    %6988 = vmatpush.bf16.msra.mxu0 %v6901
    %6989 = vmatpush.bf16.msra.mxu0 %v6899
    %6990 = vmatpush.bf16.msra.mxu0 %v6897
    %6991 = vmatmul.bf16.gmra.mxu0 %v6781
    %v6992 = vpop.f32.mrf.mxu0
    %v6993 = vadd.f32 %v6980, %v6992
    %v6994 = vpop.f32.mrf.mxu0
    %6995 = vdwg.mxu0
    %v6996 = vld [vmem:[#allocation10] sm:$0xff]
    %v6997 = vld [vmem:[#allocation10 + $0x8] sm:$0xff]
    %v6998 = vld [vmem:[#allocation10 + $0x10] sm:$0xff]
    %v6999 = vld [vmem:[#allocation10 + $0x18] sm:$0xff]
    %v7000 = vld [vmem:[#allocation10 + $0x20] sm:$0xff]
    %v7001 = vld [vmem:[#allocation10 + $0x28] sm:$0xff]
    %v7002 = vld [vmem:[#allocation10 + $0x30] sm:$0xff]
    %v7003 = vld [vmem:[#allocation10 + $0x38] sm:$0xff]
    %v7004 = vld [vmem:[#allocation10 + $0x40] sm:$0xff]
    %v7005 = vld [vmem:[#allocation10 + $0x48] sm:$0xff]
    %v7006 = vld [vmem:[#allocation10 + $0x50] sm:$0xff]
    %v7007 = vld [vmem:[#allocation10 + $0x58] sm:$0xff]
    %v7008 = vld [vmem:[#allocation10 + $0x60] sm:$0xff]
    %v7009 = vld [vmem:[#allocation10 + $0x68] sm:$0xff]
    %v7010 = vld [vmem:[#allocation10 + $0x70] sm:$0xff]
    %v7011 = vld [vmem:[#allocation10 + $0x78] sm:$0xff]
    %v7012 = vld [vmem:[#allocation10 + $0x80] sm:$0xff]
    %v7013 = vld [vmem:[#allocation10 + $0x88] sm:$0xff]
    %v7014 = vld [vmem:[#allocation10 + $0x90] sm:$0xff]
    %v7015 = vld [vmem:[#allocation10 + $0x98] sm:$0xff]
    %v7016 = vld [vmem:[#allocation10 + $0xa0] sm:$0xff]
    %v7017 = vld [vmem:[#allocation10 + $0xa8] sm:$0xff]
    %v7018 = vld [vmem:[#allocation10 + $0xb0] sm:$0xff]
    %v7019 = vld [vmem:[#allocation10 + $0xb8] sm:$0xff]
    %v7020 = vld [vmem:[#allocation10 + $0xc0] sm:$0xff]
    %v7021 = vld [vmem:[#allocation10 + $0xc8] sm:$0xff]
    %v7022 = vld [vmem:[#allocation10 + $0xd0] sm:$0xff]
    %v7023 = vld [vmem:[#allocation10 + $0xd8] sm:$0xff]
    %v7024 = vld [vmem:[#allocation10 + $0xe0] sm:$0xff]
    %v7025 = vld [vmem:[#allocation10 + $0xe8] sm:$0xff]
    %v7026 = vld [vmem:[#allocation10 + $0xf0] sm:$0xff]
    %v7027 = vld [vmem:[#allocation10 + $0xf8] sm:$0xff]
    %v7028 = vld [vmem:[#allocation10 + $0x100] sm:$0xff]
    %v7029 = vld [vmem:[#allocation10 + $0x108] sm:$0xff]
    %v7030 = vld [vmem:[#allocation10 + $0x110] sm:$0xff]
    %v7031 = vld [vmem:[#allocation10 + $0x118] sm:$0xff]
    %v7032 = vld [vmem:[#allocation10 + $0x120] sm:$0xff]
    %v7033 = vld [vmem:[#allocation10 + $0x128] sm:$0xff]
    %v7034 = vld [vmem:[#allocation10 + $0x130] sm:$0xff]
    %v7035 = vld [vmem:[#allocation10 + $0x138] sm:$0xff]
    %v7036 = vld [vmem:[#allocation10 + $0x140] sm:$0xff]
    %v7037 = vld [vmem:[#allocation10 + $0x148] sm:$0xff]
    %v7038 = vld [vmem:[#allocation10 + $0x150] sm:$0xff]
    %v7039 = vld [vmem:[#allocation10 + $0x158] sm:$0xff]
    %v7040 = vld [vmem:[#allocation10 + $0x160] sm:$0xff]
    %v7041 = vld [vmem:[#allocation10 + $0x168] sm:$0xff]
    %v7042 = vld [vmem:[#allocation10 + $0x170] sm:$0xff]
    %v7043 = vld [vmem:[#allocation10 + $0x178] sm:$0xff]
    %v7044 = vld [vmem:[#allocation10 + $0x180] sm:$0xff]
    %v7045 = vld [vmem:[#allocation10 + $0x188] sm:$0xff]
    %v7046 = vld [vmem:[#allocation10 + $0x190] sm:$0xff]
    %v7047 = vld [vmem:[#allocation10 + $0x198] sm:$0xff]
    %v7048 = vld [vmem:[#allocation10 + $0x1a0] sm:$0xff]
    %v7049 = vld [vmem:[#allocation10 + $0x1a8] sm:$0xff]
    %v7050 = vld [vmem:[#allocation10 + $0x1b0] sm:$0xff]
    %v7051 = vld [vmem:[#allocation10 + $0x1b8] sm:$0xff]
    %v7052 = vld [vmem:[#allocation10 + $0x1c0] sm:$0xff]
    %v7053 = vld [vmem:[#allocation10 + $0x1c8] sm:$0xff]
    %v7054 = vld [vmem:[#allocation10 + $0x1d0] sm:$0xff]
    %v7055 = vld [vmem:[#allocation10 + $0x1d8] sm:$0xff]
    %v7056 = vld [vmem:[#allocation10 + $0x1e0] sm:$0xff]
    %v7057 = vld [vmem:[#allocation10 + $0x1e8] sm:$0xff]
    %v7058 = vld [vmem:[#allocation10 + $0x1f0] sm:$0xff]
    %v7059 = vld [vmem:[#allocation10 + $0x1f8] sm:$0xff]
    %v7060 = vld [vmem:[#allocation10 + $0x200] sm:$0xff]
    %v7061 = vld [vmem:[#allocation10 + $0x208] sm:$0xff]
    %v7062 = vld [vmem:[#allocation10 + $0x210] sm:$0xff]
    %v7063 = vld [vmem:[#allocation10 + $0x218] sm:$0xff]
    %v7064 = vld [vmem:[#allocation10 + $0x220] sm:$0xff]
    %v7065 = vld [vmem:[#allocation10 + $0x228] sm:$0xff]
    %v7066 = vld [vmem:[#allocation10 + $0x230] sm:$0xff]
    %v7067 = vld [vmem:[#allocation10 + $0x238] sm:$0xff]
    %v7068 = vld [vmem:[#allocation10 + $0x240] sm:$0xff]
    %v7069 = vld [vmem:[#allocation10 + $0x248] sm:$0xff]
    %v7070 = vld [vmem:[#allocation10 + $0x250] sm:$0xff]
    %v7071 = vld [vmem:[#allocation10 + $0x258] sm:$0xff]
    %v7072 = vld [vmem:[#allocation10 + $0x260] sm:$0xff]
    %v7073 = vld [vmem:[#allocation10 + $0x268] sm:$0xff]
    %v7074 = vld [vmem:[#allocation10 + $0x270] sm:$0xff]
    %v7075 = vld [vmem:[#allocation10 + $0x278] sm:$0xff]
    %v7076 = vld [vmem:[#allocation10 + $0x280] sm:$0xff]
    %v7077 = vld [vmem:[#allocation10 + $0x288] sm:$0xff]
    %v7078 = vld [vmem:[#allocation10 + $0x290] sm:$0xff]
    %v7079 = vld [vmem:[#allocation10 + $0x298] sm:$0xff]
    %v7080 = vld [vmem:[#allocation10 + $0x2a0] sm:$0xff]
    %v7081 = vld [vmem:[#allocation10 + $0x2a8] sm:$0xff]
    %v7082 = vld [vmem:[#allocation10 + $0x2b0] sm:$0xff]
    %v7083 = vld [vmem:[#allocation10 + $0x2b8] sm:$0xff]
    %v7084 = vld [vmem:[#allocation10 + $0x2c0] sm:$0xff]
    %v7085 = vld [vmem:[#allocation10 + $0x2c8] sm:$0xff]
    %v7086 = vld [vmem:[#allocation10 + $0x2d0] sm:$0xff]
    %v7087 = vld [vmem:[#allocation10 + $0x2d8] sm:$0xff]
    %v7088 = vld [vmem:[#allocation10 + $0x2e0] sm:$0xff]
    %v7089 = vld [vmem:[#allocation10 + $0x2e8] sm:$0xff]
    %v7090 = vld [vmem:[#allocation10 + $0x2f0] sm:$0xff]
    %v7091 = vld [vmem:[#allocation10 + $0x2f8] sm:$0xff]
    %v7092 = vld [vmem:[#allocation10 + $0x300] sm:$0xff]
    %v7093 = vld [vmem:[#allocation10 + $0x308] sm:$0xff]
    %v7094 = vld [vmem:[#allocation10 + $0x310] sm:$0xff]
    %v7095 = vld [vmem:[#allocation10 + $0x318] sm:$0xff]
    %v7096 = vld [vmem:[#allocation10 + $0x320] sm:$0xff]
    %v7097 = vld [vmem:[#allocation10 + $0x328] sm:$0xff]
    %v7098 = vld [vmem:[#allocation10 + $0x330] sm:$0xff]
    %v7099 = vld [vmem:[#allocation10 + $0x338] sm:$0xff]
    %v7100 = vld [vmem:[#allocation10 + $0x340] sm:$0xff]
    %v7101 = vld [vmem:[#allocation10 + $0x348] sm:$0xff]
    %v7102 = vld [vmem:[#allocation10 + $0x350] sm:$0xff]
    %v7103 = vld [vmem:[#allocation10 + $0x358] sm:$0xff]
    %v7104 = vld [vmem:[#allocation10 + $0x360] sm:$0xff]
    %v7105 = vld [vmem:[#allocation10 + $0x368] sm:$0xff]
    %v7106 = vld [vmem:[#allocation10 + $0x370] sm:$0xff]
    %v7107 = vld [vmem:[#allocation10 + $0x378] sm:$0xff]
    %v7108 = vld [vmem:[#allocation10 + $0x380] sm:$0xff]
    %v7109 = vld [vmem:[#allocation10 + $0x388] sm:$0xff]
    %v7110 = vld [vmem:[#allocation10 + $0x390] sm:$0xff]
    %v7111 = vld [vmem:[#allocation10 + $0x398] sm:$0xff]
    %v7112 = vld [vmem:[#allocation10 + $0x3a0] sm:$0xff]
    %v7113 = vld [vmem:[#allocation10 + $0x3a8] sm:$0xff]
    %v7114 = vld [vmem:[#allocation10 + $0x3b0] sm:$0xff]
    %v7115 = vld [vmem:[#allocation10 + $0x3b8] sm:$0xff]
    %v7116 = vld [vmem:[#allocation10 + $0x3c0] sm:$0xff]
    %v7117 = vld [vmem:[#allocation10 + $0x3c8] sm:$0xff]
    %v7118 = vld [vmem:[#allocation10 + $0x3d0] sm:$0xff]
    %v7119 = vld [vmem:[#allocation10 + $0x3d8] sm:$0xff]
    %v7120 = vld [vmem:[#allocation10 + $0x3e0] sm:$0xff]
    %v7121 = vld [vmem:[#allocation10 + $0x3e8] sm:$0xff]
    %v7122 = vld [vmem:[#allocation10 + $0x3f0] sm:$0xff]
    %v7123 = vld [vmem:[#allocation10 + $0x3f8] sm:$0xff]
    %v7124 = vld [vmem:[#allocation10 + $0x400] sm:$0xff]
    %v7125 = vld [vmem:[#allocation10 + $0x408] sm:$0xff]
    %v7126 = vld [vmem:[#allocation10 + $0x410] sm:$0xff]
    %v7127 = vld [vmem:[#allocation10 + $0x418] sm:$0xff]
    %v7128 = vld [vmem:[#allocation10 + $0x420] sm:$0xff]
    %v7129 = vld [vmem:[#allocation10 + $0x428] sm:$0xff]
    %v7130 = vld [vmem:[#allocation10 + $0x430] sm:$0xff]
    %v7131 = vld [vmem:[#allocation10 + $0x438] sm:$0xff]
    %v7132 = vld [vmem:[#allocation10 + $0x440] sm:$0xff]
    %v7133 = vld [vmem:[#allocation10 + $0x448] sm:$0xff]
    %v7134 = vld [vmem:[#allocation10 + $0x450] sm:$0xff]
    %v7135 = vld [vmem:[#allocation10 + $0x458] sm:$0xff]
    %v7136 = vld [vmem:[#allocation10 + $0x460] sm:$0xff]
    %v7137 = vld [vmem:[#allocation10 + $0x468] sm:$0xff]
    %v7138 = vld [vmem:[#allocation10 + $0x470] sm:$0xff]
    %v7139 = vld [vmem:[#allocation10 + $0x478] sm:$0xff]
    %v7140 = vld [vmem:[#allocation10 + $0x480] sm:$0xff]
    %v7141 = vld [vmem:[#allocation10 + $0x488] sm:$0xff]
    %v7142 = vld [vmem:[#allocation10 + $0x490] sm:$0xff]
    %v7143 = vld [vmem:[#allocation10 + $0x498] sm:$0xff]
    %v7144 = vld [vmem:[#allocation10 + $0x4a0] sm:$0xff]
    %v7145 = vld [vmem:[#allocation10 + $0x4a8] sm:$0xff]
    %v7146 = vld [vmem:[#allocation10 + $0x4b0] sm:$0xff]
    %v7147 = vld [vmem:[#allocation10 + $0x4b8] sm:$0xff]
    %v7148 = vld [vmem:[#allocation10 + $0x4c0] sm:$0xff]
    %v7149 = vld [vmem:[#allocation10 + $0x4c8] sm:$0xff]
    %v7150 = vld [vmem:[#allocation10 + $0x4d0] sm:$0xff]
    %v7151 = vld [vmem:[#allocation10 + $0x4d8] sm:$0xff]
    %v7152 = vld [vmem:[#allocation10 + $0x4e0] sm:$0xff]
    %v7153 = vld [vmem:[#allocation10 + $0x4e8] sm:$0xff]
    %v7154 = vld [vmem:[#allocation10 + $0x4f0] sm:$0xff]
    %v7155 = vld [vmem:[#allocation10 + $0x4f8] sm:$0xff]
    %v7156 = vld [vmem:[#allocation10 + $0x500] sm:$0xff]
    %v7157 = vld [vmem:[#allocation10 + $0x508] sm:$0xff]
    %v7158 = vld [vmem:[#allocation10 + $0x510] sm:$0xff]
    %v7159 = vld [vmem:[#allocation10 + $0x518] sm:$0xff]
    %v7160 = vld [vmem:[#allocation10 + $0x520] sm:$0xff]
    %v7161 = vld [vmem:[#allocation10 + $0x528] sm:$0xff]
    %v7162 = vld [vmem:[#allocation10 + $0x530] sm:$0xff]
    %v7163 = vld [vmem:[#allocation10 + $0x538] sm:$0xff]
    %v7164 = vld [vmem:[#allocation10 + $0x540] sm:$0xff]
    %v7165 = vld [vmem:[#allocation10 + $0x548] sm:$0xff]
    %v7166 = vld [vmem:[#allocation10 + $0x550] sm:$0xff]
    %v7167 = vld [vmem:[#allocation10 + $0x558] sm:$0xff]
    %v7168 = vld [vmem:[#allocation10 + $0x560] sm:$0xff]
    %v7169 = vld [vmem:[#allocation10 + $0x568] sm:$0xff]
    %v7170 = vld [vmem:[#allocation10 + $0x570] sm:$0xff]
    %v7171 = vld [vmem:[#allocation10 + $0x578] sm:$0xff]
    %v7172 = vld [vmem:[#allocation10 + $0x580] sm:$0xff]
    %v7173 = vld [vmem:[#allocation10 + $0x588] sm:$0xff]
    %v7174 = vld [vmem:[#allocation10 + $0x590] sm:$0xff]
    %v7175 = vld [vmem:[#allocation10 + $0x598] sm:$0xff]
    %v7176 = vld [vmem:[#allocation10 + $0x5a0] sm:$0xff]
    %v7177 = vld [vmem:[#allocation10 + $0x5a8] sm:$0xff]
    %v7178 = vld [vmem:[#allocation10 + $0x5b0] sm:$0xff]
    %v7179 = vld [vmem:[#allocation10 + $0x5b8] sm:$0xff]
    %v7180 = vld [vmem:[#allocation10 + $0x5c0] sm:$0xff]
    %v7181 = vld [vmem:[#allocation10 + $0x5c8] sm:$0xff]
    %v7182 = vld [vmem:[#allocation10 + $0x5d0] sm:$0xff]
    %v7183 = vld [vmem:[#allocation10 + $0x5d8] sm:$0xff]
    %v7184 = vld [vmem:[#allocation10 + $0x5e0] sm:$0xff]
    %v7185 = vld [vmem:[#allocation10 + $0x5e8] sm:$0xff]
    %v7186 = vld [vmem:[#allocation10 + $0x5f0] sm:$0xff]
    %v7187 = vld [vmem:[#allocation10 + $0x5f8] sm:$0xff]
    %v7188 = vld [vmem:[#allocation10 + $0x600] sm:$0xff]
    %v7189 = vld [vmem:[#allocation10 + $0x608] sm:$0xff]
    %v7190 = vld [vmem:[#allocation10 + $0x610] sm:$0xff]
    %v7191 = vld [vmem:[#allocation10 + $0x618] sm:$0xff]
    %v7192 = vld [vmem:[#allocation10 + $0x620] sm:$0xff]
    %v7193 = vld [vmem:[#allocation10 + $0x628] sm:$0xff]
    %v7194 = vld [vmem:[#allocation10 + $0x630] sm:$0xff]
    %v7195 = vld [vmem:[#allocation10 + $0x638] sm:$0xff]
    %v7196 = vld [vmem:[#allocation10 + $0x640] sm:$0xff]
    %v7197 = vld [vmem:[#allocation10 + $0x648] sm:$0xff]
    %v7198 = vld [vmem:[#allocation10 + $0x650] sm:$0xff]
    %v7199 = vld [vmem:[#allocation10 + $0x658] sm:$0xff]
    %v7200 = vld [vmem:[#allocation10 + $0x660] sm:$0xff]
    %v7201 = vld [vmem:[#allocation10 + $0x668] sm:$0xff]
    %v7202 = vld [vmem:[#allocation10 + $0x670] sm:$0xff]
    %v7203 = vld [vmem:[#allocation10 + $0x678] sm:$0xff]
    %v7204 = vld [vmem:[#allocation10 + $0x680] sm:$0xff]
    %v7205 = vld [vmem:[#allocation10 + $0x688] sm:$0xff]
    %v7206 = vld [vmem:[#allocation10 + $0x690] sm:$0xff]
    %v7207 = vld [vmem:[#allocation10 + $0x698] sm:$0xff]
    %v7208 = vld [vmem:[#allocation10 + $0x6a0] sm:$0xff]
    %v7209 = vld [vmem:[#allocation10 + $0x6a8] sm:$0xff]
    %v7210 = vld [vmem:[#allocation10 + $0x6b0] sm:$0xff]
    %v7211 = vld [vmem:[#allocation10 + $0x6b8] sm:$0xff]
    %v7212 = vld [vmem:[#allocation10 + $0x6c0] sm:$0xff]
    %v7213 = vld [vmem:[#allocation10 + $0x6c8] sm:$0xff]
    %v7214 = vld [vmem:[#allocation10 + $0x6d0] sm:$0xff]
    %v7215 = vld [vmem:[#allocation10 + $0x6d8] sm:$0xff]
    %v7216 = vld [vmem:[#allocation10 + $0x6e0] sm:$0xff]
    %v7217 = vld [vmem:[#allocation10 + $0x6e8] sm:$0xff]
    %v7218 = vld [vmem:[#allocation10 + $0x6f0] sm:$0xff]
    %v7219 = vld [vmem:[#allocation10 + $0x6f8] sm:$0xff]
    %v7220 = vld [vmem:[#allocation10 + $0x700] sm:$0xff]
    %v7221 = vld [vmem:[#allocation10 + $0x708] sm:$0xff]
    %v7222 = vld [vmem:[#allocation10 + $0x710] sm:$0xff]
    %v7223 = vld [vmem:[#allocation10 + $0x718] sm:$0xff]
    %v7224 = vld [vmem:[#allocation10 + $0x720] sm:$0xff]
    %v7225 = vld [vmem:[#allocation10 + $0x728] sm:$0xff]
    %v7226 = vld [vmem:[#allocation10 + $0x730] sm:$0xff]
    %v7227 = vld [vmem:[#allocation10 + $0x738] sm:$0xff]
    %v7228 = vld [vmem:[#allocation10 + $0x740] sm:$0xff]
    %v7229 = vld [vmem:[#allocation10 + $0x748] sm:$0xff]
    %v7230 = vld [vmem:[#allocation10 + $0x750] sm:$0xff]
    %v7231 = vld [vmem:[#allocation10 + $0x758] sm:$0xff]
    %v7232 = vld [vmem:[#allocation10 + $0x760] sm:$0xff]
    %v7233 = vld [vmem:[#allocation10 + $0x768] sm:$0xff]
    %v7234 = vld [vmem:[#allocation10 + $0x770] sm:$0xff]
    %v7235 = vld [vmem:[#allocation10 + $0x778] sm:$0xff]
    %v7236 = vld [vmem:[#allocation10 + $0x780] sm:$0xff]
    %v7237 = vld [vmem:[#allocation10 + $0x788] sm:$0xff]
    %v7238 = vld [vmem:[#allocation10 + $0x790] sm:$0xff]
    %v7239 = vld [vmem:[#allocation10 + $0x798] sm:$0xff]
    %v7240 = vld [vmem:[#allocation10 + $0x7a0] sm:$0xff]
    %v7241 = vld [vmem:[#allocation10 + $0x7a8] sm:$0xff]
    %v7242 = vld [vmem:[#allocation10 + $0x7b0] sm:$0xff]
    %v7243 = vld [vmem:[#allocation10 + $0x7b8] sm:$0xff]
    %v7244 = vld [vmem:[#allocation10 + $0x7c0] sm:$0xff]
    %v7245 = vld [vmem:[#allocation10 + $0x7c8] sm:$0xff]
    %v7246 = vld [vmem:[#allocation10 + $0x7d0] sm:$0xff]
    %v7247 = vld [vmem:[#allocation10 + $0x7d8] sm:$0xff]
    %v7248 = vld [vmem:[#allocation10 + $0x7e0] sm:$0xff]
    %v7249 = vld [vmem:[#allocation10 + $0x7e8] sm:$0xff]
    %v7250 = vld [vmem:[#allocation10 + $0x7f0] sm:$0xff]
    %v7251 = vld [vmem:[#allocation10 + $0x7f8] sm:$0xff]
    %v7252 = vld [vmem:[#allocation13 + $0xc] sm:$0xff]
    %v7254 = vperm.slane %v7252, 0
    %v7255 = vperm.slane %v7252, 1
    %v7256 = vperm.slane %v7252, 2
    %v7257 = vperm.slane %v7252, 3
    %v7258 = vperm.slane %v7252, 4
    %v7259 = vperm.slane %v7252, 5
    %v7260 = vperm.slane %v7252, 6
    %v7261 = vperm.slane %v7252, 7
    %v7526 = vunpack.c.l.b16 %v6996
    %v7527 = vunpack.c.h.b16 %v6996
    %v7528 = vunpack.c.l.b16 %v6997
    %v7529 = vunpack.c.h.b16 %v6997
    %v7530 = vunpack.c.l.b16 %v6998
    %v7531 = vunpack.c.h.b16 %v6998
    %v7532 = vunpack.c.l.b16 %v6999
    %v7533 = vunpack.c.h.b16 %v6999
    %v7534 = vunpack.c.l.b16 %v7000
    %v7535 = vunpack.c.h.b16 %v7000
    %v7536 = vunpack.c.l.b16 %v7001
    %v7537 = vunpack.c.h.b16 %v7001
    %v7538 = vunpack.c.l.b16 %v7002
    %v7539 = vunpack.c.h.b16 %v7002
    %v7540 = vunpack.c.l.b16 %v7003
    %v7541 = vunpack.c.h.b16 %v7003
    %v7542 = vunpack.c.l.b16 %v7004
    %v7543 = vunpack.c.h.b16 %v7004
    %v7544 = vunpack.c.l.b16 %v7005
    %v7545 = vunpack.c.h.b16 %v7005
    %v7546 = vunpack.c.l.b16 %v7006
    %v7547 = vunpack.c.h.b16 %v7006
    %v7548 = vunpack.c.l.b16 %v7007
    %v7549 = vunpack.c.h.b16 %v7007
    %v7550 = vunpack.c.l.b16 %v7008
    %v7551 = vunpack.c.h.b16 %v7008
    %v7552 = vunpack.c.l.b16 %v7009
    %v7553 = vunpack.c.h.b16 %v7009
    %v7554 = vunpack.c.l.b16 %v7010
    %v7555 = vunpack.c.h.b16 %v7010
    %v7556 = vunpack.c.l.b16 %v7011
    %v7557 = vunpack.c.h.b16 %v7011
    %v7558 = vunpack.c.l.b16 %v7012
    %v7559 = vunpack.c.h.b16 %v7012
    %v7560 = vunpack.c.l.b16 %v7013
    %v7561 = vunpack.c.h.b16 %v7013
    %v7562 = vunpack.c.l.b16 %v7014
    %v7563 = vunpack.c.h.b16 %v7014
    %v7564 = vunpack.c.l.b16 %v7015
    %v7565 = vunpack.c.h.b16 %v7015
    %v7566 = vunpack.c.l.b16 %v7016
    %v7567 = vunpack.c.h.b16 %v7016
    %v7568 = vunpack.c.l.b16 %v7017
    %v7569 = vunpack.c.h.b16 %v7017
    %v7570 = vunpack.c.l.b16 %v7018
    %v7571 = vunpack.c.h.b16 %v7018
    %v7572 = vunpack.c.l.b16 %v7019
    %v7573 = vunpack.c.h.b16 %v7019
    %v7574 = vunpack.c.l.b16 %v7020
    %v7575 = vunpack.c.h.b16 %v7020
    %v7576 = vunpack.c.l.b16 %v7021
    %v7577 = vunpack.c.h.b16 %v7021
    %v7578 = vunpack.c.l.b16 %v7022
    %v7579 = vunpack.c.h.b16 %v7022
    %v7580 = vunpack.c.l.b16 %v7023
    %v7581 = vunpack.c.h.b16 %v7023
    %v7582 = vunpack.c.l.b16 %v7024
    %v7583 = vunpack.c.h.b16 %v7024
    %v7584 = vunpack.c.l.b16 %v7025
    %v7585 = vunpack.c.h.b16 %v7025
    %v7586 = vunpack.c.l.b16 %v7026
    %v7587 = vunpack.c.h.b16 %v7026
    %v7588 = vunpack.c.l.b16 %v7027
    %v7589 = vunpack.c.h.b16 %v7027
    %v7590 = vunpack.c.l.b16 %v7028
    %v7591 = vunpack.c.h.b16 %v7028
    %v7592 = vunpack.c.l.b16 %v7029
    %v7593 = vunpack.c.h.b16 %v7029
    %v7594 = vunpack.c.l.b16 %v7030
    %v7595 = vunpack.c.h.b16 %v7030
    %v7596 = vunpack.c.l.b16 %v7031
    %v7597 = vunpack.c.h.b16 %v7031
    %v7598 = vunpack.c.l.b16 %v7032
    %v7599 = vunpack.c.h.b16 %v7032
    %v7600 = vunpack.c.l.b16 %v7033
    %v7601 = vunpack.c.h.b16 %v7033
    %v7602 = vunpack.c.l.b16 %v7034
    %v7603 = vunpack.c.h.b16 %v7034
    %v7604 = vunpack.c.l.b16 %v7035
    %v7605 = vunpack.c.h.b16 %v7035
    %v7606 = vunpack.c.l.b16 %v7036
    %v7607 = vunpack.c.h.b16 %v7036
    %v7608 = vunpack.c.l.b16 %v7037
    %v7609 = vunpack.c.h.b16 %v7037
    %v7610 = vunpack.c.l.b16 %v7038
    %v7611 = vunpack.c.h.b16 %v7038
    %v7612 = vunpack.c.l.b16 %v7039
    %v7613 = vunpack.c.h.b16 %v7039
    %v7614 = vunpack.c.l.b16 %v7040
    %v7615 = vunpack.c.h.b16 %v7040
    %v7616 = vunpack.c.l.b16 %v7041
    %v7617 = vunpack.c.h.b16 %v7041
    %v7618 = vunpack.c.l.b16 %v7042
    %v7619 = vunpack.c.h.b16 %v7042
    %v7620 = vunpack.c.l.b16 %v7043
    %v7621 = vunpack.c.h.b16 %v7043
    %v7622 = vunpack.c.l.b16 %v7044
    %v7623 = vunpack.c.h.b16 %v7044
    %v7624 = vunpack.c.l.b16 %v7045
    %v7625 = vunpack.c.h.b16 %v7045
    %v7626 = vunpack.c.l.b16 %v7046
    %v7627 = vunpack.c.h.b16 %v7046
    %v7628 = vunpack.c.l.b16 %v7047
    %v7629 = vunpack.c.h.b16 %v7047
    %v7630 = vunpack.c.l.b16 %v7048
    %v7631 = vunpack.c.h.b16 %v7048
    %v7632 = vunpack.c.l.b16 %v7049
    %v7633 = vunpack.c.h.b16 %v7049
    %v7634 = vunpack.c.l.b16 %v7050
    %v7635 = vunpack.c.h.b16 %v7050
    %v7636 = vunpack.c.l.b16 %v7051
    %v7637 = vunpack.c.h.b16 %v7051
    %v7638 = vunpack.c.l.b16 %v7052
    %v7639 = vunpack.c.h.b16 %v7052
    %v7640 = vunpack.c.l.b16 %v7053
    %v7641 = vunpack.c.h.b16 %v7053
    %v7642 = vunpack.c.l.b16 %v7054
    %v7643 = vunpack.c.h.b16 %v7054
    %v7644 = vunpack.c.l.b16 %v7055
    %v7645 = vunpack.c.h.b16 %v7055
    %v7646 = vunpack.c.l.b16 %v7056
    %v7647 = vunpack.c.h.b16 %v7056
    %v7648 = vunpack.c.l.b16 %v7057
    %v7649 = vunpack.c.h.b16 %v7057
    %v7650 = vunpack.c.l.b16 %v7058
    %v7651 = vunpack.c.h.b16 %v7058
    %v7652 = vunpack.c.l.b16 %v7059
    %v7653 = vunpack.c.h.b16 %v7059
    %v7654 = vunpack.c.l.b16 %v7060
    %v7655 = vunpack.c.h.b16 %v7060
    %v7656 = vunpack.c.l.b16 %v7061
    %v7657 = vunpack.c.h.b16 %v7061
    %v7658 = vunpack.c.l.b16 %v7062
    %v7659 = vunpack.c.h.b16 %v7062
    %v7660 = vunpack.c.l.b16 %v7063
    %v7661 = vunpack.c.h.b16 %v7063
    %v7662 = vunpack.c.l.b16 %v7064
    %v7663 = vunpack.c.h.b16 %v7064
    %v7664 = vunpack.c.l.b16 %v7065
    %v7665 = vunpack.c.h.b16 %v7065
    %v7666 = vunpack.c.l.b16 %v7066
    %v7667 = vunpack.c.h.b16 %v7066
    %v7668 = vunpack.c.l.b16 %v7067
    %v7669 = vunpack.c.h.b16 %v7067
    %v7670 = vunpack.c.l.b16 %v7068
    %v7671 = vunpack.c.h.b16 %v7068
    %v7672 = vunpack.c.l.b16 %v7069
    %v7673 = vunpack.c.h.b16 %v7069
    %v7674 = vunpack.c.l.b16 %v7070
    %v7675 = vunpack.c.h.b16 %v7070
    %v7676 = vunpack.c.l.b16 %v7071
    %v7677 = vunpack.c.h.b16 %v7071
    %v7678 = vunpack.c.l.b16 %v7072
    %v7679 = vunpack.c.h.b16 %v7072
    %v7680 = vunpack.c.l.b16 %v7073
    %v7681 = vunpack.c.h.b16 %v7073
    %v7682 = vunpack.c.l.b16 %v7074
    %v7683 = vunpack.c.h.b16 %v7074
    %v7684 = vunpack.c.l.b16 %v7075
    %v7685 = vunpack.c.h.b16 %v7075
    %v7686 = vunpack.c.l.b16 %v7076
    %v7687 = vunpack.c.h.b16 %v7076
    %v7688 = vunpack.c.l.b16 %v7077
    %v7689 = vunpack.c.h.b16 %v7077
    %v7690 = vunpack.c.l.b16 %v7078
    %v7691 = vunpack.c.h.b16 %v7078
    %v7692 = vunpack.c.l.b16 %v7079
    %v7693 = vunpack.c.h.b16 %v7079
    %v7694 = vunpack.c.l.b16 %v7080
    %v7695 = vunpack.c.h.b16 %v7080
    %v7696 = vunpack.c.l.b16 %v7081
    %v7697 = vunpack.c.h.b16 %v7081
    %v7698 = vunpack.c.l.b16 %v7082
    %v7699 = vunpack.c.h.b16 %v7082
    %v7700 = vunpack.c.l.b16 %v7083
    %v7701 = vunpack.c.h.b16 %v7083
    %v7702 = vunpack.c.l.b16 %v7084
    %v7703 = vunpack.c.h.b16 %v7084
    %v7704 = vunpack.c.l.b16 %v7085
    %v7705 = vunpack.c.h.b16 %v7085
    %v7706 = vunpack.c.l.b16 %v7086
    %v7707 = vunpack.c.h.b16 %v7086
    %v7708 = vunpack.c.l.b16 %v7087
    %v7709 = vunpack.c.h.b16 %v7087
    %v7710 = vunpack.c.l.b16 %v7088
    %v7711 = vunpack.c.h.b16 %v7088
    %v7712 = vunpack.c.l.b16 %v7089
    %v7713 = vunpack.c.h.b16 %v7089
    %v7714 = vunpack.c.l.b16 %v7090
    %v7715 = vunpack.c.h.b16 %v7090
    %v7716 = vunpack.c.l.b16 %v7091
    %v7717 = vunpack.c.h.b16 %v7091
    %v7718 = vunpack.c.l.b16 %v7092
    %v7719 = vunpack.c.h.b16 %v7092
    %v7720 = vunpack.c.l.b16 %v7093
    %v7721 = vunpack.c.h.b16 %v7093
    %v7722 = vunpack.c.l.b16 %v7094
    %v7723 = vunpack.c.h.b16 %v7094
    %v7724 = vunpack.c.l.b16 %v7095
    %v7725 = vunpack.c.h.b16 %v7095
    %v7726 = vunpack.c.l.b16 %v7096
    %v7727 = vunpack.c.h.b16 %v7096
    %v7728 = vunpack.c.l.b16 %v7097
    %v7729 = vunpack.c.h.b16 %v7097
    %v7730 = vunpack.c.l.b16 %v7098
    %v7731 = vunpack.c.h.b16 %v7098
    %v7732 = vunpack.c.l.b16 %v7099
    %v7733 = vunpack.c.h.b16 %v7099
    %v7734 = vunpack.c.l.b16 %v7100
    %v7735 = vunpack.c.h.b16 %v7100
    %v7736 = vunpack.c.l.b16 %v7101
    %v7737 = vunpack.c.h.b16 %v7101
    %v7738 = vunpack.c.l.b16 %v7102
    %v7739 = vunpack.c.h.b16 %v7102
    %v7740 = vunpack.c.l.b16 %v7103
    %v7741 = vunpack.c.h.b16 %v7103
    %v7742 = vunpack.c.l.b16 %v7104
    %v7743 = vunpack.c.h.b16 %v7104
    %v7744 = vunpack.c.l.b16 %v7105
    %v7745 = vunpack.c.h.b16 %v7105
    %v7746 = vunpack.c.l.b16 %v7106
    %v7747 = vunpack.c.h.b16 %v7106
    %v7748 = vunpack.c.l.b16 %v7107
    %v7749 = vunpack.c.h.b16 %v7107
    %v7750 = vunpack.c.l.b16 %v7108
    %v7751 = vunpack.c.h.b16 %v7108
    %v7752 = vunpack.c.l.b16 %v7109
    %v7753 = vunpack.c.h.b16 %v7109
    %v7754 = vunpack.c.l.b16 %v7110
    %v7755 = vunpack.c.h.b16 %v7110
    %v7756 = vunpack.c.l.b16 %v7111
    %v7757 = vunpack.c.h.b16 %v7111
    %v7758 = vunpack.c.l.b16 %v7112
    %v7759 = vunpack.c.h.b16 %v7112
    %v7760 = vunpack.c.l.b16 %v7113
    %v7761 = vunpack.c.h.b16 %v7113
    %v7762 = vunpack.c.l.b16 %v7114
    %v7763 = vunpack.c.h.b16 %v7114
    %v7764 = vunpack.c.l.b16 %v7115
    %v7765 = vunpack.c.h.b16 %v7115
    %v7766 = vunpack.c.l.b16 %v7116
    %v7767 = vunpack.c.h.b16 %v7116
    %v7768 = vunpack.c.l.b16 %v7117
    %v7769 = vunpack.c.h.b16 %v7117
    %v7770 = vunpack.c.l.b16 %v7118
    %v7771 = vunpack.c.h.b16 %v7118
    %v7772 = vunpack.c.l.b16 %v7119
    %v7773 = vunpack.c.h.b16 %v7119
    %v7774 = vunpack.c.l.b16 %v7120
    %v7775 = vunpack.c.h.b16 %v7120
    %v7776 = vunpack.c.l.b16 %v7121
    %v7777 = vunpack.c.h.b16 %v7121
    %v7778 = vunpack.c.l.b16 %v7122
    %v7779 = vunpack.c.h.b16 %v7122
    %v7780 = vunpack.c.l.b16 %v7123
    %v7781 = vunpack.c.h.b16 %v7123
    %v7782 = vunpack.c.l.b16 %v7124
    %v7783 = vunpack.c.h.b16 %v7124
    %v7784 = vunpack.c.l.b16 %v7125
    %v7785 = vunpack.c.h.b16 %v7125
    %v7786 = vunpack.c.l.b16 %v7126
    %v7787 = vunpack.c.h.b16 %v7126
    %v7788 = vunpack.c.l.b16 %v7127
    %v7789 = vunpack.c.h.b16 %v7127
    %v7790 = vunpack.c.l.b16 %v7128
    %v7791 = vunpack.c.h.b16 %v7128
    %v7792 = vunpack.c.l.b16 %v7129
    %v7793 = vunpack.c.h.b16 %v7129
    %v7794 = vunpack.c.l.b16 %v7130
    %v7795 = vunpack.c.h.b16 %v7130
    %v7796 = vunpack.c.l.b16 %v7131
    %v7797 = vunpack.c.h.b16 %v7131
    %v7798 = vunpack.c.l.b16 %v7132
    %v7799 = vunpack.c.h.b16 %v7132
    %v7800 = vunpack.c.l.b16 %v7133
    %v7801 = vunpack.c.h.b16 %v7133
    %v7802 = vunpack.c.l.b16 %v7134
    %v7803 = vunpack.c.h.b16 %v7134
    %v7804 = vunpack.c.l.b16 %v7135
    %v7805 = vunpack.c.h.b16 %v7135
    %v7806 = vunpack.c.l.b16 %v7136
    %v7807 = vunpack.c.h.b16 %v7136
    %v7808 = vunpack.c.l.b16 %v7137
    %v7809 = vunpack.c.h.b16 %v7137
    %v7810 = vunpack.c.l.b16 %v7138
    %v7811 = vunpack.c.h.b16 %v7138
    %v7812 = vunpack.c.l.b16 %v7139
    %v7813 = vunpack.c.h.b16 %v7139
    %v7814 = vunpack.c.l.b16 %v7140
    %v7815 = vunpack.c.h.b16 %v7140
    %v7816 = vunpack.c.l.b16 %v7141
    %v7817 = vunpack.c.h.b16 %v7141
    %v7818 = vunpack.c.l.b16 %v7142
    %v7819 = vunpack.c.h.b16 %v7142
    %v7820 = vunpack.c.l.b16 %v7143
    %v7821 = vunpack.c.h.b16 %v7143
    %v7822 = vunpack.c.l.b16 %v7144
    %v7823 = vunpack.c.h.b16 %v7144
    %v7824 = vunpack.c.l.b16 %v7145
    %v7825 = vunpack.c.h.b16 %v7145
    %v7826 = vunpack.c.l.b16 %v7146
    %v7827 = vunpack.c.h.b16 %v7146
    %v7828 = vunpack.c.l.b16 %v7147
    %v7829 = vunpack.c.h.b16 %v7147
    %v7830 = vunpack.c.l.b16 %v7148
    %v7831 = vunpack.c.h.b16 %v7148
    %v7832 = vunpack.c.l.b16 %v7149
    %v7833 = vunpack.c.h.b16 %v7149
    %v7834 = vunpack.c.l.b16 %v7150
    %v7835 = vunpack.c.h.b16 %v7150
    %v7836 = vunpack.c.l.b16 %v7151
    %v7837 = vunpack.c.h.b16 %v7151
    %v7838 = vunpack.c.l.b16 %v7152
    %v7839 = vunpack.c.h.b16 %v7152
    %v7840 = vunpack.c.l.b16 %v7153
    %v7841 = vunpack.c.h.b16 %v7153
    %v7842 = vunpack.c.l.b16 %v7154
    %v7843 = vunpack.c.h.b16 %v7154
    %v7844 = vunpack.c.l.b16 %v7155
    %v7845 = vunpack.c.h.b16 %v7155
    %v7846 = vunpack.c.l.b16 %v7156
    %v7847 = vunpack.c.h.b16 %v7156
    %v7848 = vunpack.c.l.b16 %v7157
    %v7849 = vunpack.c.h.b16 %v7157
    %v7850 = vunpack.c.l.b16 %v7158
    %v7851 = vunpack.c.h.b16 %v7158
    %v7852 = vunpack.c.l.b16 %v7159
    %v7853 = vunpack.c.h.b16 %v7159
    %v7854 = vunpack.c.l.b16 %v7160
    %v7855 = vunpack.c.h.b16 %v7160
    %v7856 = vunpack.c.l.b16 %v7161
    %v7857 = vunpack.c.h.b16 %v7161
    %v7858 = vunpack.c.l.b16 %v7162
    %v7859 = vunpack.c.h.b16 %v7162
    %v7860 = vunpack.c.l.b16 %v7163
    %v7861 = vunpack.c.h.b16 %v7163
    %v7862 = vunpack.c.l.b16 %v7164
    %v7863 = vunpack.c.h.b16 %v7164
    %v7864 = vunpack.c.l.b16 %v7165
    %v7865 = vunpack.c.h.b16 %v7165
    %v7866 = vunpack.c.l.b16 %v7166
    %v7867 = vunpack.c.h.b16 %v7166
    %v7868 = vunpack.c.l.b16 %v7167
    %v7869 = vunpack.c.h.b16 %v7167
    %v7870 = vunpack.c.l.b16 %v7168
    %v7871 = vunpack.c.h.b16 %v7168
    %v7872 = vunpack.c.l.b16 %v7169
    %v7873 = vunpack.c.h.b16 %v7169
    %v7874 = vunpack.c.l.b16 %v7170
    %v7875 = vunpack.c.h.b16 %v7170
    %v7876 = vunpack.c.l.b16 %v7171
    %v7877 = vunpack.c.h.b16 %v7171
    %v7878 = vunpack.c.l.b16 %v7172
    %v7879 = vunpack.c.h.b16 %v7172
    %v7880 = vunpack.c.l.b16 %v7173
    %v7881 = vunpack.c.h.b16 %v7173
    %v7882 = vunpack.c.l.b16 %v7174
    %v7883 = vunpack.c.h.b16 %v7174
    %v7884 = vunpack.c.l.b16 %v7175
    %v7885 = vunpack.c.h.b16 %v7175
    %v7886 = vunpack.c.l.b16 %v7176
    %v7887 = vunpack.c.h.b16 %v7176
    %v7888 = vunpack.c.l.b16 %v7177
    %v7889 = vunpack.c.h.b16 %v7177
    %v7890 = vunpack.c.l.b16 %v7178
    %v7891 = vunpack.c.h.b16 %v7178
    %v7892 = vunpack.c.l.b16 %v7179
    %v7893 = vunpack.c.h.b16 %v7179
    %v7894 = vunpack.c.l.b16 %v7180
    %v7895 = vunpack.c.h.b16 %v7180
    %v7896 = vunpack.c.l.b16 %v7181
    %v7897 = vunpack.c.h.b16 %v7181
    %v7898 = vunpack.c.l.b16 %v7182
    %v7899 = vunpack.c.h.b16 %v7182
    %v7900 = vunpack.c.l.b16 %v7183
    %v7901 = vunpack.c.h.b16 %v7183
    %v7902 = vunpack.c.l.b16 %v7184
    %v7903 = vunpack.c.h.b16 %v7184
    %v7904 = vunpack.c.l.b16 %v7185
    %v7905 = vunpack.c.h.b16 %v7185
    %v7906 = vunpack.c.l.b16 %v7186
    %v7907 = vunpack.c.h.b16 %v7186
    %v7908 = vunpack.c.l.b16 %v7187
    %v7909 = vunpack.c.h.b16 %v7187
    %v7910 = vunpack.c.l.b16 %v7188
    %v7911 = vunpack.c.h.b16 %v7188
    %v7912 = vunpack.c.l.b16 %v7189
    %v7913 = vunpack.c.h.b16 %v7189
    %v7914 = vunpack.c.l.b16 %v7190
    %v7915 = vunpack.c.h.b16 %v7190
    %v7916 = vunpack.c.l.b16 %v7191
    %v7917 = vunpack.c.h.b16 %v7191
    %v7918 = vunpack.c.l.b16 %v7192
    %v7919 = vunpack.c.h.b16 %v7192
    %v7920 = vunpack.c.l.b16 %v7193
    %v7921 = vunpack.c.h.b16 %v7193
    %v7922 = vunpack.c.l.b16 %v7194
    %v7923 = vunpack.c.h.b16 %v7194
    %v7924 = vunpack.c.l.b16 %v7195
    %v7925 = vunpack.c.h.b16 %v7195
    %v7926 = vunpack.c.l.b16 %v7196
    %v7927 = vunpack.c.h.b16 %v7196
    %v7928 = vunpack.c.l.b16 %v7197
    %v7929 = vunpack.c.h.b16 %v7197
    %v7930 = vunpack.c.l.b16 %v7198
    %v7931 = vunpack.c.h.b16 %v7198
    %v7932 = vunpack.c.l.b16 %v7199
    %v7933 = vunpack.c.h.b16 %v7199
    %v7934 = vunpack.c.l.b16 %v7200
    %v7935 = vunpack.c.h.b16 %v7200
    %v7936 = vunpack.c.l.b16 %v7201
    %v7937 = vunpack.c.h.b16 %v7201
    %v7938 = vunpack.c.l.b16 %v7202
    %v7939 = vunpack.c.h.b16 %v7202
    %v7940 = vunpack.c.l.b16 %v7203
    %v7941 = vunpack.c.h.b16 %v7203
    %v7942 = vunpack.c.l.b16 %v7204
    %v7943 = vunpack.c.h.b16 %v7204
    %v7944 = vunpack.c.l.b16 %v7205
    %v7945 = vunpack.c.h.b16 %v7205
    %v7946 = vunpack.c.l.b16 %v7206
    %v7947 = vunpack.c.h.b16 %v7206
    %v7948 = vunpack.c.l.b16 %v7207
    %v7949 = vunpack.c.h.b16 %v7207
    %v7950 = vunpack.c.l.b16 %v7208
    %v7951 = vunpack.c.h.b16 %v7208
    %v7952 = vunpack.c.l.b16 %v7209
    %v7953 = vunpack.c.h.b16 %v7209
    %v7954 = vunpack.c.l.b16 %v7210
    %v7955 = vunpack.c.h.b16 %v7210
    %v7956 = vunpack.c.l.b16 %v7211
    %v7957 = vunpack.c.h.b16 %v7211
    %v7958 = vunpack.c.l.b16 %v7212
    %v7959 = vunpack.c.h.b16 %v7212
    %v7960 = vunpack.c.l.b16 %v7213
    %v7961 = vunpack.c.h.b16 %v7213
    %v7962 = vunpack.c.l.b16 %v7214
    %v7963 = vunpack.c.h.b16 %v7214
    %v7964 = vunpack.c.l.b16 %v7215
    %v7965 = vunpack.c.h.b16 %v7215
    %v7966 = vunpack.c.l.b16 %v7216
    %v7967 = vunpack.c.h.b16 %v7216
    %v7968 = vunpack.c.l.b16 %v7217
    %v7969 = vunpack.c.h.b16 %v7217
    %v7970 = vunpack.c.l.b16 %v7218
    %v7971 = vunpack.c.h.b16 %v7218
    %v7972 = vunpack.c.l.b16 %v7219
    %v7973 = vunpack.c.h.b16 %v7219
    %v7974 = vunpack.c.l.b16 %v7220
    %v7975 = vunpack.c.h.b16 %v7220
    %v7976 = vunpack.c.l.b16 %v7221
    %v7977 = vunpack.c.h.b16 %v7221
    %v7978 = vunpack.c.l.b16 %v7222
    %v7979 = vunpack.c.h.b16 %v7222
    %v7980 = vunpack.c.l.b16 %v7223
    %v7981 = vunpack.c.h.b16 %v7223
    %v7982 = vunpack.c.l.b16 %v7224
    %v7983 = vunpack.c.h.b16 %v7224
    %v7984 = vunpack.c.l.b16 %v7225
    %v7985 = vunpack.c.h.b16 %v7225
    %v7986 = vunpack.c.l.b16 %v7226
    %v7987 = vunpack.c.h.b16 %v7226
    %v7988 = vunpack.c.l.b16 %v7227
    %v7989 = vunpack.c.h.b16 %v7227
    %v7990 = vunpack.c.l.b16 %v7228
    %v7991 = vunpack.c.h.b16 %v7228
    %v7992 = vunpack.c.l.b16 %v7229
    %v7993 = vunpack.c.h.b16 %v7229
    %v7994 = vunpack.c.l.b16 %v7230
    %v7995 = vunpack.c.h.b16 %v7230
    %v7996 = vunpack.c.l.b16 %v7231
    %v7997 = vunpack.c.h.b16 %v7231
    %v7998 = vunpack.c.l.b16 %v7232
    %v7999 = vunpack.c.h.b16 %v7232
    %v8000 = vunpack.c.l.b16 %v7233
    %v8001 = vunpack.c.h.b16 %v7233
    %v8002 = vunpack.c.l.b16 %v7234
    %v8003 = vunpack.c.h.b16 %v7234
    %v8004 = vunpack.c.l.b16 %v7235
    %v8005 = vunpack.c.h.b16 %v7235
    %v8006 = vunpack.c.l.b16 %v7236
    %v8007 = vunpack.c.h.b16 %v7236
    %v8008 = vunpack.c.l.b16 %v7237
    %v8009 = vunpack.c.h.b16 %v7237
    %v8010 = vunpack.c.l.b16 %v7238
    %v8011 = vunpack.c.h.b16 %v7238
    %v8012 = vunpack.c.l.b16 %v7239
    %v8013 = vunpack.c.h.b16 %v7239
    %v8014 = vunpack.c.l.b16 %v7240
    %v8015 = vunpack.c.h.b16 %v7240
    %v8016 = vunpack.c.l.b16 %v7241
    %v8017 = vunpack.c.h.b16 %v7241
    %v8018 = vunpack.c.l.b16 %v7242
    %v8019 = vunpack.c.h.b16 %v7242
    %v8020 = vunpack.c.l.b16 %v7243
    %v8021 = vunpack.c.h.b16 %v7243
    %v8022 = vunpack.c.l.b16 %v7244
    %v8023 = vunpack.c.h.b16 %v7244
    %v8024 = vunpack.c.l.b16 %v7245
    %v8025 = vunpack.c.h.b16 %v7245
    %v8026 = vunpack.c.l.b16 %v7246
    %v8027 = vunpack.c.h.b16 %v7246
    %v8028 = vunpack.c.l.b16 %v7247
    %v8029 = vunpack.c.h.b16 %v7247
    %v8030 = vunpack.c.l.b16 %v7248
    %v8031 = vunpack.c.h.b16 %v7248
    %v8032 = vunpack.c.l.b16 %v7249
    %v8033 = vunpack.c.h.b16 %v7249
    %v8034 = vunpack.c.l.b16 %v7250
    %v8035 = vunpack.c.h.b16 %v7250
    %v8036 = vunpack.c.l.b16 %v7251
    %v8037 = vunpack.c.h.b16 %v7251
    %v8038 = vpack.c.b16 %v7534, %v7526
    %v8039 = vpack.c.b16 %v7535, %v7527
    %v8040 = vpack.c.b16 %v7536, %v7528
    %v8041 = vpack.c.b16 %v7537, %v7529
    %v8042 = vpack.c.b16 %v7538, %v7530
    %v8043 = vpack.c.b16 %v7539, %v7531
    %v8044 = vpack.c.b16 %v7540, %v7532
    %v8045 = vpack.c.b16 %v7541, %v7533
    %v8046 = vpack.c.b16 %v7550, %v7542
    %v8047 = vpack.c.b16 %v7551, %v7543
    %v8048 = vpack.c.b16 %v7552, %v7544
    %v8049 = vpack.c.b16 %v7553, %v7545
    %v8050 = vpack.c.b16 %v7554, %v7546
    %v8051 = vpack.c.b16 %v7555, %v7547
    %v8052 = vpack.c.b16 %v7556, %v7548
    %v8053 = vpack.c.b16 %v7557, %v7549
    %v8054 = vpack.c.b16 %v7566, %v7558
    %v8055 = vpack.c.b16 %v7567, %v7559
    %v8056 = vpack.c.b16 %v7568, %v7560
    %v8057 = vpack.c.b16 %v7569, %v7561
    %v8058 = vpack.c.b16 %v7570, %v7562
    %v8059 = vpack.c.b16 %v7571, %v7563
    %v8060 = vpack.c.b16 %v7572, %v7564
    %v8061 = vpack.c.b16 %v7573, %v7565
    %v8062 = vpack.c.b16 %v7582, %v7574
    %v8063 = vpack.c.b16 %v7583, %v7575
    %v8064 = vpack.c.b16 %v7584, %v7576
    %v8065 = vpack.c.b16 %v7585, %v7577
    %v8066 = vpack.c.b16 %v7586, %v7578
    %v8067 = vpack.c.b16 %v7587, %v7579
    %v8068 = vpack.c.b16 %v7588, %v7580
    %v8069 = vpack.c.b16 %v7589, %v7581
    %v8070 = vpack.c.b16 %v7598, %v7590
    %v8071 = vpack.c.b16 %v7599, %v7591
    %v8072 = vpack.c.b16 %v7600, %v7592
    %v8073 = vpack.c.b16 %v7601, %v7593
    %v8074 = vpack.c.b16 %v7602, %v7594
    %v8075 = vpack.c.b16 %v7603, %v7595
    %v8076 = vpack.c.b16 %v7604, %v7596
    %v8077 = vpack.c.b16 %v7605, %v7597
    %v8078 = vpack.c.b16 %v7614, %v7606
    %v8079 = vpack.c.b16 %v7615, %v7607
    %v8080 = vpack.c.b16 %v7616, %v7608
    %v8081 = vpack.c.b16 %v7617, %v7609
    %v8082 = vpack.c.b16 %v7618, %v7610
    %v8083 = vpack.c.b16 %v7619, %v7611
    %v8084 = vpack.c.b16 %v7620, %v7612
    %v8085 = vpack.c.b16 %v7621, %v7613
    %v8086 = vpack.c.b16 %v7630, %v7622
    %v8087 = vpack.c.b16 %v7631, %v7623
    %v8088 = vpack.c.b16 %v7632, %v7624
    %v8089 = vpack.c.b16 %v7633, %v7625
    %v8090 = vpack.c.b16 %v7634, %v7626
    %v8091 = vpack.c.b16 %v7635, %v7627
    %v8092 = vpack.c.b16 %v7636, %v7628
    %v8093 = vpack.c.b16 %v7637, %v7629
    %v8094 = vpack.c.b16 %v7646, %v7638
    %v8095 = vpack.c.b16 %v7647, %v7639
    %v8096 = vpack.c.b16 %v7648, %v7640
    %v8097 = vpack.c.b16 %v7649, %v7641
    %v8098 = vpack.c.b16 %v7650, %v7642
    %v8099 = vpack.c.b16 %v7651, %v7643
    %v8100 = vpack.c.b16 %v7652, %v7644
    %v8101 = vpack.c.b16 %v7653, %v7645
    %v8102 = vpack.c.b16 %v7662, %v7654
    %v8103 = vpack.c.b16 %v7663, %v7655
    %v8104 = vpack.c.b16 %v7664, %v7656
    %v8105 = vpack.c.b16 %v7665, %v7657
    %v8106 = vpack.c.b16 %v7666, %v7658
    %v8107 = vpack.c.b16 %v7667, %v7659
    %v8108 = vpack.c.b16 %v7668, %v7660
    %v8109 = vpack.c.b16 %v7669, %v7661
    %v8110 = vpack.c.b16 %v7678, %v7670
    %v8111 = vpack.c.b16 %v7679, %v7671
    %v8112 = vpack.c.b16 %v7680, %v7672
    %v8113 = vpack.c.b16 %v7681, %v7673
    %v8114 = vpack.c.b16 %v7682, %v7674
    %v8115 = vpack.c.b16 %v7683, %v7675
    %v8116 = vpack.c.b16 %v7684, %v7676
    %v8117 = vpack.c.b16 %v7685, %v7677
    %v8118 = vpack.c.b16 %v7694, %v7686
    %v8119 = vpack.c.b16 %v7695, %v7687
    %v8120 = vpack.c.b16 %v7696, %v7688
    %v8121 = vpack.c.b16 %v7697, %v7689
    %v8122 = vpack.c.b16 %v7698, %v7690
    %v8123 = vpack.c.b16 %v7699, %v7691
    %v8124 = vpack.c.b16 %v7700, %v7692
    %v8125 = vpack.c.b16 %v7701, %v7693
    %v8126 = vpack.c.b16 %v7710, %v7702
    %v8127 = vpack.c.b16 %v7711, %v7703
    %v8128 = vpack.c.b16 %v7712, %v7704
    %v8129 = vpack.c.b16 %v7713, %v7705
    %v8130 = vpack.c.b16 %v7714, %v7706
    %v8131 = vpack.c.b16 %v7715, %v7707
    %v8132 = vpack.c.b16 %v7716, %v7708
    %v8133 = vpack.c.b16 %v7717, %v7709
    %v8134 = vpack.c.b16 %v7726, %v7718
    %v8135 = vpack.c.b16 %v7727, %v7719
    %v8136 = vpack.c.b16 %v7728, %v7720
    %v8137 = vpack.c.b16 %v7729, %v7721
    %v8138 = vpack.c.b16 %v7730, %v7722
    %v8139 = vpack.c.b16 %v7731, %v7723
    %v8140 = vpack.c.b16 %v7732, %v7724
    %v8141 = vpack.c.b16 %v7733, %v7725
    %v8142 = vpack.c.b16 %v7742, %v7734
    %v8143 = vpack.c.b16 %v7743, %v7735
    %v8144 = vpack.c.b16 %v7744, %v7736
    %v8145 = vpack.c.b16 %v7745, %v7737
    %v8146 = vpack.c.b16 %v7746, %v7738
    %v8147 = vpack.c.b16 %v7747, %v7739
    %v8148 = vpack.c.b16 %v7748, %v7740
    %v8149 = vpack.c.b16 %v7749, %v7741
    %v8150 = vpack.c.b16 %v7758, %v7750
    %v8151 = vpack.c.b16 %v7759, %v7751
    %v8152 = vpack.c.b16 %v7760, %v7752
    %v8153 = vpack.c.b16 %v7761, %v7753
    %v8154 = vpack.c.b16 %v7762, %v7754
    %v8155 = vpack.c.b16 %v7763, %v7755
    %v8156 = vpack.c.b16 %v7764, %v7756
    %v8157 = vpack.c.b16 %v7765, %v7757
    %v8158 = vpack.c.b16 %v7774, %v7766
    %v8159 = vpack.c.b16 %v7775, %v7767
    %v8160 = vpack.c.b16 %v7776, %v7768
    %v8161 = vpack.c.b16 %v7777, %v7769
    %v8162 = vpack.c.b16 %v7778, %v7770
    %v8163 = vpack.c.b16 %v7779, %v7771
    %v8164 = vpack.c.b16 %v7780, %v7772
    %v8165 = vpack.c.b16 %v7781, %v7773
    %v8166 = vpack.c.b16 %v7790, %v7782
    %v8167 = vpack.c.b16 %v7791, %v7783
    %v8168 = vpack.c.b16 %v7792, %v7784
    %v8169 = vpack.c.b16 %v7793, %v7785
    %v8170 = vpack.c.b16 %v7794, %v7786
    %v8171 = vpack.c.b16 %v7795, %v7787
    %v8172 = vpack.c.b16 %v7796, %v7788
    %v8173 = vpack.c.b16 %v7797, %v7789
    %v8174 = vpack.c.b16 %v7806, %v7798
    %v8175 = vpack.c.b16 %v7807, %v7799
    %v8176 = vpack.c.b16 %v7808, %v7800
    %v8177 = vpack.c.b16 %v7809, %v7801
    %v8178 = vpack.c.b16 %v7810, %v7802
    %v8179 = vpack.c.b16 %v7811, %v7803
    %v8180 = vpack.c.b16 %v7812, %v7804
    %v8181 = vpack.c.b16 %v7813, %v7805
    %v8182 = vpack.c.b16 %v7822, %v7814
    %v8183 = vpack.c.b16 %v7823, %v7815
    %v8184 = vpack.c.b16 %v7824, %v7816
    %v8185 = vpack.c.b16 %v7825, %v7817
    %v8186 = vpack.c.b16 %v7826, %v7818
    %v8187 = vpack.c.b16 %v7827, %v7819
    %v8188 = vpack.c.b16 %v7828, %v7820
    %v8189 = vpack.c.b16 %v7829, %v7821
    %v8190 = vpack.c.b16 %v7838, %v7830
    %v8191 = vpack.c.b16 %v7839, %v7831
    %v8192 = vpack.c.b16 %v7840, %v7832
    %v8193 = vpack.c.b16 %v7841, %v7833
    %v8194 = vpack.c.b16 %v7842, %v7834
    %v8195 = vpack.c.b16 %v7843, %v7835
    %v8196 = vpack.c.b16 %v7844, %v7836
    %v8197 = vpack.c.b16 %v7845, %v7837
    %v8198 = vpack.c.b16 %v7854, %v7846
    %v8199 = vpack.c.b16 %v7855, %v7847
    %v8200 = vpack.c.b16 %v7856, %v7848
    %v8201 = vpack.c.b16 %v7857, %v7849
    %v8202 = vpack.c.b16 %v7858, %v7850
    %v8203 = vpack.c.b16 %v7859, %v7851
    %v8204 = vpack.c.b16 %v7860, %v7852
    %v8205 = vpack.c.b16 %v7861, %v7853
    %v8206 = vpack.c.b16 %v7870, %v7862
    %v8207 = vpack.c.b16 %v7871, %v7863
    %v8208 = vpack.c.b16 %v7872, %v7864
    %v8209 = vpack.c.b16 %v7873, %v7865
    %v8210 = vpack.c.b16 %v7874, %v7866
    %v8211 = vpack.c.b16 %v7875, %v7867
    %v8212 = vpack.c.b16 %v7876, %v7868
    %v8213 = vpack.c.b16 %v7877, %v7869
    %v8214 = vpack.c.b16 %v7886, %v7878
    %v8215 = vpack.c.b16 %v7887, %v7879
    %v8216 = vpack.c.b16 %v7888, %v7880
    %v8217 = vpack.c.b16 %v7889, %v7881
    %v8218 = vpack.c.b16 %v7890, %v7882
    %v8219 = vpack.c.b16 %v7891, %v7883
    %v8220 = vpack.c.b16 %v7892, %v7884
    %v8221 = vpack.c.b16 %v7893, %v7885
    %v8222 = vpack.c.b16 %v7902, %v7894
    %v8223 = vpack.c.b16 %v7903, %v7895
    %v8224 = vpack.c.b16 %v7904, %v7896
    %v8225 = vpack.c.b16 %v7905, %v7897
    %v8226 = vpack.c.b16 %v7906, %v7898
    %v8227 = vpack.c.b16 %v7907, %v7899
    %v8228 = vpack.c.b16 %v7908, %v7900
    %v8229 = vpack.c.b16 %v7909, %v7901
    %v8230 = vpack.c.b16 %v7918, %v7910
    %v8231 = vpack.c.b16 %v7919, %v7911
    %v8232 = vpack.c.b16 %v7920, %v7912
    %v8233 = vpack.c.b16 %v7921, %v7913
    %v8234 = vpack.c.b16 %v7922, %v7914
    %v8235 = vpack.c.b16 %v7923, %v7915
    %v8236 = vpack.c.b16 %v7924, %v7916
    %v8237 = vpack.c.b16 %v7925, %v7917
    %v8238 = vpack.c.b16 %v7934, %v7926
    %v8239 = vpack.c.b16 %v7935, %v7927
    %v8240 = vpack.c.b16 %v7936, %v7928
    %v8241 = vpack.c.b16 %v7937, %v7929
    %v8242 = vpack.c.b16 %v7938, %v7930
    %v8243 = vpack.c.b16 %v7939, %v7931
    %v8244 = vpack.c.b16 %v7940, %v7932
    %v8245 = vpack.c.b16 %v7941, %v7933
    %v8246 = vpack.c.b16 %v7950, %v7942
    %v8247 = vpack.c.b16 %v7951, %v7943
    %v8248 = vpack.c.b16 %v7952, %v7944
    %v8249 = vpack.c.b16 %v7953, %v7945
    %v8250 = vpack.c.b16 %v7954, %v7946
    %v8251 = vpack.c.b16 %v7955, %v7947
    %v8252 = vpack.c.b16 %v7956, %v7948
    %v8253 = vpack.c.b16 %v7957, %v7949
    %v8254 = vpack.c.b16 %v7966, %v7958
    %v8255 = vpack.c.b16 %v7967, %v7959
    %v8256 = vpack.c.b16 %v7968, %v7960
    %v8257 = vpack.c.b16 %v7969, %v7961
    %v8258 = vpack.c.b16 %v7970, %v7962
    %v8259 = vpack.c.b16 %v7971, %v7963
    %v8260 = vpack.c.b16 %v7972, %v7964
    %v8261 = vpack.c.b16 %v7973, %v7965
    %v8262 = vpack.c.b16 %v7982, %v7974
    %v8263 = vpack.c.b16 %v7983, %v7975
    %v8264 = vpack.c.b16 %v7984, %v7976
    %v8265 = vpack.c.b16 %v7985, %v7977
    %v8266 = vpack.c.b16 %v7986, %v7978
    %v8267 = vpack.c.b16 %v7987, %v7979
    %v8268 = vpack.c.b16 %v7988, %v7980
    %v8269 = vpack.c.b16 %v7989, %v7981
    %v8270 = vpack.c.b16 %v7998, %v7990
    %v8271 = vpack.c.b16 %v7999, %v7991
    %v8272 = vpack.c.b16 %v8000, %v7992
    %v8273 = vpack.c.b16 %v8001, %v7993
    %v8274 = vpack.c.b16 %v8002, %v7994
    %v8275 = vpack.c.b16 %v8003, %v7995
    %v8276 = vpack.c.b16 %v8004, %v7996
    %v8277 = vpack.c.b16 %v8005, %v7997
    %v8278 = vpack.c.b16 %v8014, %v8006
    %v8279 = vpack.c.b16 %v8015, %v8007
    %v8280 = vpack.c.b16 %v8016, %v8008
    %v8281 = vpack.c.b16 %v8017, %v8009
    %v8282 = vpack.c.b16 %v8018, %v8010
    %v8283 = vpack.c.b16 %v8019, %v8011
    %v8284 = vpack.c.b16 %v8020, %v8012
    %v8285 = vpack.c.b16 %v8021, %v8013
    %v8286 = vpack.c.b16 %v8030, %v8022
    %v8287 = vpack.c.b16 %v8031, %v8023
    %v8288 = vpack.c.b16 %v8032, %v8024
    %v8289 = vpack.c.b16 %v8033, %v8025
    %v8290 = vpack.c.b16 %v8034, %v8026
    %v8291 = vpack.c.b16 %v8035, %v8027
    %v8292 = vpack.c.b16 %v8036, %v8028
    %v8293 = vpack.c.b16 %v8037, %v8029
    %8550 = vmatpush.bf16.msra.mxu0 %v8094
    %8551 = vmatpush.bf16.msra.mxu0 %v8086
    %8552 = vmatpush.bf16.msra.mxu0 %v8078
    %8553 = vmatpush.bf16.msra.mxu0 %v8070
    %8554 = vmatpush.bf16.msra.mxu0 %v8062
    %8555 = vmatpush.bf16.msra.mxu0 %v8054
    %8556 = vmatpush.bf16.msra.mxu0 %v8046
    %8557 = vmatpush.bf16.msra.mxu0 %v8038
    %8558 = vmatmul.bf16.gmra.mxu0 %v336
    %v8559 = vpop.f32.mrf.mxu0
    %v8560 = vadd.f32 %v7254, %v8559
    %v8561 = vpop.f32.mrf.mxu0
    %8562 = vdwg.mxu0
    %8563 = vmatpush.bf16.msra.mxu0 %v8158
    %8564 = vmatpush.bf16.msra.mxu0 %v8150
    %8565 = vmatpush.bf16.msra.mxu0 %v8142
    %8566 = vmatpush.bf16.msra.mxu0 %v8134
    %8567 = vmatpush.bf16.msra.mxu0 %v8126
    %8568 = vmatpush.bf16.msra.mxu0 %v8118
    %8569 = vmatpush.bf16.msra.mxu0 %v8110
    %8570 = vmatpush.bf16.msra.mxu0 %v8102
    %8571 = vmatmul.bf16.gmra.mxu0 %v337
    %v8572 = vpop.f32.mrf.mxu0
    %v8573 = vadd.f32 %v8560, %v8572
    %v8574 = vpop.f32.mrf.mxu0
    %8575 = vdwg.mxu0
    %8576 = vmatpush.bf16.msra.mxu0 %v8222
    %8577 = vmatpush.bf16.msra.mxu0 %v8214
    %8578 = vmatpush.bf16.msra.mxu0 %v8206
    %8579 = vmatpush.bf16.msra.mxu0 %v8198
    %8580 = vmatpush.bf16.msra.mxu0 %v8190
    %8581 = vmatpush.bf16.msra.mxu0 %v8182
    %8582 = vmatpush.bf16.msra.mxu0 %v8174
    %8583 = vmatpush.bf16.msra.mxu0 %v8166
    %8584 = vmatmul.bf16.gmra.mxu0 %v338
    %v8585 = vpop.f32.mrf.mxu0
    %v8586 = vadd.f32 %v8573, %v8585
    %v8587 = vpop.f32.mrf.mxu0
    %8588 = vdwg.mxu0
    %8589 = vmatpush.bf16.msra.mxu0 %v8286
    %8590 = vmatpush.bf16.msra.mxu0 %v8278
    %8591 = vmatpush.bf16.msra.mxu0 %v8270
    %8592 = vmatpush.bf16.msra.mxu0 %v8262
    %8593 = vmatpush.bf16.msra.mxu0 %v8254
    %8594 = vmatpush.bf16.msra.mxu0 %v8246
    %8595 = vmatpush.bf16.msra.mxu0 %v8238
    %8596 = vmatpush.bf16.msra.mxu0 %v8230
    %8597 = vmatmul.bf16.gmra.mxu0 %v339
    %v8598 = vpop.f32.mrf.mxu0
    %v8599 = vadd.f32 %v8586, %v8598
    %v8600 = vpop.f32.mrf.mxu0
    %8601 = vdwg.mxu0
    %8602 = vmatpush.bf16.msra.mxu0 %v8095
    %8603 = vmatpush.bf16.msra.mxu0 %v8087
    %8604 = vmatpush.bf16.msra.mxu0 %v8079
    %8605 = vmatpush.bf16.msra.mxu0 %v8071
    %8606 = vmatpush.bf16.msra.mxu0 %v8063
    %8607 = vmatpush.bf16.msra.mxu0 %v8055
    %8608 = vmatpush.bf16.msra.mxu0 %v8047
    %8609 = vmatpush.bf16.msra.mxu0 %v8039
    %8610 = vmatmul.bf16.gmra.mxu0 %v336
    %v8611 = vpop.f32.mrf.mxu0
    %v8612 = vadd.f32 %v7255, %v8611
    %v8613 = vpop.f32.mrf.mxu0
    %8614 = vdwg.mxu0
    %8615 = vmatpush.bf16.msra.mxu0 %v8159
    %8616 = vmatpush.bf16.msra.mxu0 %v8151
    %8617 = vmatpush.bf16.msra.mxu0 %v8143
    %8618 = vmatpush.bf16.msra.mxu0 %v8135
    %8619 = vmatpush.bf16.msra.mxu0 %v8127
    %8620 = vmatpush.bf16.msra.mxu0 %v8119
    %8621 = vmatpush.bf16.msra.mxu0 %v8111
    %8622 = vmatpush.bf16.msra.mxu0 %v8103
    %8623 = vmatmul.bf16.gmra.mxu0 %v337
    %v8624 = vpop.f32.mrf.mxu0
    %v8625 = vadd.f32 %v8612, %v8624
    %v8626 = vpop.f32.mrf.mxu0
    %8627 = vdwg.mxu0
    %8628 = vmatpush.bf16.msra.mxu0 %v8223
    %8629 = vmatpush.bf16.msra.mxu0 %v8215
    %8630 = vmatpush.bf16.msra.mxu0 %v8207
    %8631 = vmatpush.bf16.msra.mxu0 %v8199
    %8632 = vmatpush.bf16.msra.mxu0 %v8191
    %8633 = vmatpush.bf16.msra.mxu0 %v8183
    %8634 = vmatpush.bf16.msra.mxu0 %v8175
    %8635 = vmatpush.bf16.msra.mxu0 %v8167
    %8636 = vmatmul.bf16.gmra.mxu0 %v338
    %v8637 = vpop.f32.mrf.mxu0
    %v8638 = vadd.f32 %v8625, %v8637
    %v8639 = vpop.f32.mrf.mxu0
    %8640 = vdwg.mxu0
    %8641 = vmatpush.bf16.msra.mxu0 %v8287
    %8642 = vmatpush.bf16.msra.mxu0 %v8279
    %8643 = vmatpush.bf16.msra.mxu0 %v8271
    %8644 = vmatpush.bf16.msra.mxu0 %v8263
    %8645 = vmatpush.bf16.msra.mxu0 %v8255
    %8646 = vmatpush.bf16.msra.mxu0 %v8247
    %8647 = vmatpush.bf16.msra.mxu0 %v8239
    %8648 = vmatpush.bf16.msra.mxu0 %v8231
    %8649 = vmatmul.bf16.gmra.mxu0 %v339
    %v8650 = vpop.f32.mrf.mxu0
    %v8651 = vadd.f32 %v8638, %v8650
    %v8652 = vpop.f32.mrf.mxu0
    %8653 = vdwg.mxu0
    %8654 = vmatpush.bf16.msra.mxu0 %v8096
    %8655 = vmatpush.bf16.msra.mxu0 %v8088
    %8656 = vmatpush.bf16.msra.mxu0 %v8080
    %8657 = vmatpush.bf16.msra.mxu0 %v8072
    %8658 = vmatpush.bf16.msra.mxu0 %v8064
    %8659 = vmatpush.bf16.msra.mxu0 %v8056
    %8660 = vmatpush.bf16.msra.mxu0 %v8048
    %8661 = vmatpush.bf16.msra.mxu0 %v8040
    %8662 = vmatmul.bf16.gmra.mxu0 %v336
    %v8663 = vpop.f32.mrf.mxu0
    %v8664 = vadd.f32 %v7256, %v8663
    %v8665 = vpop.f32.mrf.mxu0
    %8666 = vdwg.mxu0
    %8667 = vmatpush.bf16.msra.mxu0 %v8160
    %8668 = vmatpush.bf16.msra.mxu0 %v8152
    %8669 = vmatpush.bf16.msra.mxu0 %v8144
    %8670 = vmatpush.bf16.msra.mxu0 %v8136
    %8671 = vmatpush.bf16.msra.mxu0 %v8128
    %8672 = vmatpush.bf16.msra.mxu0 %v8120
    %8673 = vmatpush.bf16.msra.mxu0 %v8112
    %8674 = vmatpush.bf16.msra.mxu0 %v8104
    %8675 = vmatmul.bf16.gmra.mxu0 %v337
    %v8676 = vpop.f32.mrf.mxu0
    %v8677 = vadd.f32 %v8664, %v8676
    %v8678 = vpop.f32.mrf.mxu0
    %8679 = vdwg.mxu0
    %8680 = vmatpush.bf16.msra.mxu0 %v8224
    %8681 = vmatpush.bf16.msra.mxu0 %v8216
    %8682 = vmatpush.bf16.msra.mxu0 %v8208
    %8683 = vmatpush.bf16.msra.mxu0 %v8200
    %8684 = vmatpush.bf16.msra.mxu0 %v8192
    %8685 = vmatpush.bf16.msra.mxu0 %v8184
    %8686 = vmatpush.bf16.msra.mxu0 %v8176
    %8687 = vmatpush.bf16.msra.mxu0 %v8168
    %8688 = vmatmul.bf16.gmra.mxu0 %v338
    %v8689 = vpop.f32.mrf.mxu0
    %v8690 = vadd.f32 %v8677, %v8689
    %v8691 = vpop.f32.mrf.mxu0
    %8692 = vdwg.mxu0
    %8693 = vmatpush.bf16.msra.mxu0 %v8288
    %8694 = vmatpush.bf16.msra.mxu0 %v8280
    %8695 = vmatpush.bf16.msra.mxu0 %v8272
    %8696 = vmatpush.bf16.msra.mxu0 %v8264
    %8697 = vmatpush.bf16.msra.mxu0 %v8256
    %8698 = vmatpush.bf16.msra.mxu0 %v8248
    %8699 = vmatpush.bf16.msra.mxu0 %v8240
    %8700 = vmatpush.bf16.msra.mxu0 %v8232
    %8701 = vmatmul.bf16.gmra.mxu0 %v339
    %v8702 = vpop.f32.mrf.mxu0
    %v8703 = vadd.f32 %v8690, %v8702
    %v8704 = vpop.f32.mrf.mxu0
    %8705 = vdwg.mxu0
    %8706 = vmatpush.bf16.msra.mxu0 %v8097
    %8707 = vmatpush.bf16.msra.mxu0 %v8089
    %8708 = vmatpush.bf16.msra.mxu0 %v8081
    %8709 = vmatpush.bf16.msra.mxu0 %v8073
    %8710 = vmatpush.bf16.msra.mxu0 %v8065
    %8711 = vmatpush.bf16.msra.mxu0 %v8057
    %8712 = vmatpush.bf16.msra.mxu0 %v8049
    %8713 = vmatpush.bf16.msra.mxu0 %v8041
    %8714 = vmatmul.bf16.gmra.mxu0 %v336
    %v8715 = vpop.f32.mrf.mxu0
    %v8716 = vadd.f32 %v7257, %v8715
    %v8717 = vpop.f32.mrf.mxu0
    %8718 = vdwg.mxu0
    %8719 = vmatpush.bf16.msra.mxu0 %v8161
    %8720 = vmatpush.bf16.msra.mxu0 %v8153
    %8721 = vmatpush.bf16.msra.mxu0 %v8145
    %8722 = vmatpush.bf16.msra.mxu0 %v8137
    %8723 = vmatpush.bf16.msra.mxu0 %v8129
    %8724 = vmatpush.bf16.msra.mxu0 %v8121
    %8725 = vmatpush.bf16.msra.mxu0 %v8113
    %8726 = vmatpush.bf16.msra.mxu0 %v8105
    %8727 = vmatmul.bf16.gmra.mxu0 %v337
    %v8728 = vpop.f32.mrf.mxu0
    %v8729 = vadd.f32 %v8716, %v8728
    %v8730 = vpop.f32.mrf.mxu0
    %8731 = vdwg.mxu0
    %8732 = vmatpush.bf16.msra.mxu0 %v8225
    %8733 = vmatpush.bf16.msra.mxu0 %v8217
    %8734 = vmatpush.bf16.msra.mxu0 %v8209
    %8735 = vmatpush.bf16.msra.mxu0 %v8201
    %8736 = vmatpush.bf16.msra.mxu0 %v8193
    %8737 = vmatpush.bf16.msra.mxu0 %v8185
    %8738 = vmatpush.bf16.msra.mxu0 %v8177
    %8739 = vmatpush.bf16.msra.mxu0 %v8169
    %8740 = vmatmul.bf16.gmra.mxu0 %v338
    %v8741 = vpop.f32.mrf.mxu0
    %v8742 = vadd.f32 %v8729, %v8741
    %v8743 = vpop.f32.mrf.mxu0
    %8744 = vdwg.mxu0
    %8745 = vmatpush.bf16.msra.mxu0 %v8289
    %8746 = vmatpush.bf16.msra.mxu0 %v8281
    %8747 = vmatpush.bf16.msra.mxu0 %v8273
    %8748 = vmatpush.bf16.msra.mxu0 %v8265
    %8749 = vmatpush.bf16.msra.mxu0 %v8257
    %8750 = vmatpush.bf16.msra.mxu0 %v8249
    %8751 = vmatpush.bf16.msra.mxu0 %v8241
    %8752 = vmatpush.bf16.msra.mxu0 %v8233
    %8753 = vmatmul.bf16.gmra.mxu0 %v339
    %v8754 = vpop.f32.mrf.mxu0
    %v8755 = vadd.f32 %v8742, %v8754
    %v8756 = vpop.f32.mrf.mxu0
    %8757 = vdwg.mxu0
    %8758 = vmatpush.bf16.msra.mxu0 %v8098
    %8759 = vmatpush.bf16.msra.mxu0 %v8090
    %8760 = vmatpush.bf16.msra.mxu0 %v8082
    %8761 = vmatpush.bf16.msra.mxu0 %v8074
    %8762 = vmatpush.bf16.msra.mxu0 %v8066
    %8763 = vmatpush.bf16.msra.mxu0 %v8058
    %8764 = vmatpush.bf16.msra.mxu0 %v8050
    %8765 = vmatpush.bf16.msra.mxu0 %v8042
    %8766 = vmatmul.bf16.gmra.mxu0 %v336
    %v8767 = vpop.f32.mrf.mxu0
    %v8768 = vadd.f32 %v7258, %v8767
    %v8769 = vpop.f32.mrf.mxu0
    %8770 = vdwg.mxu0
    %8771 = vmatpush.bf16.msra.mxu0 %v8162
    %8772 = vmatpush.bf16.msra.mxu0 %v8154
    %8773 = vmatpush.bf16.msra.mxu0 %v8146
    %8774 = vmatpush.bf16.msra.mxu0 %v8138
    %8775 = vmatpush.bf16.msra.mxu0 %v8130
    %8776 = vmatpush.bf16.msra.mxu0 %v8122
    %8777 = vmatpush.bf16.msra.mxu0 %v8114
    %8778 = vmatpush.bf16.msra.mxu0 %v8106
    %8779 = vmatmul.bf16.gmra.mxu0 %v337
    %v8780 = vpop.f32.mrf.mxu0
    %v8781 = vadd.f32 %v8768, %v8780
    %v8782 = vpop.f32.mrf.mxu0
    %8783 = vdwg.mxu0
    %8784 = vmatpush.bf16.msra.mxu0 %v8226
    %8785 = vmatpush.bf16.msra.mxu0 %v8218
    %8786 = vmatpush.bf16.msra.mxu0 %v8210
    %8787 = vmatpush.bf16.msra.mxu0 %v8202
    %8788 = vmatpush.bf16.msra.mxu0 %v8194
    %8789 = vmatpush.bf16.msra.mxu0 %v8186
    %8790 = vmatpush.bf16.msra.mxu0 %v8178
    %8791 = vmatpush.bf16.msra.mxu0 %v8170
    %8792 = vmatmul.bf16.gmra.mxu0 %v338
    %v8793 = vpop.f32.mrf.mxu0
    %v8794 = vadd.f32 %v8781, %v8793
    %v8795 = vpop.f32.mrf.mxu0
    %8796 = vdwg.mxu0
    %8797 = vmatpush.bf16.msra.mxu0 %v8290
    %8798 = vmatpush.bf16.msra.mxu0 %v8282
    %8799 = vmatpush.bf16.msra.mxu0 %v8274
    %8800 = vmatpush.bf16.msra.mxu0 %v8266
    %8801 = vmatpush.bf16.msra.mxu0 %v8258
    %8802 = vmatpush.bf16.msra.mxu0 %v8250
    %8803 = vmatpush.bf16.msra.mxu0 %v8242
    %8804 = vmatpush.bf16.msra.mxu0 %v8234
    %8805 = vmatmul.bf16.gmra.mxu0 %v339
    %v8806 = vpop.f32.mrf.mxu0
    %v8807 = vadd.f32 %v8794, %v8806
    %v8808 = vpop.f32.mrf.mxu0
    %8809 = vdwg.mxu0
    %8810 = vmatpush.bf16.msra.mxu0 %v8099
    %8811 = vmatpush.bf16.msra.mxu0 %v8091
    %8812 = vmatpush.bf16.msra.mxu0 %v8083
    %8813 = vmatpush.bf16.msra.mxu0 %v8075
    %8814 = vmatpush.bf16.msra.mxu0 %v8067
    %8815 = vmatpush.bf16.msra.mxu0 %v8059
    %8816 = vmatpush.bf16.msra.mxu0 %v8051
    %8817 = vmatpush.bf16.msra.mxu0 %v8043
    %8818 = vmatmul.bf16.gmra.mxu0 %v336
    %v8819 = vpop.f32.mrf.mxu0
    %v8820 = vadd.f32 %v7259, %v8819
    %v8821 = vpop.f32.mrf.mxu0
    %8822 = vdwg.mxu0
    %8823 = vmatpush.bf16.msra.mxu0 %v8163
    %8824 = vmatpush.bf16.msra.mxu0 %v8155
    %8825 = vmatpush.bf16.msra.mxu0 %v8147
    %8826 = vmatpush.bf16.msra.mxu0 %v8139
    %8827 = vmatpush.bf16.msra.mxu0 %v8131
    %8828 = vmatpush.bf16.msra.mxu0 %v8123
    %8829 = vmatpush.bf16.msra.mxu0 %v8115
    %8830 = vmatpush.bf16.msra.mxu0 %v8107
    %8831 = vmatmul.bf16.gmra.mxu0 %v337
    %v8832 = vpop.f32.mrf.mxu0
    %v8833 = vadd.f32 %v8820, %v8832
    %v8834 = vpop.f32.mrf.mxu0
    %8835 = vdwg.mxu0
    %8836 = vmatpush.bf16.msra.mxu0 %v8227
    %8837 = vmatpush.bf16.msra.mxu0 %v8219
    %8838 = vmatpush.bf16.msra.mxu0 %v8211
    %8839 = vmatpush.bf16.msra.mxu0 %v8203
    %8840 = vmatpush.bf16.msra.mxu0 %v8195
    %8841 = vmatpush.bf16.msra.mxu0 %v8187
    %8842 = vmatpush.bf16.msra.mxu0 %v8179
    %8843 = vmatpush.bf16.msra.mxu0 %v8171
    %8844 = vmatmul.bf16.gmra.mxu0 %v338
    %v8845 = vpop.f32.mrf.mxu0
    %v8846 = vadd.f32 %v8833, %v8845
    %v8847 = vpop.f32.mrf.mxu0
    %8848 = vdwg.mxu0
    %8849 = vmatpush.bf16.msra.mxu0 %v8291
    %8850 = vmatpush.bf16.msra.mxu0 %v8283
    %8851 = vmatpush.bf16.msra.mxu0 %v8275
    %8852 = vmatpush.bf16.msra.mxu0 %v8267
    %8853 = vmatpush.bf16.msra.mxu0 %v8259
    %8854 = vmatpush.bf16.msra.mxu0 %v8251
    %8855 = vmatpush.bf16.msra.mxu0 %v8243
    %8856 = vmatpush.bf16.msra.mxu0 %v8235
    %8857 = vmatmul.bf16.gmra.mxu0 %v339
    %v8858 = vpop.f32.mrf.mxu0
    %v8859 = vadd.f32 %v8846, %v8858
    %v8860 = vpop.f32.mrf.mxu0
    %8861 = vdwg.mxu0
    %8862 = vmatpush.bf16.msra.mxu0 %v8100
    %8863 = vmatpush.bf16.msra.mxu0 %v8092
    %8864 = vmatpush.bf16.msra.mxu0 %v8084
    %8865 = vmatpush.bf16.msra.mxu0 %v8076
    %8866 = vmatpush.bf16.msra.mxu0 %v8068
    %8867 = vmatpush.bf16.msra.mxu0 %v8060
    %8868 = vmatpush.bf16.msra.mxu0 %v8052
    %8869 = vmatpush.bf16.msra.mxu0 %v8044
    %8870 = vmatmul.bf16.gmra.mxu0 %v336
    %v8871 = vpop.f32.mrf.mxu0
    %v8872 = vadd.f32 %v7260, %v8871
    %v8873 = vpop.f32.mrf.mxu0
    %8874 = vdwg.mxu0
    %8875 = vmatpush.bf16.msra.mxu0 %v8164
    %8876 = vmatpush.bf16.msra.mxu0 %v8156
    %8877 = vmatpush.bf16.msra.mxu0 %v8148
    %8878 = vmatpush.bf16.msra.mxu0 %v8140
    %8879 = vmatpush.bf16.msra.mxu0 %v8132
    %8880 = vmatpush.bf16.msra.mxu0 %v8124
    %8881 = vmatpush.bf16.msra.mxu0 %v8116
    %8882 = vmatpush.bf16.msra.mxu0 %v8108
    %8883 = vmatmul.bf16.gmra.mxu0 %v337
    %v8884 = vpop.f32.mrf.mxu0
    %v8885 = vadd.f32 %v8872, %v8884
    %v8886 = vpop.f32.mrf.mxu0
    %8887 = vdwg.mxu0
    %8888 = vmatpush.bf16.msra.mxu0 %v8228
    %8889 = vmatpush.bf16.msra.mxu0 %v8220
    %8890 = vmatpush.bf16.msra.mxu0 %v8212
    %8891 = vmatpush.bf16.msra.mxu0 %v8204
    %8892 = vmatpush.bf16.msra.mxu0 %v8196
    %8893 = vmatpush.bf16.msra.mxu0 %v8188
    %8894 = vmatpush.bf16.msra.mxu0 %v8180
    %8895 = vmatpush.bf16.msra.mxu0 %v8172
    %8896 = vmatmul.bf16.gmra.mxu0 %v338
    %v8897 = vpop.f32.mrf.mxu0
    %v8898 = vadd.f32 %v8885, %v8897
    %v8899 = vpop.f32.mrf.mxu0
    %8900 = vdwg.mxu0
    %8901 = vmatpush.bf16.msra.mxu0 %v8292
    %8902 = vmatpush.bf16.msra.mxu0 %v8284
    %8903 = vmatpush.bf16.msra.mxu0 %v8276
    %8904 = vmatpush.bf16.msra.mxu0 %v8268
    %8905 = vmatpush.bf16.msra.mxu0 %v8260
    %8906 = vmatpush.bf16.msra.mxu0 %v8252
    %8907 = vmatpush.bf16.msra.mxu0 %v8244
    %8908 = vmatpush.bf16.msra.mxu0 %v8236
    %8909 = vmatmul.bf16.gmra.mxu0 %v339
    %v8910 = vpop.f32.mrf.mxu0
    %v8911 = vadd.f32 %v8898, %v8910
    %v8912 = vpop.f32.mrf.mxu0
    %8913 = vdwg.mxu0
    %8914 = vmatpush.bf16.msra.mxu0 %v8101
    %8915 = vmatpush.bf16.msra.mxu0 %v8093
    %8916 = vmatpush.bf16.msra.mxu0 %v8085
    %8917 = vmatpush.bf16.msra.mxu0 %v8077
    %8918 = vmatpush.bf16.msra.mxu0 %v8069
    %8919 = vmatpush.bf16.msra.mxu0 %v8061
    %8920 = vmatpush.bf16.msra.mxu0 %v8053
    %8921 = vmatpush.bf16.msra.mxu0 %v8045
    %8922 = vmatmul.bf16.gmra.mxu0 %v336
    %v8923 = vpop.f32.mrf.mxu0
    %v8924 = vadd.f32 %v7261, %v8923
    %v8925 = vpop.f32.mrf.mxu0
    %8926 = vdwg.mxu0
    %8927 = vmatpush.bf16.msra.mxu0 %v8165
    %8928 = vmatpush.bf16.msra.mxu0 %v8157
    %8929 = vmatpush.bf16.msra.mxu0 %v8149
    %8930 = vmatpush.bf16.msra.mxu0 %v8141
    %8931 = vmatpush.bf16.msra.mxu0 %v8133
    %8932 = vmatpush.bf16.msra.mxu0 %v8125
    %8933 = vmatpush.bf16.msra.mxu0 %v8117
    %8934 = vmatpush.bf16.msra.mxu0 %v8109
    %8935 = vmatmul.bf16.gmra.mxu0 %v337
    %v8936 = vpop.f32.mrf.mxu0
    %v8937 = vadd.f32 %v8924, %v8936
    %v8938 = vpop.f32.mrf.mxu0
    %8939 = vdwg.mxu0
    %8940 = vmatpush.bf16.msra.mxu0 %v8229
    %8941 = vmatpush.bf16.msra.mxu0 %v8221
    %8942 = vmatpush.bf16.msra.mxu0 %v8213
    %8943 = vmatpush.bf16.msra.mxu0 %v8205
    %8944 = vmatpush.bf16.msra.mxu0 %v8197
    %8945 = vmatpush.bf16.msra.mxu0 %v8189
    %8946 = vmatpush.bf16.msra.mxu0 %v8181
    %8947 = vmatpush.bf16.msra.mxu0 %v8173
    %8948 = vmatmul.bf16.gmra.mxu0 %v338
    %v8949 = vpop.f32.mrf.mxu0
    %v8950 = vadd.f32 %v8937, %v8949
    %v8951 = vpop.f32.mrf.mxu0
    %8952 = vdwg.mxu0
    %8953 = vmatpush.bf16.msra.mxu0 %v8293
    %8954 = vmatpush.bf16.msra.mxu0 %v8285
    %8955 = vmatpush.bf16.msra.mxu0 %v8277
    %8956 = vmatpush.bf16.msra.mxu0 %v8269
    %8957 = vmatpush.bf16.msra.mxu0 %v8261
    %8958 = vmatpush.bf16.msra.mxu0 %v8253
    %8959 = vmatpush.bf16.msra.mxu0 %v8245
    %8960 = vmatpush.bf16.msra.mxu0 %v8237
    %8961 = vmatmul.bf16.gmra.mxu0 %v339
    %v8962 = vpop.f32.mrf.mxu0
    %v8963 = vadd.f32 %v8950, %v8962
    %v8964 = vpop.f32.mrf.mxu0
    %8965 = vdwg.mxu0
    %v8966 = vmax.f32 %v8599, 0.0
    %v8967 = vmax.f32 %v8651, 0.0
    %v8968 = vmax.f32 %v8703, 0.0
    %v8969 = vmax.f32 %v8755, 0.0
    %v8970 = vmax.f32 %v8807, 0.0
    %v8971 = vmax.f32 %v8859, 0.0
    %v8972 = vmax.f32 %v8911, 0.0
    %v8973 = vmax.f32 %v8963, 0.0
    %v8974 = vmax.f32 %v8966, %v8968
    %v8975 = vmax.f32 %v8967, %v8969
    %v8976 = vmax.f32 %v8970, %v8972
    %v8977 = vmax.f32 %v8971, %v8973
    %v8978 = vmax.f32 %v8974, %v8976
    %v8979 = vmax.f32 %v8975, %v8977
    %v8980 = vpack.c.bf16 %v8979, %v8978
    %v8981 = vld [vmem:[#allocation11] sm:$0xf]
    %v8982 = vld [vmem:[#allocation11 + $0x4] sm:$0xf]
    %v8983 = vld [vmem:[#allocation11 + $0x8] sm:$0xf]
    %v8984 = vld [vmem:[#allocation11 + $0xc] sm:$0xf]
    %v8985 = vld [vmem:[#allocation11 + $0x10] sm:$0xf]
    %v8986 = vld [vmem:[#allocation11 + $0x14] sm:$0xf]
    %v8987 = vld [vmem:[#allocation11 + $0x18] sm:$0xf]
    %v8988 = vld [vmem:[#allocation11 + $0x1c] sm:$0xf]
    %v8989 = vld [vmem:[#allocation11 + $0x20] sm:$0xf]
    %v8990 = vld [vmem:[#allocation11 + $0x24] sm:$0xf]
    %v8991 = vld [vmem:[#allocation11 + $0x28] sm:$0xf]
    %v8992 = vld [vmem:[#allocation11 + $0x2c] sm:$0xf]
    %v8993 = vld [vmem:[#allocation11 + $0x30] sm:$0xf]
    %v8994 = vld [vmem:[#allocation11 + $0x34] sm:$0xf]
    %v8995 = vld [vmem:[#allocation11 + $0x38] sm:$0xf]
    %v8996 = vld [vmem:[#allocation11 + $0x3c] sm:$0xf]
    %v8997 = vld [vmem:[#allocation11 + $0x40] sm:$0xf]
    %v8998 = vld [vmem:[#allocation11 + $0x44] sm:$0xf]
    %v8999 = vld [vmem:[#allocation11 + $0x48] sm:$0xf]
    %v9000 = vld [vmem:[#allocation11 + $0x4c] sm:$0xf]
    %v9001 = vld [vmem:[#allocation11 + $0x50] sm:$0xf]
    %v9002 = vld [vmem:[#allocation11 + $0x54] sm:$0xf]
    %v9003 = vld [vmem:[#allocation11 + $0x58] sm:$0xf]
    %v9004 = vld [vmem:[#allocation11 + $0x5c] sm:$0xf]
    %v9005 = vld [vmem:[#allocation11 + $0x60] sm:$0xf]
    %v9006 = vld [vmem:[#allocation11 + $0x64] sm:$0xf]
    %v9007 = vld [vmem:[#allocation11 + $0x68] sm:$0xf]
    %v9008 = vld [vmem:[#allocation11 + $0x6c] sm:$0xf]
    %v9009 = vld [vmem:[#allocation11 + $0x70] sm:$0xf]
    %v9010 = vld [vmem:[#allocation11 + $0x74] sm:$0xf]
    %v9011 = vld [vmem:[#allocation11 + $0x78] sm:$0xf]
    %v9012 = vld [vmem:[#allocation11 + $0x7c] sm:$0xf]
    %v9013 = vld [vmem:[#allocation11 + $0x80] sm:$0xf]
    %v9014 = vld [vmem:[#allocation11 + $0x84] sm:$0xf]
    %v9015 = vld [vmem:[#allocation11 + $0x88] sm:$0xf]
    %v9016 = vld [vmem:[#allocation11 + $0x8c] sm:$0xf]
    %v9017 = vld [vmem:[#allocation11 + $0x90] sm:$0xf]
    %v9018 = vld [vmem:[#allocation11 + $0x94] sm:$0xf]
    %v9019 = vld [vmem:[#allocation11 + $0x98] sm:$0xf]
    %v9020 = vld [vmem:[#allocation11 + $0x9c] sm:$0xf]
    %v9021 = vld [vmem:[#allocation11 + $0xa0] sm:$0xf]
    %v9022 = vld [vmem:[#allocation11 + $0xa4] sm:$0xf]
    %v9023 = vld [vmem:[#allocation11 + $0xa8] sm:$0xf]
    %v9024 = vld [vmem:[#allocation11 + $0xac] sm:$0xf]
    %v9025 = vld [vmem:[#allocation11 + $0xb0] sm:$0xf]
    %v9026 = vld [vmem:[#allocation11 + $0xb4] sm:$0xf]
    %v9027 = vld [vmem:[#allocation11 + $0xb8] sm:$0xf]
    %v9028 = vld [vmem:[#allocation11 + $0xbc] sm:$0xf]
    %v9029 = vld [vmem:[#allocation11 + $0xc0] sm:$0xf]
    %v9030 = vld [vmem:[#allocation11 + $0xc4] sm:$0xf]
    %v9031 = vld [vmem:[#allocation11 + $0xc8] sm:$0xf]
    %v9032 = vld [vmem:[#allocation11 + $0xcc] sm:$0xf]
    %v9033 = vld [vmem:[#allocation11 + $0xd0] sm:$0xf]
    %v9034 = vld [vmem:[#allocation11 + $0xd4] sm:$0xf]
    %v9035 = vld [vmem:[#allocation11 + $0xd8] sm:$0xf]
    %v9036 = vld [vmem:[#allocation11 + $0xdc] sm:$0xf]
    %v9037 = vld [vmem:[#allocation11 + $0xe0] sm:$0xf]
    %v9038 = vld [vmem:[#allocation11 + $0xe4] sm:$0xf]
    %v9039 = vld [vmem:[#allocation11 + $0xe8] sm:$0xf]
    %v9040 = vld [vmem:[#allocation11 + $0xec] sm:$0xf]
    %v9041 = vld [vmem:[#allocation11 + $0xf0] sm:$0xf]
    %v9042 = vld [vmem:[#allocation11 + $0xf4] sm:$0xf]
    %v9043 = vld [vmem:[#allocation11 + $0xf8] sm:$0xf]
    %v9044 = vld [vmem:[#allocation11 + $0xfc] sm:$0xf]
    %v9045 = vld [vmem:[#allocation13 + $0x14] sm:$0x1]
    %v9047 = vperm.slane %v9045, 0
    %v9050 = vunpack.c.l.b16 %v8980
    %v9051 = vunpack.c.h.b16 %v8980
    %v9052 = vpack.c.b16 %v9050, %v9050
    %v9053 = vpack.c.b16 %v9051, %v9051
    %v9088 = vunpack.c.l.b16 %v8981
    %v9089 = vunpack.c.l.b16 %v8982
    %v9090 = vunpack.c.l.b16 %v8983
    %v9091 = vunpack.c.l.b16 %v8984
    %v9092 = vunpack.c.l.b16 %v8985
    %v9093 = vunpack.c.l.b16 %v8986
    %v9094 = vunpack.c.l.b16 %v8987
    %v9095 = vunpack.c.l.b16 %v8988
    %v9096 = vunpack.c.l.b16 %v8989
    %v9097 = vunpack.c.l.b16 %v8990
    %v9098 = vunpack.c.l.b16 %v8991
    %v9099 = vunpack.c.l.b16 %v8992
    %v9100 = vunpack.c.l.b16 %v8993
    %v9101 = vunpack.c.l.b16 %v8994
    %v9102 = vunpack.c.l.b16 %v8995
    %v9103 = vunpack.c.l.b16 %v8996
    %v9104 = vunpack.c.l.b16 %v8997
    %v9105 = vunpack.c.l.b16 %v8998
    %v9106 = vunpack.c.l.b16 %v8999
    %v9107 = vunpack.c.l.b16 %v9000
    %v9108 = vunpack.c.l.b16 %v9001
    %v9109 = vunpack.c.l.b16 %v9002
    %v9110 = vunpack.c.l.b16 %v9003
    %v9111 = vunpack.c.l.b16 %v9004
    %v9112 = vunpack.c.l.b16 %v9005
    %v9113 = vunpack.c.l.b16 %v9006
    %v9114 = vunpack.c.l.b16 %v9007
    %v9115 = vunpack.c.l.b16 %v9008
    %v9116 = vunpack.c.l.b16 %v9009
    %v9117 = vunpack.c.l.b16 %v9010
    %v9118 = vunpack.c.l.b16 %v9011
    %v9119 = vunpack.c.l.b16 %v9012
    %v9120 = vpack.c.b16 %v9089, %v9088
    %v9121 = vpack.c.b16 %v9091, %v9090
    %v9122 = vpack.c.b16 %v9093, %v9092
    %v9123 = vpack.c.b16 %v9095, %v9094
    %v9124 = vpack.c.b16 %v9097, %v9096
    %v9125 = vpack.c.b16 %v9099, %v9098
    %v9126 = vpack.c.b16 %v9101, %v9100
    %v9127 = vpack.c.b16 %v9103, %v9102
    %v9128 = vpack.c.b16 %v9105, %v9104
    %v9129 = vpack.c.b16 %v9107, %v9106
    %v9130 = vpack.c.b16 %v9109, %v9108
    %v9131 = vpack.c.b16 %v9111, %v9110
    %v9132 = vpack.c.b16 %v9113, %v9112
    %v9133 = vpack.c.b16 %v9115, %v9114
    %v9134 = vpack.c.b16 %v9117, %v9116
    %v9135 = vpack.c.b16 %v9119, %v9118
    %9152 = vmatpush.bf16.msra.mxu0 %v9127
    %9153 = vmatpush.bf16.msra.mxu0 %v9126
    %9154 = vmatpush.bf16.msra.mxu0 %v9125
    %9155 = vmatpush.bf16.msra.mxu0 %v9124
    %9156 = vmatpush.bf16.msra.mxu0 %v9123
    %9157 = vmatpush.bf16.msra.mxu0 %v9122
    %9158 = vmatpush.bf16.msra.mxu0 %v9121
    %9159 = vmatpush.bf16.msra.mxu0 %v9120
    %9160 = vmatmul.bf16.gmra.mxu0 %v9052
    %v9161 = vpop.f32.mrf.mxu0
    %v9162 = vadd.f32 %v9047, %v9161
    %v9163 = vpop.f32.mrf.mxu0
    %9164 = vdwg.mxu0
    %9165 = vmatpush.bf16.msra.mxu0 %v9135
    %9166 = vmatpush.bf16.msra.mxu0 %v9134
    %9167 = vmatpush.bf16.msra.mxu0 %v9133
    %9168 = vmatpush.bf16.msra.mxu0 %v9132
    %9169 = vmatpush.bf16.msra.mxu0 %v9131
    %9170 = vmatpush.bf16.msra.mxu0 %v9130
    %9171 = vmatpush.bf16.msra.mxu0 %v9129
    %9172 = vmatpush.bf16.msra.mxu0 %v9128
    %9173 = vmatmul.bf16.gmra.mxu0 %v9053
    %v9174 = vpop.f32.mrf.mxu0
    %v9175 = vadd.f32 %v9162, %v9174
    %v9176 = vpop.f32.mrf.mxu0
    %9177 = vdwg.mxu0
    %v9178 = vld [vmem:[#allocation8 + $0x1b00] sm:$0xff]
    %v9179 = vld [vmem:[#allocation8 + $0x1b08] sm:$0xff]
    %v9180 = vld [vmem:[#allocation8 + $0x1b10] sm:$0xff]
    %v9181 = vld [vmem:[#allocation8 + $0x1b18] sm:$0xff]
    %v9182 = vld [vmem:[#allocation8 + $0x1b20] sm:$0xff]
    %v9183 = vld [vmem:[#allocation8 + $0x1b28] sm:$0xff]
    %v9184 = vld [vmem:[#allocation8 + $0x1b30] sm:$0xff]
    %v9185 = vld [vmem:[#allocation8 + $0x1b38] sm:$0xff]
    %v9186 = vld [vmem:[#allocation8 + $0x1b40] sm:$0xff]
    %v9187 = vld [vmem:[#allocation8 + $0x1b48] sm:$0xff]
    %v9188 = vld [vmem:[#allocation8 + $0x1b50] sm:$0xff]
    %v9189 = vld [vmem:[#allocation8 + $0x1b58] sm:$0xff]
    %v9190 = vld [vmem:[#allocation8 + $0x1b60] sm:$0xff]
    %v9191 = vld [vmem:[#allocation8 + $0x1b68] sm:$0xff]
    %v9192 = vld [vmem:[#allocation8 + $0x1b70] sm:$0xff]
    %v9193 = vld [vmem:[#allocation8 + $0x1b78] sm:$0xff]
    %v9194 = vld [vmem:[#allocation8 + $0x1b80] sm:$0xff]
    %v9195 = vld [vmem:[#allocation8 + $0x1b88] sm:$0xff]
    %v9196 = vld [vmem:[#allocation8 + $0x1b90] sm:$0xff]
    %v9197 = vld [vmem:[#allocation8 + $0x1b98] sm:$0xff]
    %v9198 = vld [vmem:[#allocation8 + $0x1ba0] sm:$0xff]
    %v9199 = vld [vmem:[#allocation8 + $0x1ba8] sm:$0xff]
    %v9200 = vld [vmem:[#allocation8 + $0x1bb0] sm:$0xff]
    %v9201 = vld [vmem:[#allocation8 + $0x1bb8] sm:$0xff]
    %v9202 = vld [vmem:[#allocation8 + $0x1bc0] sm:$0xff]
    %v9203 = vld [vmem:[#allocation8 + $0x1bc8] sm:$0xff]
    %v9204 = vld [vmem:[#allocation8 + $0x1bd0] sm:$0xff]
    %v9205 = vld [vmem:[#allocation8 + $0x1bd8] sm:$0xff]
    %v9206 = vld [vmem:[#allocation8 + $0x1be0] sm:$0xff]
    %v9207 = vld [vmem:[#allocation8 + $0x1be8] sm:$0xff]
    %v9208 = vld [vmem:[#allocation8 + $0x1bf0] sm:$0xff]
    %v9209 = vld [vmem:[#allocation8 + $0x1bf8] sm:$0xff]
    %v9210 = vld [vmem:[#allocation8 + $0x1c00] sm:$0xff]
    %v9211 = vld [vmem:[#allocation8 + $0x1c08] sm:$0xff]
    %v9212 = vld [vmem:[#allocation8 + $0x1c10] sm:$0xff]
    %v9213 = vld [vmem:[#allocation8 + $0x1c18] sm:$0xff]
    %v9214 = vld [vmem:[#allocation8 + $0x1c20] sm:$0xff]
    %v9215 = vld [vmem:[#allocation8 + $0x1c28] sm:$0xff]
    %v9216 = vld [vmem:[#allocation8 + $0x1c30] sm:$0xff]
    %v9217 = vld [vmem:[#allocation8 + $0x1c38] sm:$0xff]
    %v9218 = vld [vmem:[#allocation8 + $0x1c40] sm:$0xff]
    %v9219 = vld [vmem:[#allocation8 + $0x1c48] sm:$0xff]
    %v9220 = vld [vmem:[#allocation8 + $0x1c50] sm:$0xff]
    %v9221 = vld [vmem:[#allocation8 + $0x1c58] sm:$0xff]
    %v9222 = vld [vmem:[#allocation8 + $0x1c60] sm:$0xff]
    %v9223 = vld [vmem:[#allocation8 + $0x1c68] sm:$0xff]
    %v9224 = vld [vmem:[#allocation8 + $0x1c70] sm:$0xff]
    %v9225 = vld [vmem:[#allocation8 + $0x1c78] sm:$0xff]
    %v9226 = vld [vmem:[#allocation8 + $0x1c80] sm:$0xff]
    %v9227 = vld [vmem:[#allocation8 + $0x1c88] sm:$0xff]
    %v9228 = vld [vmem:[#allocation8 + $0x1c90] sm:$0xff]
    %v9229 = vld [vmem:[#allocation8 + $0x1c98] sm:$0xff]
    %v9230 = vld [vmem:[#allocation8 + $0x1ca0] sm:$0xff]
    %v9231 = vld [vmem:[#allocation8 + $0x1ca8] sm:$0xff]
    %v9232 = vld [vmem:[#allocation8 + $0x1cb0] sm:$0xff]
    %v9233 = vld [vmem:[#allocation8 + $0x1cb8] sm:$0xff]
    %v9234 = vld [vmem:[#allocation8 + $0x1cc0] sm:$0xff]
    %v9235 = vld [vmem:[#allocation8 + $0x1cc8] sm:$0xff]
    %v9236 = vld [vmem:[#allocation8 + $0x1cd0] sm:$0xff]
    %v9237 = vld [vmem:[#allocation8 + $0x1cd8] sm:$0xff]
    %v9238 = vld [vmem:[#allocation8 + $0x1ce0] sm:$0xff]
    %v9239 = vld [vmem:[#allocation8 + $0x1ce8] sm:$0xff]
    %v9240 = vld [vmem:[#allocation8 + $0x1cf0] sm:$0xff]
    %v9241 = vld [vmem:[#allocation8 + $0x1cf8] sm:$0xff]
    %v9242 = vld [vmem:[#allocation13 + $0x15] sm:$0x3]
    %v9243 = vld [vmem:[#allocation13 + $0x17] sm:$0x1]
    %v9244 = vrot.slane %v6780, 7
    %v9245 = vrot.slane %v6781, 7
    %vm9246 = vcmask 1040384
    %v9249 = vsel %vm9246, %v4050, %v9244
    %v9253 = vsel %vm9246, %v4051, %v9245
    %v9255 = vrot.slane %v9052, 7
    %v9256 = vrot.slane %v9053, 7
    %v9259 = vsel %vm9246, %v5048, %v9255
    %v9263 = vsel %vm9246, %v5049, %v9256
    %v9266 = vperm.slane %v9242, 0
    %v9267 = vperm.slane %v9242, 1
    %v9334 = vunpack.c.l.b16 %v9178
    %v9335 = vunpack.c.h.b16 %v9178
    %v9336 = vunpack.c.l.b16 %v9179
    %v9337 = vunpack.c.h.b16 %v9179
    %v9338 = vunpack.c.l.b16 %v9180
    %v9339 = vunpack.c.h.b16 %v9180
    %v9340 = vunpack.c.l.b16 %v9181
    %v9341 = vunpack.c.h.b16 %v9181
    %v9342 = vunpack.c.l.b16 %v9182
    %v9343 = vunpack.c.h.b16 %v9182
    %v9344 = vunpack.c.l.b16 %v9183
    %v9345 = vunpack.c.h.b16 %v9183
    %v9346 = vunpack.c.l.b16 %v9184
    %v9347 = vunpack.c.h.b16 %v9184
    %v9348 = vunpack.c.l.b16 %v9185
    %v9349 = vunpack.c.h.b16 %v9185
    %v9350 = vunpack.c.l.b16 %v9186
    %v9351 = vunpack.c.h.b16 %v9186
    %v9352 = vunpack.c.l.b16 %v9187
    %v9353 = vunpack.c.h.b16 %v9187
    %v9354 = vunpack.c.l.b16 %v9188
    %v9355 = vunpack.c.h.b16 %v9188
    %v9356 = vunpack.c.l.b16 %v9189
    %v9357 = vunpack.c.h.b16 %v9189
    %v9358 = vunpack.c.l.b16 %v9190
    %v9359 = vunpack.c.h.b16 %v9190
    %v9360 = vunpack.c.l.b16 %v9191
    %v9361 = vunpack.c.h.b16 %v9191
    %v9362 = vunpack.c.l.b16 %v9192
    %v9363 = vunpack.c.h.b16 %v9192
    %v9364 = vunpack.c.l.b16 %v9193
    %v9365 = vunpack.c.h.b16 %v9193
    %v9366 = vunpack.c.l.b16 %v9194
    %v9367 = vunpack.c.h.b16 %v9194
    %v9368 = vunpack.c.l.b16 %v9195
    %v9369 = vunpack.c.h.b16 %v9195
    %v9370 = vunpack.c.l.b16 %v9196
    %v9371 = vunpack.c.h.b16 %v9196
    %v9372 = vunpack.c.l.b16 %v9197
    %v9373 = vunpack.c.h.b16 %v9197
    %v9374 = vunpack.c.l.b16 %v9198
    %v9375 = vunpack.c.h.b16 %v9198
    %v9376 = vunpack.c.l.b16 %v9199
    %v9377 = vunpack.c.h.b16 %v9199
    %v9378 = vunpack.c.l.b16 %v9200
    %v9379 = vunpack.c.h.b16 %v9200
    %v9380 = vunpack.c.l.b16 %v9201
    %v9381 = vunpack.c.h.b16 %v9201
    %v9382 = vunpack.c.l.b16 %v9202
    %v9383 = vunpack.c.h.b16 %v9202
    %v9384 = vunpack.c.l.b16 %v9203
    %v9385 = vunpack.c.h.b16 %v9203
    %v9386 = vunpack.c.l.b16 %v9204
    %v9387 = vunpack.c.h.b16 %v9204
    %v9388 = vunpack.c.l.b16 %v9205
    %v9389 = vunpack.c.h.b16 %v9205
    %v9390 = vunpack.c.l.b16 %v9206
    %v9391 = vunpack.c.h.b16 %v9206
    %v9392 = vunpack.c.l.b16 %v9207
    %v9393 = vunpack.c.h.b16 %v9207
    %v9394 = vunpack.c.l.b16 %v9208
    %v9395 = vunpack.c.h.b16 %v9208
    %v9396 = vunpack.c.l.b16 %v9209
    %v9397 = vunpack.c.h.b16 %v9209
    %v9398 = vunpack.c.l.b16 %v9210
    %v9399 = vunpack.c.h.b16 %v9210
    %v9400 = vunpack.c.l.b16 %v9211
    %v9401 = vunpack.c.h.b16 %v9211
    %v9402 = vunpack.c.l.b16 %v9212
    %v9403 = vunpack.c.h.b16 %v9212
    %v9404 = vunpack.c.l.b16 %v9213
    %v9405 = vunpack.c.h.b16 %v9213
    %v9406 = vunpack.c.l.b16 %v9214
    %v9407 = vunpack.c.h.b16 %v9214
    %v9408 = vunpack.c.l.b16 %v9215
    %v9409 = vunpack.c.h.b16 %v9215
    %v9410 = vunpack.c.l.b16 %v9216
    %v9411 = vunpack.c.h.b16 %v9216
    %v9412 = vunpack.c.l.b16 %v9217
    %v9413 = vunpack.c.h.b16 %v9217
    %v9414 = vunpack.c.l.b16 %v9218
    %v9415 = vunpack.c.h.b16 %v9218
    %v9416 = vunpack.c.l.b16 %v9219
    %v9417 = vunpack.c.h.b16 %v9219
    %v9418 = vunpack.c.l.b16 %v9220
    %v9419 = vunpack.c.h.b16 %v9220
    %v9420 = vunpack.c.l.b16 %v9221
    %v9421 = vunpack.c.h.b16 %v9221
    %v9422 = vunpack.c.l.b16 %v9222
    %v9423 = vunpack.c.h.b16 %v9222
    %v9424 = vunpack.c.l.b16 %v9223
    %v9425 = vunpack.c.h.b16 %v9223
    %v9426 = vunpack.c.l.b16 %v9224
    %v9427 = vunpack.c.h.b16 %v9224
    %v9428 = vunpack.c.l.b16 %v9225
    %v9429 = vunpack.c.h.b16 %v9225
    %v9430 = vunpack.c.l.b16 %v9226
    %v9431 = vunpack.c.h.b16 %v9226
    %v9432 = vunpack.c.l.b16 %v9227
    %v9433 = vunpack.c.h.b16 %v9227
    %v9434 = vunpack.c.l.b16 %v9228
    %v9435 = vunpack.c.h.b16 %v9228
    %v9436 = vunpack.c.l.b16 %v9229
    %v9437 = vunpack.c.h.b16 %v9229
    %v9438 = vunpack.c.l.b16 %v9230
    %v9439 = vunpack.c.h.b16 %v9230
    %v9440 = vunpack.c.l.b16 %v9231
    %v9441 = vunpack.c.h.b16 %v9231
    %v9442 = vunpack.c.l.b16 %v9232
    %v9443 = vunpack.c.h.b16 %v9232
    %v9444 = vunpack.c.l.b16 %v9233
    %v9445 = vunpack.c.h.b16 %v9233
    %v9446 = vunpack.c.l.b16 %v9234
    %v9447 = vunpack.c.h.b16 %v9234
    %v9448 = vunpack.c.l.b16 %v9235
    %v9449 = vunpack.c.h.b16 %v9235
    %v9450 = vunpack.c.l.b16 %v9236
    %v9451 = vunpack.c.h.b16 %v9236
    %v9452 = vunpack.c.l.b16 %v9237
    %v9453 = vunpack.c.h.b16 %v9237
    %v9454 = vunpack.c.l.b16 %v9238
    %v9455 = vunpack.c.h.b16 %v9238
    %v9456 = vunpack.c.l.b16 %v9239
    %v9457 = vunpack.c.h.b16 %v9239
    %v9458 = vunpack.c.l.b16 %v9240
    %v9459 = vunpack.c.h.b16 %v9240
    %v9460 = vunpack.c.l.b16 %v9241
    %v9461 = vunpack.c.h.b16 %v9241
    %v9462 = vpack.c.b16 %v9336, %v9334
    %v9463 = vpack.c.b16 %v9337, %v9335
    %v9464 = vpack.c.b16 %v9340, %v9338
    %v9465 = vpack.c.b16 %v9341, %v9339
    %v9466 = vpack.c.b16 %v9344, %v9342
    %v9467 = vpack.c.b16 %v9345, %v9343
    %v9468 = vpack.c.b16 %v9348, %v9346
    %v9469 = vpack.c.b16 %v9349, %v9347
    %v9470 = vpack.c.b16 %v9352, %v9350
    %v9471 = vpack.c.b16 %v9353, %v9351
    %v9472 = vpack.c.b16 %v9356, %v9354
    %v9473 = vpack.c.b16 %v9357, %v9355
    %v9474 = vpack.c.b16 %v9360, %v9358
    %v9475 = vpack.c.b16 %v9361, %v9359
    %v9476 = vpack.c.b16 %v9364, %v9362
    %v9477 = vpack.c.b16 %v9365, %v9363
    %v9478 = vpack.c.b16 %v9368, %v9366
    %v9479 = vpack.c.b16 %v9369, %v9367
    %v9480 = vpack.c.b16 %v9372, %v9370
    %v9481 = vpack.c.b16 %v9373, %v9371
    %v9482 = vpack.c.b16 %v9376, %v9374
    %v9483 = vpack.c.b16 %v9377, %v9375
    %v9484 = vpack.c.b16 %v9380, %v9378
    %v9485 = vpack.c.b16 %v9381, %v9379
    %v9486 = vpack.c.b16 %v9384, %v9382
    %v9487 = vpack.c.b16 %v9385, %v9383
    %v9488 = vpack.c.b16 %v9388, %v9386
    %v9489 = vpack.c.b16 %v9389, %v9387
    %v9490 = vpack.c.b16 %v9392, %v9390
    %v9491 = vpack.c.b16 %v9393, %v9391
    %v9492 = vpack.c.b16 %v9396, %v9394
    %v9493 = vpack.c.b16 %v9397, %v9395
    %v9494 = vpack.c.b16 %v9400, %v9398
    %v9495 = vpack.c.b16 %v9401, %v9399
    %v9496 = vpack.c.b16 %v9404, %v9402
    %v9497 = vpack.c.b16 %v9405, %v9403
    %v9498 = vpack.c.b16 %v9408, %v9406
    %v9499 = vpack.c.b16 %v9409, %v9407
    %v9500 = vpack.c.b16 %v9412, %v9410
    %v9501 = vpack.c.b16 %v9413, %v9411
    %v9502 = vpack.c.b16 %v9416, %v9414
    %v9503 = vpack.c.b16 %v9417, %v9415
    %v9504 = vpack.c.b16 %v9420, %v9418
    %v9505 = vpack.c.b16 %v9421, %v9419
    %v9506 = vpack.c.b16 %v9424, %v9422
    %v9507 = vpack.c.b16 %v9425, %v9423
    %v9508 = vpack.c.b16 %v9428, %v9426
    %v9509 = vpack.c.b16 %v9429, %v9427
    %v9510 = vpack.c.b16 %v9432, %v9430
    %v9511 = vpack.c.b16 %v9433, %v9431
    %v9512 = vpack.c.b16 %v9436, %v9434
    %v9513 = vpack.c.b16 %v9437, %v9435
    %v9514 = vpack.c.b16 %v9440, %v9438
    %v9515 = vpack.c.b16 %v9441, %v9439
    %v9516 = vpack.c.b16 %v9444, %v9442
    %v9517 = vpack.c.b16 %v9445, %v9443
    %v9518 = vpack.c.b16 %v9448, %v9446
    %v9519 = vpack.c.b16 %v9449, %v9447
    %v9520 = vpack.c.b16 %v9452, %v9450
    %v9521 = vpack.c.b16 %v9453, %v9451
    %v9522 = vpack.c.b16 %v9456, %v9454
    %v9523 = vpack.c.b16 %v9457, %v9455
    %v9524 = vpack.c.b16 %v9460, %v9458
    %v9525 = vpack.c.b16 %v9461, %v9459
    %9590 = vmatpush.bf16.msra.mxu0 %v9476
    %9591 = vmatpush.bf16.msra.mxu0 %v9474
    %9592 = vmatpush.bf16.msra.mxu0 %v9472
    %9593 = vmatpush.bf16.msra.mxu0 %v9470
    %9594 = vmatpush.bf16.msra.mxu0 %v9468
    %9595 = vmatpush.bf16.msra.mxu0 %v9466
    %9596 = vmatpush.bf16.msra.mxu0 %v9464
    %9597 = vmatpush.bf16.msra.mxu0 %v9462
    %9598 = vmatmul.bf16.gmra.mxu0 %v9249
    %v9599 = vpop.f32.mrf.mxu0
    %v9600 = vadd.f32 %v9266, %v9599
    %v9601 = vpop.f32.mrf.mxu0
    %9602 = vdwg.mxu0
    %9603 = vmatpush.bf16.msra.mxu0 %v9492
    %9604 = vmatpush.bf16.msra.mxu0 %v9490
    %9605 = vmatpush.bf16.msra.mxu0 %v9488
    %9606 = vmatpush.bf16.msra.mxu0 %v9486
    %9607 = vmatpush.bf16.msra.mxu0 %v9484
    %9608 = vmatpush.bf16.msra.mxu0 %v9482
    %9609 = vmatpush.bf16.msra.mxu0 %v9480
    %9610 = vmatpush.bf16.msra.mxu0 %v9478
    %9611 = vmatmul.bf16.gmra.mxu0 %v9253
    %v9612 = vpop.f32.mrf.mxu0
    %v9613 = vadd.f32 %v9600, %v9612
    %v9614 = vpop.f32.mrf.mxu0
    %9615 = vdwg.mxu0
    %9616 = vmatpush.bf16.msra.mxu0 %v9508
    %9617 = vmatpush.bf16.msra.mxu0 %v9506
    %9618 = vmatpush.bf16.msra.mxu0 %v9504
    %9619 = vmatpush.bf16.msra.mxu0 %v9502
    %9620 = vmatpush.bf16.msra.mxu0 %v9500
    %9621 = vmatpush.bf16.msra.mxu0 %v9498
    %9622 = vmatpush.bf16.msra.mxu0 %v9496
    %9623 = vmatpush.bf16.msra.mxu0 %v9494
    %9624 = vmatmul.bf16.gmra.mxu0 %v9259
    %v9625 = vpop.f32.mrf.mxu0
    %v9626 = vadd.f32 %v9613, %v9625
    %v9627 = vpop.f32.mrf.mxu0
    %9628 = vdwg.mxu0
    %9629 = vmatpush.bf16.msra.mxu0 %v9524
    %9630 = vmatpush.bf16.msra.mxu0 %v9522
    %9631 = vmatpush.bf16.msra.mxu0 %v9520
    %9632 = vmatpush.bf16.msra.mxu0 %v9518
    %9633 = vmatpush.bf16.msra.mxu0 %v9516
    %9634 = vmatpush.bf16.msra.mxu0 %v9514
    %9635 = vmatpush.bf16.msra.mxu0 %v9512
    %9636 = vmatpush.bf16.msra.mxu0 %v9510
    %9637 = vmatmul.bf16.gmra.mxu0 %v9263
    %v9638 = vpop.f32.mrf.mxu0
    %v9639 = vadd.f32 %v9626, %v9638
    %v9640 = vpop.f32.mrf.mxu0
    %9641 = vdwg.mxu0
    %9642 = vmatpush.bf16.msra.mxu0 %v9477
    %9643 = vmatpush.bf16.msra.mxu0 %v9475
    %9644 = vmatpush.bf16.msra.mxu0 %v9473
    %9645 = vmatpush.bf16.msra.mxu0 %v9471
    %9646 = vmatpush.bf16.msra.mxu0 %v9469
    %9647 = vmatpush.bf16.msra.mxu0 %v9467
    %9648 = vmatpush.bf16.msra.mxu0 %v9465
    %9649 = vmatpush.bf16.msra.mxu0 %v9463
    %9650 = vmatmul.bf16.gmra.mxu0 %v9249
    %v9651 = vpop.f32.mrf.mxu0
    %v9652 = vadd.f32 %v9267, %v9651
    %v9653 = vpop.f32.mrf.mxu0
    %9654 = vdwg.mxu0
    %9655 = vmatpush.bf16.msra.mxu0 %v9493
    %9656 = vmatpush.bf16.msra.mxu0 %v9491
    %9657 = vmatpush.bf16.msra.mxu0 %v9489
    %9658 = vmatpush.bf16.msra.mxu0 %v9487
    %9659 = vmatpush.bf16.msra.mxu0 %v9485
    %9660 = vmatpush.bf16.msra.mxu0 %v9483
    %9661 = vmatpush.bf16.msra.mxu0 %v9481
    %9662 = vmatpush.bf16.msra.mxu0 %v9479
    %9663 = vmatmul.bf16.gmra.mxu0 %v9253
    %v9664 = vpop.f32.mrf.mxu0
    %v9665 = vadd.f32 %v9652, %v9664
    %v9666 = vpop.f32.mrf.mxu0
    %9667 = vdwg.mxu0
    %9668 = vmatpush.bf16.msra.mxu0 %v9509
    %9669 = vmatpush.bf16.msra.mxu0 %v9507
    %9670 = vmatpush.bf16.msra.mxu0 %v9505
    %9671 = vmatpush.bf16.msra.mxu0 %v9503
    %9672 = vmatpush.bf16.msra.mxu0 %v9501
    %9673 = vmatpush.bf16.msra.mxu0 %v9499
    %9674 = vmatpush.bf16.msra.mxu0 %v9497
    %9675 = vmatpush.bf16.msra.mxu0 %v9495
    %9676 = vmatmul.bf16.gmra.mxu0 %v9259
    %v9677 = vpop.f32.mrf.mxu0
    %v9678 = vadd.f32 %v9665, %v9677
    %v9679 = vpop.f32.mrf.mxu0
    %9680 = vdwg.mxu0
    %9681 = vmatpush.bf16.msra.mxu0 %v9525
    %9682 = vmatpush.bf16.msra.mxu0 %v9523
    %9683 = vmatpush.bf16.msra.mxu0 %v9521
    %9684 = vmatpush.bf16.msra.mxu0 %v9519
    %9685 = vmatpush.bf16.msra.mxu0 %v9517
    %9686 = vmatpush.bf16.msra.mxu0 %v9515
    %9687 = vmatpush.bf16.msra.mxu0 %v9513
    %9688 = vmatpush.bf16.msra.mxu0 %v9511
    %9689 = vmatmul.bf16.gmra.mxu0 %v9263
    %v9690 = vpop.f32.mrf.mxu0
    %v9691 = vadd.f32 %v9678, %v9690
    %v9692 = vpop.f32.mrf.mxu0
    %9693 = vdwg.mxu0
    %v9694 = vmax.f32 %v9639, 0.0
    %v9695 = vmax.f32 %v9691, 0.0
    %v9696 = vpack.c.bf16 %v9695, %v9694
    %v9698 = vperm.slane %v9243, 0
    %v9701 = vunpack.c.l.b16 %v9696
    %v9702 = vunpack.c.h.b16 %v9696
    %v9703 = vpack.c.b16 %v9701, %v9701
    %v9704 = vpack.c.b16 %v9702, %v9702
    %v9739 = vunpack.c.l.b16 %v9013
    %v9740 = vunpack.c.l.b16 %v9014
    %v9741 = vunpack.c.l.b16 %v9015
    %v9742 = vunpack.c.l.b16 %v9016
    %v9743 = vunpack.c.l.b16 %v9017
    %v9744 = vunpack.c.l.b16 %v9018
    %v9745 = vunpack.c.l.b16 %v9019
    %v9746 = vunpack.c.l.b16 %v9020
    %v9747 = vunpack.c.l.b16 %v9021
    %v9748 = vunpack.c.l.b16 %v9022
    %v9749 = vunpack.c.l.b16 %v9023
    %v9750 = vunpack.c.l.b16 %v9024
    %v9751 = vunpack.c.l.b16 %v9025
    %v9752 = vunpack.c.l.b16 %v9026
    %v9753 = vunpack.c.l.b16 %v9027
    %v9754 = vunpack.c.l.b16 %v9028
    %v9755 = vunpack.c.l.b16 %v9029
    %v9756 = vunpack.c.l.b16 %v9030
    %v9757 = vunpack.c.l.b16 %v9031
    %v9758 = vunpack.c.l.b16 %v9032
    %v9759 = vunpack.c.l.b16 %v9033
    %v9760 = vunpack.c.l.b16 %v9034
    %v9761 = vunpack.c.l.b16 %v9035
    %v9762 = vunpack.c.l.b16 %v9036
    %v9763 = vunpack.c.l.b16 %v9037
    %v9764 = vunpack.c.l.b16 %v9038
    %v9765 = vunpack.c.l.b16 %v9039
    %v9766 = vunpack.c.l.b16 %v9040
    %v9767 = vunpack.c.l.b16 %v9041
    %v9768 = vunpack.c.l.b16 %v9042
    %v9769 = vunpack.c.l.b16 %v9043
    %v9770 = vunpack.c.l.b16 %v9044
    %v9771 = vpack.c.b16 %v9740, %v9739
    %v9772 = vpack.c.b16 %v9742, %v9741
    %v9773 = vpack.c.b16 %v9744, %v9743
    %v9774 = vpack.c.b16 %v9746, %v9745
    %v9775 = vpack.c.b16 %v9748, %v9747
    %v9776 = vpack.c.b16 %v9750, %v9749
    %v9777 = vpack.c.b16 %v9752, %v9751
    %v9778 = vpack.c.b16 %v9754, %v9753
    %v9779 = vpack.c.b16 %v9756, %v9755
    %v9780 = vpack.c.b16 %v9758, %v9757
    %v9781 = vpack.c.b16 %v9760, %v9759
    %v9782 = vpack.c.b16 %v9762, %v9761
    %v9783 = vpack.c.b16 %v9764, %v9763
    %v9784 = vpack.c.b16 %v9766, %v9765
    %v9785 = vpack.c.b16 %v9768, %v9767
    %v9786 = vpack.c.b16 %v9770, %v9769
    %9803 = vmatpush.bf16.msra.mxu0 %v9778
    %9804 = vmatpush.bf16.msra.mxu0 %v9777
    %9805 = vmatpush.bf16.msra.mxu0 %v9776
    %9806 = vmatpush.bf16.msra.mxu0 %v9775
    %9807 = vmatpush.bf16.msra.mxu0 %v9774
    %9808 = vmatpush.bf16.msra.mxu0 %v9773
    %9809 = vmatpush.bf16.msra.mxu0 %v9772
    %9810 = vmatpush.bf16.msra.mxu0 %v9771
    %9811 = vmatmul.bf16.gmra.mxu0 %v9703
    %v9812 = vpop.f32.mrf.mxu0
    %v9813 = vadd.f32 %v9698, %v9812
    %v9814 = vpop.f32.mrf.mxu0
    %9815 = vdwg.mxu0
    %9816 = vmatpush.bf16.msra.mxu0 %v9786
    %9817 = vmatpush.bf16.msra.mxu0 %v9785
    %9818 = vmatpush.bf16.msra.mxu0 %v9784
    %9819 = vmatpush.bf16.msra.mxu0 %v9783
    %9820 = vmatpush.bf16.msra.mxu0 %v9782
    %9821 = vmatpush.bf16.msra.mxu0 %v9781
    %9822 = vmatpush.bf16.msra.mxu0 %v9780
    %9823 = vmatpush.bf16.msra.mxu0 %v9779
    %9824 = vmatmul.bf16.gmra.mxu0 %v9704
    %v9825 = vpop.f32.mrf.mxu0
    %v9826 = vadd.f32 %v9813, %v9825
    %v9827 = vpop.f32.mrf.mxu0
    %9828 = vdwg.mxu0
    %v9829 = vrot.slane %v9703, 1
    %v9830 = vrot.slane %v9704, 1
    %9833 = vmatpush.bf16.msra.mxu0 %v9476
    %9834 = vmatpush.bf16.msra.mxu0 %v9474
    %9835 = vmatpush.bf16.msra.mxu0 %v9472
    %9836 = vmatpush.bf16.msra.mxu0 %v9470
    %9837 = vmatpush.bf16.msra.mxu0 %v9468
    %9838 = vmatpush.bf16.msra.mxu0 %v9466
    %9839 = vmatpush.bf16.msra.mxu0 %v9464
    %9840 = vmatpush.bf16.msra.mxu0 %v9462
    %9841 = vmatmul.bf16.gmra.mxu0 %v9703
    %v9842 = vpop.f32.mrf.mxu0
    %v9843 = vadd.f32 %v9266, %v9842
    %v9844 = vpop.f32.mrf.mxu0
    %9845 = vdwg.mxu0
    %9846 = vmatpush.bf16.msra.mxu0 %v9492
    %9847 = vmatpush.bf16.msra.mxu0 %v9490
    %9848 = vmatpush.bf16.msra.mxu0 %v9488
    %9849 = vmatpush.bf16.msra.mxu0 %v9486
    %9850 = vmatpush.bf16.msra.mxu0 %v9484
    %9851 = vmatpush.bf16.msra.mxu0 %v9482
    %9852 = vmatpush.bf16.msra.mxu0 %v9480
    %9853 = vmatpush.bf16.msra.mxu0 %v9478
    %9854 = vmatmul.bf16.gmra.mxu0 %v9704
    %v9855 = vpop.f32.mrf.mxu0
    %v9856 = vadd.f32 %v9843, %v9855
    %v9857 = vpop.f32.mrf.mxu0
    %9858 = vdwg.mxu0
    %9859 = vmatpush.bf16.msra.mxu0 %v9508
    %9860 = vmatpush.bf16.msra.mxu0 %v9506
    %9861 = vmatpush.bf16.msra.mxu0 %v9504
    %9862 = vmatpush.bf16.msra.mxu0 %v9502
    %9863 = vmatpush.bf16.msra.mxu0 %v9500
    %9864 = vmatpush.bf16.msra.mxu0 %v9498
    %9865 = vmatpush.bf16.msra.mxu0 %v9496
    %9866 = vmatpush.bf16.msra.mxu0 %v9494
    %9867 = vmatmul.bf16.gmra.mxu0 %v9829
    %v9868 = vpop.f32.mrf.mxu0
    %v9869 = vadd.f32 %v9856, %v9868
    %v9870 = vpop.f32.mrf.mxu0
    %9871 = vdwg.mxu0
    %9872 = vmatpush.bf16.msra.mxu0 %v9524
    %9873 = vmatpush.bf16.msra.mxu0 %v9522
    %9874 = vmatpush.bf16.msra.mxu0 %v9520
    %9875 = vmatpush.bf16.msra.mxu0 %v9518
    %9876 = vmatpush.bf16.msra.mxu0 %v9516
    %9877 = vmatpush.bf16.msra.mxu0 %v9514
    %9878 = vmatpush.bf16.msra.mxu0 %v9512
    %9879 = vmatpush.bf16.msra.mxu0 %v9510
    %9880 = vmatmul.bf16.gmra.mxu0 %v9830
    %v9881 = vpop.f32.mrf.mxu0
    %v9882 = vadd.f32 %v9869, %v9881
    %v9883 = vpop.f32.mrf.mxu0
    %9884 = vdwg.mxu0
    %9885 = vmatpush.bf16.msra.mxu0 %v9477
    %9886 = vmatpush.bf16.msra.mxu0 %v9475
    %9887 = vmatpush.bf16.msra.mxu0 %v9473
    %9888 = vmatpush.bf16.msra.mxu0 %v9471
    %9889 = vmatpush.bf16.msra.mxu0 %v9469
    %9890 = vmatpush.bf16.msra.mxu0 %v9467
    %9891 = vmatpush.bf16.msra.mxu0 %v9465
    %9892 = vmatpush.bf16.msra.mxu0 %v9463
    %9893 = vmatmul.bf16.gmra.mxu0 %v9703
    %v9894 = vpop.f32.mrf.mxu0
    %v9895 = vadd.f32 %v9267, %v9894
    %v9896 = vpop.f32.mrf.mxu0
    %9897 = vdwg.mxu0
    %9898 = vmatpush.bf16.msra.mxu0 %v9493
    %9899 = vmatpush.bf16.msra.mxu0 %v9491
    %9900 = vmatpush.bf16.msra.mxu0 %v9489
    %9901 = vmatpush.bf16.msra.mxu0 %v9487
    %9902 = vmatpush.bf16.msra.mxu0 %v9485
    %9903 = vmatpush.bf16.msra.mxu0 %v9483
    %9904 = vmatpush.bf16.msra.mxu0 %v9481
    %9905 = vmatpush.bf16.msra.mxu0 %v9479
    %9906 = vmatmul.bf16.gmra.mxu0 %v9704
    %v9907 = vpop.f32.mrf.mxu0
    %v9908 = vadd.f32 %v9895, %v9907
    %v9909 = vpop.f32.mrf.mxu0
    %9910 = vdwg.mxu0
    %9911 = vmatpush.bf16.msra.mxu0 %v9509
    %9912 = vmatpush.bf16.msra.mxu0 %v9507
    %9913 = vmatpush.bf16.msra.mxu0 %v9505
    %9914 = vmatpush.bf16.msra.mxu0 %v9503
    %9915 = vmatpush.bf16.msra.mxu0 %v9501
    %9916 = vmatpush.bf16.msra.mxu0 %v9499
    %9917 = vmatpush.bf16.msra.mxu0 %v9497
    %9918 = vmatpush.bf16.msra.mxu0 %v9495
    %9919 = vmatmul.bf16.gmra.mxu0 %v9829
    %v9920 = vpop.f32.mrf.mxu0
    %v9921 = vadd.f32 %v9908, %v9920
    %v9922 = vpop.f32.mrf.mxu0
    %9923 = vdwg.mxu0
    %9924 = vmatpush.bf16.msra.mxu0 %v9525
    %9925 = vmatpush.bf16.msra.mxu0 %v9523
    %9926 = vmatpush.bf16.msra.mxu0 %v9521
    %9927 = vmatpush.bf16.msra.mxu0 %v9519
    %9928 = vmatpush.bf16.msra.mxu0 %v9517
    %9929 = vmatpush.bf16.msra.mxu0 %v9515
    %9930 = vmatpush.bf16.msra.mxu0 %v9513
    %9931 = vmatpush.bf16.msra.mxu0 %v9511
    %9932 = vmatmul.bf16.gmra.mxu0 %v9830
    %v9933 = vpop.f32.mrf.mxu0
    %v9934 = vadd.f32 %v9921, %v9933
    %v9935 = vpop.f32.mrf.mxu0
    %9936 = vdwg.mxu0
    %v9937 = vmax.f32 %v9882, 0.0
    %v9938 = vmax.f32 %v9934, 0.0
    %v9939 = vpack.c.bf16 %v9937, %v9937
    %v9940 = vpack.c.bf16 %v9938, %v9938
    %9941 = vmatpush.bf16.msra.mxu0 %v9778
    %9942 = vmatpush.bf16.msra.mxu0 %v9777
    %9943 = vmatpush.bf16.msra.mxu0 %v9776
    %9944 = vmatpush.bf16.msra.mxu0 %v9775
    %9945 = vmatpush.bf16.msra.mxu0 %v9774
    %9946 = vmatpush.bf16.msra.mxu0 %v9773
    %9947 = vmatpush.bf16.msra.mxu0 %v9772
    %9948 = vmatpush.bf16.msra.mxu0 %v9771
    %9949 = vmatmul.bf16.gmra.mxu0 %v9939
    %v9950 = vpop.f32.mrf.mxu0
    %v9951 = vadd.f32 %v9698, %v9950
    %v9952 = vpop.f32.mrf.mxu0
    %9953 = vdwg.mxu0
    %9954 = vmatpush.bf16.msra.mxu0 %v9786
    %9955 = vmatpush.bf16.msra.mxu0 %v9785
    %9956 = vmatpush.bf16.msra.mxu0 %v9784
    %9957 = vmatpush.bf16.msra.mxu0 %v9783
    %9958 = vmatpush.bf16.msra.mxu0 %v9782
    %9959 = vmatpush.bf16.msra.mxu0 %v9781
    %9960 = vmatpush.bf16.msra.mxu0 %v9780
    %9961 = vmatpush.bf16.msra.mxu0 %v9779
    %9962 = vmatmul.bf16.gmra.mxu0 %v9940
    %v9963 = vpop.f32.mrf.mxu0
    %v9964 = vadd.f32 %v9951, %v9963
    %v9965 = vpop.f32.mrf.mxu0
    %9966 = vdwg.mxu0
    %9967 = vst [vmem:[#allocation14] sm:$0x3] %v4237
    %9968 = vst [vmem:[#allocation14 + $0x2] sm:$0x3] %v5235
    %9969 = vst [vmem:[#allocation14 + $0x4] sm:$0x3] %v6967
    %v9972 = vrot.slane %v8979, 6
    %vm9973 = vcmask 1041408
    %v9974 = vsel %vm9973, %v8978, %v9972
    %9976 = vst [vmem:[#allocation14 + $0x6] sm:$0xf] %v9974
    %v9979 = vrot.slane %v9938, 6
    %v9980 = vsel %vm9973, %v9937, %v9979
    %9982 = vst [vmem:[#allocation14 + $0xa] sm:$0xf] %v9980
    %v9984 = vrot.slane %v5261, 6
    %v9987 = vrot.slane %v6993, 4
    %v9990 = vrot.slane %v9175, 2
    %v9993 = vrot.slane %v9964, 4
    %v9995 = vsel %vm9973, %v4263, %v9984
    %vm9996 = vcmask 1043456
    %v9997 = vsel %vm9996, %v9995, %v9987
    %vm9998 = vcmask 1045504
    %v9999 = vsel %vm9998, %v9997, %v9990
    %v10000 = vsel %vm9996, %v9826, %v9993
    %v10001 = vlaneseq
    %v10002 = vand.u32 %v10001, 127
    %vm10003 = vcmp.lt.s32.totalorder %v10002, 40
    %v10004 = vsel %vm10003, %v9999, inf
    %v10005 = vsel %vm10003, %v10000, inf
    %10006 = vmin.xlane.f32.xlu0 %v10004
    %v10007 = vpop.xlane.xlu0 %10006
    %v10008 = vsel %vm9998, %v10005, inf
    %10009 = vmin.xlane.f32.xlu0 %v10008
    %v10010 = vpop.xlane.xlu0 %10009
    %v10011 = vsub.f32 %v9999, %v10007
    %v10012 = vsub.f32 %v10000, %v10010
    %v10013 = vadd.f32 %v10011, 0.01
    %v10014 = vadd.f32 %v10012, 0.01
    %v10015 = vsel %vm10003, %v10013, -inf
    %v10016 = vsel %vm10003, %v10014, -inf
    %10017 = vmax.xlane.f32.xlu0 %v10015
    %v10018 = vpop.xlane.xlu0 %10017
    %v10019 = vsel %vm9998, %v10016, -inf
    %10020 = vmax.xlane.f32.xlu0 %v10019
    %v10021 = vpop.xlane.xlu0 %10020
    %v10022 = vrcp.pop %v10018
    %v10023 = vmul.f32 %v10018, %v10022
    %v10024 = vsub.f32 1.0, %v10023
    %v10025 = vmul.f32 %v10022, %v10024
    %v10026 = vadd.f32 %v10022, %v10025
    %vm10027 = vweird.f32 %v10018
    %vm10028 = vweird.f32 %v10022
    %vm10029 = vmor %vm10027, %vm10028
    %v10030 = vsel %vm10029, %v10022, %v10026
    %v10031 = vand.u32 2147483647, %v10018
    %vm10032 = vcmp.eq.f32.partialorder %v10031, 8.507059e+37
    %v10033 = vand.u32 %v10018, 2147483648
    %v10034 = vor.u32 1.1754944e-38, %v10033
    %v10035 = vsel %vm10032, %v10034, %v10030
    %v10036 = vmul.f32 %v10013, %v10035
    %v10037 = vrcp.pop %v10021
    %v10038 = vmul.f32 %v10021, %v10037
    %v10039 = vsub.f32 1.0, %v10038
    %v10040 = vmul.f32 %v10037, %v10039
    %v10041 = vadd.f32 %v10037, %v10040
    %vm10042 = vweird.f32 %v10021
    %vm10043 = vweird.f32 %v10037
    %vm10044 = vmor %vm10042, %vm10043
    %v10045 = vsel %vm10044, %v10037, %v10041
    %v10046 = vand.u32 2147483647, %v10021
    %vm10047 = vcmp.eq.f32.partialorder %v10046, 8.507059e+37
    %v10048 = vand.u32 %v10021, 2147483648
    %v10049 = vor.u32 1.1754944e-38, %v10048
    %v10050 = vsel %vm10047, %v10049, %v10045
    %v10051 = vmul.f32 %v10014, %v10050
    %10052 = vst [vmem:[%s9] sm:$0xff] %v10036
    %10053 = vst [vmem:[%s9 + $0x8] sm:$0x3f] %v10051
    // Predicated region
    $region66: #{uni_forward.1} parent=1 // pred_check
      _
    $region67: #{uni_forward.1} parent=1 // pred_check_branch
      %10055 = sbr.rel (0) target = $region69
    $region68: #{uni_forward.1} parent=1 // pred_region
      _
    $region69: #{uni_forward.1} parent=1 // pred_fallthru
      _
    // Predicated region
    $region70: #{uni_forward.1} parent=1 // pred_check
      _
    $region71: #{uni_forward.1} parent=1 // pred_check_branch
      %10057 = sbr.rel (0) target = $region73
    $region72: #{uni_forward.1} parent=1 // pred_region
      %10059 = vsyncadd [#allocation4], 0
      %s10061 = sshll.u32 [#allocation14], 4
      %s10062 = int_to_ptr.vmem [resolvable:$true] %s10061
      %s10063 = sshll.u32 %s10, 4
      %s10064 = int_to_ptr.hbm [resolvable:$true] %s10063
      %10066 = dma.vmem_to_hbm [thread:$0]  %s10062, 224, %s10064, [#allocation4]
    $region73: #{uni_forward.1} parent=1 // pred_fallthru
      _
    // Predicated region
    $region74: #{uni_forward.1} parent=1 // pred_check
      _
    $region75: #{uni_forward.1} parent=1 // pred_check_branch
      %10068 = sbr.rel (0) target = $region77
    $region76: #{uni_forward.1} parent=1 // pred_region
      _
    $region77: #{uni_forward.1} parent=1 // pred_fallthru
      _
    // Predicated region
    $region78: #{uni_forward.1} parent=1 // pred_check
      _
    $region79: #{uni_forward.1} parent=1 // pred_check_branch
      %10070 = sbr.rel (0) target = $region81
    $region80: #{uni_forward.1} parent=1 // pred_region
      %10072 = dma.done [#allocation4], 224
    $region81: #{uni_forward.1} parent=1 // pred_fallthru
      _
    %10073 = vsyncpa [#allocation3], 1
    %10074 = vsyncpa [#allocation6], 1
    %10075 = vsyncpa [#allocation9], 1
    %10076 = vsyncpa [#allocation12], 1
    %10077 = vsyncpa [#allocation4], 1

</llo_original>
